<compile_context>
chip_gen: v5e
topology: v5e:2x2
jax: 0.10.0
libtpu: 0.0.40
codegen_flags: <defaults>
</compile_context>

<pallas_src>
import jax
import jax.numpy as jnp
from jax.experimental import pallas as pl
from jax.experimental.pallas import tpu as pltpu

_EPS = 1e-5


def _vmem_limit_bytes():
    """Scoped-VMEM budget: ~half of physical VMEM, capped at 64 MiB.
    -> 64 MiB on v5e/v6e (128 MiB parts), 32 MiB on v7x (64 MiB per TC)."""
    cap = 128 * 1024 * 1024
    try:
        cap = int(getattr(pltpu.get_tpu_info(), "vmem_capacity_bytes", cap))
    except Exception:
        pass
    return max(32 * 1024 * 1024, min(64 * 1024 * 1024, cap // 2))


# --------------------------------------------------------------------------
# Kernels
# --------------------------------------------------------------------------
def _conv1x1_stats_kernel(x_ref, w_ref, o_ref, sum_ref, ssq_ref):
    """o = x @ w (bf16 operands, fp32 MXU accumulation), stored bf16.
    Emits per-channel sum / sum-of-squares of the fp32 accumulator so BN
    statistics never require a second HBM pass over the activation."""
    acc = jnp.dot(x_ref[...].astype(jnp.bfloat16), w_ref[...],
                  preferred_element_type=jnp.float32)
    o_ref[...] = acc.astype(o_ref.dtype)
    sum_ref[...] = jnp.broadcast_to(jnp.sum(acc, axis=0, keepdims=True),
                                    sum_ref.shape)
    ssq_ref[...] = jnp.broadcast_to(jnp.sum(acc * acc, axis=0, keepdims=True),
                                    ssq_ref.shape)


def _bn_relu_conv1x1_stats_kernel(x_ref, s_ref, t_ref, w_ref,
                                  o_ref, sum_ref, ssq_ref):
    """o = relu(x*scale + shift) @ w: folded BN of the previous stage applied
    (fp32 math) to the bf16-stored input, matmul on the MXU in bf16 with fp32
    accumulation; emits BN stats for the NEXT BatchNorm."""
    z = jnp.maximum(x_ref[...].astype(jnp.float32) * s_ref[...] + t_ref[...],
                    0.0)
    acc = jnp.dot(z.astype(jnp.bfloat16), w_ref[...],
                  preferred_element_type=jnp.float32)
    o_ref[...] = acc.astype(o_ref.dtype)
    sum_ref[...] = jnp.broadcast_to(jnp.sum(acc, axis=0, keepdims=True),
                                    sum_ref.shape)
    ssq_ref[...] = jnp.broadcast_to(jnp.sum(acc * acc, axis=0, keepdims=True),
                                    ssq_ref.shape)


def _bn_relu_conv3x3_stats_kernel(x_ref, s_ref, t_ref, w_ref,
                                  o_ref, sum_ref, ssq_ref, zp_ref):
    """One image per grid step: z = relu(x*scale + shift) (fp32 math, bf16
    result) is written ONCE into the interior of a zero-bordered
    (H+2, W+2, P) bf16 scratch; the 3x3/pad=1 conv is 9 accumulated
    (H*W, P) @ (P, P) matmuls over shifted windows of that scratch — no full
    scratch zero-fill, no 9 tap stores, no 9P-wide im2col buffer."""
    _, H, W, P = x_ref.shape
    z = jnp.maximum(x_ref[0].astype(jnp.float32) * s_ref[...] + t_ref[...],
                    0.0).astype(jnp.bfloat16)

    # Zero only the 1-pixel border strips; write the activation interior once.
    zp_ref[0:1, :, :] = jnp.zeros((1, W + 2, P), jnp.bfloat16)
    zp_ref[H + 1:H + 2, :, :] = jnp.zeros((1, W + 2, P), jnp.bfloat16)
    zp_ref[:, 0:1, :] = jnp.zeros((H + 2, 1, P), jnp.bfloat16)
    zp_ref[:, W + 1:W + 2, :] = jnp.zeros((H + 2, 1, P), jnp.bfloat16)
    zp_ref[1:H + 1, 1:W + 1, :] = z

    acc = jnp.zeros((H * W, P), jnp.float32)
    for kh in range(3):
        for kw in range(3):
            win = zp_ref[kh:kh + H, kw:kw + W, :].reshape(H * W, P)
            acc = acc + jnp.dot(win, w_ref[kh * 3 + kw],
                                preferred_element_type=jnp.float32)

    o_ref[...] = acc.reshape(1, H, W, P).astype(o_ref.dtype)
    sum_ref[...] = jnp.broadcast_to(jnp.sum(acc, axis=0, keepdims=True),
                                    sum_ref.shape)
    ssq_ref[...] = jnp.broadcast_to(jnp.sum(acc * acc, axis=0, keepdims=True),
                                    ssq_ref.shape)


def _bn_add_relu_kernel(y_ref, r_ref, s_ref, t_ref, o_ref):
    """o = relu(y*scale + shift + residual) — all fp32, pure VPU."""
    y = y_ref[...].astype(jnp.float32)
    o_ref[...] = jnp.maximum(y * s_ref[...] + t_ref[...] + r_ref[...], 0.0)


# --------------------------------------------------------------------------
# Host-side helpers
# --------------------------------------------------------------------------
def _pick_row_tile(rows, target):
    """Largest multiple of 8 that divides `rows` and is <= target."""
    tile = min(int(target), rows)
    tile -= tile % 8
    while tile >= 8 and rows % tile:
        tile -= 8
    return tile if tile >= 8 else rows


def _row_tile(rows, bytes_per_row, vmem_limit, target):
    """Row tile capped so the double-buffered in/out blocks fit ~60% of the
    scoped VMEM budget."""
    cap = max(8, int((vmem_limit * 3 // 5) // max(bytes_per_row, 1)))
    return _pick_row_tile(rows, min(target, cap))


def _fold_bn(sum_rows, ssq_rows, count, gamma, beta, eps=_EPS):
    """Fold training-mode BatchNorm (biased variance over N*H*W) into a
    per-channel fp32 scale/shift, from in-kernel fp32 partial sums.  Each grid
    step broadcast its (1, C) sums across an (8, C) block, so take every 8th
    row before reducing (a tiny XLA op)."""
    total = jnp.sum(sum_rows[::8], axis=0)
    total2 = jnp.sum(ssq_rows[::8], axis=0)
    mean = total / count
    var = jnp.maximum(total2 / count - mean * mean, 0.0)
    scale = gamma * jax.lax.rsqrt(var + eps)
    shift = beta - mean * scale
    return (scale.reshape(1, -1).astype(jnp.float32),
            shift.reshape(1, -1).astype(jnp.float32))


def bottleneck_forward(x_nchw, params, *, conv_row_tile=None, ew_row_tile=None,
                       eps=_EPS):
    """x_nchw: (N, Cin, H, W) float32 (PyTorch layout). Returns (N, 4*planes, H, W)."""
    w1, w2, w3, g1, b1, g2, b2, g3, b3 = params
    N, Cin, H, W = x_nchw.shape
    P = w1.shape[1]
    C4 = w3.shape[1]
    assert Cin == C4, ("identity residual path requires inplanes == planes*4; "
                       "stride>1 / downsample not implemented")
    # TODO(synk): stride>1 / user-provided downsample module not implemented.

    rows = N * H * W
    vmem_limit = _vmem_limit_bytes()

    # Per-kernel row tiles, VMEM-budgeted (bytes/row of double-buffered blocks).
    tile1 = conv_row_tile if conv_row_tile else _row_tile(
        rows, 2 * (4 * Cin + 2 * P), vmem_limit, 1024)
    tile3 = conv_row_tile if conv_row_tile else _row_tile(
        rows, 2 * (2 * P + 2 * C4), vmem_limit, 1024)
    tile_ew = ew_row_tile if ew_row_tile else _row_tile(
        rows, 2 * (2 * C4 + 4 * C4 + 4 * C4), vmem_limit, 2048)
    for t in (tile1, tile3, tile_ew):
        assert rows % t == 0 and t % 8 == 0

    # NCHW -> NHWC once; the residual is re-read from this fp32 copy.
    # TODO(synk): fold the NCHW<->NHWC layout changes into the first/last
    # kernels (in-kernel XLU transpose) to save two full HBM passes.
    x_nhwc = jnp.transpose(x_nchw, (0, 2, 3, 1)).astype(jnp.float32)
    xr = x_nhwc.reshape(rows, Cin)

    # Weights cast to bf16 once (MXU-native on v5e/v6e/v7x).
    w1b = w1.astype(jnp.bfloat16)          # (Cin, P)
    w2b = w2.astype(jnp.bfloat16)          # (9, P, P): tap = kh*3 + kw
    w3b = w3.astype(jnp.bfloat16)          # (P, C4)

    def cparams():
        return pltpu.CompilerParams(dimension_semantics=("parallel",),
                                    vmem_limit_bytes=vmem_limit)

    # ---- conv1 (1x1) + fused BN1 statistics ---------------------------------
    g1r = rows // tile1
    y1, s1sum, s1ssq = pl.pallas_call(
        _conv1x1_stats_kernel,
        grid=(g1r,),
        in_specs=[pl.BlockSpec((tile1, Cin), lambda i: (i, 0)),
                  pl.BlockSpec((Cin, P), lambda i: (0, 0))],
        out_specs=(pl.BlockSpec((tile1, P), lambda i: (i, 0)),
                   pl.BlockSpec((8, P), lambda i: (i, 0)),
                   pl.BlockSpec((8, P), lambda i: (i, 0))),
        out_shape=(jax.ShapeDtypeStruct((rows, P), jnp.bfloat16),
                   jax.ShapeDtypeStruct((8 * g1r, P), jnp.float32),
                   jax.ShapeDtypeStruct((8 * g1r, P), jnp.float32)),
        compiler_params=cparams(),
        cost_estimate=pl.CostEstimate(
            flops=2 * rows * Cin * P, transcendentals=0,
            bytes_accessed=4 * rows * Cin + 2 * rows * P + 2 * Cin * P),
    )(xr, w1b)
    s1, t1 = _fold_bn(s1sum, s1ssq, rows, g1, b1, eps)

    # ---- conv2 (3x3, pad=1) with fused BN1+ReLU + BN2 statistics ------------
    # TODO(synk): tile over H-strips with a 2-row halo (instead of one whole
    # image per step) to re-budget for v7x's 64 MiB VMEM and give an even,
    # >=2-step parallel grid when N is small/odd.
    y2, s2sum, s2ssq = pl.pallas_call(
        _bn_relu_conv3x3_stats_kernel,
        grid=(N,),
        in_specs=[pl.BlockSpec((1, H, W, P), lambda n: (n, 0, 0, 0)),
                  pl.BlockSpec((1, P), lambda n: (0, 0)),
                  pl.BlockSpec((1, P), lambda n: (0, 0)),
                  pl.BlockSpec((9, P, P), lambda n: (0, 0, 0))],
        out_specs=(pl.BlockSpec((1, H, W, P), lambda n: (n, 0, 0, 0)),
                   pl.BlockSpec((8, P), lambda n: (n, 0)),
                   pl.BlockSpec((8, P), lambda n: (n, 0))),
        out_shape=(jax.ShapeDtypeStruct((N, H, W, P), jnp.bfloat16),
                   jax.ShapeDtypeStruct((8 * N, P), jnp.float32),
                   jax.ShapeDtypeStruct((8 * N, P), jnp.float32)),
        scratch_shapes=[pltpu.VMEM((H + 2, W + 2, P), jnp.bfloat16)],
        compiler_params=cparams(),
        cost_estimate=pl.CostEstimate(
            flops=2 * rows * 9 * P * P, transcendentals=0,
            bytes_accessed=4 * rows * P + 2 * 9 * P * P),
    )(y1.reshape(N, H, W, P), s1, t1, w2b)
    s2, t2 = _fold_bn(s2sum, s2ssq, rows, g2, b2, eps)

    # ---- conv3 (1x1) with fused BN2+ReLU + BN3 statistics --------------------
    g3r = rows // tile3
    y3, s3sum, s3ssq = pl.pallas_call(
        _bn_relu_conv1x1_stats_kernel,
        grid=(g3r,),
        in_specs=[pl.BlockSpec((tile3, P), lambda i: (i, 0)),
                  pl.BlockSpec((1, P), lambda i: (0, 0)),
                  pl.BlockSpec((1, P), lambda i: (0, 0)),
                  pl.BlockSpec((P, C4), lambda i: (0, 0))],
        out_specs=(pl.BlockSpec((tile3, C4), lambda i: (i, 0)),
                   pl.BlockSpec((8, C4), lambda i: (i, 0)),
                   pl.BlockSpec((8, C4), lambda i: (i, 0))),
        out_shape=(jax.ShapeDtypeStruct((rows, C4), jnp.bfloat16),
                   jax.ShapeDtypeStruct((8 * g3r, C4), jnp.float32),
                   jax.ShapeDtypeStruct((8 * g3r, C4), jnp.float32)),
        compiler_params=cparams(),
        cost_estimate=pl.CostEstimate(
            flops=2 * rows * P * C4, transcendentals=0,
            bytes_accessed=2 * rows * P + 2 * rows * C4 + 2 * P * C4),
    )(y2.reshape(rows, P), s2, t2, w3b)
    s3, t3 = _fold_bn(s3sum, s3ssq, rows, g3, b3, eps)

    # ---- BN3 + identity residual + final ReLU (larger elementwise tile) -----
    gew = rows // tile_ew
    out = pl.pallas_call(
        _bn_add_relu_kernel,
        grid=(gew,),
        in_specs=[pl.BlockSpec((tile_ew, C4), lambda i: (i, 0)),
                  pl.BlockSpec((tile_ew, C4), lambda i: (i, 0)),
                  pl.BlockSpec((1, C4), lambda i: (0, 0)),
                  pl.BlockSpec((1, C4), lambda i: (0, 0))],
        out_specs=pl.BlockSpec((tile_ew, C4), lambda i: (i, 0)),
        out_shape=jax.ShapeDtypeStruct((rows, C4), jnp.float32),
        compiler_params=cparams(),
    )(y3, xr, s3, t3)

    # NHWC -> NCHW (see TODO above about folding into the finalize kernel).
    return jnp.transpose(out.reshape(N, H, W, C4), (0, 3, 1, 2))


# --------------------------------------------------------------------------
# Parameters, pure-JAX reference, and self-test
# --------------------------------------------------------------------------
def init_params(key, inplanes, planes):
    """conv1: (inplanes, planes); conv2: (9, planes, planes) [tap=kh*3+kw, cin, cout];
    conv3: (planes, 4*planes); BatchNorm2d: gamma=1, beta=0, shape (C,)."""
    c4 = planes * 4
    k1, k2, k3 = jax.random.split(key, 3)
    w1 = jax.random.normal(k1, (inplanes, planes), jnp.float32) * 0.1
    w2 = jax.random.normal(k2, (9, planes, planes), jnp.float32) * 0.1
    w3 = jax.random.normal(k3, (planes, c4), jnp.float32) * 0.1
    g1 = jnp.ones((planes,), jnp.float32)
    b1 = jnp.zeros((planes,), jnp.float32)
    g2 = jnp.ones((planes,), jnp.float32)
    b2 = jnp.zeros((planes,), jnp.float32)
    g3 = jnp.ones((c4,), jnp.float32)
    b3 = jnp.zeros((c4,), jnp.float32)
    return (w1, w2, w3, g1, b1, g2, b2, g3, b3)


def _reference_forward(x_nchw, params, eps=_EPS):
    """Pure-JAX fp32 reference matching the PyTorch Bottleneck (train-mode BN)."""
    w1, w2, w3, g1, b1, g2, b2, g3, b3 = params
    hi = jax.lax.Precision.HIGHEST
    x = jnp.transpose(x_nchw, (0, 2, 3, 1)).astype(jnp.float32)
    N, H, W, _ = x.shape
    P = w1.shape[1]

    def bn(y, g, b):
        m = jnp.mean(y, axis=(0, 1, 2))
        v = jnp.var(y, axis=(0, 1, 2))
        return (y - m) * jax.lax.rsqrt(v + eps) * g + b

    y = jnp.maximum(bn(jnp.einsum('nhwc,cp->nhwp', x, w1, precision=hi), g1, b1), 0.0)
    yp = jnp.pad(y, ((0, 0), (1, 1), (1, 1), (0, 0)))
    acc = jnp.zeros((N, H, W, P), jnp.float32)
    for kh in range(3):
        for kw in range(3):
            acc = acc + jnp.einsum('nhwc,cp->nhwp',
                                   yp[:, kh:kh + H, kw:kw + W, :],
                                   w2[kh * 3 + kw], precision=hi)
    y = jnp.maximum(bn(acc, g2, b2), 0.0)
    y = bn(jnp.einsum('nhwc,cp->nhwp', y, w3, precision=hi), g3, b3)
    y = jnp.maximum(y + x, 0.0)
    return jnp.transpose(y, (0, 3, 1, 2))


if __name__ == "__main__":
    key = jax.random.PRNGKey(0)
    kp, kx = jax.random.split(key)

    # Small shapes: batch=2, inplanes=16, planes=4 (planes*4 == inplanes so the
    # identity residual is valid), spatial 16x16.  Explicit small row tiles so
    # the grids have several steps (exercises the pipelined tiling).
    N, inplanes, planes, H, W = 2, 16, 4, 16, 16

    params = init_params(kp, inplanes, planes)
    x = jax.random.normal(kx, (N, inplanes, H, W), jnp.float32)

    fwd = jax.jit(lambda xx, pp: bottleneck_forward(
        xx, pp, conv_row_tile=128, ew_row_tile=256))
    y = fwd(x, params)
    jax.block_until_ready(y)

    assert y.shape == (N, planes * 4, H, W)
    assert bool(jnp.all(jnp.isfinite(y)))
    assert bool(jnp.all(y >= 0.0))  # final ReLU

    # Compare against a pure-JAX fp32 reference (kernel matmuls + stored
    # intermediates are bf16, so use a loose absolute tolerance on the
    # O(1)-scale outputs).
    y_ref = _reference_forward(x, params)
    max_err = float(jnp.max(jnp.abs(y - y_ref)))
    assert max_err < 0.25, f"max abs err vs reference: {max_err}"

    print("KERNEL_OK")
</pallas_src>

<mosaic_0001>
module attributes {stable_mosaic.version = 11 : i64} {
  func.func @_conv1x1_stats_kernel(%arg0: i32, %arg1: memref<128x16xf32, #tpu.memory_space<vmem>>, %arg2: memref<16x4xbf16, #tpu.memory_space<vmem>>, %arg3: memref<128x4xbf16, #tpu.memory_space<vmem>>, %arg4: memref<8x4xf32, #tpu.memory_space<vmem>>, %arg5: memref<8x4xf32, #tpu.memory_space<vmem>>) attributes {dimension_semantics = [#tpu.dimension_semantics<parallel>], iteration_bounds = array<i64: 4>, scalar_prefetch = 0 : i64, scratch_operands = 0 : i64, tpu.core_type = #tpu.core_type<tc>, window_params = [{transform_indices = @transform_0, window_bounds = array<i64: 128, 16>}, {pipeline_mode = #tpu.pipeline_mode<synchronous>, transform_indices = @transform_1, window_bounds = array<i64: 16, 4>}, {transform_indices = @transform_2, window_bounds = array<i64: 128, 4>}, {transform_indices = @transform_3, window_bounds = array<i64: 8, 4>}, {transform_indices = @transform_4, window_bounds = array<i64: 8, 4>}]} {
    %c0 = arith.constant 0 : index
    %c0_0 = arith.constant 0 : index
    %0 = vector.load %arg1[%c0, %c0_0] : memref<128x16xf32, #tpu.memory_space<vmem>>, vector<128x16xf32>
    %1 = arith.truncf %0 : vector<128x16xf32> to vector<128x16xbf16>
    %c0_1 = arith.constant 0 : index
    %c0_2 = arith.constant 0 : index
    %2 = vector.load %arg2[%c0_1, %c0_2] : memref<16x4xbf16, #tpu.memory_space<vmem>>, vector<16x4xbf16>
    %cst = arith.constant dense<0.000000e+00> : vector<128x4xf32>
    %3 = tpu.matmul %1, %2, %cst {dimension_numbers = #tpu.dot_dimension_numbers<[1], [0], [0], [1], [0, 0, 1, 1], [], []>} : vector<128x16xbf16>, vector<16x4xbf16>, vector<128x4xf32> -> vector<128x4xf32>
    %4 = arith.truncf %3 : vector<128x4xf32> to vector<128x4xbf16>
    %c0_3 = arith.constant 0 : index
    %c0_4 = arith.constant 0 : index
    %5 = vector.load %arg3[%c0_3, %c0_4] : memref<128x4xbf16, #tpu.memory_space<vmem>>, vector<128x4xbf16>
    tpu.vector_store %arg3[%c0_3, %c0_4], %4 {strides = array<i32>} : memref<128x4xbf16, #tpu.memory_space<vmem>>, vector<128x4xbf16>,
    %cst_5 = arith.constant dense<0.000000e+00> : vector<4xf32>
    %6 = vector.multi_reduction <add>, %3, %cst_5 [0] : vector<128x4xf32> to vector<4xf32>
    %7 = vector.shape_cast %6 : vector<4xf32> to vector<1x4xf32>
    %8 = vector.shape_cast %7 : vector<1x4xf32> to vector<1x4xf32>
    %9 = vector.broadcast %8 : vector<1x4xf32> to vector<8x4xf32>
    %c0_6 = arith.constant 0 : index
    %c0_7 = arith.constant 0 : index
    %10 = vector.load %arg4[%c0_6, %c0_7] : memref<8x4xf32, #tpu.memory_space<vmem>>, vector<8x4xf32>
    tpu.vector_store %arg4[%c0_6, %c0_7], %9 {strides = array<i32>} : memref<8x4xf32, #tpu.memory_space<vmem>>, vector<8x4xf32>,
    %11 = arith.mulf %3, %3 : vector<128x4xf32>
    %cst_8 = arith.constant dense<0.000000e+00> : vector<4xf32>
    %12 = vector.multi_reduction <add>, %11, %cst_8 [0] : vector<128x4xf32> to vector<4xf32>
    %13 = vector.shape_cast %12 : vector<4xf32> to vector<1x4xf32>
    %14 = vector.shape_cast %13 : vector<1x4xf32> to vector<1x4xf32>
    %15 = vector.broadcast %14 : vector<1x4xf32> to vector<8x4xf32>
    %c0_9 = arith.constant 0 : index
    %c0_10 = arith.constant 0 : index
    %16 = vector.load %arg5[%c0_9, %c0_10] : memref<8x4xf32, #tpu.memory_space<vmem>>, vector<8x4xf32>
    tpu.vector_store %arg5[%c0_9, %c0_10], %15 {strides = array<i32>} : memref<8x4xf32, #tpu.memory_space<vmem>>, vector<8x4xf32>,
    return
  }
  func.func @transform_0(%arg0: i32) -> (i32, i32) {
    %c0_i32 = arith.constant 0 : i32
    %c0_i32_0 = arith.constant 0 : i32
    return %arg0, %c0_i32 : i32, i32
  }
  func.func @transform_1(%arg0: i32) -> (i32, i32) {
    %c0_i32 = arith.constant 0 : i32
    %c0_i32_0 = arith.constant 0 : i32
    %c0_i32_1 = arith.constant 0 : i32
    return %c0_i32, %c0_i32_0 : i32, i32
  }
  func.func @transform_2(%arg0: i32) -> (i32, i32) {
    %c0_i32 = arith.constant 0 : i32
    %c0_i32_0 = arith.constant 0 : i32
    return %arg0, %c0_i32 : i32, i32
  }
  func.func @transform_3(%arg0: i32) -> (i32, i32) {
    %c0_i32 = arith.constant 0 : i32
    %c0_i32_0 = arith.constant 0 : i32
    return %arg0, %c0_i32 : i32, i32
  }
  func.func @transform_4(%arg0: i32) -> (i32, i32) {
    %c0_i32 = arith.constant 0 : i32
    %c0_i32_0 = arith.constant 0 : i32
    return %arg0, %c0_i32 : i32, i32
  }
}

module attributes {stable_mosaic.version = 11 : i64} {
  func.func @_bn_relu_conv3x3_stats_kernel(%arg0: i32, %arg1: memref<1x16x16x4xbf16, #tpu.memory_space<vmem>>, %arg2: memref<1x4xf32, #tpu.memory_space<vmem>>, %arg3: memref<1x4xf32, #tpu.memory_space<vmem>>, %arg4: memref<9x4x4xbf16, #tpu.memory_space<vmem>>, %arg5: memref<1x16x16x4xbf16, #tpu.memory_space<vmem>>, %arg6: memref<8x4xf32, #tpu.memory_space<vmem>>, %arg7: memref<8x4xf32, #tpu.memory_space<vmem>>, %arg8: memref<18x18x4xbf16, #tpu.memory_space<vmem>>) attributes {dimension_semantics = [#tpu.dimension_semantics<parallel>], iteration_bounds = array<i64: 2>, scalar_prefetch = 0 : i64, scratch_operands = 1 : i64, tpu.core_type = #tpu.core_type<tc>, window_params = [{transform_indices = @transform_0, window_bounds = array<i64: 1, 16, 16, 4>}, {pipeline_mode = #tpu.pipeline_mode<synchronous>, transform_indices = @transform_1, window_bounds = array<i64: 1, 4>}, {pipeline_mode = #tpu.pipeline_mode<synchronous>, transform_indices = @transform_2, window_bounds = array<i64: 1, 4>}, {pipeline_mode = #tpu.pipeline_mode<synchronous>, transform_indices = @transform_3, window_bounds = array<i64: 9, 4, 4>}, {transform_indices = @transform_4, window_bounds = array<i64: 1, 16, 16, 4>}, {transform_indices = @transform_5, window_bounds = array<i64: 8, 4>}, {transform_indices = @transform_6, window_bounds = array<i64: 8, 4>}]} {
    %c0 = arith.constant 0 : index
    %c0_0 = arith.constant 0 : index
    %c0_1 = arith.constant 0 : index
    %c0_2 = arith.constant 0 : index
    %0 = vector.load %arg1[%c0, %c0_0, %c0_1, %c0_2] : memref<1x16x16x4xbf16, #tpu.memory_space<vmem>>, vector<1x16x16x4xbf16>
    %1 = vector.shape_cast %0 : vector<1x16x16x4xbf16> to vector<16x16x4xbf16>
    %2 = arith.extf %1 : vector<16x16x4xbf16> to vector<16x16x4xf32>
    %c0_3 = arith.constant 0 : index
    %c0_4 = arith.constant 0 : index
    %3 = vector.load %arg2[%c0_3, %c0_4] : memref<1x4xf32, #tpu.memory_space<vmem>>, vector<1x4xf32>
    %4 = vector.shape_cast %3 : vector<1x4xf32> to vector<1x1x4xf32>
    %5 = vector.broadcast %4 : vector<1x1x4xf32> to vector<16x16x4xf32>
    %6 = arith.mulf %2, %5 : vector<16x16x4xf32>
    %c0_5 = arith.constant 0 : index
    %c0_6 = arith.constant 0 : index
    %7 = vector.load %arg3[%c0_5, %c0_6] : memref<1x4xf32, #tpu.memory_space<vmem>>, vector<1x4xf32>
    %8 = vector.shape_cast %7 : vector<1x4xf32> to vector<1x1x4xf32>
    %9 = vector.broadcast %8 : vector<1x1x4xf32> to vector<16x16x4xf32>
    %10 = arith.addf %6, %9 : vector<16x16x4xf32>
    %cst = arith.constant 0.000000e+00 : f32
    %11 = vector.broadcast %cst : f32 to vector<16x16x4xf32>
    %12 = arith.maximumf %10, %11 : vector<16x16x4xf32>
    %13 = arith.truncf %12 : vector<16x16x4xf32> to vector<16x16x4xbf16>
    %cst_7 = arith.constant 0.000000e+00 : bf16
    %14 = vector.broadcast %cst_7 : bf16 to vector<1x18x4xbf16>
    %c0_8 = arith.constant 0 : index
    %c0_9 = arith.constant 0 : index
    %c0_10 = arith.constant 0 : index
    %15 = vector.load %arg8[%c0_8, %c0_9, %c0_10] : memref<18x18x4xbf16, #tpu.memory_space<vmem>>, vector<1x18x4xbf16>
    tpu.vector_store %arg8[%c0_8, %c0_9, %c0_10], %14 {strides = array<i32>} : memref<18x18x4xbf16, #tpu.memory_space<vmem>>, vector<1x18x4xbf16>,
    %cst_11 = arith.constant 0.000000e+00 : bf16
    %16 = vector.broadcast %cst_11 : bf16 to vector<1x18x4xbf16>
    %c17 = arith.constant 17 : index
    %c0_12 = arith.constant 0 : index
    %c0_13 = arith.constant 0 : index
    %17 = vector.load %arg8[%c17, %c0_12, %c0_13] : memref<18x18x4xbf16, #tpu.memory_space<vmem>>, vector<1x18x4xbf16>
    tpu.vector_store %arg8[%c17, %c0_12, %c0_13], %16 {strides = array<i32>} : memref<18x18x4xbf16, #tpu.memory_space<vmem>>, vector<1x18x4xbf16>,
    %cst_14 = arith.constant 0.000000e+00 : bf16
    %18 = vector.broadcast %cst_14 : bf16 to vector<18x1x4xbf16>
    %c0_15 = arith.constant 0 : index
    %c0_16 = arith.constant 0 : index
    %c0_17 = arith.constant 0 : index
    %19 = vector.load %arg8[%c0_15, %c0_16, %c0_17] : memref<18x18x4xbf16, #tpu.memory_space<vmem>>, vector<18x1x4xbf16>
    tpu.vector_store %arg8[%c0_15, %c0_16, %c0_17], %18 {strides = array<i32>} : memref<18x18x4xbf16, #tpu.memory_space<vmem>>, vector<18x1x4xbf16>,
    %cst_18 = arith.constant 0.000000e+00 : bf16
    %20 = vector.broadcast %cst_18 : bf16 to vector<18x1x4xbf16>
    %c0_19 = arith.constant 0 : index
    %c17_20 = arith.constant 17 : index
    %c0_21 = arith.constant 0 : index
    %21 = vector.load %arg8[%c0_19, %c17_20, %c0_21] : memref<18x18x4xbf16, #tpu.memory_space<vmem>>, vector<18x1x4xbf16>
    tpu.vector_store %arg8[%c0_19, %c17_20, %c0_21], %20 {strides = array<i32>} : memref<18x18x4xbf16, #tpu.memory_space<vmem>>, vector<18x1x4xbf16>,
    %c1 = arith.constant 1 : index
    %c1_22 = arith.constant 1 : index
    %c0_23 = arith.constant 0 : index
    %22 = vector.load %arg8[%c1, %c1_22, %c0_23] : memref<18x18x4xbf16, #tpu.memory_space<vmem>>, vector<16x16x4xbf16>
    tpu.vector_store %arg8[%c1, %c1_22, %c0_23], %13 {strides = array<i32>} : memref<18x18x4xbf16, #tpu.memory_space<vmem>>, vector<16x16x4xbf16>,
    %cst_24 = arith.constant 0.000000e+00 : f32
    %23 = vector.broadcast %cst_24 : f32 to vector<256x4xf32>
    %c0_25 = arith.constant 0 : index
    %c0_26 = arith.constant 0 : index
    %c0_27 = arith.constant 0 : index
    %24 = vector.load %arg8[%c0_25, %c0_26, %c0_27] : memref<18x18x4xbf16, #tpu.memory_space<vmem>>, vector<16x16x4xbf16>
    %25 = vector.shape_cast %24 : vector<16x16x4xbf16> to vector<256x4xbf16>
    %c0_28 = arith.constant 0 : index
    %c0_29 = arith.constant 0 : index
    %c0_30 = arith.constant 0 : index
    %26 = vector.load %arg4[%c0_28, %c0_29, %c0_30] : memref<9x4x4xbf16, #tpu.memory_space<vmem>>, vector<1x4x4xbf16>
    %27 = vector.shape_cast %26 : vector<1x4x4xbf16> to vector<4x4xbf16>
    %cst_31 = arith.constant dense<0.000000e+00> : vector<256x4xf32>
    %28 = tpu.matmul %25, %27, %cst_31 {dimension_numbers = #tpu.dot_dimension_numbers<[1], [0], [0], [1], [0, 0, 1, 1], [], []>} : vector<256x4xbf16>, vector<4x4xbf16>, vector<256x4xf32> -> vector<256x4xf32>
    %29 = arith.addf %23, %28 : vector<256x4xf32>
    %c0_32 = arith.constant 0 : index
    %c1_33 = arith.constant 1 : index
    %c0_34 = arith.constant 0 : index
    %30 = vector.load %arg8[%c0_32, %c1_33, %c0_34] : memref<18x18x4xbf16, #tpu.memory_space<vmem>>, vector<16x16x4xbf16>
    %31 = vector.shape_cast %30 : vector<16x16x4xbf16> to vector<256x4xbf16>
    %c1_35 = arith.constant 1 : index
    %c0_36 = arith.constant 0 : index
    %c0_37 = arith.constant 0 : index
    %32 = vector.load %arg4[%c1_35, %c0_36, %c0_37] : memref<9x4x4xbf16, #tpu.memory_space<vmem>>, vector<1x4x4xbf16>
    %33 = vector.shape_cast %32 : vector<1x4x4xbf16> to vector<4x4xbf16>
    %cst_38 = arith.constant dense<0.000000e+00> : vector<256x4xf32>
    %34 = tpu.matmul %31, %33, %cst_38 {dimension_numbers = #tpu.dot_dimension_numbers<[1], [0], [0], [1], [0, 0, 1, 1], [], []>} : vector<256x4xbf16>, vector<4x4xbf16>, vector<256x4xf32> -> vector<256x4xf32>
    %35 = arith.addf %29, %34 : vector<256x4xf32>
    %c0_39 = arith.constant 0 : index
    %c2 = arith.constant 2 : index
    %c0_40 = arith.constant 0 : index
    %36 = vector.load %arg8[%c0_39, %c2, %c0_40] : memref<18x18x4xbf16, #tpu.memory_space<vmem>>, vector<16x16x4xbf16>
    %37 = vector.shape_cast %36 : vector<16x16x4xbf16> to vector<256x4xbf16>
    %c2_41 = arith.constant 2 : index
    %c0_42 = arith.constant 0 : index
    %c0_43 = arith.constant 0 : index
    %38 = vector.load %arg4[%c2_41, %c0_42, %c0_43] : memref<9x4x4xbf16, #tpu.memory_space<vmem>>, vector<1x4x4xbf16>
    %39 = vector.shape_cast %38 : vector<1x4x4xbf16> to vector<4x4xbf16>
    %cst_44 = arith.constant dense<0.000000e+00> : vector<256x4xf32>
    %40 = tpu.matmul %37, %39, %cst_44 {dimension_numbers = #tpu.dot_dimension_numbers<[1], [0], [0], [1], [0, 0, 1, 1], [], []>} : vector<256x4xbf16>, vector<4x4xbf16>, vector<256x4xf32> -> vector<256x4xf32>
    %41 = arith.addf %35, %40 : vector<256x4xf32>
    %c1_45 = arith.constant 1 : index
    %c0_46 = arith.constant 0 : index
    %c0_47 = arith.constant 0 : index
    %42 = vector.load %arg8[%c1_45, %c0_46, %c0_47] : memref<18x18x4xbf16, #tpu.memory_space<vmem>>, vector<16x16x4xbf16>
    %43 = vector.shape_cast %42 : vector<16x16x4xbf16> to vector<256x4xbf16>
    %c3 = arith.constant 3 : index
    %c0_48 = arith.constant 0 : index
    %c0_49 = arith.constant 0 : index
    %44 = vector.load %arg4[%c3, %c0_48, %c0_49] : memref<9x4x4xbf16, #tpu.memory_space<vmem>>, vector<1x4x4xbf16>
    %45 = vector.shape_cast %44 : vector<1x4x4xbf16> to vector<4x4xbf16>
    %cst_50 = arith.constant dense<0.000000e+00> : vector<256x4xf32>
    %46 = tpu.matmul %43, %45, %cst_50 {dimension_numbers = #tpu.dot_dimension_numbers<[1], [0], [0], [1], [0, 0, 1, 1], [], []>} : vector<256x4xbf16>, vector<4x4xbf16>, vector<256x4xf32> -> vector<256x4xf32>
    %47 = arith.addf %41, %46 : vector<256x4xf32>
    %c1_51 = arith.constant 1 : index
    %c1_52 = arith.constant 1 : index
    %c0_53 = arith.constant 0 : index
    %48 = vector.load %arg8[%c1_51, %c1_52, %c0_53] : memref<18x18x4xbf16, #tpu.memory_space<vmem>>, vector<16x16x4xbf16>
    %49 = vector.shape_cast %48 : vector<16x16x4xbf16> to vector<256x4xbf16>
    %c4 = arith.constant 4 : index
    %c0_54 = arith.constant 0 : index
    %c0_55 = arith.constant 0 : index
    %50 = vector.load %arg4[%c4, %c0_54, %c0_55] : memref<9x4x4xbf16, #tpu.memory_space<vmem>>, vector<1x4x4xbf16>
    %51 = vector.shape_cast %50 : vector<1x4x4xbf16> to vector<4x4xbf16>
    %cst_56 = arith.constant dense<0.000000e+00> : vector<256x4xf32>
    %52 = tpu.matmul %49, %51, %cst_56 {dimension_numbers = #tpu.dot_dimension_numbers<[1], [0], [0], [1], [0, 0, 1, 1], [], []>} : vector<256x4xbf16>, vector<4x4xbf16>, vector<256x4xf32> -> vector<256x4xf32>
    %53 = arith.addf %47, %52 : vector<256x4xf32>
    %c1_57 = arith.constant 1 : index
    %c2_58 = arith.constant 2 : index
    %c0_59 = arith.constant 0 : index
    %54 = vector.load %arg8[%c1_57, %c2_58, %c0_59] : memref<18x18x4xbf16, #tpu.memory_space<vmem>>, vector<16x16x4xbf16>
    %55 = vector.shape_cast %54 : vector<16x16x4xbf16> to vector<256x4xbf16>
    %c5 = arith.constant 5 : index
    %c0_60 = arith.constant 0 : index
    %c0_61 = arith.constant 0 : index
    %56 = vector.load %arg4[%c5, %c0_60, %c0_61] : memref<9x4x4xbf16, #tpu.memory_space<vmem>>, vector<1x4x4xbf16>
    %57 = vector.shape_cast %56 : vector<1x4x4xbf16> to vector<4x4xbf16>
    %cst_62 = arith.constant dense<0.000000e+00> : vector<256x4xf32>
    %58 = tpu.matmul %55, %57, %cst_62 {dimension_numbers = #tpu.dot_dimension_numbers<[1], [0], [0], [1], [0, 0, 1, 1], [], []>} : vector<256x4xbf16>, vector<4x4xbf16>, vector<256x4xf32> -> vector<256x4xf32>
    %59 = arith.addf %53, %58 : vector<256x4xf32>
    %c2_63 = arith.constant 2 : index
    %c0_64 = arith.constant 0 : index
    %c0_65 = arith.constant 0 : index
    %60 = vector.load %arg8[%c2_63, %c0_64, %c0_65] : memref<18x18x4xbf16, #tpu.memory_space<vmem>>, vector<16x16x4xbf16>
    %61 = vector.shape_cast %60 : vector<16x16x4xbf16> to vector<256x4xbf16>
    %c6 = arith.constant 6 : index
    %c0_66 = arith.constant 0 : index
    %c0_67 = arith.constant 0 : index
    %62 = vector.load %arg4[%c6, %c0_66, %c0_67] : memref<9x4x4xbf16, #tpu.memory_space<vmem>>, vector<1x4x4xbf16>
    %63 = vector.shape_cast %62 : vector<1x4x4xbf16> to vector<4x4xbf16>
    %cst_68 = arith.constant dense<0.000000e+00> : vector<256x4xf32>
    %64 = tpu.matmul %61, %63, %cst_68 {dimension_numbers = #tpu.dot_dimension_numbers<[1], [0], [0], [1], [0, 0, 1, 1], [], []>} : vector<256x4xbf16>, vector<4x4xbf16>, vector<256x4xf32> -> vector<256x4xf32>
    %65 = arith.addf %59, %64 : vector<256x4xf32>
    %c2_69 = arith.constant 2 : index
    %c1_70 = arith.constant 1 : index
    %c0_71 = arith.constant 0 : index
    %66 = vector.load %arg8[%c2_69, %c1_70, %c0_71] : memref<18x18x4xbf16, #tpu.memory_space<vmem>>, vector<16x16x4xbf16>
    %67 = vector.shape_cast %66 : vector<16x16x4xbf16> to vector<256x4xbf16>
    %c7 = arith.constant 7 : index
    %c0_72 = arith.constant 0 : index
    %c0_73 = arith.constant 0 : index
    %68 = vector.load %arg4[%c7, %c0_72, %c0_73] : memref<9x4x4xbf16, #tpu.memory_space<vmem>>, vector<1x4x4xbf16>
    %69 = vector.shape_cast %68 : vector<1x4x4xbf16> to vector<4x4xbf16>
    %cst_74 = arith.constant dense<0.000000e+00> : vector<256x4xf32>
    %70 = tpu.matmul %67, %69, %cst_74 {dimension_numbers = #tpu.dot_dimension_numbers<[1], [0], [0], [1], [0, 0, 1, 1], [], []>} : vector<256x4xbf16>, vector<4x4xbf16>, vector<256x4xf32> -> vector<256x4xf32>
    %71 = arith.addf %65, %70 : vector<256x4xf32>
    %c2_75 = arith.constant 2 : index
    %c2_76 = arith.constant 2 : index
    %c0_77 = arith.constant 0 : index
    %72 = vector.load %arg8[%c2_75, %c2_76, %c0_77] : memref<18x18x4xbf16, #tpu.memory_space<vmem>>, vector<16x16x4xbf16>
    %73 = vector.shape_cast %72 : vector<16x16x4xbf16> to vector<256x4xbf16>
    %c8 = arith.constant 8 : index
    %c0_78 = arith.constant 0 : index
    %c0_79 = arith.constant 0 : index
    %74 = vector.load %arg4[%c8, %c0_78, %c0_79] : memref<9x4x4xbf16, #tpu.memory_space<vmem>>, vector<1x4x4xbf16>
    %75 = vector.shape_cast %74 : vector<1x4x4xbf16> to vector<4x4xbf16>
    %cst_80 = arith.constant dense<0.000000e+00> : vector<256x4xf32>
    %76 = tpu.matmul %73, %75, %cst_80 {dimension_numbers = #tpu.dot_dimension_numbers<[1], [0], [0], [1], [0, 0, 1, 1], [], []>} : vector<256x4xbf16>, vector<4x4xbf16>, vector<256x4xf32> -> vector<256x4xf32>
    %77 = arith.addf %71, %76 : vector<256x4xf32>
    %78 = vector.shape_cast %77 : vector<256x4xf32> to vector<1x16x16x4xf32>
    %79 = arith.truncf %78 : vector<1x16x16x4xf32> to vector<1x16x16x4xbf16>
    %c0_81 = arith.constant 0 : index
    %c0_82 = arith.constant 0 : index
    %c0_83 = arith.constant 0 : index
    %c0_84 = arith.constant 0 : index
    %80 = vector.load %arg5[%c0_81, %c0_82, %c0_83, %c0_84] : memref<1x16x16x4xbf16, #tpu.memory_space<vmem>>, vector<1x16x16x4xbf16>
    tpu.vector_store %arg5[%c0_81, %c0_82, %c0_83, %c0_84], %79 {strides = array<i32>} : memref<1x16x16x4xbf16, #tpu.memory_space<vmem>>, vector<1x16x16x4xbf16>,
    %cst_85 = arith.constant dense<0.000000e+00> : vector<4xf32>
    %81 = vector.multi_reduction <add>, %77, %cst_85 [0] : vector<256x4xf32> to vector<4xf32>
    %82 = vector.shape_cast %81 : vector<4xf32> to vector<1x4xf32>
    %83 = vector.shape_cast %82 : vector<1x4xf32> to vector<1x4xf32>
    %84 = vector.broadcast %83 : vector<1x4xf32> to vector<8x4xf32>
    %c0_86 = arith.constant 0 : index
    %c0_87 = arith.constant 0 : index
    %85 = vector.load %arg6[%c0_86, %c0_87] : memref<8x4xf32, #tpu.memory_space<vmem>>, vector<8x4xf32>
    tpu.vector_store %arg6[%c0_86, %c0_87], %84 {strides = array<i32>} : memref<8x4xf32, #tpu.memory_space<vmem>>, vector<8x4xf32>,
    %86 = arith.mulf %77, %77 : vector<256x4xf32>
    %cst_88 = arith.constant dense<0.000000e+00> : vector<4xf32>
    %87 = vector.multi_reduction <add>, %86, %cst_88 [0] : vector<256x4xf32> to vector<4xf32>
    %88 = vector.shape_cast %87 : vector<4xf32> to vector<1x4xf32>
    %89 = vector.shape_cast %88 : vector<1x4xf32> to vector<1x4xf32>
    %90 = vector.broadcast %89 : vector<1x4xf32> to vector<8x4xf32>
    %c0_89 = arith.constant 0 : index
    %c0_90 = arith.constant 0 : index
    %91 = vector.load %arg7[%c0_89, %c0_90] : memref<8x4xf32, #tpu.memory_space<vmem>>, vector<8x4xf32>
    tpu.vector_store %arg7[%c0_89, %c0_90], %90 {strides = array<i32>} : memref<8x4xf32, #tpu.memory_space<vmem>>, vector<8x4xf32>,
    return
  }
  func.func @transform_0(%arg0: i32) -> (i32, i32, i32, i32) {
    %c0_i32 = arith.constant 0 : i32
    %c0_i32_0 = arith.constant 0 : i32
    %c0_i32_1 = arith.constant 0 : i32
    %c0_i32_2 = arith.constant 0 : i32
    return %arg0, %c0_i32, %c0_i32_0, %c0_i32_1 : i32, i32, i32, i32
  }
  func.func @transform_1(%arg0: i32) -> (i32, i32) {
    %c0_i32 = arith.constant 0 : i32
    %c0_i32_0 = arith.constant 0 : i32
    %c0_i32_1 = arith.constant 0 : i32
    return %c0_i32, %c0_i32_0 : i32, i32
  }
  func.func @transform_2(%arg0: i32) -> (i32, i32) {
    %c0_i32 = arith.constant 0 : i32
    %c0_i32_0 = arith.constant 0 : i32
    %c0_i32_1 = arith.constant 0 : i32
    return %c0_i32, %c0_i32_0 : i32, i32
  }
  func.func @transform_3(%arg0: i32) -> (i32, i32, i32) {
    %c0_i32 = arith.constant 0 : i32
    %c0_i32_0 = arith.constant 0 : i32
    %c0_i32_1 = arith.constant 0 : i32
    %c0_i32_2 = arith.constant 0 : i32
    return %c0_i32, %c0_i32_0, %c0_i32_1 : i32, i32, i32
  }
  func.func @transform_4(%arg0: i32) -> (i32, i32, i32, i32) {
    %c0_i32 = arith.constant 0 : i32
    %c0_i32_0 = arith.constant 0 : i32
    %c0_i32_1 = arith.constant 0 : i32
    %c0_i32_2 = arith.constant 0 : i32
    return %arg0, %c0_i32, %c0_i32_0, %c0_i32_1 : i32, i32, i32, i32
  }
  func.func @transform_5(%arg0: i32) -> (i32, i32) {
    %c0_i32 = arith.constant 0 : i32
    %c0_i32_0 = arith.constant 0 : i32
    return %arg0, %c0_i32 : i32, i32
  }
  func.func @transform_6(%arg0: i32) -> (i32, i32) {
    %c0_i32 = arith.constant 0 : i32
    %c0_i32_0 = arith.constant 0 : i32
    return %arg0, %c0_i32 : i32, i32
  }
}

module attributes {stable_mosaic.version = 11 : i64} {
  func.func @_bn_relu_conv1x1_stats_kernel(%arg0: i32, %arg1: memref<128x4xbf16, #tpu.memory_space<vmem>>, %arg2: memref<1x4xf32, #tpu.memory_space<vmem>>, %arg3: memref<1x4xf32, #tpu.memory_space<vmem>>, %arg4: memref<4x16xbf16, #tpu.memory_space<vmem>>, %arg5: memref<128x16xbf16, #tpu.memory_space<vmem>>, %arg6: memref<8x16xf32, #tpu.memory_space<vmem>>, %arg7: memref<8x16xf32, #tpu.memory_space<vmem>>) attributes {dimension_semantics = [#tpu.dimension_semantics<parallel>], iteration_bounds = array<i64: 4>, scalar_prefetch = 0 : i64, scratch_operands = 0 : i64, tpu.core_type = #tpu.core_type<tc>, window_params = [{transform_indices = @transform_0, window_bounds = array<i64: 128, 4>}, {pipeline_mode = #tpu.pipeline_mode<synchronous>, transform_indices = @transform_1, window_bounds = array<i64: 1, 4>}, {pipeline_mode = #tpu.pipeline_mode<synchronous>, transform_indices = @transform_2, window_bounds = array<i64: 1, 4>}, {pipeline_mode = #tpu.pipeline_mode<synchronous>, transform_indices = @transform_3, window_bounds = array<i64: 4, 16>}, {transform_indices = @transform_4, window_bounds = array<i64: 128, 16>}, {transform_indices = @transform_5, window_bounds = array<i64: 8, 16>}, {transform_indices = @transform_6, window_bounds = array<i64: 8, 16>}]} {
    %c0 = arith.constant 0 : index
    %c0_0 = arith.constant 0 : index
    %0 = vector.load %arg1[%c0, %c0_0] : memref<128x4xbf16, #tpu.memory_space<vmem>>, vector<128x4xbf16>
    %1 = arith.extf %0 : vector<128x4xbf16> to vector<128x4xf32>
    %c0_1 = arith.constant 0 : index
    %c0_2 = arith.constant 0 : index
    %2 = vector.load %arg2[%c0_1, %c0_2] : memref<1x4xf32, #tpu.memory_space<vmem>>, vector<1x4xf32>
    %3 = vector.broadcast %2 : vector<1x4xf32> to vector<128x4xf32>
    %4 = arith.mulf %1, %3 : vector<128x4xf32>
    %c0_3 = arith.constant 0 : index
    %c0_4 = arith.constant 0 : index
    %5 = vector.load %arg3[%c0_3, %c0_4] : memref<1x4xf32, #tpu.memory_space<vmem>>, vector<1x4xf32>
    %6 = vector.broadcast %5 : vector<1x4xf32> to vector<128x4xf32>
    %7 = arith.addf %4, %6 : vector<128x4xf32>
    %cst = arith.constant 0.000000e+00 : f32
    %8 = vector.broadcast %cst : f32 to vector<128x4xf32>
    %9 = arith.maximumf %7, %8 : vector<128x4xf32>
    %10 = arith.truncf %9 : vector<128x4xf32> to vector<128x4xbf16>
    %c0_5 = arith.constant 0 : index
    %c0_6 = arith.constant 0 : index
    %11 = vector.load %arg4[%c0_5, %c0_6] : memref<4x16xbf16, #tpu.memory_space<vmem>>, vector<4x16xbf16>
    %cst_7 = arith.constant dense<0.000000e+00> : vector<128x16xf32>
    %12 = tpu.matmul %10, %11, %cst_7 {dimension_numbers = #tpu.dot_dimension_numbers<[1], [0], [0], [1], [0, 0, 1, 1], [], []>} : vector<128x4xbf16>, vector<4x16xbf16>, vector<128x16xf32> -> vector<128x16xf32>
    %13 = arith.truncf %12 : vector<128x16xf32> to vector<128x16xbf16>
    %c0_8 = arith.constant 0 : index
    %c0_9 = arith.constant 0 : index
    %14 = vector.load %arg5[%c0_8, %c0_9] : memref<128x16xbf16, #tpu.memory_space<vmem>>, vector<128x16xbf16>
    tpu.vector_store %arg5[%c0_8, %c0_9], %13 {strides = array<i32>} : memref<128x16xbf16, #tpu.memory_space<vmem>>, vector<128x16xbf16>,
    %cst_10 = arith.constant dense<0.000000e+00> : vector<16xf32>
    %15 = vector.multi_reduction <add>, %12, %cst_10 [0] : vector<128x16xf32> to vector<16xf32>
    %16 = vector.shape_cast %15 : vector<16xf32> to vector<1x16xf32>
    %17 = vector.shape_cast %16 : vector<1x16xf32> to vector<1x16xf32>
    %18 = vector.broadcast %17 : vector<1x16xf32> to vector<8x16xf32>
    %c0_11 = arith.constant 0 : index
    %c0_12 = arith.constant 0 : index
    %19 = vector.load %arg6[%c0_11, %c0_12] : memref<8x16xf32, #tpu.memory_space<vmem>>, vector<8x16xf32>
    tpu.vector_store %arg6[%c0_11, %c0_12], %18 {strides = array<i32>} : memref<8x16xf32, #tpu.memory_space<vmem>>, vector<8x16xf32>,
    %20 = arith.mulf %12, %12 : vector<128x16xf32>
    %cst_13 = arith.constant dense<0.000000e+00> : vector<16xf32>
    %21 = vector.multi_reduction <add>, %20, %cst_13 [0] : vector<128x16xf32> to vector<16xf32>
    %22 = vector.shape_cast %21 : vector<16xf32> to vector<1x16xf32>
    %23 = vector.shape_cast %22 : vector<1x16xf32> to vector<1x16xf32>
    %24 = vector.broadcast %23 : vector<1x16xf32> to vector<8x16xf32>
    %c0_14 = arith.constant 0 : index
    %c0_15 = arith.constant 0 : index
    %25 = vector.load %arg7[%c0_14, %c0_15] : memref<8x16xf32, #tpu.memory_space<vmem>>, vector<8x16xf32>
    tpu.vector_store %arg7[%c0_14, %c0_15], %24 {strides = array<i32>} : memref<8x16xf32, #tpu.memory_space<vmem>>, vector<8x16xf32>,
    return
  }
  func.func @transform_0(%arg0: i32) -> (i32, i32) {
    %c0_i32 = arith.constant 0 : i32
    %c0_i32_0 = arith.constant 0 : i32
    return %arg0, %c0_i32 : i32, i32
  }
  func.func @transform_1(%arg0: i32) -> (i32, i32) {
    %c0_i32 = arith.constant 0 : i32
    %c0_i32_0 = arith.constant 0 : i32
    %c0_i32_1 = arith.constant 0 : i32
    return %c0_i32, %c0_i32_0 : i32, i32
  }
  func.func @transform_2(%arg0: i32) -> (i32, i32) {
    %c0_i32 = arith.constant 0 : i32
    %c0_i32_0 = arith.constant 0 : i32
    %c0_i32_1 = arith.constant 0 : i32
    return %c0_i32, %c0_i32_0 : i32, i32
  }
  func.func @transform_3(%arg0: i32) -> (i32, i32) {
    %c0_i32 = arith.constant 0 : i32
    %c0_i32_0 = arith.constant 0 : i32
    %c0_i32_1 = arith.constant 0 : i32
    return %c0_i32, %c0_i32_0 : i32, i32
  }
  func.func @transform_4(%arg0: i32) -> (i32, i32) {
    %c0_i32 = arith.constant 0 : i32
    %c0_i32_0 = arith.constant 0 : i32
    return %arg0, %c0_i32 : i32, i32
  }
  func.func @transform_5(%arg0: i32) -> (i32, i32) {
    %c0_i32 = arith.constant 0 : i32
    %c0_i32_0 = arith.constant 0 : i32
    return %arg0, %c0_i32 : i32, i32
  }
  func.func @transform_6(%arg0: i32) -> (i32, i32) {
    %c0_i32 = arith.constant 0 : i32
    %c0_i32_0 = arith.constant 0 : i32
    return %arg0, %c0_i32 : i32, i32
  }
}

module attributes {stable_mosaic.version = 11 : i64} {
  func.func @_bn_add_relu_kernel(%arg0: i32, %arg1: memref<256x16xbf16, #tpu.memory_space<vmem>>, %arg2: memref<256x16xf32, #tpu.memory_space<vmem>>, %arg3: memref<1x16xf32, #tpu.memory_space<vmem>>, %arg4: memref<1x16xf32, #tpu.memory_space<vmem>>, %arg5: memref<256x16xf32, #tpu.memory_space<vmem>>) attributes {dimension_semantics = [#tpu.dimension_semantics<parallel>], iteration_bounds = array<i64: 2>, scalar_prefetch = 0 : i64, scratch_operands = 0 : i64, tpu.core_type = #tpu.core_type<tc>, window_params = [{transform_indices = @transform_0, window_bounds = array<i64: 256, 16>}, {transform_indices = @transform_1, window_bounds = array<i64: 256, 16>}, {pipeline_mode = #tpu.pipeline_mode<synchronous>, transform_indices = @transform_2, window_bounds = array<i64: 1, 16>}, {pipeline_mode = #tpu.pipeline_mode<synchronous>, transform_indices = @transform_3, window_bounds = array<i64: 1, 16>}, {transform_indices = @transform_4, window_bounds = array<i64: 256, 16>}]} {
    %c0 = arith.constant 0 : index
    %c0_0 = arith.constant 0 : index
    %0 = vector.load %arg1[%c0, %c0_0] : memref<256x16xbf16, #tpu.memory_space<vmem>>, vector<256x16xbf16>
    %1 = arith.extf %0 : vector<256x16xbf16> to vector<256x16xf32>
    %c0_1 = arith.constant 0 : index
    %c0_2 = arith.constant 0 : index
    %2 = vector.load %arg3[%c0_1, %c0_2] : memref<1x16xf32, #tpu.memory_space<vmem>>, vector<1x16xf32>
    %3 = vector.broadcast %2 : vector<1x16xf32> to vector<256x16xf32>
    %4 = arith.mulf %1, %3 : vector<256x16xf32>
    %c0_3 = arith.constant 0 : index
    %c0_4 = arith.constant 0 : index
    %5 = vector.load %arg4[%c0_3, %c0_4] : memref<1x16xf32, #tpu.memory_space<vmem>>, vector<1x16xf32>
    %6 = vector.broadcast %5 : vector<1x16xf32> to vector<256x16xf32>
    %7 = arith.addf %4, %6 : vector<256x16xf32>
    %c0_5 = arith.constant 0 : index
    %c0_6 = arith.constant 0 : index
    %8 = vector.load %arg2[%c0_5, %c0_6] : memref<256x16xf32, #tpu.memory_space<vmem>>, vector<256x16xf32>
    %9 = arith.addf %7, %8 : vector<256x16xf32>
    %cst = arith.constant 0.000000e+00 : f32
    %10 = vector.broadcast %cst : f32 to vector<256x16xf32>
    %11 = arith.maximumf %9, %10 : vector<256x16xf32>
    %c0_7 = arith.constant 0 : index
    %c0_8 = arith.constant 0 : index
    %12 = vector.load %arg5[%c0_7, %c0_8] : memref<256x16xf32, #tpu.memory_space<vmem>>, vector<256x16xf32>
    tpu.vector_store %arg5[%c0_7, %c0_8], %11 {strides = array<i32>} : memref<256x16xf32, #tpu.memory_space<vmem>>, vector<256x16xf32>,
    return
  }
  func.func @transform_0(%arg0: i32) -> (i32, i32) {
    %c0_i32 = arith.constant 0 : i32
    %c0_i32_0 = arith.constant 0 : i32
    return %arg0, %c0_i32 : i32, i32
  }
  func.func @transform_1(%arg0: i32) -> (i32, i32) {
    %c0_i32 = arith.constant 0 : i32
    %c0_i32_0 = arith.constant 0 : i32
    return %arg0, %c0_i32 : i32, i32
  }
  func.func @transform_2(%arg0: i32) -> (i32, i32) {
    %c0_i32 = arith.constant 0 : i32
    %c0_i32_0 = arith.constant 0 : i32
    %c0_i32_1 = arith.constant 0 : i32
    return %c0_i32, %c0_i32_0 : i32, i32
  }
  func.func @transform_3(%arg0: i32) -> (i32, i32) {
    %c0_i32 = arith.constant 0 : i32
    %c0_i32_0 = arith.constant 0 : i32
    %c0_i32_1 = arith.constant 0 : i32
    return %c0_i32, %c0_i32_0 : i32, i32
  }
  func.func @transform_4(%arg0: i32) -> (i32, i32) {
    %c0_i32 = arith.constant 0 : i32
    %c0_i32_0 = arith.constant 0 : i32
    return %arg0, %c0_i32 : i32, i32
  }
}

</mosaic_0001>

<llo_original>
// kernel: _lambda_.6
$region0: #{_lambda_.6}
  #allocation0 [shape = 'u32[]', space=smem, size = 0x4, offset = 0x4, fixed_abs, tag = 'smem constant byte address 0x4 - core index']
  #allocation1 [shape = 'u32[72,128]{1,0:T(1,128)}', space=vmem, size = 0x9000, scoped, tag = 'internal scratch']
  %s0 = inlined_call_operand.vmem [shape: bf16[512,4], index: 0, kind: input, shape index: {}]
  %s1 = inlined_call_operand.vmem [shape: f32[1,4], index: 1, kind: input, shape index: {}]
  %s2 = inlined_call_operand.vmem [shape: f32[1,4], index: 2, kind: input, shape index: {}]
  %s3 = inlined_call_operand.vmem [shape: bf16[4,16], index: 3, kind: input, shape index: {}]
  %s4 = inlined_call_operand.vmem [shape: bf16[512,16], index: 4, kind: output, shape index: {0}]
  %s5 = inlined_call_operand.vmem [shape: f32[32,16], index: 5, kind: output, shape index: {1}]
  %s6 = inlined_call_operand.vmem [shape: f32[32,16], index: 6, kind: output, shape index: {2}]
  %7 = xla_tuple %s4, %s5, %s6
  %s8 = sld [smem:[#allocation0]]
  $region65: #{_lambda_.6} parent=0
    _
  %s10 = ssub.s32 1, %s8
  %s11 = scalar_select 0, %s10, %s8
  loop: start=0, step=1, limit=6
  $region2: #{_lambda_.6} parent=0 // loop_pre_header
    _
  $region3: #{_lambda_.6} parent=0 // loop_header
    %s13 = sphi 0, %s17
    %p14 = scmp.ge.s32.totalorder %s13, 6
    %s23 = sphi 0, %s25
    %s26 = sphi 0, %s23
    %s27 = sphi 0, %s26
    %s43 = sphi 0, %s27
    %s47 = sphi 0, %s47
    %s49 = sphi 0, %s47
    %s50 = sphi 0, %s49
    %s64 = sphi 0, %s50
    %s68 = sphi 0, %s68
    %s70 = sphi 0, %s68
    %s71 = sphi 0, %s70
    %s85 = sphi 0, %s71
    %s89 = sphi 0, %s89
    %s91 = sphi 0, %s89
    %s92 = sphi 0, %s91
    %s106 = sphi 0, %s92
    %s112 = sphi 0, %s114
    %s115 = sphi 0, %s112
    %s116 = sphi 0, %s115
    %s132 = sphi 0, %s116
    %s138 = sphi 0, %s140
    %s141 = sphi 0, %s138
    %s142 = sphi 0, %s141
    %s158 = sphi 0, %s142
    %s164 = sphi 0, %s166
    %s167 = sphi 0, %s164
    %s168 = sphi 0, %s167
    %s184 = sphi 0, %s168
  $region4: #{_lambda_.6} parent=0 // loop_header_branch
    %16 = sbr.rel (%p14) target = $region8
  $region5: #{_lambda_.6} parent=0 // loop_body
    %s18 = ssub.s32 %s13, 1
    %s19 = ssub.s32 %s13, 2
    %s20 = sadd.s32 %s13, 1
    %s21 = ssub.s32 %s13, %s20
    %p22 = scmp.eq.s32.totalorder %s21, 0
    %s24 = sadd.s32 %s23, 1
    %s25 = scalar_select %p22, %s23, %s24
    %p28 = pneg %p22
    %p29 = scmp.eq.s32.totalorder %s13, 3
    %p30 = por %p28, %p29
    %p31 = scmp.ne.s32.totalorder %s23, %s26
    %p32 = scmp.eq.s32.totalorder %s13, 0
    %p33 = por %p31, %p32
    %p34 = scmp.ne.s32.totalorder %s23, %s26
    %p35 = scmp.eq.s32.totalorder %s18, 3
    %p36 = por %p34, %p35
    %p37 = scmp.ne.s32.totalorder %s26, %s27
    %p38 = scmp.eq.s32.totalorder %s18, 0
    %p39 = por %p37, %p38
    %p40 = scmp.ne.s32.totalorder %s26, %s27
    %p41 = scmp.eq.s32.totalorder %s19, 3
    %p42 = por %p40, %p41
    %p44 = scmp.ne.s32.totalorder %s27, %s43
    %p45 = scmp.eq.s32.totalorder %s19, 0
    %p46 = por %p44, %p45
    %s48 = sadd.s32 %s47, 1
    %p51 = scmp.eq.s32.totalorder %s13, 3
    %p52 = scmp.ne.s32.totalorder %s47, %s49
    %p53 = scmp.eq.s32.totalorder %s13, 0
    %p54 = por %p52, %p53
    %p55 = scmp.ne.s32.totalorder %s47, %s49
    %p56 = scmp.eq.s32.totalorder %s18, 3
    %p57 = por %p55, %p56
    %p58 = scmp.ne.s32.totalorder %s49, %s50
    %p59 = scmp.eq.s32.totalorder %s18, 0
    %p60 = por %p58, %p59
    %p61 = scmp.ne.s32.totalorder %s49, %s50
    %p62 = scmp.eq.s32.totalorder %s19, 3
    %p63 = por %p61, %p62
    %p65 = scmp.ne.s32.totalorder %s50, %s64
    %p66 = scmp.eq.s32.totalorder %s19, 0
    %p67 = por %p65, %p66
    %s69 = sadd.s32 %s68, 1
    %p72 = scmp.eq.s32.totalorder %s13, 3
    %p73 = scmp.ne.s32.totalorder %s68, %s70
    %p74 = scmp.eq.s32.totalorder %s13, 0
    %p75 = por %p73, %p74
    %p76 = scmp.ne.s32.totalorder %s68, %s70
    %p77 = scmp.eq.s32.totalorder %s18, 3
    %p78 = por %p76, %p77
    %p79 = scmp.ne.s32.totalorder %s70, %s71
    %p80 = scmp.eq.s32.totalorder %s18, 0
    %p81 = por %p79, %p80
    %p82 = scmp.ne.s32.totalorder %s70, %s71
    %p83 = scmp.eq.s32.totalorder %s19, 3
    %p84 = por %p82, %p83
    %p86 = scmp.ne.s32.totalorder %s71, %s85
    %p87 = scmp.eq.s32.totalorder %s19, 0
    %p88 = por %p86, %p87
    %s90 = sadd.s32 %s89, 1
    %p93 = scmp.eq.s32.totalorder %s13, 3
    %p94 = scmp.ne.s32.totalorder %s89, %s91
    %p95 = scmp.eq.s32.totalorder %s13, 0
    %p96 = por %p94, %p95
    %p97 = scmp.ne.s32.totalorder %s89, %s91
    %p98 = scmp.eq.s32.totalorder %s18, 3
    %p99 = por %p97, %p98
    %p100 = scmp.ne.s32.totalorder %s91, %s92
    %p101 = scmp.eq.s32.totalorder %s18, 0
    %p102 = por %p100, %p101
    %p103 = scmp.ne.s32.totalorder %s91, %s92
    %p104 = scmp.eq.s32.totalorder %s19, 3
    %p105 = por %p103, %p104
    %p107 = scmp.ne.s32.totalorder %s92, %s106
    %p108 = scmp.eq.s32.totalorder %s19, 0
    %p109 = por %p107, %p108
    %s110 = ssub.s32 %s13, %s20
    %p111 = scmp.eq.s32.totalorder %s110, 0
    %s113 = sadd.s32 %s112, 1
    %s114 = scalar_select %p111, %s112, %s113
    %p117 = pneg %p111
    %p118 = scmp.eq.s32.totalorder %s13, 3
    %p119 = por %p117, %p118
    %p120 = scmp.ne.s32.totalorder %s112, %s115
    %p121 = scmp.eq.s32.totalorder %s13, 0
    %p122 = por %p120, %p121
    %p123 = scmp.ne.s32.totalorder %s112, %s115
    %p124 = scmp.eq.s32.totalorder %s18, 3
    %p125 = por %p123, %p124
    %p126 = scmp.ne.s32.totalorder %s115, %s116
    %p127 = scmp.eq.s32.totalorder %s18, 0
    %p128 = por %p126, %p127
    %p129 = scmp.ne.s32.totalorder %s115, %s116
    %p130 = scmp.eq.s32.totalorder %s19, 3
    %p131 = por %p129, %p130
    %p133 = scmp.ne.s32.totalorder %s116, %s132
    %p134 = scmp.eq.s32.totalorder %s19, 0
    %p135 = por %p133, %p134
    %s136 = ssub.s32 %s13, %s20
    %p137 = scmp.eq.s32.totalorder %s136, 0
    %s139 = sadd.s32 %s138, 1
    %s140 = scalar_select %p137, %s138, %s139
    %p143 = pneg %p137
    %p144 = scmp.eq.s32.totalorder %s13, 3
    %p145 = por %p143, %p144
    %p146 = scmp.ne.s32.totalorder %s138, %s141
    %p147 = scmp.eq.s32.totalorder %s13, 0
    %p148 = por %p146, %p147
    %p149 = scmp.ne.s32.totalorder %s138, %s141
    %p150 = scmp.eq.s32.totalorder %s18, 3
    %p151 = por %p149, %p150
    %p152 = scmp.ne.s32.totalorder %s141, %s142
    %p153 = scmp.eq.s32.totalorder %s18, 0
    %p154 = por %p152, %p153
    %p155 = scmp.ne.s32.totalorder %s141, %s142
    %p156 = scmp.eq.s32.totalorder %s19, 3
    %p157 = por %p155, %p156
    %p159 = scmp.ne.s32.totalorder %s142, %s158
    %p160 = scmp.eq.s32.totalorder %s19, 0
    %p161 = por %p159, %p160
    %s162 = ssub.s32 %s13, %s20
    %p163 = scmp.eq.s32.totalorder %s162, 0
    %s165 = sadd.s32 %s164, 1
    %s166 = scalar_select %p163, %s164, %s165
    %p169 = pneg %p163
    %p170 = scmp.eq.s32.totalorder %s13, 3
    %p171 = por %p169, %p170
    %p172 = scmp.ne.s32.totalorder %s164, %s167
    %p173 = scmp.eq.s32.totalorder %s13, 0
    %p174 = por %p172, %p173
    %p175 = scmp.ne.s32.totalorder %s164, %s167
    %p176 = scmp.eq.s32.totalorder %s18, 3
    %p177 = por %p175, %p176
    %p178 = scmp.ne.s32.totalorder %s167, %s168
    %p179 = scmp.eq.s32.totalorder %s18, 0
    %p180 = por %p178, %p179
    %p181 = scmp.ne.s32.totalorder %s167, %s168
    %p182 = scmp.eq.s32.totalorder %s19, 3
    %p183 = por %p181, %p182
    %p185 = scmp.ne.s32.totalorder %s168, %s184
    %p186 = scmp.eq.s32.totalorder %s19, 0
    %p187 = por %p185, %p186
    %p188 = scmp.le.s32.totalorder 1, %s13
    %p189 = scmp.lt.s32.totalorder %s13, 5
    %p190 = pnand %p188, %p189
    %p191 = pneg %p190
    // Predicated region
    $region9: #{_lambda_.6} parent=5 // pred_check
      _
    $region10: #{_lambda_.6} parent=5 // pred_check_branch
      %193 = sbr.rel (%p190) target = $region12
    $region11: #{_lambda_.6} parent=5 // pred_region
      %s194 = ssub.s32 %s13, 1
      // Predicated region
      $region13: #{_lambda_.6} parent=11 // pred_check
        %p195 = pneg %p60
      $region14: #{_lambda_.6} parent=11 // pred_check_branch
        %197 = sbr.rel (%p195) target = $region16
      $region15: #{_lambda_.6} parent=11 // pred_region
        _
      $region16: #{_lambda_.6} parent=11 // pred_fallthru
        _
      // Predicated region
      $region17: #{_lambda_.6} parent=11 // pred_check
        %p198 = pneg %p81
      $region18: #{_lambda_.6} parent=11 // pred_check_branch
        %200 = sbr.rel (%p198) target = $region20
      $region19: #{_lambda_.6} parent=11 // pred_region
        _
      $region20: #{_lambda_.6} parent=11 // pred_fallthru
        _
      // Predicated region
      $region21: #{_lambda_.6} parent=11 // pred_check
        %p201 = pneg %p102
      $region22: #{_lambda_.6} parent=11 // pred_check_branch
        %203 = sbr.rel (%p201) target = $region24
      $region23: #{_lambda_.6} parent=11 // pred_region
        _
      $region24: #{_lambda_.6} parent=11 // pred_fallthru
        _
    $region12: #{_lambda_.6} parent=5 // pred_fallthru
      _
    %p204 = scmp.lt.s32.totalorder %s13, 4
    // Predicated region
    $region25: #{_lambda_.6} parent=5 // pred_check
      %p205 = pneg %p204
    $region26: #{_lambda_.6} parent=5 // pred_check_branch
      %207 = sbr.rel (%p205) target = $region28
    $region27: #{_lambda_.6} parent=5 // pred_region
      // Predicated region
      $region29: #{_lambda_.6} parent=27 // pred_check
        %p208 = pneg %p33
      $region30: #{_lambda_.6} parent=27 // pred_check_branch
        %210 = sbr.rel (%p208) target = $region32
      $region31: #{_lambda_.6} parent=27 // pred_region
        %s211 = smul.u32 16, %s13
        %p212 = scmp.lt.s32.totalorder %s211, 63
        %s213 = scalar_select %p212, %s211, 63
        %s214 = smul.addr %s213, 4
        %s215 = scalar_lea.vmem %s0, %s214
        %s216 = smul.u32 16, %s13
      $region32: #{_lambda_.6} parent=27 // pred_fallthru
        _
    $region28: #{_lambda_.6} parent=5 // pred_fallthru
      _
    %p217 = scmp.le.s32.totalorder 1, %s13
    %p218 = scmp.lt.s32.totalorder %s13, 5
    %p219 = pnand %p217, %p218
    %p220 = pneg %p219
    // Predicated region
    $region33: #{_lambda_.6} parent=5 // pred_check
      _
    $region34: #{_lambda_.6} parent=5 // pred_check_branch
      %222 = sbr.rel (%p219) target = $region36
    $region35: #{_lambda_.6} parent=5 // pred_region
      %s223 = ssub.s32 %s13, 1
      %s224 = smul.u32 16, %s18
      %p225 = scmp.lt.s32.totalorder %s224, 63
      %s226 = scalar_select %p225, %s224, 63
      %s227 = smul.addr %s226, 4
      %s228 = scalar_lea.vmem %s0, %s227
      %p229 = pneg %p39
      %p230 = pneg %p36
      %p231 = pneg %p60
      %p232 = pneg %p57
      %p233 = pneg %p81
      %p234 = pneg %p78
      %p235 = pneg %p102
      %p236 = pneg %p99
      %p237 = pneg %p128
      %p238 = pneg %p125
      %s239 = smul.u32 16, %s18
      %p240 = scmp.lt.s32.totalorder %s239, 63
      %s241 = scalar_select %p240, %s239, 63
      %s242 = smul.addr %s241, 4
      %s243 = scalar_lea.vmem %s4, %s242
      %p244 = pneg %p154
      %p245 = pneg %p151
      %p246 = scmp.lt.s32.totalorder %s18, 3
      %s247 = scalar_select %p246, %s18, 3
      %s248 = smul.addr %s247, 8
      %s249 = scalar_lea.vmem %s5, %s248
      %p250 = pneg %p180
      %p251 = pneg %p177
      %p252 = scmp.lt.s32.totalorder %s18, 3
      %s253 = scalar_select %p252, %s18, 3
      %s254 = smul.addr %s253, 8
      %s255 = scalar_lea.vmem %s6, %s254
      %s256 = smul.u32 16, %s18
      %p257 = scmp.lt.s32.totalorder %s256, 63
      %s258 = scalar_select %p257, %s256, 63
      %s259 = smul.addr %s258, 4
      %s260 = scalar_lea.vmem %s0, %s259
      %s261 = smul.u32 16, %s18
      %s262 = smul.u32 16, %s18
      %p263 = scmp.lt.s32.totalorder %s262, 63
      %s264 = scalar_select %p263, %s262, 63
      %s265 = smul.addr %s264, 4
      %s266 = scalar_lea.vmem %s4, %s265
      %s267 = smul.u32 16, %s18
      %p268 = scmp.lt.s32.totalorder %s18, 3
      %s269 = scalar_select %p268, %s18, 3
      %s270 = smul.addr %s269, 8
      %s271 = scalar_lea.vmem %s5, %s270
      %p272 = scmp.lt.s32.totalorder %s18, 3
      %s273 = scalar_select %p272, %s18, 3
      %s274 = smul.addr %s273, 8
      %s275 = scalar_lea.vmem %s6, %s274
      %v277 = vld [vmem:[%s260] sm:$0xf]
      %v278 = vld [vmem:[%s260 + $0x4] sm:$0xf]
      %v279 = vld [vmem:[%s260 + $0x8] sm:$0xf]
      %v280 = vld [vmem:[%s260 + $0xc] sm:$0xf]
      %v281 = vld [vmem:[%s260 + $0x10] sm:$0xf]
      %v282 = vld [vmem:[%s260 + $0x14] sm:$0xf]
      %v283 = vld [vmem:[%s260 + $0x18] sm:$0xf]
      %v284 = vld [vmem:[%s260 + $0x1c] sm:$0xf]
      %v285 = vld [vmem:[%s260 + $0x20] sm:$0xf]
      %v286 = vld [vmem:[%s260 + $0x24] sm:$0xf]
      %v287 = vld [vmem:[%s260 + $0x28] sm:$0xf]
      %v288 = vld [vmem:[%s260 + $0x2c] sm:$0xf]
      %v289 = vld [vmem:[%s260 + $0x30] sm:$0xf]
      %v290 = vld [vmem:[%s260 + $0x34] sm:$0xf]
      %v291 = vld [vmem:[%s260 + $0x38] sm:$0xf]
      %v292 = vld [vmem:[%s260 + $0x3c] sm:$0xf]
      %v293 = vunpack.c.l.bf16 %v277
      %v294 = vunpack.c.l.bf16 %v278
      %v295 = vunpack.c.l.bf16 %v279
      %v296 = vunpack.c.l.bf16 %v280
      %v297 = vunpack.c.l.bf16 %v281
      %v298 = vunpack.c.l.bf16 %v282
      %v299 = vunpack.c.l.bf16 %v283
      %v300 = vunpack.c.l.bf16 %v284
      %v301 = vunpack.c.l.bf16 %v285
      %v302 = vunpack.c.l.bf16 %v286
      %v303 = vunpack.c.l.bf16 %v287
      %v304 = vunpack.c.l.bf16 %v288
      %v305 = vunpack.c.l.bf16 %v289
      %v306 = vunpack.c.l.bf16 %v290
      %v307 = vunpack.c.l.bf16 %v291
      %v308 = vunpack.c.l.bf16 %v292
      %v309 = vld [vmem:[%s1] sm:$0x1]
      %v311 = vperm.slane %v309, 0
      %v313 = vmul.f32 %v293, %v311
      %v314 = vmul.f32 %v294, %v311
      %v315 = vmul.f32 %v295, %v311
      %v316 = vmul.f32 %v296, %v311
      %v317 = vmul.f32 %v297, %v311
      %v318 = vmul.f32 %v298, %v311
      %v319 = vmul.f32 %v299, %v311
      %v320 = vmul.f32 %v300, %v311
      %v321 = vmul.f32 %v301, %v311
      %v322 = vmul.f32 %v302, %v311
      %v323 = vmul.f32 %v303, %v311
      %v324 = vmul.f32 %v304, %v311
      %v325 = vmul.f32 %v305, %v311
      %v326 = vmul.f32 %v306, %v311
      %v327 = vmul.f32 %v307, %v311
      %v328 = vmul.f32 %v308, %v311
      %v329 = vld [vmem:[%s2] sm:$0x1]
      %v331 = vperm.slane %v329, 0
      %v333 = vadd.f32 %v313, %v331
      %v334 = vadd.f32 %v314, %v331
      %v335 = vadd.f32 %v315, %v331
      %v336 = vadd.f32 %v316, %v331
      %v337 = vadd.f32 %v317, %v331
      %v338 = vadd.f32 %v318, %v331
      %v339 = vadd.f32 %v319, %v331
      %v340 = vadd.f32 %v320, %v331
      %v341 = vadd.f32 %v321, %v331
      %v342 = vadd.f32 %v322, %v331
      %v343 = vadd.f32 %v323, %v331
      %v344 = vadd.f32 %v324, %v331
      %v345 = vadd.f32 %v325, %v331
      %v346 = vadd.f32 %v326, %v331
      %v347 = vadd.f32 %v327, %v331
      %v348 = vadd.f32 %v328, %v331
      %v349 = vmax.f32 %v333, 0.0
      %v350 = vmax.f32 %v334, 0.0
      %v351 = vmax.f32 %v335, 0.0
      %v352 = vmax.f32 %v336, 0.0
      %v353 = vmax.f32 %v337, 0.0
      %v354 = vmax.f32 %v338, 0.0
      %v355 = vmax.f32 %v339, 0.0
      %v356 = vmax.f32 %v340, 0.0
      %v357 = vmax.f32 %v341, 0.0
      %v358 = vmax.f32 %v342, 0.0
      %v359 = vmax.f32 %v343, 0.0
      %v360 = vmax.f32 %v344, 0.0
      %v361 = vmax.f32 %v345, 0.0
      %v362 = vmax.f32 %v346, 0.0
      %v363 = vmax.f32 %v347, 0.0
      %v364 = vmax.f32 %v348, 0.0
      %v365 = vpack.c.bf16 %v350, %v349
      %v366 = vpack.c.bf16 %v352, %v351
      %v367 = vpack.c.bf16 %v354, %v353
      %v368 = vpack.c.bf16 %v356, %v355
      %v369 = vpack.c.bf16 %v358, %v357
      %v370 = vpack.c.bf16 %v360, %v359
      %v371 = vpack.c.bf16 %v362, %v361
      %v372 = vpack.c.bf16 %v364, %v363
      %v373 = vld [vmem:[%s3] sm:$0x3]
      %vm374 = vcmask 31744
      %v376 = vsel %vm374, %v365, 0
      %v379 = vsel %vm374, %v366, 0
      %v382 = vsel %vm374, %v367, 0
      %v385 = vsel %vm374, %v368, 0
      %v388 = vsel %vm374, %v369, 0
      %v391 = vsel %vm374, %v370, 0
      %v394 = vsel %vm374, %v371, 0
      %v397 = vsel %vm374, %v372, 0
      %vm399 = vcmask 1041408
      %v401 = vsel %vm399, %v373, 0
      %403 = vmatpush.bf16.msra.mxu0 0
      %404 = vmatpush.bf16.msra.mxu0 0
      %405 = vmatpush.bf16.msra.mxu0 0
      %406 = vmatpush.bf16.msra.mxu0 0
      %407 = vmatpush.bf16.msra.mxu0 0
      %408 = vmatpush.bf16.msra.mxu0 0
      %409 = vmatpush.bf16.msra.mxu0 0
      %410 = vmatpush.bf16.msra.mxu0 %v401
      %411 = vmatmul.bf16.gmra.mxu0 %v376
      %v412 = vpop.f32.mrf.mxu0
      %v413 = vadd.f32 0.0, %v412
      %v414 = vpop.f32.mrf.mxu0
      %v415 = vadd.f32 0.0, %v414
      %416 = vmatmul.bf16.gmra.mxu0 %v379
      %v417 = vpop.f32.mrf.mxu0
      %v418 = vadd.f32 0.0, %v417
      %v419 = vpop.f32.mrf.mxu0
      %v420 = vadd.f32 0.0, %v419
      %421 = vmatmul.bf16.gmra.mxu0 %v382
      %v422 = vpop.f32.mrf.mxu0
      %v423 = vadd.f32 0.0, %v422
      %v424 = vpop.f32.mrf.mxu0
      %v425 = vadd.f32 0.0, %v424
      %426 = vmatmul.bf16.gmra.mxu0 %v385
      %v427 = vpop.f32.mrf.mxu0
      %v428 = vadd.f32 0.0, %v427
      %v429 = vpop.f32.mrf.mxu0
      %v430 = vadd.f32 0.0, %v429
      %431 = vmatmul.bf16.gmra.mxu0 %v388
      %v432 = vpop.f32.mrf.mxu0
      %v433 = vadd.f32 0.0, %v432
      %v434 = vpop.f32.mrf.mxu0
      %v435 = vadd.f32 0.0, %v434
      %436 = vmatmul.bf16.gmra.mxu0 %v391
      %v437 = vpop.f32.mrf.mxu0
      %v438 = vadd.f32 0.0, %v437
      %v439 = vpop.f32.mrf.mxu0
      %v440 = vadd.f32 0.0, %v439
      %441 = vmatmul.bf16.gmra.mxu0 %v394
      %v442 = vpop.f32.mrf.mxu0
      %v443 = vadd.f32 0.0, %v442
      %v444 = vpop.f32.mrf.mxu0
      %v445 = vadd.f32 0.0, %v444
      %446 = vmatmul.bf16.gmra.mxu0 %v397
      %v447 = vpop.f32.mrf.mxu0
      %v448 = vadd.f32 0.0, %v447
      %v449 = vpop.f32.mrf.mxu0
      %v450 = vadd.f32 0.0, %v449
      %451 = vdwg.mxu0
      %v452 = vpack.c.bf16 %v413, %v413
      %v453 = vpack.c.bf16 %v415, %v415
      %v454 = vpack.c.bf16 %v418, %v418
      %v455 = vpack.c.bf16 %v420, %v420
      %v456 = vpack.c.bf16 %v423, %v423
      %v457 = vpack.c.bf16 %v425, %v425
      %v458 = vpack.c.bf16 %v428, %v428
      %v459 = vpack.c.bf16 %v430, %v430
      %v460 = vpack.c.bf16 %v433, %v433
      %v461 = vpack.c.bf16 %v435, %v435
      %v462 = vpack.c.bf16 %v438, %v438
      %v463 = vpack.c.bf16 %v440, %v440
      %v464 = vpack.c.bf16 %v443, %v443
      %v465 = vpack.c.bf16 %v445, %v445
      %v466 = vpack.c.bf16 %v448, %v448
      %v467 = vpack.c.bf16 %v450, %v450
      %vm468 = vcmask 125952
      %469 = vst.msk [vmem:[%s266] sm:$0xf] %vm468, %v452
      %470 = vst.msk [vmem:[%s266 + $0x4] sm:$0xf] %vm468, %v453
      %471 = vst.msk [vmem:[%s266 + $0x8] sm:$0xf] %vm468, %v454
      %472 = vst.msk [vmem:[%s266 + $0xc] sm:$0xf] %vm468, %v455
      %473 = vst.msk [vmem:[%s266 + $0x10] sm:$0xf] %vm468, %v456
      %474 = vst.msk [vmem:[%s266 + $0x14] sm:$0xf] %vm468, %v457
      %475 = vst.msk [vmem:[%s266 + $0x18] sm:$0xf] %vm468, %v458
      %476 = vst.msk [vmem:[%s266 + $0x1c] sm:$0xf] %vm468, %v459
      %477 = vst.msk [vmem:[%s266 + $0x20] sm:$0xf] %vm468, %v460
      %478 = vst.msk [vmem:[%s266 + $0x24] sm:$0xf] %vm468, %v461
      %479 = vst.msk [vmem:[%s266 + $0x28] sm:$0xf] %vm468, %v462
      %480 = vst.msk [vmem:[%s266 + $0x2c] sm:$0xf] %vm468, %v463
      %481 = vst.msk [vmem:[%s266 + $0x30] sm:$0xf] %vm468, %v464
      %482 = vst.msk [vmem:[%s266 + $0x34] sm:$0xf] %vm468, %v465
      %483 = vst.msk [vmem:[%s266 + $0x38] sm:$0xf] %vm468, %v466
      %484 = vst.msk [vmem:[%s266 + $0x3c] sm:$0xf] %vm468, %v467
      %vm485 = vcmask 130048
      %v486 = vsel %vm485, %v413, 0.0
      %v487 = vsel %vm485, %v415, 0.0
      %v488 = vadd.f32 %v486, %v487
      %v489 = vsel %vm485, %v418, 0.0
      %v490 = vadd.f32 %v488, %v489
      %v491 = vsel %vm485, %v420, 0.0
      %v492 = vadd.f32 %v490, %v491
      %v493 = vsel %vm485, %v423, 0.0
      %v494 = vadd.f32 %v492, %v493
      %v495 = vsel %vm485, %v425, 0.0
      %v496 = vadd.f32 %v494, %v495
      %v497 = vsel %vm485, %v428, 0.0
      %v498 = vadd.f32 %v496, %v497
      %v499 = vsel %vm485, %v430, 0.0
      %v500 = vadd.f32 %v498, %v499
      %v501 = vsel %vm485, %v433, 0.0
      %v502 = vadd.f32 %v500, %v501
      %v503 = vsel %vm485, %v435, 0.0
      %v504 = vadd.f32 %v502, %v503
      %v505 = vsel %vm485, %v438, 0.0
      %v506 = vadd.f32 %v504, %v505
      %v507 = vsel %vm485, %v440, 0.0
      %v508 = vadd.f32 %v506, %v507
      %v509 = vsel %vm485, %v443, 0.0
      %v510 = vadd.f32 %v508, %v509
      %v511 = vsel %vm485, %v445, 0.0
      %v512 = vadd.f32 %v510, %v511
      %v513 = vsel %vm485, %v448, 0.0
      %v514 = vadd.f32 %v512, %v513
      %v515 = vsel %vm485, %v450, 0.0
      %v516 = vadd.f32 %v514, %v515
      %v517 = vrot.slane %v516, 4
      %v518 = vadd.f32 %v516, %v517
      %v519 = vrot.slane %v518, 2
      %v520 = vadd.f32 %v518, %v519
      %v521 = vrot.slane %v520, 1
      %v522 = vadd.f32 %v520, %v521
      %523 = vst.msk [vmem:[%s271] sm:$0xff] %vm485, %v522
      %v524 = vmul.f32 %v413, %v413
      %v525 = vmul.f32 %v415, %v415
      %v526 = vmul.f32 %v418, %v418
      %v527 = vmul.f32 %v420, %v420
      %v528 = vmul.f32 %v423, %v423
      %v529 = vmul.f32 %v425, %v425
      %v530 = vmul.f32 %v428, %v428
      %v531 = vmul.f32 %v430, %v430
      %v532 = vmul.f32 %v433, %v433
      %v533 = vmul.f32 %v435, %v435
      %v534 = vmul.f32 %v438, %v438
      %v535 = vmul.f32 %v440, %v440
      %v536 = vmul.f32 %v443, %v443
      %v537 = vmul.f32 %v445, %v445
      %v538 = vmul.f32 %v448, %v448
      %v539 = vmul.f32 %v450, %v450
      %v540 = vsel %vm485, %v524, 0.0
      %v541 = vsel %vm485, %v525, 0.0
      %v542 = vadd.f32 %v540, %v541
      %v543 = vsel %vm485, %v526, 0.0
      %v544 = vadd.f32 %v542, %v543
      %v545 = vsel %vm485, %v527, 0.0
      %v546 = vadd.f32 %v544, %v545
      %v547 = vsel %vm485, %v528, 0.0
      %v548 = vadd.f32 %v546, %v547
      %v549 = vsel %vm485, %v529, 0.0
      %v550 = vadd.f32 %v548, %v549
      %v551 = vsel %vm485, %v530, 0.0
      %v552 = vadd.f32 %v550, %v551
      %v553 = vsel %vm485, %v531, 0.0
      %v554 = vadd.f32 %v552, %v553
      %v555 = vsel %vm485, %v532, 0.0
      %v556 = vadd.f32 %v554, %v555
      %v557 = vsel %vm485, %v533, 0.0
      %v558 = vadd.f32 %v556, %v557
      %v559 = vsel %vm485, %v534, 0.0
      %v560 = vadd.f32 %v558, %v559
      %v561 = vsel %vm485, %v535, 0.0
      %v562 = vadd.f32 %v560, %v561
      %v563 = vsel %vm485, %v536, 0.0
      %v564 = vadd.f32 %v562, %v563
      %v565 = vsel %vm485, %v537, 0.0
      %v566 = vadd.f32 %v564, %v565
      %v567 = vsel %vm485, %v538, 0.0
      %v568 = vadd.f32 %v566, %v567
      %v569 = vsel %vm485, %v539, 0.0
      %v570 = vadd.f32 %v568, %v569
      %v571 = vrot.slane %v570, 4
      %v572 = vadd.f32 %v570, %v571
      %v573 = vrot.slane %v572, 2
      %v574 = vadd.f32 %v572, %v573
      %v575 = vrot.slane %v574, 1
      %v576 = vadd.f32 %v574, %v575
      %577 = vst.msk [vmem:[%s275] sm:$0xff] %vm485, %v576
      %s578 = smul.u32 16, %s18
      %p579 = scmp.lt.s32.totalorder %s578, 63
      %s580 = scalar_select %p579, %s578, 63
      %s581 = smul.addr %s580, 4
      %s582 = scalar_lea.vmem %s4, %s581
      %p583 = scmp.lt.s32.totalorder %s18, 3
      %s584 = scalar_select %p583, %s18, 3
      %s585 = smul.addr %s584, 8
      %s586 = scalar_lea.vmem %s5, %s585
      %p587 = scmp.lt.s32.totalorder %s18, 3
      %s588 = scalar_select %p587, %s18, 3
      %s589 = smul.addr %s588, 8
      %s590 = scalar_lea.vmem %s6, %s589
      // Predicated region
      $region37: #{_lambda_.6} parent=35 // pred_check
        %p591 = pneg %p125
      $region38: #{_lambda_.6} parent=35 // pred_check_branch
        %593 = sbr.rel (%p591) target = $region40
      $region39: #{_lambda_.6} parent=35 // pred_region
        %s594 = smul.u32 16, %s18
      $region40: #{_lambda_.6} parent=35 // pred_fallthru
        _
      // Predicated region
      $region41: #{_lambda_.6} parent=35 // pred_check
        %p595 = pneg %p151
      $region42: #{_lambda_.6} parent=35 // pred_check_branch
        %597 = sbr.rel (%p595) target = $region44
      $region43: #{_lambda_.6} parent=35 // pred_region
        _
      $region44: #{_lambda_.6} parent=35 // pred_fallthru
        _
      // Predicated region
      $region45: #{_lambda_.6} parent=35 // pred_check
        %p598 = pneg %p177
      $region46: #{_lambda_.6} parent=35 // pred_check_branch
        %600 = sbr.rel (%p598) target = $region48
      $region47: #{_lambda_.6} parent=35 // pred_region
        _
      $region48: #{_lambda_.6} parent=35 // pred_fallthru
        _
    $region36: #{_lambda_.6} parent=5 // pred_fallthru
      _
    %p601 = scmp.le.s32.totalorder 2, %s13
    // Predicated region
    $region49: #{_lambda_.6} parent=5 // pred_check
      %p602 = pneg %p601
    $region50: #{_lambda_.6} parent=5 // pred_check_branch
      %604 = sbr.rel (%p602) target = $region52
    $region51: #{_lambda_.6} parent=5 // pred_region
      %s605 = ssub.s32 %s13, 2
      // Predicated region
      $region53: #{_lambda_.6} parent=51 // pred_check
        %p606 = pneg %p131
      $region54: #{_lambda_.6} parent=51 // pred_check_branch
        %608 = sbr.rel (%p606) target = $region56
      $region55: #{_lambda_.6} parent=51 // pred_region
        %s609 = smul.u32 16, %s19
        %p610 = scmp.lt.s32.totalorder %s609, 63
        %s611 = scalar_select %p610, %s609, 63
        %s612 = smul.addr %s611, 4
        %s613 = scalar_lea.vmem %s4, %s612
      $region56: #{_lambda_.6} parent=51 // pred_fallthru
        _
      // Predicated region
      $region57: #{_lambda_.6} parent=51 // pred_check
        %p614 = pneg %p157
      $region58: #{_lambda_.6} parent=51 // pred_check_branch
        %616 = sbr.rel (%p614) target = $region60
      $region59: #{_lambda_.6} parent=51 // pred_region
        %p617 = scmp.lt.s32.totalorder %s19, 3
        %s618 = scalar_select %p617, %s19, 3
        %s619 = smul.addr %s618, 8
        %s620 = scalar_lea.vmem %s5, %s619
      $region60: #{_lambda_.6} parent=51 // pred_fallthru
        _
      // Predicated region
      $region61: #{_lambda_.6} parent=51 // pred_check
        %p621 = pneg %p183
      $region62: #{_lambda_.6} parent=51 // pred_check_branch
        %623 = sbr.rel (%p621) target = $region64
      $region63: #{_lambda_.6} parent=51 // pred_region
        %p624 = scmp.lt.s32.totalorder %s19, 3
        %s625 = scalar_select %p624, %s19, 3
        %s626 = smul.addr %s625, 8
        %s627 = scalar_lea.vmem %s6, %s626
      $region64: #{_lambda_.6} parent=51 // pred_fallthru
        _
    $region52: #{_lambda_.6} parent=5 // pred_fallthru
      _
  $region6: #{_lambda_.6} parent=0 // loop_footer
    %s17 = sadd.s32 1, %s13
  $region7: #{_lambda_.6} parent=0 // loop_footer_branch
    %12 = sbr.rel target = $region3
  $region8: #{_lambda_.6} parent=0 // loop_exit
    _

// kernel: _lambda_.4
$region0: #{_lambda_.4}
  #allocation0 [shape = 'u32[]', space=smem, size = 0x4, offset = 0x4, fixed_abs, tag = 'smem constant byte address 0x4 - core index']
  #allocation1 [shape = 'u32[72,128]{1,0:T(1,128)}', space=vmem, size = 0x9000, scoped, tag = 'internal scratch']
  %s0 = inlined_call_operand.vmem [shape: f32[512,16], index: 0, kind: input, shape index: {}]
  %s1 = inlined_call_operand.vmem [shape: bf16[16,4], index: 1, kind: input, shape index: {}]
  %s2 = inlined_call_operand.vmem [shape: bf16[512,4], index: 2, kind: output, shape index: {0}]
  %s3 = inlined_call_operand.vmem [shape: f32[32,4], index: 3, kind: output, shape index: {1}]
  %s4 = inlined_call_operand.vmem [shape: f32[32,4], index: 4, kind: output, shape index: {2}]
  %5 = xla_tuple %s2, %s3, %s4
  %s6 = sld [smem:[#allocation0]]
  $region57: #{_lambda_.4} parent=0
    _
  %s8 = ssub.s32 1, %s6
  %s9 = scalar_select 0, %s8, %s6
  loop: start=0, step=1, limit=6
  $region2: #{_lambda_.4} parent=0 // loop_pre_header
    _
  $region3: #{_lambda_.4} parent=0 // loop_header
    %s11 = sphi 0, %s15
    %p12 = scmp.ge.s32.totalorder %s11, 6
    %s21 = sphi 0, %s23
    %s24 = sphi 0, %s21
    %s25 = sphi 0, %s24
    %s41 = sphi 0, %s25
    %s45 = sphi 0, %s45
    %s47 = sphi 0, %s45
    %s48 = sphi 0, %s47
    %s62 = sphi 0, %s48
    %s68 = sphi 0, %s70
    %s71 = sphi 0, %s68
    %s72 = sphi 0, %s71
    %s88 = sphi 0, %s72
    %s94 = sphi 0, %s96
    %s97 = sphi 0, %s94
    %s98 = sphi 0, %s97
    %s114 = sphi 0, %s98
    %s120 = sphi 0, %s122
    %s123 = sphi 0, %s120
    %s124 = sphi 0, %s123
    %s140 = sphi 0, %s124
  $region4: #{_lambda_.4} parent=0 // loop_header_branch
    %14 = sbr.rel (%p12) target = $region8
  $region5: #{_lambda_.4} parent=0 // loop_body
    %s16 = ssub.s32 %s11, 1
    %s17 = ssub.s32 %s11, 2
    %s18 = sadd.s32 %s11, 1
    %s19 = ssub.s32 %s11, %s18
    %p20 = scmp.eq.s32.totalorder %s19, 0
    %s22 = sadd.s32 %s21, 1
    %s23 = scalar_select %p20, %s21, %s22
    %p26 = pneg %p20
    %p27 = scmp.eq.s32.totalorder %s11, 3
    %p28 = por %p26, %p27
    %p29 = scmp.ne.s32.totalorder %s21, %s24
    %p30 = scmp.eq.s32.totalorder %s11, 0
    %p31 = por %p29, %p30
    %p32 = scmp.ne.s32.totalorder %s21, %s24
    %p33 = scmp.eq.s32.totalorder %s16, 3
    %p34 = por %p32, %p33
    %p35 = scmp.ne.s32.totalorder %s24, %s25
    %p36 = scmp.eq.s32.totalorder %s16, 0
    %p37 = por %p35, %p36
    %p38 = scmp.ne.s32.totalorder %s24, %s25
    %p39 = scmp.eq.s32.totalorder %s17, 3
    %p40 = por %p38, %p39
    %p42 = scmp.ne.s32.totalorder %s25, %s41
    %p43 = scmp.eq.s32.totalorder %s17, 0
    %p44 = por %p42, %p43
    %s46 = sadd.s32 %s45, 1
    %p49 = scmp.eq.s32.totalorder %s11, 3
    %p50 = scmp.ne.s32.totalorder %s45, %s47
    %p51 = scmp.eq.s32.totalorder %s11, 0
    %p52 = por %p50, %p51
    %p53 = scmp.ne.s32.totalorder %s45, %s47
    %p54 = scmp.eq.s32.totalorder %s16, 3
    %p55 = por %p53, %p54
    %p56 = scmp.ne.s32.totalorder %s47, %s48
    %p57 = scmp.eq.s32.totalorder %s16, 0
    %p58 = por %p56, %p57
    %p59 = scmp.ne.s32.totalorder %s47, %s48
    %p60 = scmp.eq.s32.totalorder %s17, 3
    %p61 = por %p59, %p60
    %p63 = scmp.ne.s32.totalorder %s48, %s62
    %p64 = scmp.eq.s32.totalorder %s17, 0
    %p65 = por %p63, %p64
    %s66 = ssub.s32 %s11, %s18
    %p67 = scmp.eq.s32.totalorder %s66, 0
    %s69 = sadd.s32 %s68, 1
    %s70 = scalar_select %p67, %s68, %s69
    %p73 = pneg %p67
    %p74 = scmp.eq.s32.totalorder %s11, 3
    %p75 = por %p73, %p74
    %p76 = scmp.ne.s32.totalorder %s68, %s71
    %p77 = scmp.eq.s32.totalorder %s11, 0
    %p78 = por %p76, %p77
    %p79 = scmp.ne.s32.totalorder %s68, %s71
    %p80 = scmp.eq.s32.totalorder %s16, 3
    %p81 = por %p79, %p80
    %p82 = scmp.ne.s32.totalorder %s71, %s72
    %p83 = scmp.eq.s32.totalorder %s16, 0
    %p84 = por %p82, %p83
    %p85 = scmp.ne.s32.totalorder %s71, %s72
    %p86 = scmp.eq.s32.totalorder %s17, 3
    %p87 = por %p85, %p86
    %p89 = scmp.ne.s32.totalorder %s72, %s88
    %p90 = scmp.eq.s32.totalorder %s17, 0
    %p91 = por %p89, %p90
    %s92 = ssub.s32 %s11, %s18
    %p93 = scmp.eq.s32.totalorder %s92, 0
    %s95 = sadd.s32 %s94, 1
    %s96 = scalar_select %p93, %s94, %s95
    %p99 = pneg %p93
    %p100 = scmp.eq.s32.totalorder %s11, 3
    %p101 = por %p99, %p100
    %p102 = scmp.ne.s32.totalorder %s94, %s97
    %p103 = scmp.eq.s32.totalorder %s11, 0
    %p104 = por %p102, %p103
    %p105 = scmp.ne.s32.totalorder %s94, %s97
    %p106 = scmp.eq.s32.totalorder %s16, 3
    %p107 = por %p105, %p106
    %p108 = scmp.ne.s32.totalorder %s97, %s98
    %p109 = scmp.eq.s32.totalorder %s16, 0
    %p110 = por %p108, %p109
    %p111 = scmp.ne.s32.totalorder %s97, %s98
    %p112 = scmp.eq.s32.totalorder %s17, 3
    %p113 = por %p111, %p112
    %p115 = scmp.ne.s32.totalorder %s98, %s114
    %p116 = scmp.eq.s32.totalorder %s17, 0
    %p117 = por %p115, %p116
    %s118 = ssub.s32 %s11, %s18
    %p119 = scmp.eq.s32.totalorder %s118, 0
    %s121 = sadd.s32 %s120, 1
    %s122 = scalar_select %p119, %s120, %s121
    %p125 = pneg %p119
    %p126 = scmp.eq.s32.totalorder %s11, 3
    %p127 = por %p125, %p126
    %p128 = scmp.ne.s32.totalorder %s120, %s123
    %p129 = scmp.eq.s32.totalorder %s11, 0
    %p130 = por %p128, %p129
    %p131 = scmp.ne.s32.totalorder %s120, %s123
    %p132 = scmp.eq.s32.totalorder %s16, 3
    %p133 = por %p131, %p132
    %p134 = scmp.ne.s32.totalorder %s123, %s124
    %p135 = scmp.eq.s32.totalorder %s16, 0
    %p136 = por %p134, %p135
    %p137 = scmp.ne.s32.totalorder %s123, %s124
    %p138 = scmp.eq.s32.totalorder %s17, 3
    %p139 = por %p137, %p138
    %p141 = scmp.ne.s32.totalorder %s124, %s140
    %p142 = scmp.eq.s32.totalorder %s17, 0
    %p143 = por %p141, %p142
    %p144 = scmp.le.s32.totalorder 1, %s11
    %p145 = scmp.lt.s32.totalorder %s11, 5
    %p146 = pnand %p144, %p145
    %p147 = pneg %p146
    // Predicated region
    $region9: #{_lambda_.4} parent=5 // pred_check
      _
    $region10: #{_lambda_.4} parent=5 // pred_check_branch
      %149 = sbr.rel (%p146) target = $region12
    $region11: #{_lambda_.4} parent=5 // pred_region
      %s150 = ssub.s32 %s11, 1
      // Predicated region
      $region13: #{_lambda_.4} parent=11 // pred_check
        %p151 = pneg %p58
      $region14: #{_lambda_.4} parent=11 // pred_check_branch
        %153 = sbr.rel (%p151) target = $region16
      $region15: #{_lambda_.4} parent=11 // pred_region
        _
      $region16: #{_lambda_.4} parent=11 // pred_fallthru
        _
    $region12: #{_lambda_.4} parent=5 // pred_fallthru
      _
    %p154 = scmp.lt.s32.totalorder %s11, 4
    // Predicated region
    $region17: #{_lambda_.4} parent=5 // pred_check
      %p155 = pneg %p154
    $region18: #{_lambda_.4} parent=5 // pred_check_branch
      %157 = sbr.rel (%p155) target = $region20
    $region19: #{_lambda_.4} parent=5 // pred_region
      // Predicated region
      $region21: #{_lambda_.4} parent=19 // pred_check
        %p158 = pneg %p31
      $region22: #{_lambda_.4} parent=19 // pred_check_branch
        %160 = sbr.rel (%p158) target = $region24
      $region23: #{_lambda_.4} parent=19 // pred_region
        %s161 = smul.u32 16, %s11
        %p162 = scmp.lt.s32.totalorder %s161, 63
        %s163 = scalar_select %p162, %s161, 63
        %s164 = smul.addr %s163, 8
        %s165 = scalar_lea.vmem %s0, %s164
        %s166 = smul.u32 16, %s11
      $region24: #{_lambda_.4} parent=19 // pred_fallthru
        _
    $region20: #{_lambda_.4} parent=5 // pred_fallthru
      _
    %p167 = scmp.le.s32.totalorder 1, %s11
    %p168 = scmp.lt.s32.totalorder %s11, 5
    %p169 = pnand %p167, %p168
    %p170 = pneg %p169
    // Predicated region
    $region25: #{_lambda_.4} parent=5 // pred_check
      _
    $region26: #{_lambda_.4} parent=5 // pred_check_branch
      %172 = sbr.rel (%p169) target = $region28
    $region27: #{_lambda_.4} parent=5 // pred_region
      %s173 = ssub.s32 %s11, 1
      %s174 = smul.u32 16, %s16
      %p175 = scmp.lt.s32.totalorder %s174, 63
      %s176 = scalar_select %p175, %s174, 63
      %s177 = smul.addr %s176, 8
      %s178 = scalar_lea.vmem %s0, %s177
      %p179 = pneg %p37
      %p180 = pneg %p34
      %p181 = pneg %p58
      %p182 = pneg %p55
      %p183 = pneg %p84
      %p184 = pneg %p81
      %s185 = smul.u32 16, %s16
      %p186 = scmp.lt.s32.totalorder %s185, 63
      %s187 = scalar_select %p186, %s185, 63
      %s188 = smul.addr %s187, 4
      %s189 = scalar_lea.vmem %s2, %s188
      %p190 = pneg %p110
      %p191 = pneg %p107
      %p192 = scmp.lt.s32.totalorder %s16, 3
      %s193 = scalar_select %p192, %s16, 3
      %s194 = smul.addr %s193, 8
      %s195 = scalar_lea.vmem %s3, %s194
      %p196 = pneg %p136
      %p197 = pneg %p133
      %p198 = scmp.lt.s32.totalorder %s16, 3
      %s199 = scalar_select %p198, %s16, 3
      %s200 = smul.addr %s199, 8
      %s201 = scalar_lea.vmem %s4, %s200
      %s202 = smul.u32 16, %s16
      %p203 = scmp.lt.s32.totalorder %s202, 63
      %s204 = scalar_select %p203, %s202, 63
      %s205 = smul.addr %s204, 8
      %s206 = scalar_lea.vmem %s0, %s205
      %s207 = smul.u32 16, %s16
      %s208 = smul.u32 16, %s16
      %p209 = scmp.lt.s32.totalorder %s208, 63
      %s210 = scalar_select %p209, %s208, 63
      %s211 = smul.addr %s210, 4
      %s212 = scalar_lea.vmem %s2, %s211
      %s213 = smul.u32 16, %s16
      %p214 = scmp.lt.s32.totalorder %s16, 3
      %s215 = scalar_select %p214, %s16, 3
      %s216 = smul.addr %s215, 8
      %s217 = scalar_lea.vmem %s3, %s216
      %p218 = scmp.lt.s32.totalorder %s16, 3
      %s219 = scalar_select %p218, %s16, 3
      %s220 = smul.addr %s219, 8
      %s221 = scalar_lea.vmem %s4, %s220
      %v223 = vld [vmem:[%s206] sm:$0xff]
      %v224 = vld [vmem:[%s206 + $0x8] sm:$0xff]
      %v225 = vld [vmem:[%s206 + $0x10] sm:$0xff]
      %v226 = vld [vmem:[%s206 + $0x18] sm:$0xff]
      %v227 = vld [vmem:[%s206 + $0x20] sm:$0xff]
      %v228 = vld [vmem:[%s206 + $0x28] sm:$0xff]
      %v229 = vld [vmem:[%s206 + $0x30] sm:$0xff]
      %v230 = vld [vmem:[%s206 + $0x38] sm:$0xff]
      %v231 = vld [vmem:[%s206 + $0x40] sm:$0xff]
      %v232 = vld [vmem:[%s206 + $0x48] sm:$0xff]
      %v233 = vld [vmem:[%s206 + $0x50] sm:$0xff]
      %v234 = vld [vmem:[%s206 + $0x58] sm:$0xff]
      %v235 = vld [vmem:[%s206 + $0x60] sm:$0xff]
      %v236 = vld [vmem:[%s206 + $0x68] sm:$0xff]
      %v237 = vld [vmem:[%s206 + $0x70] sm:$0xff]
      %v238 = vld [vmem:[%s206 + $0x78] sm:$0xff]
      %v239 = vpack.c.bf16 %v224, %v223
      %v240 = vpack.c.bf16 %v226, %v225
      %v241 = vpack.c.bf16 %v228, %v227
      %v242 = vpack.c.bf16 %v230, %v229
      %v243 = vpack.c.bf16 %v232, %v231
      %v244 = vpack.c.bf16 %v234, %v233
      %v245 = vpack.c.bf16 %v236, %v235
      %v246 = vpack.c.bf16 %v238, %v237
      %v247 = vld [vmem:[%s1] sm:$0xf]
      %v248 = vld [vmem:[%s1 + $0x4] sm:$0xf]
      %v251 = vunpack.c.l.b16 %v247
      %v252 = vunpack.c.l.b16 %v248
      %v253 = vpack.c.b16 %v252, %v251
      %vm255 = vcmask 130048
      %v257 = vsel %vm255, %v239, 0
      %v260 = vsel %vm255, %v240, 0
      %v263 = vsel %vm255, %v241, 0
      %v266 = vsel %vm255, %v242, 0
      %v269 = vsel %vm255, %v243, 0
      %v272 = vsel %vm255, %v244, 0
      %v275 = vsel %vm255, %v245, 0
      %v278 = vsel %vm255, %v246, 0
      %280 = vmatpush.bf16.msra.mxu0 0
      %281 = vmatpush.bf16.msra.mxu0 0
      %282 = vmatpush.bf16.msra.mxu0 0
      %283 = vmatpush.bf16.msra.mxu0 0
      %284 = vmatpush.bf16.msra.mxu0 0
      %285 = vmatpush.bf16.msra.mxu0 0
      %286 = vmatpush.bf16.msra.mxu0 0
      %287 = vmatpush.bf16.msra.mxu0 %v253
      %288 = vmatmul.bf16.gmra.mxu0 %v257
      %v289 = vpop.f32.mrf.mxu0
      %v290 = vadd.f32 0.0, %v289
      %v291 = vpop.f32.mrf.mxu0
      %v292 = vadd.f32 0.0, %v291
      %293 = vmatmul.bf16.gmra.mxu0 %v260
      %v294 = vpop.f32.mrf.mxu0
      %v295 = vadd.f32 0.0, %v294
      %v296 = vpop.f32.mrf.mxu0
      %v297 = vadd.f32 0.0, %v296
      %298 = vmatmul.bf16.gmra.mxu0 %v263
      %v299 = vpop.f32.mrf.mxu0
      %v300 = vadd.f32 0.0, %v299
      %v301 = vpop.f32.mrf.mxu0
      %v302 = vadd.f32 0.0, %v301
      %303 = vmatmul.bf16.gmra.mxu0 %v266
      %v304 = vpop.f32.mrf.mxu0
      %v305 = vadd.f32 0.0, %v304
      %v306 = vpop.f32.mrf.mxu0
      %v307 = vadd.f32 0.0, %v306
      %308 = vmatmul.bf16.gmra.mxu0 %v269
      %v309 = vpop.f32.mrf.mxu0
      %v310 = vadd.f32 0.0, %v309
      %v311 = vpop.f32.mrf.mxu0
      %v312 = vadd.f32 0.0, %v311
      %313 = vmatmul.bf16.gmra.mxu0 %v272
      %v314 = vpop.f32.mrf.mxu0
      %v315 = vadd.f32 0.0, %v314
      %v316 = vpop.f32.mrf.mxu0
      %v317 = vadd.f32 0.0, %v316
      %318 = vmatmul.bf16.gmra.mxu0 %v275
      %v319 = vpop.f32.mrf.mxu0
      %v320 = vadd.f32 0.0, %v319
      %v321 = vpop.f32.mrf.mxu0
      %v322 = vadd.f32 0.0, %v321
      %323 = vmatmul.bf16.gmra.mxu0 %v278
      %v324 = vpop.f32.mrf.mxu0
      %v325 = vadd.f32 0.0, %v324
      %v326 = vpop.f32.mrf.mxu0
      %v327 = vadd.f32 0.0, %v326
      %328 = vdwg.mxu0
      %v329 = vpack.c.bf16 %v290, %v290
      %v330 = vpack.c.bf16 %v292, %v292
      %v331 = vpack.c.bf16 %v295, %v295
      %v332 = vpack.c.bf16 %v297, %v297
      %v333 = vpack.c.bf16 %v300, %v300
      %v334 = vpack.c.bf16 %v302, %v302
      %v335 = vpack.c.bf16 %v305, %v305
      %v336 = vpack.c.bf16 %v307, %v307
      %v337 = vpack.c.bf16 %v310, %v310
      %v338 = vpack.c.bf16 %v312, %v312
      %v339 = vpack.c.bf16 %v315, %v315
      %v340 = vpack.c.bf16 %v317, %v317
      %v341 = vpack.c.bf16 %v320, %v320
      %v342 = vpack.c.bf16 %v322, %v322
      %v343 = vpack.c.bf16 %v325, %v325
      %v344 = vpack.c.bf16 %v327, %v327
      %vm345 = vcmask 27648
      %346 = vst.msk [vmem:[%s212] sm:$0xf] %vm345, %v329
      %347 = vst.msk [vmem:[%s212 + $0x4] sm:$0xf] %vm345, %v330
      %348 = vst.msk [vmem:[%s212 + $0x8] sm:$0xf] %vm345, %v331
      %349 = vst.msk [vmem:[%s212 + $0xc] sm:$0xf] %vm345, %v332
      %350 = vst.msk [vmem:[%s212 + $0x10] sm:$0xf] %vm345, %v333
      %351 = vst.msk [vmem:[%s212 + $0x14] sm:$0xf] %vm345, %v334
      %352 = vst.msk [vmem:[%s212 + $0x18] sm:$0xf] %vm345, %v335
      %353 = vst.msk [vmem:[%s212 + $0x1c] sm:$0xf] %vm345, %v336
      %354 = vst.msk [vmem:[%s212 + $0x20] sm:$0xf] %vm345, %v337
      %355 = vst.msk [vmem:[%s212 + $0x24] sm:$0xf] %vm345, %v338
      %356 = vst.msk [vmem:[%s212 + $0x28] sm:$0xf] %vm345, %v339
      %357 = vst.msk [vmem:[%s212 + $0x2c] sm:$0xf] %vm345, %v340
      %358 = vst.msk [vmem:[%s212 + $0x30] sm:$0xf] %vm345, %v341
      %359 = vst.msk [vmem:[%s212 + $0x34] sm:$0xf] %vm345, %v342
      %360 = vst.msk [vmem:[%s212 + $0x38] sm:$0xf] %vm345, %v343
      %361 = vst.msk [vmem:[%s212 + $0x3c] sm:$0xf] %vm345, %v344
      %vm362 = vcmask 31744
      %v363 = vsel %vm362, %v290, 0.0
      %v364 = vsel %vm362, %v292, 0.0
      %v365 = vadd.f32 %v363, %v364
      %v366 = vsel %vm362, %v295, 0.0
      %v367 = vadd.f32 %v365, %v366
      %v368 = vsel %vm362, %v297, 0.0
      %v369 = vadd.f32 %v367, %v368
      %v370 = vsel %vm362, %v300, 0.0
      %v371 = vadd.f32 %v369, %v370
      %v372 = vsel %vm362, %v302, 0.0
      %v373 = vadd.f32 %v371, %v372
      %v374 = vsel %vm362, %v305, 0.0
      %v375 = vadd.f32 %v373, %v374
      %v376 = vsel %vm362, %v307, 0.0
      %v377 = vadd.f32 %v375, %v376
      %v378 = vsel %vm362, %v310, 0.0
      %v379 = vadd.f32 %v377, %v378
      %v380 = vsel %vm362, %v312, 0.0
      %v381 = vadd.f32 %v379, %v380
      %v382 = vsel %vm362, %v315, 0.0
      %v383 = vadd.f32 %v381, %v382
      %v384 = vsel %vm362, %v317, 0.0
      %v385 = vadd.f32 %v383, %v384
      %v386 = vsel %vm362, %v320, 0.0
      %v387 = vadd.f32 %v385, %v386
      %v388 = vsel %vm362, %v322, 0.0
      %v389 = vadd.f32 %v387, %v388
      %v390 = vsel %vm362, %v325, 0.0
      %v391 = vadd.f32 %v389, %v390
      %v392 = vsel %vm362, %v327, 0.0
      %v393 = vadd.f32 %v391, %v392
      %v394 = vrot.slane %v393, 4
      %v395 = vadd.f32 %v393, %v394
      %v396 = vrot.slane %v395, 2
      %v397 = vadd.f32 %v395, %v396
      %v398 = vrot.slane %v397, 1
      %v399 = vadd.f32 %v397, %v398
      %400 = vst.msk [vmem:[%s217] sm:$0xff] %vm362, %v399
      %v401 = vmul.f32 %v290, %v290
      %v402 = vmul.f32 %v292, %v292
      %v403 = vmul.f32 %v295, %v295
      %v404 = vmul.f32 %v297, %v297
      %v405 = vmul.f32 %v300, %v300
      %v406 = vmul.f32 %v302, %v302
      %v407 = vmul.f32 %v305, %v305
      %v408 = vmul.f32 %v307, %v307
      %v409 = vmul.f32 %v310, %v310
      %v410 = vmul.f32 %v312, %v312
      %v411 = vmul.f32 %v315, %v315
      %v412 = vmul.f32 %v317, %v317
      %v413 = vmul.f32 %v320, %v320
      %v414 = vmul.f32 %v322, %v322
      %v415 = vmul.f32 %v325, %v325
      %v416 = vmul.f32 %v327, %v327
      %v417 = vsel %vm362, %v401, 0.0
      %v418 = vsel %vm362, %v402, 0.0
      %v419 = vadd.f32 %v417, %v418
      %v420 = vsel %vm362, %v403, 0.0
      %v421 = vadd.f32 %v419, %v420
      %v422 = vsel %vm362, %v404, 0.0
      %v423 = vadd.f32 %v421, %v422
      %v424 = vsel %vm362, %v405, 0.0
      %v425 = vadd.f32 %v423, %v424
      %v426 = vsel %vm362, %v406, 0.0
      %v427 = vadd.f32 %v425, %v426
      %v428 = vsel %vm362, %v407, 0.0
      %v429 = vadd.f32 %v427, %v428
      %v430 = vsel %vm362, %v408, 0.0
      %v431 = vadd.f32 %v429, %v430
      %v432 = vsel %vm362, %v409, 0.0
      %v433 = vadd.f32 %v431, %v432
      %v434 = vsel %vm362, %v410, 0.0
      %v435 = vadd.f32 %v433, %v434
      %v436 = vsel %vm362, %v411, 0.0
      %v437 = vadd.f32 %v435, %v436
      %v438 = vsel %vm362, %v412, 0.0
      %v439 = vadd.f32 %v437, %v438
      %v440 = vsel %vm362, %v413, 0.0
      %v441 = vadd.f32 %v439, %v440
      %v442 = vsel %vm362, %v414, 0.0
      %v443 = vadd.f32 %v441, %v442
      %v444 = vsel %vm362, %v415, 0.0
      %v445 = vadd.f32 %v443, %v444
      %v446 = vsel %vm362, %v416, 0.0
      %v447 = vadd.f32 %v445, %v446
      %v448 = vrot.slane %v447, 4
      %v449 = vadd.f32 %v447, %v448
      %v450 = vrot.slane %v449, 2
      %v451 = vadd.f32 %v449, %v450
      %v452 = vrot.slane %v451, 1
      %v453 = vadd.f32 %v451, %v452
      %454 = vst.msk [vmem:[%s221] sm:$0xff] %vm362, %v453
      %s455 = smul.u32 16, %s16
      %p456 = scmp.lt.s32.totalorder %s455, 63
      %s457 = scalar_select %p456, %s455, 63
      %s458 = smul.addr %s457, 4
      %s459 = scalar_lea.vmem %s2, %s458
      %p460 = scmp.lt.s32.totalorder %s16, 3
      %s461 = scalar_select %p460, %s16, 3
      %s462 = smul.addr %s461, 8
      %s463 = scalar_lea.vmem %s3, %s462
      %p464 = scmp.lt.s32.totalorder %s16, 3
      %s465 = scalar_select %p464, %s16, 3
      %s466 = smul.addr %s465, 8
      %s467 = scalar_lea.vmem %s4, %s466
      // Predicated region
      $region29: #{_lambda_.4} parent=27 // pred_check
        %p468 = pneg %p81
      $region30: #{_lambda_.4} parent=27 // pred_check_branch
        %470 = sbr.rel (%p468) target = $region32
      $region31: #{_lambda_.4} parent=27 // pred_region
        %s471 = smul.u32 16, %s16
      $region32: #{_lambda_.4} parent=27 // pred_fallthru
        _
      // Predicated region
      $region33: #{_lambda_.4} parent=27 // pred_check
        %p472 = pneg %p107
      $region34: #{_lambda_.4} parent=27 // pred_check_branch
        %474 = sbr.rel (%p472) target = $region36
      $region35: #{_lambda_.4} parent=27 // pred_region
        _
      $region36: #{_lambda_.4} parent=27 // pred_fallthru
        _
      // Predicated region
      $region37: #{_lambda_.4} parent=27 // pred_check
        %p475 = pneg %p133
      $region38: #{_lambda_.4} parent=27 // pred_check_branch
        %477 = sbr.rel (%p475) target = $region40
      $region39: #{_lambda_.4} parent=27 // pred_region
        _
      $region40: #{_lambda_.4} parent=27 // pred_fallthru
        _
    $region28: #{_lambda_.4} parent=5 // pred_fallthru
      _
    %p478 = scmp.le.s32.totalorder 2, %s11
    // Predicated region
    $region41: #{_lambda_.4} parent=5 // pred_check
      %p479 = pneg %p478
    $region42: #{_lambda_.4} parent=5 // pred_check_branch
      %481 = sbr.rel (%p479) target = $region44
    $region43: #{_lambda_.4} parent=5 // pred_region
      %s482 = ssub.s32 %s11, 2
      // Predicated region
      $region45: #{_lambda_.4} parent=43 // pred_check
        %p483 = pneg %p87
      $region46: #{_lambda_.4} parent=43 // pred_check_branch
        %485 = sbr.rel (%p483) target = $region48
      $region47: #{_lambda_.4} parent=43 // pred_region
        %s486 = smul.u32 16, %s17
        %p487 = scmp.lt.s32.totalorder %s486, 63
        %s488 = scalar_select %p487, %s486, 63
        %s489 = smul.addr %s488, 4
        %s490 = scalar_lea.vmem %s2, %s489
      $region48: #{_lambda_.4} parent=43 // pred_fallthru
        _
      // Predicated region
      $region49: #{_lambda_.4} parent=43 // pred_check
        %p491 = pneg %p113
      $region50: #{_lambda_.4} parent=43 // pred_check_branch
        %493 = sbr.rel (%p491) target = $region52
      $region51: #{_lambda_.4} parent=43 // pred_region
        %p494 = scmp.lt.s32.totalorder %s17, 3
        %s495 = scalar_select %p494, %s17, 3
        %s496 = smul.addr %s495, 8
        %s497 = scalar_lea.vmem %s3, %s496
      $region52: #{_lambda_.4} parent=43 // pred_fallthru
        _
      // Predicated region
      $region53: #{_lambda_.4} parent=43 // pred_check
        %p498 = pneg %p139
      $region54: #{_lambda_.4} parent=43 // pred_check_branch
        %500 = sbr.rel (%p498) target = $region56
      $region55: #{_lambda_.4} parent=43 // pred_region
        %p501 = scmp.lt.s32.totalorder %s17, 3
        %s502 = scalar_select %p501, %s17, 3
        %s503 = smul.addr %s502, 8
        %s504 = scalar_lea.vmem %s4, %s503
      $region56: #{_lambda_.4} parent=43 // pred_fallthru
        _
    $region44: #{_lambda_.4} parent=5 // pred_fallthru
      _
  $region6: #{_lambda_.4} parent=0 // loop_footer
    %s15 = sadd.s32 1, %s11
  $region7: #{_lambda_.4} parent=0 // loop_footer_branch
    %10 = sbr.rel target = $region3
  $region8: #{_lambda_.4} parent=0 // loop_exit
    _

// kernel: _lambda_.7
$region0: #{_lambda_.7}
  #allocation0 [shape = 'u32[]', space=smem, size = 0x4, offset = 0x4, fixed_abs, tag = 'smem constant byte address 0x4 - core index']
  #allocation1 [shape = 'u32[72,128]{1,0:T(1,128)}', space=vmem, size = 0x9000, scoped, tag = 'internal scratch']
  %s0 = inlined_call_operand.vmem [shape: bf16[512,16], index: 0, kind: input, shape index: {}]
  %s1 = inlined_call_operand.vmem [shape: f32[512,16], index: 1, kind: input, shape index: {}]
  %s2 = inlined_call_operand.vmem [shape: f32[1,16], index: 2, kind: input, shape index: {}]
  %s3 = inlined_call_operand.vmem [shape: f32[1,16], index: 3, kind: input, shape index: {}]
  %s4 = inlined_call_operand.vmem [shape: f32[512,16], index: 4, kind: output, shape index: {}]
  %s5 = sld [smem:[#allocation0]]
  $region49: #{_lambda_.7} parent=0
    _
  %s7 = ssub.s32 1, %s5
  %s8 = scalar_select 0, %s7, %s5
  loop: start=0, step=1, limit=4
  $region2: #{_lambda_.7} parent=0 // loop_pre_header
    _
  $region3: #{_lambda_.7} parent=0 // loop_header
    %s10 = sphi 0, %s14
    %p11 = scmp.ge.s32.totalorder %s10, 4
    %s20 = sphi 0, %s22
    %s23 = sphi 0, %s20
    %s24 = sphi 0, %s23
    %s40 = sphi 0, %s24
    %s46 = sphi 0, %s48
    %s49 = sphi 0, %s46
    %s50 = sphi 0, %s49
    %s66 = sphi 0, %s50
    %s70 = sphi 0, %s70
    %s72 = sphi 0, %s70
    %s73 = sphi 0, %s72
    %s87 = sphi 0, %s73
    %s91 = sphi 0, %s91
    %s93 = sphi 0, %s91
    %s94 = sphi 0, %s93
    %s108 = sphi 0, %s94
    %s114 = sphi 0, %s116
    %s117 = sphi 0, %s114
    %s118 = sphi 0, %s117
    %s134 = sphi 0, %s118
  $region4: #{_lambda_.7} parent=0 // loop_header_branch
    %13 = sbr.rel (%p11) target = $region8
  $region5: #{_lambda_.7} parent=0 // loop_body
    %s15 = ssub.s32 %s10, 1
    %s16 = ssub.s32 %s10, 2
    %s17 = sadd.s32 %s10, 1
    %s18 = ssub.s32 %s10, %s17
    %p19 = scmp.eq.s32.totalorder %s18, 0
    %s21 = sadd.s32 %s20, 1
    %s22 = scalar_select %p19, %s20, %s21
    %p25 = pneg %p19
    %p26 = scmp.eq.s32.totalorder %s10, 1
    %p27 = por %p25, %p26
    %p28 = scmp.ne.s32.totalorder %s20, %s23
    %p29 = scmp.eq.s32.totalorder %s10, 0
    %p30 = por %p28, %p29
    %p31 = scmp.ne.s32.totalorder %s20, %s23
    %p32 = scmp.eq.s32.totalorder %s15, 1
    %p33 = por %p31, %p32
    %p34 = scmp.ne.s32.totalorder %s23, %s24
    %p35 = scmp.eq.s32.totalorder %s15, 0
    %p36 = por %p34, %p35
    %p37 = scmp.ne.s32.totalorder %s23, %s24
    %p38 = scmp.eq.s32.totalorder %s16, 1
    %p39 = por %p37, %p38
    %p41 = scmp.ne.s32.totalorder %s24, %s40
    %p42 = scmp.eq.s32.totalorder %s16, 0
    %p43 = por %p41, %p42
    %s44 = ssub.s32 %s10, %s17
    %p45 = scmp.eq.s32.totalorder %s44, 0
    %s47 = sadd.s32 %s46, 1
    %s48 = scalar_select %p45, %s46, %s47
    %p51 = pneg %p45
    %p52 = scmp.eq.s32.totalorder %s10, 1
    %p53 = por %p51, %p52
    %p54 = scmp.ne.s32.totalorder %s46, %s49
    %p55 = scmp.eq.s32.totalorder %s10, 0
    %p56 = por %p54, %p55
    %p57 = scmp.ne.s32.totalorder %s46, %s49
    %p58 = scmp.eq.s32.totalorder %s15, 1
    %p59 = por %p57, %p58
    %p60 = scmp.ne.s32.totalorder %s49, %s50
    %p61 = scmp.eq.s32.totalorder %s15, 0
    %p62 = por %p60, %p61
    %p63 = scmp.ne.s32.totalorder %s49, %s50
    %p64 = scmp.eq.s32.totalorder %s16, 1
    %p65 = por %p63, %p64
    %p67 = scmp.ne.s32.totalorder %s50, %s66
    %p68 = scmp.eq.s32.totalorder %s16, 0
    %p69 = por %p67, %p68
    %s71 = sadd.s32 %s70, 1
    %p74 = scmp.eq.s32.totalorder %s10, 1
    %p75 = scmp.ne.s32.totalorder %s70, %s72
    %p76 = scmp.eq.s32.totalorder %s10, 0
    %p77 = por %p75, %p76
    %p78 = scmp.ne.s32.totalorder %s70, %s72
    %p79 = scmp.eq.s32.totalorder %s15, 1
    %p80 = por %p78, %p79
    %p81 = scmp.ne.s32.totalorder %s72, %s73
    %p82 = scmp.eq.s32.totalorder %s15, 0
    %p83 = por %p81, %p82
    %p84 = scmp.ne.s32.totalorder %s72, %s73
    %p85 = scmp.eq.s32.totalorder %s16, 1
    %p86 = por %p84, %p85
    %p88 = scmp.ne.s32.totalorder %s73, %s87
    %p89 = scmp.eq.s32.totalorder %s16, 0
    %p90 = por %p88, %p89
    %s92 = sadd.s32 %s91, 1
    %p95 = scmp.eq.s32.totalorder %s10, 1
    %p96 = scmp.ne.s32.totalorder %s91, %s93
    %p97 = scmp.eq.s32.totalorder %s10, 0
    %p98 = por %p96, %p97
    %p99 = scmp.ne.s32.totalorder %s91, %s93
    %p100 = scmp.eq.s32.totalorder %s15, 1
    %p101 = por %p99, %p100
    %p102 = scmp.ne.s32.totalorder %s93, %s94
    %p103 = scmp.eq.s32.totalorder %s15, 0
    %p104 = por %p102, %p103
    %p105 = scmp.ne.s32.totalorder %s93, %s94
    %p106 = scmp.eq.s32.totalorder %s16, 1
    %p107 = por %p105, %p106
    %p109 = scmp.ne.s32.totalorder %s94, %s108
    %p110 = scmp.eq.s32.totalorder %s16, 0
    %p111 = por %p109, %p110
    %s112 = ssub.s32 %s10, %s17
    %p113 = scmp.eq.s32.totalorder %s112, 0
    %s115 = sadd.s32 %s114, 1
    %s116 = scalar_select %p113, %s114, %s115
    %p119 = pneg %p113
    %p120 = scmp.eq.s32.totalorder %s10, 1
    %p121 = por %p119, %p120
    %p122 = scmp.ne.s32.totalorder %s114, %s117
    %p123 = scmp.eq.s32.totalorder %s10, 0
    %p124 = por %p122, %p123
    %p125 = scmp.ne.s32.totalorder %s114, %s117
    %p126 = scmp.eq.s32.totalorder %s15, 1
    %p127 = por %p125, %p126
    %p128 = scmp.ne.s32.totalorder %s117, %s118
    %p129 = scmp.eq.s32.totalorder %s15, 0
    %p130 = por %p128, %p129
    %p131 = scmp.ne.s32.totalorder %s117, %s118
    %p132 = scmp.eq.s32.totalorder %s16, 1
    %p133 = por %p131, %p132
    %p135 = scmp.ne.s32.totalorder %s118, %s134
    %p136 = scmp.eq.s32.totalorder %s16, 0
    %p137 = por %p135, %p136
    %p138 = scmp.le.s32.totalorder 1, %s10
    %p139 = scmp.lt.s32.totalorder %s10, 3
    %p140 = pnand %p138, %p139
    %p141 = pneg %p140
    // Predicated region
    $region9: #{_lambda_.7} parent=5 // pred_check
      _
    $region10: #{_lambda_.7} parent=5 // pred_check_branch
      %143 = sbr.rel (%p140) target = $region12
    $region11: #{_lambda_.7} parent=5 // pred_region
      %s144 = ssub.s32 %s10, 1
      // Predicated region
      $region13: #{_lambda_.7} parent=11 // pred_check
        %p145 = pneg %p83
      $region14: #{_lambda_.7} parent=11 // pred_check_branch
        %147 = sbr.rel (%p145) target = $region16
      $region15: #{_lambda_.7} parent=11 // pred_region
        _
      $region16: #{_lambda_.7} parent=11 // pred_fallthru
        _
      // Predicated region
      $region17: #{_lambda_.7} parent=11 // pred_check
        %p148 = pneg %p104
      $region18: #{_lambda_.7} parent=11 // pred_check_branch
        %150 = sbr.rel (%p148) target = $region20
      $region19: #{_lambda_.7} parent=11 // pred_region
        _
      $region20: #{_lambda_.7} parent=11 // pred_fallthru
        _
    $region12: #{_lambda_.7} parent=5 // pred_fallthru
      _
    %p151 = scmp.lt.s32.totalorder %s10, 2
    // Predicated region
    $region21: #{_lambda_.7} parent=5 // pred_check
      %p152 = pneg %p151
    $region22: #{_lambda_.7} parent=5 // pred_check_branch
      %154 = sbr.rel (%p152) target = $region24
    $region23: #{_lambda_.7} parent=5 // pred_region
      // Predicated region
      $region25: #{_lambda_.7} parent=23 // pred_check
        %p155 = pneg %p30
      $region26: #{_lambda_.7} parent=23 // pred_check_branch
        %157 = sbr.rel (%p155) target = $region28
      $region27: #{_lambda_.7} parent=23 // pred_region
        %s158 = smul.u32 32, %s10
        %p159 = scmp.lt.s32.totalorder %s158, 63
        %s160 = scalar_select %p159, %s158, 63
        %s161 = smul.addr %s160, 4
        %s162 = scalar_lea.vmem %s0, %s161
        %s163 = smul.u32 32, %s10
      $region28: #{_lambda_.7} parent=23 // pred_fallthru
        _
      // Predicated region
      $region29: #{_lambda_.7} parent=23 // pred_check
        %p164 = pneg %p56
      $region30: #{_lambda_.7} parent=23 // pred_check_branch
        %166 = sbr.rel (%p164) target = $region32
      $region31: #{_lambda_.7} parent=23 // pred_region
        %s167 = smul.u32 32, %s10
        %p168 = scmp.lt.s32.totalorder %s167, 63
        %s169 = scalar_select %p168, %s167, 63
        %s170 = smul.addr %s169, 8
        %s171 = scalar_lea.vmem %s1, %s170
        %s172 = smul.u32 32, %s10
      $region32: #{_lambda_.7} parent=23 // pred_fallthru
        _
    $region24: #{_lambda_.7} parent=5 // pred_fallthru
      _
    %p173 = scmp.le.s32.totalorder 1, %s10
    %p174 = scmp.lt.s32.totalorder %s10, 3
    %p175 = pnand %p173, %p174
    %p176 = pneg %p175
    // Predicated region
    $region33: #{_lambda_.7} parent=5 // pred_check
      _
    $region34: #{_lambda_.7} parent=5 // pred_check_branch
      %178 = sbr.rel (%p175) target = $region36
    $region35: #{_lambda_.7} parent=5 // pred_region
      %s179 = ssub.s32 %s10, 1
      %s180 = smul.u32 32, %s15
      %p181 = scmp.lt.s32.totalorder %s180, 63
      %s182 = scalar_select %p181, %s180, 63
      %s183 = smul.addr %s182, 4
      %s184 = scalar_lea.vmem %s0, %s183
      %p185 = pneg %p36
      %p186 = pneg %p33
      %s187 = smul.u32 32, %s15
      %p188 = scmp.lt.s32.totalorder %s187, 63
      %s189 = scalar_select %p188, %s187, 63
      %s190 = smul.addr %s189, 8
      %s191 = scalar_lea.vmem %s1, %s190
      %p192 = pneg %p62
      %p193 = pneg %p59
      %p194 = pneg %p83
      %p195 = pneg %p80
      %p196 = pneg %p104
      %p197 = pneg %p101
      %p198 = pneg %p130
      %p199 = pneg %p127
      %s200 = smul.u32 32, %s15
      %p201 = scmp.lt.s32.totalorder %s200, 63
      %s202 = scalar_select %p201, %s200, 63
      %s203 = smul.addr %s202, 8
      %s204 = scalar_lea.vmem %s4, %s203
      %s205 = smul.u32 32, %s15
      %p206 = scmp.lt.s32.totalorder %s205, 63
      %s207 = scalar_select %p206, %s205, 63
      %s208 = smul.addr %s207, 4
      %s209 = scalar_lea.vmem %s0, %s208
      %s210 = smul.u32 32, %s15
      %s211 = smul.u32 32, %s15
      %p212 = scmp.lt.s32.totalorder %s211, 63
      %s213 = scalar_select %p212, %s211, 63
      %s214 = smul.addr %s213, 8
      %s215 = scalar_lea.vmem %s1, %s214
      %s216 = smul.u32 32, %s15
      %s217 = smul.u32 32, %s15
      %p218 = scmp.lt.s32.totalorder %s217, 63
      %s219 = scalar_select %p218, %s217, 63
      %s220 = smul.addr %s219, 8
      %s221 = scalar_lea.vmem %s4, %s220
      %s222 = smul.u32 32, %s15
      %v223 = vld [vmem:[%s209] sm:$0xf]
      %v224 = vld [vmem:[%s209 + $0x4] sm:$0xf]
      %v225 = vld [vmem:[%s209 + $0x8] sm:$0xf]
      %v226 = vld [vmem:[%s209 + $0xc] sm:$0xf]
      %v227 = vld [vmem:[%s209 + $0x10] sm:$0xf]
      %v228 = vld [vmem:[%s209 + $0x14] sm:$0xf]
      %v229 = vld [vmem:[%s209 + $0x18] sm:$0xf]
      %v230 = vld [vmem:[%s209 + $0x1c] sm:$0xf]
      %v231 = vld [vmem:[%s209 + $0x20] sm:$0xf]
      %v232 = vld [vmem:[%s209 + $0x24] sm:$0xf]
      %v233 = vld [vmem:[%s209 + $0x28] sm:$0xf]
      %v234 = vld [vmem:[%s209 + $0x2c] sm:$0xf]
      %v235 = vld [vmem:[%s209 + $0x30] sm:$0xf]
      %v236 = vld [vmem:[%s209 + $0x34] sm:$0xf]
      %v237 = vld [vmem:[%s209 + $0x38] sm:$0xf]
      %v238 = vld [vmem:[%s209 + $0x3c] sm:$0xf]
      %v239 = vld [vmem:[%s209 + $0x40] sm:$0xf]
      %v240 = vld [vmem:[%s209 + $0x44] sm:$0xf]
      %v241 = vld [vmem:[%s209 + $0x48] sm:$0xf]
      %v242 = vld [vmem:[%s209 + $0x4c] sm:$0xf]
      %v243 = vld [vmem:[%s209 + $0x50] sm:$0xf]
      %v244 = vld [vmem:[%s209 + $0x54] sm:$0xf]
      %v245 = vld [vmem:[%s209 + $0x58] sm:$0xf]
      %v246 = vld [vmem:[%s209 + $0x5c] sm:$0xf]
      %v247 = vld [vmem:[%s209 + $0x60] sm:$0xf]
      %v248 = vld [vmem:[%s209 + $0x64] sm:$0xf]
      %v249 = vld [vmem:[%s209 + $0x68] sm:$0xf]
      %v250 = vld [vmem:[%s209 + $0x6c] sm:$0xf]
      %v251 = vld [vmem:[%s209 + $0x70] sm:$0xf]
      %v252 = vld [vmem:[%s209 + $0x74] sm:$0xf]
      %v253 = vld [vmem:[%s209 + $0x78] sm:$0xf]
      %v254 = vld [vmem:[%s209 + $0x7c] sm:$0xf]
      %v255 = vunpack.c.l.bf16 %v223
      %v256 = vunpack.c.l.bf16 %v224
      %v257 = vunpack.c.l.bf16 %v225
      %v258 = vunpack.c.l.bf16 %v226
      %v259 = vunpack.c.l.bf16 %v227
      %v260 = vunpack.c.l.bf16 %v228
      %v261 = vunpack.c.l.bf16 %v229
      %v262 = vunpack.c.l.bf16 %v230
      %v263 = vunpack.c.l.bf16 %v231
      %v264 = vunpack.c.l.bf16 %v232
      %v265 = vunpack.c.l.bf16 %v233
      %v266 = vunpack.c.l.bf16 %v234
      %v267 = vunpack.c.l.bf16 %v235
      %v268 = vunpack.c.l.bf16 %v236
      %v269 = vunpack.c.l.bf16 %v237
      %v270 = vunpack.c.l.bf16 %v238
      %v271 = vunpack.c.l.bf16 %v239
      %v272 = vunpack.c.l.bf16 %v240
      %v273 = vunpack.c.l.bf16 %v241
      %v274 = vunpack.c.l.bf16 %v242
      %v275 = vunpack.c.l.bf16 %v243
      %v276 = vunpack.c.l.bf16 %v244
      %v277 = vunpack.c.l.bf16 %v245
      %v278 = vunpack.c.l.bf16 %v246
      %v279 = vunpack.c.l.bf16 %v247
      %v280 = vunpack.c.l.bf16 %v248
      %v281 = vunpack.c.l.bf16 %v249
      %v282 = vunpack.c.l.bf16 %v250
      %v283 = vunpack.c.l.bf16 %v251
      %v284 = vunpack.c.l.bf16 %v252
      %v285 = vunpack.c.l.bf16 %v253
      %v286 = vunpack.c.l.bf16 %v254
      %v287 = vld [vmem:[%s2] sm:$0x1]
      %v289 = vperm.slane %v287, 0
      %v291 = vmul.f32 %v255, %v289
      %v292 = vmul.f32 %v256, %v289
      %v293 = vmul.f32 %v257, %v289
      %v294 = vmul.f32 %v258, %v289
      %v295 = vmul.f32 %v259, %v289
      %v296 = vmul.f32 %v260, %v289
      %v297 = vmul.f32 %v261, %v289
      %v298 = vmul.f32 %v262, %v289
      %v299 = vmul.f32 %v263, %v289
      %v300 = vmul.f32 %v264, %v289
      %v301 = vmul.f32 %v265, %v289
      %v302 = vmul.f32 %v266, %v289
      %v303 = vmul.f32 %v267, %v289
      %v304 = vmul.f32 %v268, %v289
      %v305 = vmul.f32 %v269, %v289
      %v306 = vmul.f32 %v270, %v289
      %v307 = vmul.f32 %v271, %v289
      %v308 = vmul.f32 %v272, %v289
      %v309 = vmul.f32 %v273, %v289
      %v310 = vmul.f32 %v274, %v289
      %v311 = vmul.f32 %v275, %v289
      %v312 = vmul.f32 %v276, %v289
      %v313 = vmul.f32 %v277, %v289
      %v314 = vmul.f32 %v278, %v289
      %v315 = vmul.f32 %v279, %v289
      %v316 = vmul.f32 %v280, %v289
      %v317 = vmul.f32 %v281, %v289
      %v318 = vmul.f32 %v282, %v289
      %v319 = vmul.f32 %v283, %v289
      %v320 = vmul.f32 %v284, %v289
      %v321 = vmul.f32 %v285, %v289
      %v322 = vmul.f32 %v286, %v289
      %v323 = vld [vmem:[%s3] sm:$0x1]
      %v325 = vperm.slane %v323, 0
      %v327 = vadd.f32 %v291, %v325
      %v328 = vadd.f32 %v292, %v325
      %v329 = vadd.f32 %v293, %v325
      %v330 = vadd.f32 %v294, %v325
      %v331 = vadd.f32 %v295, %v325
      %v332 = vadd.f32 %v296, %v325
      %v333 = vadd.f32 %v297, %v325
      %v334 = vadd.f32 %v298, %v325
      %v335 = vadd.f32 %v299, %v325
      %v336 = vadd.f32 %v300, %v325
      %v337 = vadd.f32 %v301, %v325
      %v338 = vadd.f32 %v302, %v325
      %v339 = vadd.f32 %v303, %v325
      %v340 = vadd.f32 %v304, %v325
      %v341 = vadd.f32 %v305, %v325
      %v342 = vadd.f32 %v306, %v325
      %v343 = vadd.f32 %v307, %v325
      %v344 = vadd.f32 %v308, %v325
      %v345 = vadd.f32 %v309, %v325
      %v346 = vadd.f32 %v310, %v325
      %v347 = vadd.f32 %v311, %v325
      %v348 = vadd.f32 %v312, %v325
      %v349 = vadd.f32 %v313, %v325
      %v350 = vadd.f32 %v314, %v325
      %v351 = vadd.f32 %v315, %v325
      %v352 = vadd.f32 %v316, %v325
      %v353 = vadd.f32 %v317, %v325
      %v354 = vadd.f32 %v318, %v325
      %v355 = vadd.f32 %v319, %v325
      %v356 = vadd.f32 %v320, %v325
      %v357 = vadd.f32 %v321, %v325
      %v358 = vadd.f32 %v322, %v325
      %v359 = vld [vmem:[%s215] sm:$0xff]
      %v360 = vld [vmem:[%s215 + $0x8] sm:$0xff]
      %v361 = vld [vmem:[%s215 + $0x10] sm:$0xff]
      %v362 = vld [vmem:[%s215 + $0x18] sm:$0xff]
      %v363 = vld [vmem:[%s215 + $0x20] sm:$0xff]
      %v364 = vld [vmem:[%s215 + $0x28] sm:$0xff]
      %v365 = vld [vmem:[%s215 + $0x30] sm:$0xff]
      %v366 = vld [vmem:[%s215 + $0x38] sm:$0xff]
      %v367 = vld [vmem:[%s215 + $0x40] sm:$0xff]
      %v368 = vld [vmem:[%s215 + $0x48] sm:$0xff]
      %v369 = vld [vmem:[%s215 + $0x50] sm:$0xff]
      %v370 = vld [vmem:[%s215 + $0x58] sm:$0xff]
      %v371 = vld [vmem:[%s215 + $0x60] sm:$0xff]
      %v372 = vld [vmem:[%s215 + $0x68] sm:$0xff]
      %v373 = vld [vmem:[%s215 + $0x70] sm:$0xff]
      %v374 = vld [vmem:[%s215 + $0x78] sm:$0xff]
      %v375 = vld [vmem:[%s215 + $0x80] sm:$0xff]
      %v376 = vld [vmem:[%s215 + $0x88] sm:$0xff]
      %v377 = vld [vmem:[%s215 + $0x90] sm:$0xff]
      %v378 = vld [vmem:[%s215 + $0x98] sm:$0xff]
      %v379 = vld [vmem:[%s215 + $0xa0] sm:$0xff]
      %v380 = vld [vmem:[%s215 + $0xa8] sm:$0xff]
      %v381 = vld [vmem:[%s215 + $0xb0] sm:$0xff]
      %v382 = vld [vmem:[%s215 + $0xb8] sm:$0xff]
      %v383 = vld [vmem:[%s215 + $0xc0] sm:$0xff]
      %v384 = vld [vmem:[%s215 + $0xc8] sm:$0xff]
      %v385 = vld [vmem:[%s215 + $0xd0] sm:$0xff]
      %v386 = vld [vmem:[%s215 + $0xd8] sm:$0xff]
      %v387 = vld [vmem:[%s215 + $0xe0] sm:$0xff]
      %v388 = vld [vmem:[%s215 + $0xe8] sm:$0xff]
      %v389 = vld [vmem:[%s215 + $0xf0] sm:$0xff]
      %v390 = vld [vmem:[%s215 + $0xf8] sm:$0xff]
      %v391 = vadd.f32 %v327, %v359
      %v392 = vadd.f32 %v328, %v360
      %v393 = vadd.f32 %v329, %v361
      %v394 = vadd.f32 %v330, %v362
      %v395 = vadd.f32 %v331, %v363
      %v396 = vadd.f32 %v332, %v364
      %v397 = vadd.f32 %v333, %v365
      %v398 = vadd.f32 %v334, %v366
      %v399 = vadd.f32 %v335, %v367
      %v400 = vadd.f32 %v336, %v368
      %v401 = vadd.f32 %v337, %v369
      %v402 = vadd.f32 %v338, %v370
      %v403 = vadd.f32 %v339, %v371
      %v404 = vadd.f32 %v340, %v372
      %v405 = vadd.f32 %v341, %v373
      %v406 = vadd.f32 %v342, %v374
      %v407 = vadd.f32 %v343, %v375
      %v408 = vadd.f32 %v344, %v376
      %v409 = vadd.f32 %v345, %v377
      %v410 = vadd.f32 %v346, %v378
      %v411 = vadd.f32 %v347, %v379
      %v412 = vadd.f32 %v348, %v380
      %v413 = vadd.f32 %v349, %v381
      %v414 = vadd.f32 %v350, %v382
      %v415 = vadd.f32 %v351, %v383
      %v416 = vadd.f32 %v352, %v384
      %v417 = vadd.f32 %v353, %v385
      %v418 = vadd.f32 %v354, %v386
      %v419 = vadd.f32 %v355, %v387
      %v420 = vadd.f32 %v356, %v388
      %v421 = vadd.f32 %v357, %v389
      %v422 = vadd.f32 %v358, %v390
      %v423 = vmax.f32 %v391, 0.0
      %v424 = vmax.f32 %v392, 0.0
      %v425 = vmax.f32 %v393, 0.0
      %v426 = vmax.f32 %v394, 0.0
      %v427 = vmax.f32 %v395, 0.0
      %v428 = vmax.f32 %v396, 0.0
      %v429 = vmax.f32 %v397, 0.0
      %v430 = vmax.f32 %v398, 0.0
      %v431 = vmax.f32 %v399, 0.0
      %v432 = vmax.f32 %v400, 0.0
      %v433 = vmax.f32 %v401, 0.0
      %v434 = vmax.f32 %v402, 0.0
      %v435 = vmax.f32 %v403, 0.0
      %v436 = vmax.f32 %v404, 0.0
      %v437 = vmax.f32 %v405, 0.0
      %v438 = vmax.f32 %v406, 0.0
      %v439 = vmax.f32 %v407, 0.0
      %v440 = vmax.f32 %v408, 0.0
      %v441 = vmax.f32 %v409, 0.0
      %v442 = vmax.f32 %v410, 0.0
      %v443 = vmax.f32 %v411, 0.0
      %v444 = vmax.f32 %v412, 0.0
      %v445 = vmax.f32 %v413, 0.0
      %v446 = vmax.f32 %v414, 0.0
      %v447 = vmax.f32 %v415, 0.0
      %v448 = vmax.f32 %v416, 0.0
      %v449 = vmax.f32 %v417, 0.0
      %v450 = vmax.f32 %v418, 0.0
      %v451 = vmax.f32 %v419, 0.0
      %v452 = vmax.f32 %v420, 0.0
      %v453 = vmax.f32 %v421, 0.0
      %v454 = vmax.f32 %v422, 0.0
      %vm455 = vcmask 130048
      %456 = vst.msk [vmem:[%s221] sm:$0xff] %vm455, %v423
      %457 = vst.msk [vmem:[%s221 + $0x8] sm:$0xff] %vm455, %v424
      %458 = vst.msk [vmem:[%s221 + $0x10] sm:$0xff] %vm455, %v425
      %459 = vst.msk [vmem:[%s221 + $0x18] sm:$0xff] %vm455, %v426
      %460 = vst.msk [vmem:[%s221 + $0x20] sm:$0xff] %vm455, %v427
      %461 = vst.msk [vmem:[%s221 + $0x28] sm:$0xff] %vm455, %v428
      %462 = vst.msk [vmem:[%s221 + $0x30] sm:$0xff] %vm455, %v429
      %463 = vst.msk [vmem:[%s221 + $0x38] sm:$0xff] %vm455, %v430
      %464 = vst.msk [vmem:[%s221 + $0x40] sm:$0xff] %vm455, %v431
      %465 = vst.msk [vmem:[%s221 + $0x48] sm:$0xff] %vm455, %v432
      %466 = vst.msk [vmem:[%s221 + $0x50] sm:$0xff] %vm455, %v433
      %467 = vst.msk [vmem:[%s221 + $0x58] sm:$0xff] %vm455, %v434
      %468 = vst.msk [vmem:[%s221 + $0x60] sm:$0xff] %vm455, %v435
      %469 = vst.msk [vmem:[%s221 + $0x68] sm:$0xff] %vm455, %v436
      %470 = vst.msk [vmem:[%s221 + $0x70] sm:$0xff] %vm455, %v437
      %471 = vst.msk [vmem:[%s221 + $0x78] sm:$0xff] %vm455, %v438
      %472 = vst.msk [vmem:[%s221 + $0x80] sm:$0xff] %vm455, %v439
      %473 = vst.msk [vmem:[%s221 + $0x88] sm:$0xff] %vm455, %v440
      %474 = vst.msk [vmem:[%s221 + $0x90] sm:$0xff] %vm455, %v441
      %475 = vst.msk [vmem:[%s221 + $0x98] sm:$0xff] %vm455, %v442
      %476 = vst.msk [vmem:[%s221 + $0xa0] sm:$0xff] %vm455, %v443
      %477 = vst.msk [vmem:[%s221 + $0xa8] sm:$0xff] %vm455, %v444
      %478 = vst.msk [vmem:[%s221 + $0xb0] sm:$0xff] %vm455, %v445
      %479 = vst.msk [vmem:[%s221 + $0xb8] sm:$0xff] %vm455, %v446
      %480 = vst.msk [vmem:[%s221 + $0xc0] sm:$0xff] %vm455, %v447
      %481 = vst.msk [vmem:[%s221 + $0xc8] sm:$0xff] %vm455, %v448
      %482 = vst.msk [vmem:[%s221 + $0xd0] sm:$0xff] %vm455, %v449
      %483 = vst.msk [vmem:[%s221 + $0xd8] sm:$0xff] %vm455, %v450
      %484 = vst.msk [vmem:[%s221 + $0xe0] sm:$0xff] %vm455, %v451
      %485 = vst.msk [vmem:[%s221 + $0xe8] sm:$0xff] %vm455, %v452
      %486 = vst.msk [vmem:[%s221 + $0xf0] sm:$0xff] %vm455, %v453
      %487 = vst.msk [vmem:[%s221 + $0xf8] sm:$0xff] %vm455, %v454
      %s488 = smul.u32 32, %s15
      %p489 = scmp.lt.s32.totalorder %s488, 63
      %s490 = scalar_select %p489, %s488, 63
      %s491 = smul.addr %s490, 8
      %s492 = scalar_lea.vmem %s4, %s491
      // Predicated region
      $region37: #{_lambda_.7} parent=35 // pred_check
        %p493 = pneg %p127
      $region38: #{_lambda_.7} parent=35 // pred_check_branch
        %495 = sbr.rel (%p493) target = $region40
      $region39: #{_lambda_.7} parent=35 // pred_region
        %s496 = smul.u32 32, %s15
      $region40: #{_lambda_.7} parent=35 // pred_fallthru
        _
    $region36: #{_lambda_.7} parent=5 // pred_fallthru
      _
    %p497 = scmp.le.s32.totalorder 2, %s10
    // Predicated region
    $region41: #{_lambda_.7} parent=5 // pred_check
      %p498 = pneg %p497
    $region42: #{_lambda_.7} parent=5 // pred_check_branch
      %500 = sbr.rel (%p498) target = $region44
    $region43: #{_lambda_.7} parent=5 // pred_region
      %s501 = ssub.s32 %s10, 2
      // Predicated region
      $region45: #{_lambda_.7} parent=43 // pred_check
        %p502 = pneg %p133
      $region46: #{_lambda_.7} parent=43 // pred_check_branch
        %504 = sbr.rel (%p502) target = $region48
      $region47: #{_lambda_.7} parent=43 // pred_region
        %s505 = smul.u32 32, %s16
        %p506 = scmp.lt.s32.totalorder %s505, 63
        %s507 = scalar_select %p506, %s505, 63
        %s508 = smul.addr %s507, 8
        %s509 = scalar_lea.vmem %s4, %s508
      $region48: #{_lambda_.7} parent=43 // pred_fallthru
        _
    $region44: #{_lambda_.7} parent=5 // pred_fallthru
      _
  $region6: #{_lambda_.7} parent=0 // loop_footer
    %s14 = sadd.s32 1, %s10
  $region7: #{_lambda_.7} parent=0 // loop_footer_branch
    %9 = sbr.rel target = $region3
  $region8: #{_lambda_.7} parent=0 // loop_exit
    _

// kernel: _lambda_.5
$region0: #{_lambda_.5}
  #allocation0 [shape = 'u32[]', space=smem, size = 0x4, offset = 0x4, fixed_abs, tag = 'smem constant byte address 0x4 - core index']
  #allocation1 [shape = 'u32[72,128]{1,0:T(1,128)}', space=vmem, size = 0x9000, scoped, tag = 'internal scratch']
  #allocation2 [shape = 'bf16[18,18,4]{2,1,0:T(8,128)(2,1)}', space=vmem, size = 0x1b000, scoped, tag = 'scratch operand']
  %s0 = inlined_call_operand.vmem [shape: bf16[2,16,16,4], index: 0, kind: input, shape index: {}]
  %s1 = inlined_call_operand.vmem [shape: f32[1,4], index: 1, kind: input, shape index: {}]
  %s2 = inlined_call_operand.vmem [shape: f32[1,4], index: 2, kind: input, shape index: {}]
  %s3 = inlined_call_operand.vmem [shape: bf16[9,4,4], index: 3, kind: input, shape index: {}]
  %s4 = inlined_call_operand.vmem [shape: bf16[2,16,16,4], index: 4, kind: output, shape index: {0}]
  %s5 = inlined_call_operand.vmem [shape: f32[16,4], index: 5, kind: output, shape index: {1}]
  %s6 = inlined_call_operand.vmem [shape: f32[16,4], index: 6, kind: output, shape index: {2}]
  %7 = xla_tuple %s4, %s5, %s6
  %s8 = sld [smem:[#allocation0]]
  $region65: #{_lambda_.5} parent=0
    _
  %s10 = ssub.s32 1, %s8
  %s11 = scalar_select 0, %s10, %s8
  loop: start=0, step=1, limit=4
  $region2: #{_lambda_.5} parent=0 // loop_pre_header
    _
  $region3: #{_lambda_.5} parent=0 // loop_header
    %s13 = sphi 0, %s17
    %p14 = scmp.ge.s32.totalorder %s13, 4
    %s23 = sphi 0, %s25
    %s26 = sphi 0, %s23
    %s27 = sphi 0, %s26
    %s43 = sphi 0, %s27
    %s47 = sphi 0, %s47
    %s49 = sphi 0, %s47
    %s50 = sphi 0, %s49
    %s64 = sphi 0, %s50
    %s68 = sphi 0, %s68
    %s70 = sphi 0, %s68
    %s71 = sphi 0, %s70
    %s85 = sphi 0, %s71
    %s89 = sphi 0, %s89
    %s91 = sphi 0, %s89
    %s92 = sphi 0, %s91
    %s106 = sphi 0, %s92
    %s112 = sphi 0, %s114
    %s115 = sphi 0, %s112
    %s116 = sphi 0, %s115
    %s132 = sphi 0, %s116
    %s138 = sphi 0, %s140
    %s141 = sphi 0, %s138
    %s142 = sphi 0, %s141
    %s158 = sphi 0, %s142
    %s164 = sphi 0, %s166
    %s167 = sphi 0, %s164
    %s168 = sphi 0, %s167
    %s184 = sphi 0, %s168
  $region4: #{_lambda_.5} parent=0 // loop_header_branch
    %16 = sbr.rel (%p14) target = $region8
  $region5: #{_lambda_.5} parent=0 // loop_body
    %s18 = ssub.s32 %s13, 1
    %s19 = ssub.s32 %s13, 2
    %s20 = sadd.s32 %s13, 1
    %s21 = ssub.s32 %s13, %s20
    %p22 = scmp.eq.s32.totalorder %s21, 0
    %s24 = sadd.s32 %s23, 1
    %s25 = scalar_select %p22, %s23, %s24
    %p28 = pneg %p22
    %p29 = scmp.eq.s32.totalorder %s13, 1
    %p30 = por %p28, %p29
    %p31 = scmp.ne.s32.totalorder %s23, %s26
    %p32 = scmp.eq.s32.totalorder %s13, 0
    %p33 = por %p31, %p32
    %p34 = scmp.ne.s32.totalorder %s23, %s26
    %p35 = scmp.eq.s32.totalorder %s18, 1
    %p36 = por %p34, %p35
    %p37 = scmp.ne.s32.totalorder %s26, %s27
    %p38 = scmp.eq.s32.totalorder %s18, 0
    %p39 = por %p37, %p38
    %p40 = scmp.ne.s32.totalorder %s26, %s27
    %p41 = scmp.eq.s32.totalorder %s19, 1
    %p42 = por %p40, %p41
    %p44 = scmp.ne.s32.totalorder %s27, %s43
    %p45 = scmp.eq.s32.totalorder %s19, 0
    %p46 = por %p44, %p45
    %s48 = sadd.s32 %s47, 1
    %p51 = scmp.eq.s32.totalorder %s13, 1
    %p52 = scmp.ne.s32.totalorder %s47, %s49
    %p53 = scmp.eq.s32.totalorder %s13, 0
    %p54 = por %p52, %p53
    %p55 = scmp.ne.s32.totalorder %s47, %s49
    %p56 = scmp.eq.s32.totalorder %s18, 1
    %p57 = por %p55, %p56
    %p58 = scmp.ne.s32.totalorder %s49, %s50
    %p59 = scmp.eq.s32.totalorder %s18, 0
    %p60 = por %p58, %p59
    %p61 = scmp.ne.s32.totalorder %s49, %s50
    %p62 = scmp.eq.s32.totalorder %s19, 1
    %p63 = por %p61, %p62
    %p65 = scmp.ne.s32.totalorder %s50, %s64
    %p66 = scmp.eq.s32.totalorder %s19, 0
    %p67 = por %p65, %p66
    %s69 = sadd.s32 %s68, 1
    %p72 = scmp.eq.s32.totalorder %s13, 1
    %p73 = scmp.ne.s32.totalorder %s68, %s70
    %p74 = scmp.eq.s32.totalorder %s13, 0
    %p75 = por %p73, %p74
    %p76 = scmp.ne.s32.totalorder %s68, %s70
    %p77 = scmp.eq.s32.totalorder %s18, 1
    %p78 = por %p76, %p77
    %p79 = scmp.ne.s32.totalorder %s70, %s71
    %p80 = scmp.eq.s32.totalorder %s18, 0
    %p81 = por %p79, %p80
    %p82 = scmp.ne.s32.totalorder %s70, %s71
    %p83 = scmp.eq.s32.totalorder %s19, 1
    %p84 = por %p82, %p83
    %p86 = scmp.ne.s32.totalorder %s71, %s85
    %p87 = scmp.eq.s32.totalorder %s19, 0
    %p88 = por %p86, %p87
    %s90 = sadd.s32 %s89, 1
    %p93 = scmp.eq.s32.totalorder %s13, 1
    %p94 = scmp.ne.s32.totalorder %s89, %s91
    %p95 = scmp.eq.s32.totalorder %s13, 0
    %p96 = por %p94, %p95
    %p97 = scmp.ne.s32.totalorder %s89, %s91
    %p98 = scmp.eq.s32.totalorder %s18, 1
    %p99 = por %p97, %p98
    %p100 = scmp.ne.s32.totalorder %s91, %s92
    %p101 = scmp.eq.s32.totalorder %s18, 0
    %p102 = por %p100, %p101
    %p103 = scmp.ne.s32.totalorder %s91, %s92
    %p104 = scmp.eq.s32.totalorder %s19, 1
    %p105 = por %p103, %p104
    %p107 = scmp.ne.s32.totalorder %s92, %s106
    %p108 = scmp.eq.s32.totalorder %s19, 0
    %p109 = por %p107, %p108
    %s110 = ssub.s32 %s13, %s20
    %p111 = scmp.eq.s32.totalorder %s110, 0
    %s113 = sadd.s32 %s112, 1
    %s114 = scalar_select %p111, %s112, %s113
    %p117 = pneg %p111
    %p118 = scmp.eq.s32.totalorder %s13, 1
    %p119 = por %p117, %p118
    %p120 = scmp.ne.s32.totalorder %s112, %s115
    %p121 = scmp.eq.s32.totalorder %s13, 0
    %p122 = por %p120, %p121
    %p123 = scmp.ne.s32.totalorder %s112, %s115
    %p124 = scmp.eq.s32.totalorder %s18, 1
    %p125 = por %p123, %p124
    %p126 = scmp.ne.s32.totalorder %s115, %s116
    %p127 = scmp.eq.s32.totalorder %s18, 0
    %p128 = por %p126, %p127
    %p129 = scmp.ne.s32.totalorder %s115, %s116
    %p130 = scmp.eq.s32.totalorder %s19, 1
    %p131 = por %p129, %p130
    %p133 = scmp.ne.s32.totalorder %s116, %s132
    %p134 = scmp.eq.s32.totalorder %s19, 0
    %p135 = por %p133, %p134
    %s136 = ssub.s32 %s13, %s20
    %p137 = scmp.eq.s32.totalorder %s136, 0
    %s139 = sadd.s32 %s138, 1
    %s140 = scalar_select %p137, %s138, %s139
    %p143 = pneg %p137
    %p144 = scmp.eq.s32.totalorder %s13, 1
    %p145 = por %p143, %p144
    %p146 = scmp.ne.s32.totalorder %s138, %s141
    %p147 = scmp.eq.s32.totalorder %s13, 0
    %p148 = por %p146, %p147
    %p149 = scmp.ne.s32.totalorder %s138, %s141
    %p150 = scmp.eq.s32.totalorder %s18, 1
    %p151 = por %p149, %p150
    %p152 = scmp.ne.s32.totalorder %s141, %s142
    %p153 = scmp.eq.s32.totalorder %s18, 0
    %p154 = por %p152, %p153
    %p155 = scmp.ne.s32.totalorder %s141, %s142
    %p156 = scmp.eq.s32.totalorder %s19, 1
    %p157 = por %p155, %p156
    %p159 = scmp.ne.s32.totalorder %s142, %s158
    %p160 = scmp.eq.s32.totalorder %s19, 0
    %p161 = por %p159, %p160
    %s162 = ssub.s32 %s13, %s20
    %p163 = scmp.eq.s32.totalorder %s162, 0
    %s165 = sadd.s32 %s164, 1
    %s166 = scalar_select %p163, %s164, %s165
    %p169 = pneg %p163
    %p170 = scmp.eq.s32.totalorder %s13, 1
    %p171 = por %p169, %p170
    %p172 = scmp.ne.s32.totalorder %s164, %s167
    %p173 = scmp.eq.s32.totalorder %s13, 0
    %p174 = por %p172, %p173
    %p175 = scmp.ne.s32.totalorder %s164, %s167
    %p176 = scmp.eq.s32.totalorder %s18, 1
    %p177 = por %p175, %p176
    %p178 = scmp.ne.s32.totalorder %s167, %s168
    %p179 = scmp.eq.s32.totalorder %s18, 0
    %p180 = por %p178, %p179
    %p181 = scmp.ne.s32.totalorder %s167, %s168
    %p182 = scmp.eq.s32.totalorder %s19, 1
    %p183 = por %p181, %p182
    %p185 = scmp.ne.s32.totalorder %s168, %s184
    %p186 = scmp.eq.s32.totalorder %s19, 0
    %p187 = por %p185, %p186
    %p188 = scmp.le.s32.totalorder 1, %s13
    %p189 = scmp.lt.s32.totalorder %s13, 3
    %p190 = pnand %p188, %p189
    %p191 = pneg %p190
    // Predicated region
    $region9: #{_lambda_.5} parent=5 // pred_check
      _
    $region10: #{_lambda_.5} parent=5 // pred_check_branch
      %193 = sbr.rel (%p190) target = $region12
    $region11: #{_lambda_.5} parent=5 // pred_region
      %s194 = ssub.s32 %s13, 1
      // Predicated region
      $region13: #{_lambda_.5} parent=11 // pred_check
        %p195 = pneg %p60
      $region14: #{_lambda_.5} parent=11 // pred_check_branch
        %197 = sbr.rel (%p195) target = $region16
      $region15: #{_lambda_.5} parent=11 // pred_region
        _
      $region16: #{_lambda_.5} parent=11 // pred_fallthru
        _
      // Predicated region
      $region17: #{_lambda_.5} parent=11 // pred_check
        %p198 = pneg %p81
      $region18: #{_lambda_.5} parent=11 // pred_check_branch
        %200 = sbr.rel (%p198) target = $region20
      $region19: #{_lambda_.5} parent=11 // pred_region
        _
      $region20: #{_lambda_.5} parent=11 // pred_fallthru
        _
      // Predicated region
      $region21: #{_lambda_.5} parent=11 // pred_check
        %p201 = pneg %p102
      $region22: #{_lambda_.5} parent=11 // pred_check_branch
        %203 = sbr.rel (%p201) target = $region24
      $region23: #{_lambda_.5} parent=11 // pred_region
        _
      $region24: #{_lambda_.5} parent=11 // pred_fallthru
        _
    $region12: #{_lambda_.5} parent=5 // pred_fallthru
      _
    %p204 = scmp.lt.s32.totalorder %s13, 2
    // Predicated region
    $region25: #{_lambda_.5} parent=5 // pred_check
      %p205 = pneg %p204
    $region26: #{_lambda_.5} parent=5 // pred_check_branch
      %207 = sbr.rel (%p205) target = $region28
    $region27: #{_lambda_.5} parent=5 // pred_region
      // Predicated region
      $region29: #{_lambda_.5} parent=27 // pred_check
        %p208 = pneg %p33
      $region30: #{_lambda_.5} parent=27 // pred_check_branch
        %210 = sbr.rel (%p208) target = $region32
      $region31: #{_lambda_.5} parent=27 // pred_region
        %p211 = scmp.lt.s32.totalorder %s13, 1
        %s212 = scalar_select %p211, %s13, 1
        %s213 = smul.addr %s212, 32
        %s214 = smul.addr %s213, 4
        %s215 = scalar_lea.vmem %s0, %s214
      $region32: #{_lambda_.5} parent=27 // pred_fallthru
        _
    $region28: #{_lambda_.5} parent=5 // pred_fallthru
      _
    %p216 = scmp.le.s32.totalorder 1, %s13
    %p217 = scmp.lt.s32.totalorder %s13, 3
    %p218 = pnand %p216, %p217
    %p219 = pneg %p218
    // Predicated region
    $region33: #{_lambda_.5} parent=5 // pred_check
      _
    $region34: #{_lambda_.5} parent=5 // pred_check_branch
      %221 = sbr.rel (%p218) target = $region36
    $region35: #{_lambda_.5} parent=5 // pred_region
      %s222 = ssub.s32 %s13, 1
      %p223 = scmp.lt.s32.totalorder %s18, 1
      %s224 = scalar_select %p223, %s18, 1
      %s225 = smul.addr %s224, 32
      %s226 = smul.addr %s225, 4
      %s227 = scalar_lea.vmem %s0, %s226
      %p228 = pneg %p39
      %p229 = pneg %p36
      %p230 = pneg %p60
      %p231 = pneg %p57
      %p232 = pneg %p81
      %p233 = pneg %p78
      %p234 = pneg %p102
      %p235 = pneg %p99
      %p236 = pneg %p128
      %p237 = pneg %p125
      %p238 = scmp.lt.s32.totalorder %s18, 1
      %s239 = scalar_select %p238, %s18, 1
      %s240 = smul.addr %s239, 32
      %s241 = smul.addr %s240, 4
      %s242 = scalar_lea.vmem %s4, %s241
      %p243 = pneg %p154
      %p244 = pneg %p151
      %p245 = scmp.lt.s32.totalorder %s18, 1
      %s246 = scalar_select %p245, %s18, 1
      %s247 = smul.addr %s246, 8
      %s248 = scalar_lea.vmem %s5, %s247
      %p249 = pneg %p180
      %p250 = pneg %p177
      %p251 = scmp.lt.s32.totalorder %s18, 1
      %s252 = scalar_select %p251, %s18, 1
      %s253 = smul.addr %s252, 8
      %s254 = scalar_lea.vmem %s6, %s253
      %p255 = scmp.lt.s32.totalorder %s18, 1
      %s256 = scalar_select %p255, %s18, 1
      %s257 = smul.addr %s256, 32
      %s258 = smul.addr %s257, 4
      %s259 = scalar_lea.vmem %s0, %s258
      %p260 = scmp.lt.s32.totalorder %s18, 1
      %s261 = scalar_select %p260, %s18, 1
      %s262 = smul.addr %s261, 32
      %s263 = smul.addr %s262, 4
      %s264 = scalar_lea.vmem %s4, %s263
      %p265 = scmp.lt.s32.totalorder %s18, 1
      %s266 = scalar_select %p265, %s18, 1
      %s267 = smul.addr %s266, 8
      %s268 = scalar_lea.vmem %s5, %s267
      %p269 = scmp.lt.s32.totalorder %s18, 1
      %s270 = scalar_select %p269, %s18, 1
      %s271 = smul.addr %s270, 8
      %s272 = scalar_lea.vmem %s6, %s271
      %v274 = vld [vmem:[%s259] sm:$0xf]
      %v275 = vld [vmem:[%s259 + $0x4] sm:$0xf]
      %v276 = vld [vmem:[%s259 + $0x8] sm:$0xf]
      %v277 = vld [vmem:[%s259 + $0xc] sm:$0xf]
      %v278 = vld [vmem:[%s259 + $0x10] sm:$0xf]
      %v279 = vld [vmem:[%s259 + $0x14] sm:$0xf]
      %v280 = vld [vmem:[%s259 + $0x18] sm:$0xf]
      %v281 = vld [vmem:[%s259 + $0x1c] sm:$0xf]
      %v282 = vld [vmem:[%s259 + $0x20] sm:$0xf]
      %v283 = vld [vmem:[%s259 + $0x24] sm:$0xf]
      %v284 = vld [vmem:[%s259 + $0x28] sm:$0xf]
      %v285 = vld [vmem:[%s259 + $0x2c] sm:$0xf]
      %v286 = vld [vmem:[%s259 + $0x30] sm:$0xf]
      %v287 = vld [vmem:[%s259 + $0x34] sm:$0xf]
      %v288 = vld [vmem:[%s259 + $0x38] sm:$0xf]
      %v289 = vld [vmem:[%s259 + $0x3c] sm:$0xf]
      %v290 = vld [vmem:[%s259 + $0x40] sm:$0xf]
      %v291 = vld [vmem:[%s259 + $0x44] sm:$0xf]
      %v292 = vld [vmem:[%s259 + $0x48] sm:$0xf]
      %v293 = vld [vmem:[%s259 + $0x4c] sm:$0xf]
      %v294 = vld [vmem:[%s259 + $0x50] sm:$0xf]
      %v295 = vld [vmem:[%s259 + $0x54] sm:$0xf]
      %v296 = vld [vmem:[%s259 + $0x58] sm:$0xf]
      %v297 = vld [vmem:[%s259 + $0x5c] sm:$0xf]
      %v298 = vld [vmem:[%s259 + $0x60] sm:$0xf]
      %v299 = vld [vmem:[%s259 + $0x64] sm:$0xf]
      %v300 = vld [vmem:[%s259 + $0x68] sm:$0xf]
      %v301 = vld [vmem:[%s259 + $0x6c] sm:$0xf]
      %v302 = vld [vmem:[%s259 + $0x70] sm:$0xf]
      %v303 = vld [vmem:[%s259 + $0x74] sm:$0xf]
      %v304 = vld [vmem:[%s259 + $0x78] sm:$0xf]
      %v305 = vld [vmem:[%s259 + $0x7c] sm:$0xf]
      %v306 = vunpack.c.l.bf16 %v274
      %v307 = vunpack.c.l.bf16 %v275
      %v308 = vunpack.c.l.bf16 %v276
      %v309 = vunpack.c.l.bf16 %v277
      %v310 = vunpack.c.l.bf16 %v278
      %v311 = vunpack.c.l.bf16 %v279
      %v312 = vunpack.c.l.bf16 %v280
      %v313 = vunpack.c.l.bf16 %v281
      %v314 = vunpack.c.l.bf16 %v282
      %v315 = vunpack.c.l.bf16 %v283
      %v316 = vunpack.c.l.bf16 %v284
      %v317 = vunpack.c.l.bf16 %v285
      %v318 = vunpack.c.l.bf16 %v286
      %v319 = vunpack.c.l.bf16 %v287
      %v320 = vunpack.c.l.bf16 %v288
      %v321 = vunpack.c.l.bf16 %v289
      %v322 = vunpack.c.l.bf16 %v290
      %v323 = vunpack.c.l.bf16 %v291
      %v324 = vunpack.c.l.bf16 %v292
      %v325 = vunpack.c.l.bf16 %v293
      %v326 = vunpack.c.l.bf16 %v294
      %v327 = vunpack.c.l.bf16 %v295
      %v328 = vunpack.c.l.bf16 %v296
      %v329 = vunpack.c.l.bf16 %v297
      %v330 = vunpack.c.l.bf16 %v298
      %v331 = vunpack.c.l.bf16 %v299
      %v332 = vunpack.c.l.bf16 %v300
      %v333 = vunpack.c.l.bf16 %v301
      %v334 = vunpack.c.l.bf16 %v302
      %v335 = vunpack.c.l.bf16 %v303
      %v336 = vunpack.c.l.bf16 %v304
      %v337 = vunpack.c.l.bf16 %v305
      %v338 = vld [vmem:[%s1] sm:$0x1]
      %v340 = vperm.slane %v338, 0
      %v342 = vmul.f32 %v306, %v340
      %v343 = vmul.f32 %v307, %v340
      %v344 = vmul.f32 %v308, %v340
      %v345 = vmul.f32 %v309, %v340
      %v346 = vmul.f32 %v310, %v340
      %v347 = vmul.f32 %v311, %v340
      %v348 = vmul.f32 %v312, %v340
      %v349 = vmul.f32 %v313, %v340
      %v350 = vmul.f32 %v314, %v340
      %v351 = vmul.f32 %v315, %v340
      %v352 = vmul.f32 %v316, %v340
      %v353 = vmul.f32 %v317, %v340
      %v354 = vmul.f32 %v318, %v340
      %v355 = vmul.f32 %v319, %v340
      %v356 = vmul.f32 %v320, %v340
      %v357 = vmul.f32 %v321, %v340
      %v358 = vmul.f32 %v322, %v340
      %v359 = vmul.f32 %v323, %v340
      %v360 = vmul.f32 %v324, %v340
      %v361 = vmul.f32 %v325, %v340
      %v362 = vmul.f32 %v326, %v340
      %v363 = vmul.f32 %v327, %v340
      %v364 = vmul.f32 %v328, %v340
      %v365 = vmul.f32 %v329, %v340
      %v366 = vmul.f32 %v330, %v340
      %v367 = vmul.f32 %v331, %v340
      %v368 = vmul.f32 %v332, %v340
      %v369 = vmul.f32 %v333, %v340
      %v370 = vmul.f32 %v334, %v340
      %v371 = vmul.f32 %v335, %v340
      %v372 = vmul.f32 %v336, %v340
      %v373 = vmul.f32 %v337, %v340
      %v374 = vld [vmem:[%s2] sm:$0x1]
      %v376 = vperm.slane %v374, 0
      %v378 = vadd.f32 %v342, %v376
      %v379 = vadd.f32 %v343, %v376
      %v380 = vadd.f32 %v344, %v376
      %v381 = vadd.f32 %v345, %v376
      %v382 = vadd.f32 %v346, %v376
      %v383 = vadd.f32 %v347, %v376
      %v384 = vadd.f32 %v348, %v376
      %v385 = vadd.f32 %v349, %v376
      %v386 = vadd.f32 %v350, %v376
      %v387 = vadd.f32 %v351, %v376
      %v388 = vadd.f32 %v352, %v376
      %v389 = vadd.f32 %v353, %v376
      %v390 = vadd.f32 %v354, %v376
      %v391 = vadd.f32 %v355, %v376
      %v392 = vadd.f32 %v356, %v376
      %v393 = vadd.f32 %v357, %v376
      %v394 = vadd.f32 %v358, %v376
      %v395 = vadd.f32 %v359, %v376
      %v396 = vadd.f32 %v360, %v376
      %v397 = vadd.f32 %v361, %v376
      %v398 = vadd.f32 %v362, %v376
      %v399 = vadd.f32 %v363, %v376
      %v400 = vadd.f32 %v364, %v376
      %v401 = vadd.f32 %v365, %v376
      %v402 = vadd.f32 %v366, %v376
      %v403 = vadd.f32 %v367, %v376
      %v404 = vadd.f32 %v368, %v376
      %v405 = vadd.f32 %v369, %v376
      %v406 = vadd.f32 %v370, %v376
      %v407 = vadd.f32 %v371, %v376
      %v408 = vadd.f32 %v372, %v376
      %v409 = vadd.f32 %v373, %v376
      %v410 = vmax.f32 %v378, 0.0
      %v411 = vmax.f32 %v379, 0.0
      %v412 = vmax.f32 %v380, 0.0
      %v413 = vmax.f32 %v381, 0.0
      %v414 = vmax.f32 %v382, 0.0
      %v415 = vmax.f32 %v383, 0.0
      %v416 = vmax.f32 %v384, 0.0
      %v417 = vmax.f32 %v385, 0.0
      %v418 = vmax.f32 %v386, 0.0
      %v419 = vmax.f32 %v387, 0.0
      %v420 = vmax.f32 %v388, 0.0
      %v421 = vmax.f32 %v389, 0.0
      %v422 = vmax.f32 %v390, 0.0
      %v423 = vmax.f32 %v391, 0.0
      %v424 = vmax.f32 %v392, 0.0
      %v425 = vmax.f32 %v393, 0.0
      %v426 = vmax.f32 %v394, 0.0
      %v427 = vmax.f32 %v395, 0.0
      %v428 = vmax.f32 %v396, 0.0
      %v429 = vmax.f32 %v397, 0.0
      %v430 = vmax.f32 %v398, 0.0
      %v431 = vmax.f32 %v399, 0.0
      %v432 = vmax.f32 %v400, 0.0
      %v433 = vmax.f32 %v401, 0.0
      %v434 = vmax.f32 %v402, 0.0
      %v435 = vmax.f32 %v403, 0.0
      %v436 = vmax.f32 %v404, 0.0
      %v437 = vmax.f32 %v405, 0.0
      %v438 = vmax.f32 %v406, 0.0
      %v439 = vmax.f32 %v407, 0.0
      %v440 = vmax.f32 %v408, 0.0
      %v441 = vmax.f32 %v409, 0.0
      %v442 = vpack.c.bf16 %v410, %v410
      %v443 = vpack.c.bf16 %v411, %v411
      %v444 = vpack.c.bf16 %v412, %v412
      %v445 = vpack.c.bf16 %v413, %v413
      %v446 = vpack.c.bf16 %v414, %v414
      %v447 = vpack.c.bf16 %v415, %v415
      %v448 = vpack.c.bf16 %v416, %v416
      %v449 = vpack.c.bf16 %v417, %v417
      %v450 = vpack.c.bf16 %v418, %v418
      %v451 = vpack.c.bf16 %v419, %v419
      %v452 = vpack.c.bf16 %v420, %v420
      %v453 = vpack.c.bf16 %v421, %v421
      %v454 = vpack.c.bf16 %v422, %v422
      %v455 = vpack.c.bf16 %v423, %v423
      %v456 = vpack.c.bf16 %v424, %v424
      %v457 = vpack.c.bf16 %v425, %v425
      %v458 = vpack.c.bf16 %v426, %v426
      %v459 = vpack.c.bf16 %v427, %v427
      %v460 = vpack.c.bf16 %v428, %v428
      %v461 = vpack.c.bf16 %v429, %v429
      %v462 = vpack.c.bf16 %v430, %v430
      %v463 = vpack.c.bf16 %v431, %v431
      %v464 = vpack.c.bf16 %v432, %v432
      %v465 = vpack.c.bf16 %v433, %v433
      %v466 = vpack.c.bf16 %v434, %v434
      %v467 = vpack.c.bf16 %v435, %v435
      %v468 = vpack.c.bf16 %v436, %v436
      %v469 = vpack.c.bf16 %v437, %v437
      %v470 = vpack.c.bf16 %v438, %v438
      %v471 = vpack.c.bf16 %v439, %v439
      %v472 = vpack.c.bf16 %v440, %v440
      %v473 = vpack.c.bf16 %v441, %v441
      %vm474 = vcmask 27648
      %475 = vst.msk [vmem:[#allocation2] sm:$0xf] %vm474, 0
      %476 = vst.msk [vmem:[#allocation2 + $0x4] sm:$0xf] %vm474, 0
      %vm477 = vcmask 24576
      %478 = vst.msk [vmem:[#allocation2 + $0x8] sm:$0x1] %vm477, 0
      %s479 = scalar_lea.vmem [#allocation2], 204
      %480 = vst.msk [vmem:[%s479] sm:$0xf] %vm474, 0
      %481 = vst.msk [vmem:[%s479 + $0x4] sm:$0xf] %vm474, 0
      %482 = vst.msk [vmem:[%s479 + $0x8] sm:$0x1] %vm477, 0
      %vm483 = vcmask 24576
      %vm484 = vsmask.f32 256
      %vm485 = vmand %vm483, %vm484
      %v486 = vld [vmem:[#allocation2] sm:$0x1]
      %v487 = vsel %vm485, 0, %v486
      %488 = vst [vmem:[#allocation2] sm:$0x1] %v487
      %v489 = vld [vmem:[#allocation2 + $0xc] sm:$0x1]
      %v490 = vsel %vm485, 0, %v489
      %491 = vst [vmem:[#allocation2 + $0xc] sm:$0x1] %v490
      %v492 = vld [vmem:[#allocation2 + $0x18] sm:$0x1]
      %v493 = vsel %vm485, 0, %v492
      %494 = vst [vmem:[#allocation2 + $0x18] sm:$0x1] %v493
      %v495 = vld [vmem:[#allocation2 + $0x24] sm:$0x1]
      %v496 = vsel %vm485, 0, %v495
      %497 = vst [vmem:[#allocation2 + $0x24] sm:$0x1] %v496
      %v498 = vld [vmem:[#allocation2 + $0x30] sm:$0x1]
      %v499 = vsel %vm485, 0, %v498
      %500 = vst [vmem:[#allocation2 + $0x30] sm:$0x1] %v499
      %v501 = vld [vmem:[#allocation2 + $0x3c] sm:$0x1]
      %v502 = vsel %vm485, 0, %v501
      %503 = vst [vmem:[#allocation2 + $0x3c] sm:$0x1] %v502
      %v504 = vld [vmem:[#allocation2 + $0x48] sm:$0x1]
      %v505 = vsel %vm485, 0, %v504
      %506 = vst [vmem:[#allocation2 + $0x48] sm:$0x1] %v505
      %v507 = vld [vmem:[#allocation2 + $0x54] sm:$0x1]
      %v508 = vsel %vm485, 0, %v507
      %509 = vst [vmem:[#allocation2 + $0x54] sm:$0x1] %v508
      %v510 = vld [vmem:[#allocation2 + $0x60] sm:$0x1]
      %v511 = vsel %vm485, 0, %v510
      %512 = vst [vmem:[#allocation2 + $0x60] sm:$0x1] %v511
      %v513 = vld [vmem:[#allocation2 + $0x6c] sm:$0x1]
      %v514 = vsel %vm485, 0, %v513
      %515 = vst [vmem:[#allocation2 + $0x6c] sm:$0x1] %v514
      %v516 = vld [vmem:[#allocation2 + $0x78] sm:$0x1]
      %v517 = vsel %vm485, 0, %v516
      %518 = vst [vmem:[#allocation2 + $0x78] sm:$0x1] %v517
      %v519 = vld [vmem:[#allocation2 + $0x84] sm:$0x1]
      %v520 = vsel %vm485, 0, %v519
      %521 = vst [vmem:[#allocation2 + $0x84] sm:$0x1] %v520
      %v522 = vld [vmem:[#allocation2 + $0x90] sm:$0x1]
      %v523 = vsel %vm485, 0, %v522
      %524 = vst [vmem:[#allocation2 + $0x90] sm:$0x1] %v523
      %v525 = vld [vmem:[#allocation2 + $0x9c] sm:$0x1]
      %v526 = vsel %vm485, 0, %v525
      %527 = vst [vmem:[#allocation2 + $0x9c] sm:$0x1] %v526
      %v528 = vld [vmem:[#allocation2 + $0xa8] sm:$0x1]
      %v529 = vsel %vm485, 0, %v528
      %530 = vst [vmem:[#allocation2 + $0xa8] sm:$0x1] %v529
      %v531 = vld [vmem:[#allocation2 + $0xb4] sm:$0x1]
      %v532 = vsel %vm485, 0, %v531
      %533 = vst [vmem:[#allocation2 + $0xb4] sm:$0x1] %v532
      %v534 = vld [vmem:[#allocation2 + $0xc0] sm:$0x1]
      %v535 = vsel %vm485, 0, %v534
      %536 = vst [vmem:[#allocation2 + $0xc0] sm:$0x1] %v535
      %v537 = vld [vmem:[#allocation2 + $0xcc] sm:$0x1]
      %v538 = vsel %vm485, 0, %v537
      %539 = vst [vmem:[#allocation2 + $0xcc] sm:$0x1] %v538
      %vm540 = vsmask.f32 7938
      %vm541 = vmand %vm483, %vm540
      %v542 = vld [vmem:[#allocation2 + $0x8] sm:$0x1]
      %v543 = vsel %vm541, 0, %v542
      %544 = vst [vmem:[#allocation2 + $0x8] sm:$0x1] %v543
      %v545 = vld [vmem:[#allocation2 + $0x14] sm:$0x1]
      %v546 = vsel %vm541, 0, %v545
      %547 = vst [vmem:[#allocation2 + $0x14] sm:$0x1] %v546
      %v548 = vld [vmem:[#allocation2 + $0x20] sm:$0x1]
      %v549 = vsel %vm541, 0, %v548
      %550 = vst [vmem:[#allocation2 + $0x20] sm:$0x1] %v549
      %v551 = vld [vmem:[#allocation2 + $0x2c] sm:$0x1]
      %v552 = vsel %vm541, 0, %v551
      %553 = vst [vmem:[#allocation2 + $0x2c] sm:$0x1] %v552
      %v554 = vld [vmem:[#allocation2 + $0x38] sm:$0x1]
      %v555 = vsel %vm541, 0, %v554
      %556 = vst [vmem:[#allocation2 + $0x38] sm:$0x1] %v555
      %v557 = vld [vmem:[#allocation2 + $0x44] sm:$0x1]
      %v558 = vsel %vm541, 0, %v557
      %559 = vst [vmem:[#allocation2 + $0x44] sm:$0x1] %v558
      %v560 = vld [vmem:[#allocation2 + $0x50] sm:$0x1]
      %v561 = vsel %vm541, 0, %v560
      %562 = vst [vmem:[#allocation2 + $0x50] sm:$0x1] %v561
      %v563 = vld [vmem:[#allocation2 + $0x5c] sm:$0x1]
      %v564 = vsel %vm541, 0, %v563
      %565 = vst [vmem:[#allocation2 + $0x5c] sm:$0x1] %v564
      %v566 = vld [vmem:[#allocation2 + $0x68] sm:$0x1]
      %v567 = vsel %vm541, 0, %v566
      %568 = vst [vmem:[#allocation2 + $0x68] sm:$0x1] %v567
      %v569 = vld [vmem:[#allocation2 + $0x74] sm:$0x1]
      %v570 = vsel %vm541, 0, %v569
      %571 = vst [vmem:[#allocation2 + $0x74] sm:$0x1] %v570
      %v572 = vld [vmem:[#allocation2 + $0x80] sm:$0x1]
      %v573 = vsel %vm541, 0, %v572
      %574 = vst [vmem:[#allocation2 + $0x80] sm:$0x1] %v573
      %v575 = vld [vmem:[#allocation2 + $0x8c] sm:$0x1]
      %v576 = vsel %vm541, 0, %v575
      %577 = vst [vmem:[#allocation2 + $0x8c] sm:$0x1] %v576
      %v578 = vld [vmem:[#allocation2 + $0x98] sm:$0x1]
      %v579 = vsel %vm541, 0, %v578
      %580 = vst [vmem:[#allocation2 + $0x98] sm:$0x1] %v579
      %v581 = vld [vmem:[#allocation2 + $0xa4] sm:$0x1]
      %v582 = vsel %vm541, 0, %v581
      %583 = vst [vmem:[#allocation2 + $0xa4] sm:$0x1] %v582
      %v584 = vld [vmem:[#allocation2 + $0xb0] sm:$0x1]
      %v585 = vsel %vm541, 0, %v584
      %586 = vst [vmem:[#allocation2 + $0xb0] sm:$0x1] %v585
      %v587 = vld [vmem:[#allocation2 + $0xbc] sm:$0x1]
      %v588 = vsel %vm541, 0, %v587
      %589 = vst [vmem:[#allocation2 + $0xbc] sm:$0x1] %v588
      %v590 = vld [vmem:[#allocation2 + $0xc8] sm:$0x1]
      %v591 = vsel %vm541, 0, %v590
      %592 = vst [vmem:[#allocation2 + $0xc8] sm:$0x1] %v591
      %v593 = vld [vmem:[#allocation2 + $0xd4] sm:$0x1]
      %v594 = vsel %vm541, 0, %v593
      %595 = vst [vmem:[#allocation2 + $0xd4] sm:$0x1] %v594
      %vm596 = vsmask.f32 4368
      %vm597 = vmor %vm484, %vm596
      %v599 = vshrl.u32 %v442, 16
      %v601 = vrot.slane %v599, 7
      %v602 = vshll.u32 %v442, 16
      %v604 = vor.u32 %v601, %v602
      %v605 = vrot.slane %v601, 4
      %v607 = vshrl.u32 %v443, 16
      %v609 = vrot.slane %v607, 7
      %v610 = vshll.u32 %v443, 16
      %v612 = vor.u32 %v609, %v610
      %v613 = vsel %vm597, %v605, %v612
      %v614 = vrot.slane %v609, 4
      %v616 = vshrl.u32 %v444, 16
      %v618 = vrot.slane %v616, 7
      %v619 = vshll.u32 %v444, 16
      %v621 = vor.u32 %v618, %v619
      %v622 = vrot.slane %v618, 4
      %v624 = vshrl.u32 %v445, 16
      %v626 = vrot.slane %v624, 7
      %v627 = vshll.u32 %v445, 16
      %v629 = vor.u32 %v626, %v627
      %v630 = vsel %vm597, %v622, %v629
      %v631 = vrot.slane %v626, 4
      %v633 = vshrl.u32 %v446, 16
      %v635 = vrot.slane %v633, 7
      %v636 = vshll.u32 %v446, 16
      %v638 = vor.u32 %v635, %v636
      %v639 = vrot.slane %v635, 4
      %v641 = vshrl.u32 %v447, 16
      %v643 = vrot.slane %v641, 7
      %v644 = vshll.u32 %v447, 16
      %v646 = vor.u32 %v643, %v644
      %v647 = vsel %vm597, %v639, %v646
      %v648 = vrot.slane %v643, 4
      %v650 = vshrl.u32 %v448, 16
      %v652 = vrot.slane %v650, 7
      %v653 = vshll.u32 %v448, 16
      %v655 = vor.u32 %v652, %v653
      %v656 = vrot.slane %v652, 4
      %v658 = vshrl.u32 %v449, 16
      %v660 = vrot.slane %v658, 7
      %v661 = vshll.u32 %v449, 16
      %v663 = vor.u32 %v660, %v661
      %v664 = vsel %vm597, %v656, %v663
      %v665 = vrot.slane %v660, 4
      %v667 = vshrl.u32 %v450, 16
      %v669 = vrot.slane %v667, 7
      %v670 = vshll.u32 %v450, 16
      %v672 = vor.u32 %v669, %v670
      %v673 = vrot.slane %v669, 4
      %v675 = vshrl.u32 %v451, 16
      %v677 = vrot.slane %v675, 7
      %v678 = vshll.u32 %v451, 16
      %v680 = vor.u32 %v677, %v678
      %v681 = vsel %vm597, %v673, %v680
      %v682 = vrot.slane %v677, 4
      %v684 = vshrl.u32 %v452, 16
      %v686 = vrot.slane %v684, 7
      %v687 = vshll.u32 %v452, 16
      %v689 = vor.u32 %v686, %v687
      %v690 = vrot.slane %v686, 4
      %v692 = vshrl.u32 %v453, 16
      %v694 = vrot.slane %v692, 7
      %v695 = vshll.u32 %v453, 16
      %v697 = vor.u32 %v694, %v695
      %v698 = vsel %vm597, %v690, %v697
      %v699 = vrot.slane %v694, 4
      %v701 = vshrl.u32 %v454, 16
      %v703 = vrot.slane %v701, 7
      %v704 = vshll.u32 %v454, 16
      %v706 = vor.u32 %v703, %v704
      %v707 = vrot.slane %v703, 4
      %v709 = vshrl.u32 %v455, 16
      %v711 = vrot.slane %v709, 7
      %v712 = vshll.u32 %v455, 16
      %v714 = vor.u32 %v711, %v712
      %v715 = vsel %vm597, %v707, %v714
      %v716 = vrot.slane %v711, 4
      %v718 = vshrl.u32 %v456, 16
      %v720 = vrot.slane %v718, 7
      %v721 = vshll.u32 %v456, 16
      %v723 = vor.u32 %v720, %v721
      %v724 = vrot.slane %v720, 4
      %v726 = vshrl.u32 %v457, 16
      %v728 = vrot.slane %v726, 7
      %v729 = vshll.u32 %v457, 16
      %v731 = vor.u32 %v728, %v729
      %v732 = vsel %vm597, %v724, %v731
      %v733 = vrot.slane %v728, 4
      %v735 = vshrl.u32 %v458, 16
      %v737 = vrot.slane %v735, 7
      %v738 = vshll.u32 %v458, 16
      %v740 = vor.u32 %v737, %v738
      %v741 = vrot.slane %v737, 4
      %v743 = vshrl.u32 %v459, 16
      %v745 = vrot.slane %v743, 7
      %v746 = vshll.u32 %v459, 16
      %v748 = vor.u32 %v745, %v746
      %v749 = vsel %vm597, %v741, %v748
      %v750 = vrot.slane %v745, 4
      %v752 = vshrl.u32 %v460, 16
      %v754 = vrot.slane %v752, 7
      %v755 = vshll.u32 %v460, 16
      %v757 = vor.u32 %v754, %v755
      %v758 = vrot.slane %v754, 4
      %v760 = vshrl.u32 %v461, 16
      %v762 = vrot.slane %v760, 7
      %v763 = vshll.u32 %v461, 16
      %v765 = vor.u32 %v762, %v763
      %v766 = vsel %vm597, %v758, %v765
      %v767 = vrot.slane %v762, 4
      %v769 = vshrl.u32 %v462, 16
      %v771 = vrot.slane %v769, 7
      %v772 = vshll.u32 %v462, 16
      %v774 = vor.u32 %v771, %v772
      %v775 = vrot.slane %v771, 4
      %v777 = vshrl.u32 %v463, 16
      %v779 = vrot.slane %v777, 7
      %v780 = vshll.u32 %v463, 16
      %v782 = vor.u32 %v779, %v780
      %v783 = vsel %vm597, %v775, %v782
      %v784 = vrot.slane %v779, 4
      %v786 = vshrl.u32 %v464, 16
      %v788 = vrot.slane %v786, 7
      %v789 = vshll.u32 %v464, 16
      %v791 = vor.u32 %v788, %v789
      %v792 = vrot.slane %v788, 4
      %v794 = vshrl.u32 %v465, 16
      %v796 = vrot.slane %v794, 7
      %v797 = vshll.u32 %v465, 16
      %v799 = vor.u32 %v796, %v797
      %v800 = vsel %vm597, %v792, %v799
      %v801 = vrot.slane %v796, 4
      %v803 = vshrl.u32 %v466, 16
      %v805 = vrot.slane %v803, 7
      %v806 = vshll.u32 %v466, 16
      %v808 = vor.u32 %v805, %v806
      %v809 = vrot.slane %v805, 4
      %v811 = vshrl.u32 %v467, 16
      %v813 = vrot.slane %v811, 7
      %v814 = vshll.u32 %v467, 16
      %v816 = vor.u32 %v813, %v814
      %v817 = vsel %vm597, %v809, %v816
      %v818 = vrot.slane %v813, 4
      %v820 = vshrl.u32 %v468, 16
      %v822 = vrot.slane %v820, 7
      %v823 = vshll.u32 %v468, 16
      %v825 = vor.u32 %v822, %v823
      %v826 = vrot.slane %v822, 4
      %v828 = vshrl.u32 %v469, 16
      %v830 = vrot.slane %v828, 7
      %v831 = vshll.u32 %v469, 16
      %v833 = vor.u32 %v830, %v831
      %v834 = vsel %vm597, %v826, %v833
      %v835 = vrot.slane %v830, 4
      %v837 = vshrl.u32 %v470, 16
      %v839 = vrot.slane %v837, 7
      %v840 = vshll.u32 %v470, 16
      %v842 = vor.u32 %v839, %v840
      %v843 = vrot.slane %v839, 4
      %v845 = vshrl.u32 %v471, 16
      %v847 = vrot.slane %v845, 7
      %v848 = vshll.u32 %v471, 16
      %v850 = vor.u32 %v847, %v848
      %v851 = vsel %vm597, %v843, %v850
      %v852 = vrot.slane %v847, 4
      %v854 = vshrl.u32 %v472, 16
      %v856 = vrot.slane %v854, 7
      %v857 = vshll.u32 %v472, 16
      %v859 = vor.u32 %v856, %v857
      %v860 = vrot.slane %v856, 4
      %v862 = vshrl.u32 %v473, 16
      %v864 = vrot.slane %v862, 7
      %v865 = vshll.u32 %v473, 16
      %v867 = vor.u32 %v864, %v865
      %v868 = vsel %vm597, %v860, %v867
      %v869 = vrot.slane %v864, 4
      %s918 = scalar_lea.vmem [#allocation2], 12
      %vm919 = vcmask 27648
      %vm920 = vmand %vm919, %vm540
      %v921 = vld [vmem:[%s918] sm:$0xf]
      %v922 = vsel %vm920, %v604, %v921
      %923 = vst [vmem:[%s918] sm:$0xf] %v922
      %924 = vst.msk [vmem:[%s918 + $0x4] sm:$0xf] %vm474, %v613
      %v925 = vld [vmem:[%s918 + $0x8] sm:$0x1]
      %v926 = vsel %vm485, %v614, %v925
      %927 = vst [vmem:[%s918 + $0x8] sm:$0x1] %v926
      %v928 = vld [vmem:[%s918 + $0xc] sm:$0xf]
      %v929 = vsel %vm920, %v621, %v928
      %930 = vst [vmem:[%s918 + $0xc] sm:$0xf] %v929
      %931 = vst.msk [vmem:[%s918 + $0x10] sm:$0xf] %vm474, %v630
      %v932 = vld [vmem:[%s918 + $0x14] sm:$0x1]
      %v933 = vsel %vm485, %v631, %v932
      %934 = vst [vmem:[%s918 + $0x14] sm:$0x1] %v933
      %v935 = vld [vmem:[%s918 + $0x18] sm:$0xf]
      %v936 = vsel %vm920, %v638, %v935
      %937 = vst [vmem:[%s918 + $0x18] sm:$0xf] %v936
      %938 = vst.msk [vmem:[%s918 + $0x1c] sm:$0xf] %vm474, %v647
      %v939 = vld [vmem:[%s918 + $0x20] sm:$0x1]
      %v940 = vsel %vm485, %v648, %v939
      %941 = vst [vmem:[%s918 + $0x20] sm:$0x1] %v940
      %v942 = vld [vmem:[%s918 + $0x24] sm:$0xf]
      %v943 = vsel %vm920, %v655, %v942
      %944 = vst [vmem:[%s918 + $0x24] sm:$0xf] %v943
      %945 = vst.msk [vmem:[%s918 + $0x28] sm:$0xf] %vm474, %v664
      %v946 = vld [vmem:[%s918 + $0x2c] sm:$0x1]
      %v947 = vsel %vm485, %v665, %v946
      %948 = vst [vmem:[%s918 + $0x2c] sm:$0x1] %v947
      %v949 = vld [vmem:[%s918 + $0x30] sm:$0xf]
      %v950 = vsel %vm920, %v672, %v949
      %951 = vst [vmem:[%s918 + $0x30] sm:$0xf] %v950
      %952 = vst.msk [vmem:[%s918 + $0x34] sm:$0xf] %vm474, %v681
      %v953 = vld [vmem:[%s918 + $0x38] sm:$0x1]
      %v954 = vsel %vm485, %v682, %v953
      %955 = vst [vmem:[%s918 + $0x38] sm:$0x1] %v954
      %v956 = vld [vmem:[%s918 + $0x3c] sm:$0xf]
      %v957 = vsel %vm920, %v689, %v956
      %958 = vst [vmem:[%s918 + $0x3c] sm:$0xf] %v957
      %959 = vst.msk [vmem:[%s918 + $0x40] sm:$0xf] %vm474, %v698
      %v960 = vld [vmem:[%s918 + $0x44] sm:$0x1]
      %v961 = vsel %vm485, %v699, %v960
      %962 = vst [vmem:[%s918 + $0x44] sm:$0x1] %v961
      %v963 = vld [vmem:[%s918 + $0x48] sm:$0xf]
      %v964 = vsel %vm920, %v706, %v963
      %965 = vst [vmem:[%s918 + $0x48] sm:$0xf] %v964
      %966 = vst.msk [vmem:[%s918 + $0x4c] sm:$0xf] %vm474, %v715
      %v967 = vld [vmem:[%s918 + $0x50] sm:$0x1]
      %v968 = vsel %vm485, %v716, %v967
      %969 = vst [vmem:[%s918 + $0x50] sm:$0x1] %v968
      %v970 = vld [vmem:[%s918 + $0x54] sm:$0xf]
      %v971 = vsel %vm920, %v723, %v970
      %972 = vst [vmem:[%s918 + $0x54] sm:$0xf] %v971
      %973 = vst.msk [vmem:[%s918 + $0x58] sm:$0xf] %vm474, %v732
      %v974 = vld [vmem:[%s918 + $0x5c] sm:$0x1]
      %v975 = vsel %vm485, %v733, %v974
      %976 = vst [vmem:[%s918 + $0x5c] sm:$0x1] %v975
      %v977 = vld [vmem:[%s918 + $0x60] sm:$0xf]
      %v978 = vsel %vm920, %v740, %v977
      %979 = vst [vmem:[%s918 + $0x60] sm:$0xf] %v978
      %980 = vst.msk [vmem:[%s918 + $0x64] sm:$0xf] %vm474, %v749
      %v981 = vld [vmem:[%s918 + $0x68] sm:$0x1]
      %v982 = vsel %vm485, %v750, %v981
      %983 = vst [vmem:[%s918 + $0x68] sm:$0x1] %v982
      %v984 = vld [vmem:[%s918 + $0x6c] sm:$0xf]
      %v985 = vsel %vm920, %v757, %v984
      %986 = vst [vmem:[%s918 + $0x6c] sm:$0xf] %v985
      %987 = vst.msk [vmem:[%s918 + $0x70] sm:$0xf] %vm474, %v766
      %v988 = vld [vmem:[%s918 + $0x74] sm:$0x1]
      %v989 = vsel %vm485, %v767, %v988
      %990 = vst [vmem:[%s918 + $0x74] sm:$0x1] %v989
      %v991 = vld [vmem:[%s918 + $0x78] sm:$0xf]
      %v992 = vsel %vm920, %v774, %v991
      %993 = vst [vmem:[%s918 + $0x78] sm:$0xf] %v992
      %994 = vst.msk [vmem:[%s918 + $0x7c] sm:$0xf] %vm474, %v783
      %v995 = vld [vmem:[%s918 + $0x80] sm:$0x1]
      %v996 = vsel %vm485, %v784, %v995
      %997 = vst [vmem:[%s918 + $0x80] sm:$0x1] %v996
      %v998 = vld [vmem:[%s918 + $0x84] sm:$0xf]
      %v999 = vsel %vm920, %v791, %v998
      %1000 = vst [vmem:[%s918 + $0x84] sm:$0xf] %v999
      %1001 = vst.msk [vmem:[%s918 + $0x88] sm:$0xf] %vm474, %v800
      %v1002 = vld [vmem:[%s918 + $0x8c] sm:$0x1]
      %v1003 = vsel %vm485, %v801, %v1002
      %1004 = vst [vmem:[%s918 + $0x8c] sm:$0x1] %v1003
      %v1005 = vld [vmem:[%s918 + $0x90] sm:$0xf]
      %v1006 = vsel %vm920, %v808, %v1005
      %1007 = vst [vmem:[%s918 + $0x90] sm:$0xf] %v1006
      %1008 = vst.msk [vmem:[%s918 + $0x94] sm:$0xf] %vm474, %v817
      %v1009 = vld [vmem:[%s918 + $0x98] sm:$0x1]
      %v1010 = vsel %vm485, %v818, %v1009
      %1011 = vst [vmem:[%s918 + $0x98] sm:$0x1] %v1010
      %v1012 = vld [vmem:[%s918 + $0x9c] sm:$0xf]
      %v1013 = vsel %vm920, %v825, %v1012
      %1014 = vst [vmem:[%s918 + $0x9c] sm:$0xf] %v1013
      %1015 = vst.msk [vmem:[%s918 + $0xa0] sm:$0xf] %vm474, %v834
      %v1016 = vld [vmem:[%s918 + $0xa4] sm:$0x1]
      %v1017 = vsel %vm485, %v835, %v1016
      %1018 = vst [vmem:[%s918 + $0xa4] sm:$0x1] %v1017
      %v1019 = vld [vmem:[%s918 + $0xa8] sm:$0xf]
      %v1020 = vsel %vm920, %v842, %v1019
      %1021 = vst [vmem:[%s918 + $0xa8] sm:$0xf] %v1020
      %1022 = vst.msk [vmem:[%s918 + $0xac] sm:$0xf] %vm474, %v851
      %v1023 = vld [vmem:[%s918 + $0xb0] sm:$0x1]
      %v1024 = vsel %vm485, %v852, %v1023
      %1025 = vst [vmem:[%s918 + $0xb0] sm:$0x1] %v1024
      %v1026 = vld [vmem:[%s918 + $0xb4] sm:$0xf]
      %v1027 = vsel %vm920, %v859, %v1026
      %1028 = vst [vmem:[%s918 + $0xb4] sm:$0xf] %v1027
      %1029 = vst.msk [vmem:[%s918 + $0xb8] sm:$0xf] %vm474, %v868
      %v1030 = vld [vmem:[%s918 + $0xbc] sm:$0x1]
      %v1031 = vsel %vm485, %v869, %v1030
      %1032 = vst [vmem:[%s918 + $0xbc] sm:$0x1] %v1031
      %v1033 = vld [vmem:[#allocation2] sm:$0xf]
      %v1034 = vld [vmem:[#allocation2 + $0x4] sm:$0xf]
      %v1035 = vld [vmem:[#allocation2 + $0xc] sm:$0xf]
      %v1036 = vld [vmem:[#allocation2 + $0x10] sm:$0xf]
      %v1037 = vld [vmem:[#allocation2 + $0x18] sm:$0xf]
      %v1038 = vld [vmem:[#allocation2 + $0x1c] sm:$0xf]
      %v1039 = vld [vmem:[#allocation2 + $0x24] sm:$0xf]
      %v1040 = vld [vmem:[#allocation2 + $0x28] sm:$0xf]
      %v1041 = vld [vmem:[#allocation2 + $0x30] sm:$0xf]
      %v1042 = vld [vmem:[#allocation2 + $0x34] sm:$0xf]
      %v1043 = vld [vmem:[#allocation2 + $0x3c] sm:$0xf]
      %v1044 = vld [vmem:[#allocation2 + $0x40] sm:$0xf]
      %v1045 = vld [vmem:[#allocation2 + $0x48] sm:$0xf]
      %v1046 = vld [vmem:[#allocation2 + $0x4c] sm:$0xf]
      %v1047 = vld [vmem:[#allocation2 + $0x54] sm:$0xf]
      %v1048 = vld [vmem:[#allocation2 + $0x58] sm:$0xf]
      %v1049 = vld [vmem:[#allocation2 + $0x60] sm:$0xf]
      %v1050 = vld [vmem:[#allocation2 + $0x64] sm:$0xf]
      %v1051 = vld [vmem:[#allocation2 + $0x6c] sm:$0xf]
      %v1052 = vld [vmem:[#allocation2 + $0x70] sm:$0xf]
      %v1053 = vld [vmem:[#allocation2 + $0x78] sm:$0xf]
      %v1054 = vld [vmem:[#allocation2 + $0x7c] sm:$0xf]
      %v1055 = vld [vmem:[#allocation2 + $0x84] sm:$0xf]
      %v1056 = vld [vmem:[#allocation2 + $0x88] sm:$0xf]
      %v1057 = vld [vmem:[#allocation2 + $0x90] sm:$0xf]
      %v1058 = vld [vmem:[#allocation2 + $0x94] sm:$0xf]
      %v1059 = vld [vmem:[#allocation2 + $0x9c] sm:$0xf]
      %v1060 = vld [vmem:[#allocation2 + $0xa0] sm:$0xf]
      %v1061 = vld [vmem:[#allocation2 + $0xa8] sm:$0xf]
      %v1062 = vld [vmem:[#allocation2 + $0xac] sm:$0xf]
      %v1063 = vld [vmem:[#allocation2 + $0xb4] sm:$0xf]
      %v1064 = vld [vmem:[#allocation2 + $0xb8] sm:$0xf]
      %v1065 = vld [vmem:[%s3] sm:$0x3]
      %v1066 = vld [vmem:[#allocation2 + $0x8] sm:$0x1]
      %v1067 = vld [vmem:[#allocation2 + $0x14] sm:$0x1]
      %v1068 = vld [vmem:[#allocation2 + $0x20] sm:$0x1]
      %v1069 = vld [vmem:[#allocation2 + $0x2c] sm:$0x1]
      %v1070 = vld [vmem:[#allocation2 + $0x38] sm:$0x1]
      %v1071 = vld [vmem:[#allocation2 + $0x44] sm:$0x1]
      %v1072 = vld [vmem:[#allocation2 + $0x50] sm:$0x1]
      %v1073 = vld [vmem:[#allocation2 + $0x5c] sm:$0x1]
      %v1074 = vld [vmem:[#allocation2 + $0x68] sm:$0x1]
      %v1075 = vld [vmem:[#allocation2 + $0x74] sm:$0x1]
      %v1076 = vld [vmem:[#allocation2 + $0x80] sm:$0x1]
      %v1077 = vld [vmem:[#allocation2 + $0x8c] sm:$0x1]
      %v1078 = vld [vmem:[#allocation2 + $0x98] sm:$0x1]
      %v1079 = vld [vmem:[#allocation2 + $0xa4] sm:$0x1]
      %v1080 = vld [vmem:[#allocation2 + $0xb0] sm:$0x1]
      %v1081 = vld [vmem:[#allocation2 + $0xbc] sm:$0x1]
      %vm1082 = vsmask.f32 3328
      %vm1083 = vsmask.f32 7440
      %vm1084 = vmor %vm1082, %vm1083
      %v1086 = vshrl.u32 %v1033, 16
      %v1088 = vrot.slane %v1086, 4
      %v1089 = vshll.u32 %v1033, 16
      %v1091 = vrot.slane %v1089, 5
      %v1092 = vor.u32 %v1088, %v1091
      %v1093 = vrot.slane %v1092, 4
      %v1095 = vshll.u32 %v1034, 16
      %v1097 = vrot.slane %v1095, 5
      %v1098 = vsel %vm1084, %v1093, %v1097
      %v1099 = vshrl.u32 %v1034, 16
      %v1101 = vrot.slane %v1099, 4
      %v1102 = vor.u32 %v1101, %v1097
      %v1103 = vrot.slane %v1102, 4
      %v1105 = vshll.u32 %v1066, 16
      %v1107 = vrot.slane %v1105, 5
      %v1108 = vsel %vm1084, %v1103, %v1107
      %v1110 = vshrl.u32 %v1035, 16
      %v1112 = vrot.slane %v1110, 4
      %v1113 = vshll.u32 %v1035, 16
      %v1115 = vrot.slane %v1113, 5
      %v1116 = vor.u32 %v1112, %v1115
      %v1117 = vrot.slane %v1116, 4
      %v1119 = vshll.u32 %v1036, 16
      %v1121 = vrot.slane %v1119, 5
      %v1122 = vsel %vm1084, %v1117, %v1121
      %v1123 = vshrl.u32 %v1036, 16
      %v1125 = vrot.slane %v1123, 4
      %v1126 = vor.u32 %v1125, %v1121
      %v1127 = vrot.slane %v1126, 4
      %v1129 = vshll.u32 %v1067, 16
      %v1131 = vrot.slane %v1129, 5
      %v1132 = vsel %vm1084, %v1127, %v1131
      %v1134 = vshrl.u32 %v1037, 16
      %v1136 = vrot.slane %v1134, 4
      %v1137 = vshll.u32 %v1037, 16
      %v1139 = vrot.slane %v1137, 5
      %v1140 = vor.u32 %v1136, %v1139
      %v1141 = vrot.slane %v1140, 4
      %v1143 = vshll.u32 %v1038, 16
      %v1145 = vrot.slane %v1143, 5
      %v1146 = vsel %vm1084, %v1141, %v1145
      %v1147 = vshrl.u32 %v1038, 16
      %v1149 = vrot.slane %v1147, 4
      %v1150 = vor.u32 %v1149, %v1145
      %v1151 = vrot.slane %v1150, 4
      %v1153 = vshll.u32 %v1068, 16
      %v1155 = vrot.slane %v1153, 5
      %v1156 = vsel %vm1084, %v1151, %v1155
      %v1158 = vshrl.u32 %v1039, 16
      %v1160 = vrot.slane %v1158, 4
      %v1161 = vshll.u32 %v1039, 16
      %v1163 = vrot.slane %v1161, 5
      %v1164 = vor.u32 %v1160, %v1163
      %v1165 = vrot.slane %v1164, 4
      %v1167 = vshll.u32 %v1040, 16
      %v1169 = vrot.slane %v1167, 5
      %v1170 = vsel %vm1084, %v1165, %v1169
      %v1171 = vshrl.u32 %v1040, 16
      %v1173 = vrot.slane %v1171, 4
      %v1174 = vor.u32 %v1173, %v1169
      %v1175 = vrot.slane %v1174, 4
      %v1177 = vshll.u32 %v1069, 16
      %v1179 = vrot.slane %v1177, 5
      %v1180 = vsel %vm1084, %v1175, %v1179
      %v1182 = vshrl.u32 %v1041, 16
      %v1184 = vrot.slane %v1182, 4
      %v1185 = vshll.u32 %v1041, 16
      %v1187 = vrot.slane %v1185, 5
      %v1188 = vor.u32 %v1184, %v1187
      %v1189 = vrot.slane %v1188, 4
      %v1191 = vshll.u32 %v1042, 16
      %v1193 = vrot.slane %v1191, 5
      %v1194 = vsel %vm1084, %v1189, %v1193
      %v1195 = vshrl.u32 %v1042, 16
      %v1197 = vrot.slane %v1195, 4
      %v1198 = vor.u32 %v1197, %v1193
      %v1199 = vrot.slane %v1198, 4
      %v1201 = vshll.u32 %v1070, 16
      %v1203 = vrot.slane %v1201, 5
      %v1204 = vsel %vm1084, %v1199, %v1203
      %v1206 = vshrl.u32 %v1043, 16
      %v1208 = vrot.slane %v1206, 4
      %v1209 = vshll.u32 %v1043, 16
      %v1211 = vrot.slane %v1209, 5
      %v1212 = vor.u32 %v1208, %v1211
      %v1213 = vrot.slane %v1212, 4
      %v1215 = vshll.u32 %v1044, 16
      %v1217 = vrot.slane %v1215, 5
      %v1218 = vsel %vm1084, %v1213, %v1217
      %v1219 = vshrl.u32 %v1044, 16
      %v1221 = vrot.slane %v1219, 4
      %v1222 = vor.u32 %v1221, %v1217
      %v1223 = vrot.slane %v1222, 4
      %v1225 = vshll.u32 %v1071, 16
      %v1227 = vrot.slane %v1225, 5
      %v1228 = vsel %vm1084, %v1223, %v1227
      %v1230 = vshrl.u32 %v1045, 16
      %v1232 = vrot.slane %v1230, 4
      %v1233 = vshll.u32 %v1045, 16
      %v1235 = vrot.slane %v1233, 5
      %v1236 = vor.u32 %v1232, %v1235
      %v1237 = vrot.slane %v1236, 4
      %v1239 = vshll.u32 %v1046, 16
      %v1241 = vrot.slane %v1239, 5
      %v1242 = vsel %vm1084, %v1237, %v1241
      %v1243 = vshrl.u32 %v1046, 16
      %v1245 = vrot.slane %v1243, 4
      %v1246 = vor.u32 %v1245, %v1241
      %v1247 = vrot.slane %v1246, 4
      %v1249 = vshll.u32 %v1072, 16
      %v1251 = vrot.slane %v1249, 5
      %v1252 = vsel %vm1084, %v1247, %v1251
      %v1254 = vshrl.u32 %v1047, 16
      %v1256 = vrot.slane %v1254, 4
      %v1257 = vshll.u32 %v1047, 16
      %v1259 = vrot.slane %v1257, 5
      %v1260 = vor.u32 %v1256, %v1259
      %v1261 = vrot.slane %v1260, 4
      %v1263 = vshll.u32 %v1048, 16
      %v1265 = vrot.slane %v1263, 5
      %v1266 = vsel %vm1084, %v1261, %v1265
      %v1267 = vshrl.u32 %v1048, 16
      %v1269 = vrot.slane %v1267, 4
      %v1270 = vor.u32 %v1269, %v1265
      %v1271 = vrot.slane %v1270, 4
      %v1273 = vshll.u32 %v1073, 16
      %v1275 = vrot.slane %v1273, 5
      %v1276 = vsel %vm1084, %v1271, %v1275
      %v1278 = vshrl.u32 %v1049, 16
      %v1280 = vrot.slane %v1278, 4
      %v1281 = vshll.u32 %v1049, 16
      %v1283 = vrot.slane %v1281, 5
      %v1284 = vor.u32 %v1280, %v1283
      %v1285 = vrot.slane %v1284, 4
      %v1287 = vshll.u32 %v1050, 16
      %v1289 = vrot.slane %v1287, 5
      %v1290 = vsel %vm1084, %v1285, %v1289
      %v1291 = vshrl.u32 %v1050, 16
      %v1293 = vrot.slane %v1291, 4
      %v1294 = vor.u32 %v1293, %v1289
      %v1295 = vrot.slane %v1294, 4
      %v1297 = vshll.u32 %v1074, 16
      %v1299 = vrot.slane %v1297, 5
      %v1300 = vsel %vm1084, %v1295, %v1299
      %v1302 = vshrl.u32 %v1051, 16
      %v1304 = vrot.slane %v1302, 4
      %v1305 = vshll.u32 %v1051, 16
      %v1307 = vrot.slane %v1305, 5
      %v1308 = vor.u32 %v1304, %v1307
      %v1309 = vrot.slane %v1308, 4
      %v1311 = vshll.u32 %v1052, 16
      %v1313 = vrot.slane %v1311, 5
      %v1314 = vsel %vm1084, %v1309, %v1313
      %v1315 = vshrl.u32 %v1052, 16
      %v1317 = vrot.slane %v1315, 4
      %v1318 = vor.u32 %v1317, %v1313
      %v1319 = vrot.slane %v1318, 4
      %v1321 = vshll.u32 %v1075, 16
      %v1323 = vrot.slane %v1321, 5
      %v1324 = vsel %vm1084, %v1319, %v1323
      %v1326 = vshrl.u32 %v1053, 16
      %v1328 = vrot.slane %v1326, 4
      %v1329 = vshll.u32 %v1053, 16
      %v1331 = vrot.slane %v1329, 5
      %v1332 = vor.u32 %v1328, %v1331
      %v1333 = vrot.slane %v1332, 4
      %v1335 = vshll.u32 %v1054, 16
      %v1337 = vrot.slane %v1335, 5
      %v1338 = vsel %vm1084, %v1333, %v1337
      %v1339 = vshrl.u32 %v1054, 16
      %v1341 = vrot.slane %v1339, 4
      %v1342 = vor.u32 %v1341, %v1337
      %v1343 = vrot.slane %v1342, 4
      %v1345 = vshll.u32 %v1076, 16
      %v1347 = vrot.slane %v1345, 5
      %v1348 = vsel %vm1084, %v1343, %v1347
      %v1350 = vshrl.u32 %v1055, 16
      %v1352 = vrot.slane %v1350, 4
      %v1353 = vshll.u32 %v1055, 16
      %v1355 = vrot.slane %v1353, 5
      %v1356 = vor.u32 %v1352, %v1355
      %v1357 = vrot.slane %v1356, 4
      %v1359 = vshll.u32 %v1056, 16
      %v1361 = vrot.slane %v1359, 5
      %v1362 = vsel %vm1084, %v1357, %v1361
      %v1363 = vshrl.u32 %v1056, 16
      %v1365 = vrot.slane %v1363, 4
      %v1366 = vor.u32 %v1365, %v1361
      %v1367 = vrot.slane %v1366, 4
      %v1369 = vshll.u32 %v1077, 16
      %v1371 = vrot.slane %v1369, 5
      %v1372 = vsel %vm1084, %v1367, %v1371
      %v1374 = vshrl.u32 %v1057, 16
      %v1376 = vrot.slane %v1374, 4
      %v1377 = vshll.u32 %v1057, 16
      %v1379 = vrot.slane %v1377, 5
      %v1380 = vor.u32 %v1376, %v1379
      %v1381 = vrot.slane %v1380, 4
      %v1383 = vshll.u32 %v1058, 16
      %v1385 = vrot.slane %v1383, 5
      %v1386 = vsel %vm1084, %v1381, %v1385
      %v1387 = vshrl.u32 %v1058, 16
      %v1389 = vrot.slane %v1387, 4
      %v1390 = vor.u32 %v1389, %v1385
      %v1391 = vrot.slane %v1390, 4
      %v1393 = vshll.u32 %v1078, 16
      %v1395 = vrot.slane %v1393, 5
      %v1396 = vsel %vm1084, %v1391, %v1395
      %v1398 = vshrl.u32 %v1059, 16
      %v1400 = vrot.slane %v1398, 4
      %v1401 = vshll.u32 %v1059, 16
      %v1403 = vrot.slane %v1401, 5
      %v1404 = vor.u32 %v1400, %v1403
      %v1405 = vrot.slane %v1404, 4
      %v1407 = vshll.u32 %v1060, 16
      %v1409 = vrot.slane %v1407, 5
      %v1410 = vsel %vm1084, %v1405, %v1409
      %v1411 = vshrl.u32 %v1060, 16
      %v1413 = vrot.slane %v1411, 4
      %v1414 = vor.u32 %v1413, %v1409
      %v1415 = vrot.slane %v1414, 4
      %v1417 = vshll.u32 %v1079, 16
      %v1419 = vrot.slane %v1417, 5
      %v1420 = vsel %vm1084, %v1415, %v1419
      %v1422 = vshrl.u32 %v1061, 16
      %v1424 = vrot.slane %v1422, 4
      %v1425 = vshll.u32 %v1061, 16
      %v1427 = vrot.slane %v1425, 5
      %v1428 = vor.u32 %v1424, %v1427
      %v1429 = vrot.slane %v1428, 4
      %v1431 = vshll.u32 %v1062, 16
      %v1433 = vrot.slane %v1431, 5
      %v1434 = vsel %vm1084, %v1429, %v1433
      %v1435 = vshrl.u32 %v1062, 16
      %v1437 = vrot.slane %v1435, 4
      %v1438 = vor.u32 %v1437, %v1433
      %v1439 = vrot.slane %v1438, 4
      %v1441 = vshll.u32 %v1080, 16
      %v1443 = vrot.slane %v1441, 5
      %v1444 = vsel %vm1084, %v1439, %v1443
      %v1446 = vshrl.u32 %v1063, 16
      %v1448 = vrot.slane %v1446, 4
      %v1449 = vshll.u32 %v1063, 16
      %v1451 = vrot.slane %v1449, 5
      %v1452 = vor.u32 %v1448, %v1451
      %v1453 = vrot.slane %v1452, 4
      %v1455 = vshll.u32 %v1064, 16
      %v1457 = vrot.slane %v1455, 5
      %v1458 = vsel %vm1084, %v1453, %v1457
      %v1459 = vshrl.u32 %v1064, 16
      %v1461 = vrot.slane %v1459, 4
      %v1462 = vor.u32 %v1461, %v1457
      %v1463 = vrot.slane %v1462, 4
      %v1465 = vshll.u32 %v1081, 16
      %v1467 = vrot.slane %v1465, 5
      %v1468 = vsel %vm1084, %v1463, %v1467
      %s1469 = scalar_lea.vmem %s3, 2
      %v1470 = vld [vmem:[%s1469] sm:$0x3]
      %v1471 = vunpack.c.l.b16 %v1098
      %v1472 = vunpack.c.l.b16 %v1108
      %v1473 = vunpack.c.l.b16 %v1122
      %v1474 = vunpack.c.l.b16 %v1132
      %v1475 = vunpack.c.l.b16 %v1146
      %v1476 = vunpack.c.l.b16 %v1156
      %v1477 = vunpack.c.l.b16 %v1170
      %v1478 = vunpack.c.l.b16 %v1180
      %v1479 = vunpack.c.l.b16 %v1194
      %v1480 = vunpack.c.l.b16 %v1204
      %v1481 = vunpack.c.l.b16 %v1218
      %v1482 = vunpack.c.l.b16 %v1228
      %v1483 = vunpack.c.l.b16 %v1242
      %v1484 = vunpack.c.l.b16 %v1252
      %v1485 = vunpack.c.l.b16 %v1266
      %v1486 = vunpack.c.l.b16 %v1276
      %v1487 = vunpack.c.l.b16 %v1290
      %v1488 = vunpack.c.l.b16 %v1300
      %v1489 = vunpack.c.l.b16 %v1314
      %v1490 = vunpack.c.l.b16 %v1324
      %v1491 = vunpack.c.l.b16 %v1338
      %v1492 = vunpack.c.l.b16 %v1348
      %v1493 = vunpack.c.l.b16 %v1362
      %v1494 = vunpack.c.l.b16 %v1372
      %v1495 = vunpack.c.l.b16 %v1386
      %v1496 = vunpack.c.l.b16 %v1396
      %v1497 = vunpack.c.l.b16 %v1410
      %v1498 = vunpack.c.l.b16 %v1420
      %v1499 = vunpack.c.l.b16 %v1434
      %v1500 = vunpack.c.l.b16 %v1444
      %v1501 = vunpack.c.l.b16 %v1458
      %v1502 = vunpack.c.l.b16 %v1468
      %v1503 = vpack.c.b16 %v1472, %v1471
      %v1504 = vpack.c.b16 %v1474, %v1473
      %v1505 = vpack.c.b16 %v1476, %v1475
      %v1506 = vpack.c.b16 %v1478, %v1477
      %v1507 = vpack.c.b16 %v1480, %v1479
      %v1508 = vpack.c.b16 %v1482, %v1481
      %v1509 = vpack.c.b16 %v1484, %v1483
      %v1510 = vpack.c.b16 %v1486, %v1485
      %v1511 = vpack.c.b16 %v1488, %v1487
      %v1512 = vpack.c.b16 %v1490, %v1489
      %v1513 = vpack.c.b16 %v1492, %v1491
      %v1514 = vpack.c.b16 %v1494, %v1493
      %v1515 = vpack.c.b16 %v1496, %v1495
      %v1516 = vpack.c.b16 %v1498, %v1497
      %v1517 = vpack.c.b16 %v1500, %v1499
      %v1518 = vpack.c.b16 %v1502, %v1501
      %vm1519 = vcmask 31744
      %v1521 = vsel %vm1519, %v1503, 0
      %v1524 = vsel %vm1519, %v1504, 0
      %v1527 = vsel %vm1519, %v1505, 0
      %v1530 = vsel %vm1519, %v1506, 0
      %v1533 = vsel %vm1519, %v1507, 0
      %v1536 = vsel %vm1519, %v1508, 0
      %v1539 = vsel %vm1519, %v1509, 0
      %v1542 = vsel %vm1519, %v1510, 0
      %v1545 = vsel %vm1519, %v1511, 0
      %v1548 = vsel %vm1519, %v1512, 0
      %v1551 = vsel %vm1519, %v1513, 0
      %v1554 = vsel %vm1519, %v1514, 0
      %v1557 = vsel %vm1519, %v1515, 0
      %v1560 = vsel %vm1519, %v1516, 0
      %v1563 = vsel %vm1519, %v1517, 0
      %v1566 = vsel %vm1519, %v1518, 0
      %vm1568 = vcmask 1041408
      %v1570 = vsel %vm1568, %v1470, 0
      %1572 = vmatpush.bf16.msra.mxu0 0
      %1573 = vmatpush.bf16.msra.mxu0 0
      %1574 = vmatpush.bf16.msra.mxu0 0
      %1575 = vmatpush.bf16.msra.mxu0 0
      %1576 = vmatpush.bf16.msra.mxu0 0
      %1577 = vmatpush.bf16.msra.mxu0 0
      %1578 = vmatpush.bf16.msra.mxu0 0
      %1579 = vmatpush.bf16.msra.mxu0 %v1570
      %1580 = vmatmul.bf16.gmra.mxu0 %v1521
      %v1581 = vpop.f32.mrf.mxu0
      %v1582 = vadd.f32 0.0, %v1581
      %v1583 = vpop.f32.mrf.mxu0
      %v1584 = vadd.f32 0.0, %v1583
      %1585 = vmatmul.bf16.gmra.mxu0 %v1524
      %v1586 = vpop.f32.mrf.mxu0
      %v1587 = vadd.f32 0.0, %v1586
      %v1588 = vpop.f32.mrf.mxu0
      %v1589 = vadd.f32 0.0, %v1588
      %1590 = vmatmul.bf16.gmra.mxu0 %v1527
      %v1591 = vpop.f32.mrf.mxu0
      %v1592 = vadd.f32 0.0, %v1591
      %v1593 = vpop.f32.mrf.mxu0
      %v1594 = vadd.f32 0.0, %v1593
      %1595 = vmatmul.bf16.gmra.mxu0 %v1530
      %v1596 = vpop.f32.mrf.mxu0
      %v1597 = vadd.f32 0.0, %v1596
      %v1598 = vpop.f32.mrf.mxu0
      %v1599 = vadd.f32 0.0, %v1598
      %1600 = vmatmul.bf16.gmra.mxu0 %v1533
      %v1601 = vpop.f32.mrf.mxu0
      %v1602 = vadd.f32 0.0, %v1601
      %v1603 = vpop.f32.mrf.mxu0
      %v1604 = vadd.f32 0.0, %v1603
      %1605 = vmatmul.bf16.gmra.mxu0 %v1536
      %v1606 = vpop.f32.mrf.mxu0
      %v1607 = vadd.f32 0.0, %v1606
      %v1608 = vpop.f32.mrf.mxu0
      %v1609 = vadd.f32 0.0, %v1608
      %1610 = vmatmul.bf16.gmra.mxu0 %v1539
      %v1611 = vpop.f32.mrf.mxu0
      %v1612 = vadd.f32 0.0, %v1611
      %v1613 = vpop.f32.mrf.mxu0
      %v1614 = vadd.f32 0.0, %v1613
      %1615 = vmatmul.bf16.gmra.mxu0 %v1542
      %v1616 = vpop.f32.mrf.mxu0
      %v1617 = vadd.f32 0.0, %v1616
      %v1618 = vpop.f32.mrf.mxu0
      %v1619 = vadd.f32 0.0, %v1618
      %1620 = vmatmul.bf16.gmra.mxu0 %v1545
      %v1621 = vpop.f32.mrf.mxu0
      %v1622 = vadd.f32 0.0, %v1621
      %v1623 = vpop.f32.mrf.mxu0
      %v1624 = vadd.f32 0.0, %v1623
      %1625 = vmatmul.bf16.gmra.mxu0 %v1548
      %v1626 = vpop.f32.mrf.mxu0
      %v1627 = vadd.f32 0.0, %v1626
      %v1628 = vpop.f32.mrf.mxu0
      %v1629 = vadd.f32 0.0, %v1628
      %1630 = vmatmul.bf16.gmra.mxu0 %v1551
      %v1631 = vpop.f32.mrf.mxu0
      %v1632 = vadd.f32 0.0, %v1631
      %v1633 = vpop.f32.mrf.mxu0
      %v1634 = vadd.f32 0.0, %v1633
      %1635 = vmatmul.bf16.gmra.mxu0 %v1554
      %v1636 = vpop.f32.mrf.mxu0
      %v1637 = vadd.f32 0.0, %v1636
      %v1638 = vpop.f32.mrf.mxu0
      %v1639 = vadd.f32 0.0, %v1638
      %1640 = vmatmul.bf16.gmra.mxu0 %v1557
      %v1641 = vpop.f32.mrf.mxu0
      %v1642 = vadd.f32 0.0, %v1641
      %v1643 = vpop.f32.mrf.mxu0
      %v1644 = vadd.f32 0.0, %v1643
      %1645 = vmatmul.bf16.gmra.mxu0 %v1560
      %v1646 = vpop.f32.mrf.mxu0
      %v1647 = vadd.f32 0.0, %v1646
      %v1648 = vpop.f32.mrf.mxu0
      %v1649 = vadd.f32 0.0, %v1648
      %1650 = vmatmul.bf16.gmra.mxu0 %v1563
      %v1651 = vpop.f32.mrf.mxu0
      %v1652 = vadd.f32 0.0, %v1651
      %v1653 = vpop.f32.mrf.mxu0
      %v1654 = vadd.f32 0.0, %v1653
      %1655 = vmatmul.bf16.gmra.mxu0 %v1566
      %v1656 = vpop.f32.mrf.mxu0
      %v1657 = vadd.f32 0.0, %v1656
      %v1658 = vpop.f32.mrf.mxu0
      %v1659 = vadd.f32 0.0, %v1658
      %1660 = vdwg.mxu0
      %v1693 = vunpack.c.l.b16 %v1033
      %v1694 = vunpack.c.l.b16 %v1034
      %v1695 = vunpack.c.l.b16 %v1035
      %v1696 = vunpack.c.l.b16 %v1036
      %v1697 = vunpack.c.l.b16 %v1037
      %v1698 = vunpack.c.l.b16 %v1038
      %v1699 = vunpack.c.l.b16 %v1039
      %v1700 = vunpack.c.l.b16 %v1040
      %v1701 = vunpack.c.l.b16 %v1041
      %v1702 = vunpack.c.l.b16 %v1042
      %v1703 = vunpack.c.l.b16 %v1043
      %v1704 = vunpack.c.l.b16 %v1044
      %v1705 = vunpack.c.l.b16 %v1045
      %v1706 = vunpack.c.l.b16 %v1046
      %v1707 = vunpack.c.l.b16 %v1047
      %v1708 = vunpack.c.l.b16 %v1048
      %v1709 = vunpack.c.l.b16 %v1049
      %v1710 = vunpack.c.l.b16 %v1050
      %v1711 = vunpack.c.l.b16 %v1051
      %v1712 = vunpack.c.l.b16 %v1052
      %v1713 = vunpack.c.l.b16 %v1053
      %v1714 = vunpack.c.l.b16 %v1054
      %v1715 = vunpack.c.l.b16 %v1055
      %v1716 = vunpack.c.l.b16 %v1056
      %v1717 = vunpack.c.l.b16 %v1057
      %v1718 = vunpack.c.l.b16 %v1058
      %v1719 = vunpack.c.l.b16 %v1059
      %v1720 = vunpack.c.l.b16 %v1060
      %v1721 = vunpack.c.l.b16 %v1061
      %v1722 = vunpack.c.l.b16 %v1062
      %v1723 = vunpack.c.l.b16 %v1063
      %v1724 = vunpack.c.l.b16 %v1064
      %v1725 = vpack.c.b16 %v1694, %v1693
      %v1726 = vpack.c.b16 %v1696, %v1695
      %v1727 = vpack.c.b16 %v1698, %v1697
      %v1728 = vpack.c.b16 %v1700, %v1699
      %v1729 = vpack.c.b16 %v1702, %v1701
      %v1730 = vpack.c.b16 %v1704, %v1703
      %v1731 = vpack.c.b16 %v1706, %v1705
      %v1732 = vpack.c.b16 %v1708, %v1707
      %v1733 = vpack.c.b16 %v1710, %v1709
      %v1734 = vpack.c.b16 %v1712, %v1711
      %v1735 = vpack.c.b16 %v1714, %v1713
      %v1736 = vpack.c.b16 %v1716, %v1715
      %v1737 = vpack.c.b16 %v1718, %v1717
      %v1738 = vpack.c.b16 %v1720, %v1719
      %v1739 = vpack.c.b16 %v1722, %v1721
      %v1740 = vpack.c.b16 %v1724, %v1723
      %v1742 = vsel %vm1519, %v1725, 0
      %v1745 = vsel %vm1519, %v1726, 0
      %v1748 = vsel %vm1519, %v1727, 0
      %v1751 = vsel %vm1519, %v1728, 0
      %v1754 = vsel %vm1519, %v1729, 0
      %v1757 = vsel %vm1519, %v1730, 0
      %v1760 = vsel %vm1519, %v1731, 0
      %v1763 = vsel %vm1519, %v1732, 0
      %v1766 = vsel %vm1519, %v1733, 0
      %v1769 = vsel %vm1519, %v1734, 0
      %v1772 = vsel %vm1519, %v1735, 0
      %v1775 = vsel %vm1519, %v1736, 0
      %v1778 = vsel %vm1519, %v1737, 0
      %v1781 = vsel %vm1519, %v1738, 0
      %v1784 = vsel %vm1519, %v1739, 0
      %v1787 = vsel %vm1519, %v1740, 0
      %v1790 = vsel %vm1568, %v1065, 0
      %1792 = vmatpush.bf16.msra.mxu0 0
      %1793 = vmatpush.bf16.msra.mxu0 0
      %1794 = vmatpush.bf16.msra.mxu0 0
      %1795 = vmatpush.bf16.msra.mxu0 0
      %1796 = vmatpush.bf16.msra.mxu0 0
      %1797 = vmatpush.bf16.msra.mxu0 0
      %1798 = vmatpush.bf16.msra.mxu0 0
      %1799 = vmatpush.bf16.msra.mxu0 %v1790
      %1800 = vmatmul.bf16.gmra.mxu0 %v1742
      %v1801 = vpop.f32.mrf.mxu0
      %v1802 = vadd.f32 %v1582, %v1801
      %v1803 = vpop.f32.mrf.mxu0
      %v1804 = vadd.f32 %v1584, %v1803
      %1805 = vmatmul.bf16.gmra.mxu0 %v1745
      %v1806 = vpop.f32.mrf.mxu0
      %v1807 = vadd.f32 %v1587, %v1806
      %v1808 = vpop.f32.mrf.mxu0
      %v1809 = vadd.f32 %v1589, %v1808
      %1810 = vmatmul.bf16.gmra.mxu0 %v1748
      %v1811 = vpop.f32.mrf.mxu0
      %v1812 = vadd.f32 %v1592, %v1811
      %v1813 = vpop.f32.mrf.mxu0
      %v1814 = vadd.f32 %v1594, %v1813
      %1815 = vmatmul.bf16.gmra.mxu0 %v1751
      %v1816 = vpop.f32.mrf.mxu0
      %v1817 = vadd.f32 %v1597, %v1816
      %v1818 = vpop.f32.mrf.mxu0
      %v1819 = vadd.f32 %v1599, %v1818
      %1820 = vmatmul.bf16.gmra.mxu0 %v1754
      %v1821 = vpop.f32.mrf.mxu0
      %v1822 = vadd.f32 %v1602, %v1821
      %v1823 = vpop.f32.mrf.mxu0
      %v1824 = vadd.f32 %v1604, %v1823
      %1825 = vmatmul.bf16.gmra.mxu0 %v1757
      %v1826 = vpop.f32.mrf.mxu0
      %v1827 = vadd.f32 %v1607, %v1826
      %v1828 = vpop.f32.mrf.mxu0
      %v1829 = vadd.f32 %v1609, %v1828
      %1830 = vmatmul.bf16.gmra.mxu0 %v1760
      %v1831 = vpop.f32.mrf.mxu0
      %v1832 = vadd.f32 %v1612, %v1831
      %v1833 = vpop.f32.mrf.mxu0
      %v1834 = vadd.f32 %v1614, %v1833
      %1835 = vmatmul.bf16.gmra.mxu0 %v1763
      %v1836 = vpop.f32.mrf.mxu0
      %v1837 = vadd.f32 %v1617, %v1836
      %v1838 = vpop.f32.mrf.mxu0
      %v1839 = vadd.f32 %v1619, %v1838
      %1840 = vmatmul.bf16.gmra.mxu0 %v1766
      %v1841 = vpop.f32.mrf.mxu0
      %v1842 = vadd.f32 %v1622, %v1841
      %v1843 = vpop.f32.mrf.mxu0
      %v1844 = vadd.f32 %v1624, %v1843
      %1845 = vmatmul.bf16.gmra.mxu0 %v1769
      %v1846 = vpop.f32.mrf.mxu0
      %v1847 = vadd.f32 %v1627, %v1846
      %v1848 = vpop.f32.mrf.mxu0
      %v1849 = vadd.f32 %v1629, %v1848
      %1850 = vmatmul.bf16.gmra.mxu0 %v1772
      %v1851 = vpop.f32.mrf.mxu0
      %v1852 = vadd.f32 %v1632, %v1851
      %v1853 = vpop.f32.mrf.mxu0
      %v1854 = vadd.f32 %v1634, %v1853
      %1855 = vmatmul.bf16.gmra.mxu0 %v1775
      %v1856 = vpop.f32.mrf.mxu0
      %v1857 = vadd.f32 %v1637, %v1856
      %v1858 = vpop.f32.mrf.mxu0
      %v1859 = vadd.f32 %v1639, %v1858
      %1860 = vmatmul.bf16.gmra.mxu0 %v1778
      %v1861 = vpop.f32.mrf.mxu0
      %v1862 = vadd.f32 %v1642, %v1861
      %v1863 = vpop.f32.mrf.mxu0
      %v1864 = vadd.f32 %v1644, %v1863
      %1865 = vmatmul.bf16.gmra.mxu0 %v1781
      %v1866 = vpop.f32.mrf.mxu0
      %v1867 = vadd.f32 %v1647, %v1866
      %v1868 = vpop.f32.mrf.mxu0
      %v1869 = vadd.f32 %v1649, %v1868
      %1870 = vmatmul.bf16.gmra.mxu0 %v1784
      %v1871 = vpop.f32.mrf.mxu0
      %v1872 = vadd.f32 %v1652, %v1871
      %v1873 = vpop.f32.mrf.mxu0
      %v1874 = vadd.f32 %v1654, %v1873
      %1875 = vmatmul.bf16.gmra.mxu0 %v1787
      %v1876 = vpop.f32.mrf.mxu0
      %v1877 = vadd.f32 %v1657, %v1876
      %v1878 = vpop.f32.mrf.mxu0
      %v1879 = vadd.f32 %v1659, %v1878
      %1880 = vdwg.mxu0
      %v1881 = vld [vmem:[#allocation2] sm:$0xe]
      %v1882 = vld [vmem:[#allocation2 + $0xc] sm:$0xe]
      %v1883 = vld [vmem:[#allocation2 + $0x18] sm:$0xe]
      %v1884 = vld [vmem:[#allocation2 + $0x24] sm:$0xe]
      %v1885 = vld [vmem:[#allocation2 + $0x30] sm:$0xe]
      %v1886 = vld [vmem:[#allocation2 + $0x3c] sm:$0xe]
      %v1887 = vld [vmem:[#allocation2 + $0x48] sm:$0xe]
      %v1888 = vld [vmem:[#allocation2 + $0x54] sm:$0xe]
      %v1889 = vld [vmem:[#allocation2 + $0x60] sm:$0xe]
      %v1890 = vld [vmem:[#allocation2 + $0x6c] sm:$0xe]
      %v1891 = vld [vmem:[#allocation2 + $0x78] sm:$0xe]
      %v1892 = vld [vmem:[#allocation2 + $0x84] sm:$0xe]
      %v1893 = vld [vmem:[#allocation2 + $0x90] sm:$0xe]
      %v1894 = vld [vmem:[#allocation2 + $0x9c] sm:$0xe]
      %v1895 = vld [vmem:[#allocation2 + $0xa8] sm:$0xe]
      %v1896 = vld [vmem:[#allocation2 + $0xb4] sm:$0xe]
      %vm1929 = vcmask 1042432
      %vm1930 = vcmask 1046532
      %vm1931 = vmor %vm1929, %vm1930
      %v1932 = vrot.slane %v1881, 5
      %v1933 = vrot.slane %v1932, 4
      %v1934 = vrot.slane %v1034, 5
      %v1935 = vsel %vm1931, %v1933, %v1934
      %v1936 = vrot.slane %v1934, 4
      %v1937 = vrot.slane %v1066, 5
      %v1938 = vsel %vm1931, %v1936, %v1937
      %v1939 = vrot.slane %v1882, 5
      %v1940 = vrot.slane %v1939, 4
      %v1941 = vrot.slane %v1036, 5
      %v1942 = vsel %vm1931, %v1940, %v1941
      %v1943 = vrot.slane %v1941, 4
      %v1944 = vrot.slane %v1067, 5
      %v1945 = vsel %vm1931, %v1943, %v1944
      %v1946 = vrot.slane %v1883, 5
      %v1947 = vrot.slane %v1946, 4
      %v1948 = vrot.slane %v1038, 5
      %v1949 = vsel %vm1931, %v1947, %v1948
      %v1950 = vrot.slane %v1948, 4
      %v1951 = vrot.slane %v1068, 5
      %v1952 = vsel %vm1931, %v1950, %v1951
      %v1953 = vrot.slane %v1884, 5
      %v1954 = vrot.slane %v1953, 4
      %v1955 = vrot.slane %v1040, 5
      %v1956 = vsel %vm1931, %v1954, %v1955
      %v1957 = vrot.slane %v1955, 4
      %v1958 = vrot.slane %v1069, 5
      %v1959 = vsel %vm1931, %v1957, %v1958
      %v1960 = vrot.slane %v1885, 5
      %v1961 = vrot.slane %v1960, 4
      %v1962 = vrot.slane %v1042, 5
      %v1963 = vsel %vm1931, %v1961, %v1962
      %v1964 = vrot.slane %v1962, 4
      %v1965 = vrot.slane %v1070, 5
      %v1966 = vsel %vm1931, %v1964, %v1965
      %v1967 = vrot.slane %v1886, 5
      %v1968 = vrot.slane %v1967, 4
      %v1969 = vrot.slane %v1044, 5
      %v1970 = vsel %vm1931, %v1968, %v1969
      %v1971 = vrot.slane %v1969, 4
      %v1972 = vrot.slane %v1071, 5
      %v1973 = vsel %vm1931, %v1971, %v1972
      %v1974 = vrot.slane %v1887, 5
      %v1975 = vrot.slane %v1974, 4
      %v1976 = vrot.slane %v1046, 5
      %v1977 = vsel %vm1931, %v1975, %v1976
      %v1978 = vrot.slane %v1976, 4
      %v1979 = vrot.slane %v1072, 5
      %v1980 = vsel %vm1931, %v1978, %v1979
      %v1981 = vrot.slane %v1888, 5
      %v1982 = vrot.slane %v1981, 4
      %v1983 = vrot.slane %v1048, 5
      %v1984 = vsel %vm1931, %v1982, %v1983
      %v1985 = vrot.slane %v1983, 4
      %v1986 = vrot.slane %v1073, 5
      %v1987 = vsel %vm1931, %v1985, %v1986
      %v1988 = vrot.slane %v1889, 5
      %v1989 = vrot.slane %v1988, 4
      %v1990 = vrot.slane %v1050, 5
      %v1991 = vsel %vm1931, %v1989, %v1990
      %v1992 = vrot.slane %v1990, 4
      %v1993 = vrot.slane %v1074, 5
      %v1994 = vsel %vm1931, %v1992, %v1993
      %v1995 = vrot.slane %v1890, 5
      %v1996 = vrot.slane %v1995, 4
      %v1997 = vrot.slane %v1052, 5
      %v1998 = vsel %vm1931, %v1996, %v1997
      %v1999 = vrot.slane %v1997, 4
      %v2000 = vrot.slane %v1075, 5
      %v2001 = vsel %vm1931, %v1999, %v2000
      %v2002 = vrot.slane %v1891, 5
      %v2003 = vrot.slane %v2002, 4
      %v2004 = vrot.slane %v1054, 5
      %v2005 = vsel %vm1931, %v2003, %v2004
      %v2006 = vrot.slane %v2004, 4
      %v2007 = vrot.slane %v1076, 5
      %v2008 = vsel %vm1931, %v2006, %v2007
      %v2009 = vrot.slane %v1892, 5
      %v2010 = vrot.slane %v2009, 4
      %v2011 = vrot.slane %v1056, 5
      %v2012 = vsel %vm1931, %v2010, %v2011
      %v2013 = vrot.slane %v2011, 4
      %v2014 = vrot.slane %v1077, 5
      %v2015 = vsel %vm1931, %v2013, %v2014
      %v2016 = vrot.slane %v1893, 5
      %v2017 = vrot.slane %v2016, 4
      %v2018 = vrot.slane %v1058, 5
      %v2019 = vsel %vm1931, %v2017, %v2018
      %v2020 = vrot.slane %v2018, 4
      %v2021 = vrot.slane %v1078, 5
      %v2022 = vsel %vm1931, %v2020, %v2021
      %v2023 = vrot.slane %v1894, 5
      %v2024 = vrot.slane %v2023, 4
      %v2025 = vrot.slane %v1060, 5
      %v2026 = vsel %vm1931, %v2024, %v2025
      %v2027 = vrot.slane %v2025, 4
      %v2028 = vrot.slane %v1079, 5
      %v2029 = vsel %vm1931, %v2027, %v2028
      %v2030 = vrot.slane %v1895, 5
      %v2031 = vrot.slane %v2030, 4
      %v2032 = vrot.slane %v1062, 5
      %v2033 = vsel %vm1931, %v2031, %v2032
      %v2034 = vrot.slane %v2032, 4
      %v2035 = vrot.slane %v1080, 5
      %v2036 = vsel %vm1931, %v2034, %v2035
      %v2037 = vrot.slane %v1896, 5
      %v2038 = vrot.slane %v2037, 4
      %v2039 = vrot.slane %v1064, 5
      %v2040 = vsel %vm1931, %v2038, %v2039
      %v2041 = vrot.slane %v2039, 4
      %v2042 = vrot.slane %v1081, 5
      %v2043 = vsel %vm1931, %v2041, %v2042
      %s2044 = scalar_lea.vmem %s3, 4
      %v2045 = vld [vmem:[%s2044] sm:$0x3]
      %v2046 = vunpack.c.l.b16 %v1935
      %v2047 = vunpack.c.l.b16 %v1938
      %v2048 = vunpack.c.l.b16 %v1942
      %v2049 = vunpack.c.l.b16 %v1945
      %v2050 = vunpack.c.l.b16 %v1949
      %v2051 = vunpack.c.l.b16 %v1952
      %v2052 = vunpack.c.l.b16 %v1956
      %v2053 = vunpack.c.l.b16 %v1959
      %v2054 = vunpack.c.l.b16 %v1963
      %v2055 = vunpack.c.l.b16 %v1966
      %v2056 = vunpack.c.l.b16 %v1970
      %v2057 = vunpack.c.l.b16 %v1973
      %v2058 = vunpack.c.l.b16 %v1977
      %v2059 = vunpack.c.l.b16 %v1980
      %v2060 = vunpack.c.l.b16 %v1984
      %v2061 = vunpack.c.l.b16 %v1987
      %v2062 = vunpack.c.l.b16 %v1991
      %v2063 = vunpack.c.l.b16 %v1994
      %v2064 = vunpack.c.l.b16 %v1998
      %v2065 = vunpack.c.l.b16 %v2001
      %v2066 = vunpack.c.l.b16 %v2005
      %v2067 = vunpack.c.l.b16 %v2008
      %v2068 = vunpack.c.l.b16 %v2012
      %v2069 = vunpack.c.l.b16 %v2015
      %v2070 = vunpack.c.l.b16 %v2019
      %v2071 = vunpack.c.l.b16 %v2022
      %v2072 = vunpack.c.l.b16 %v2026
      %v2073 = vunpack.c.l.b16 %v2029
      %v2074 = vunpack.c.l.b16 %v2033
      %v2075 = vunpack.c.l.b16 %v2036
      %v2076 = vunpack.c.l.b16 %v2040
      %v2077 = vunpack.c.l.b16 %v2043
      %v2078 = vpack.c.b16 %v2047, %v2046
      %v2079 = vpack.c.b16 %v2049, %v2048
      %v2080 = vpack.c.b16 %v2051, %v2050
      %v2081 = vpack.c.b16 %v2053, %v2052
      %v2082 = vpack.c.b16 %v2055, %v2054
      %v2083 = vpack.c.b16 %v2057, %v2056
      %v2084 = vpack.c.b16 %v2059, %v2058
      %v2085 = vpack.c.b16 %v2061, %v2060
      %v2086 = vpack.c.b16 %v2063, %v2062
      %v2087 = vpack.c.b16 %v2065, %v2064
      %v2088 = vpack.c.b16 %v2067, %v2066
      %v2089 = vpack.c.b16 %v2069, %v2068
      %v2090 = vpack.c.b16 %v2071, %v2070
      %v2091 = vpack.c.b16 %v2073, %v2072
      %v2092 = vpack.c.b16 %v2075, %v2074
      %v2093 = vpack.c.b16 %v2077, %v2076
      %v2095 = vsel %vm1519, %v2078, 0
      %v2098 = vsel %vm1519, %v2079, 0
      %v2101 = vsel %vm1519, %v2080, 0
      %v2104 = vsel %vm1519, %v2081, 0
      %v2107 = vsel %vm1519, %v2082, 0
      %v2110 = vsel %vm1519, %v2083, 0
      %v2113 = vsel %vm1519, %v2084, 0
      %v2116 = vsel %vm1519, %v2085, 0
      %v2119 = vsel %vm1519, %v2086, 0
      %v2122 = vsel %vm1519, %v2087, 0
      %v2125 = vsel %vm1519, %v2088, 0
      %v2128 = vsel %vm1519, %v2089, 0
      %v2131 = vsel %vm1519, %v2090, 0
      %v2134 = vsel %vm1519, %v2091, 0
      %v2137 = vsel %vm1519, %v2092, 0
      %v2140 = vsel %vm1519, %v2093, 0
      %v2143 = vsel %vm1568, %v2045, 0
      %2145 = vmatpush.bf16.msra.mxu0 0
      %2146 = vmatpush.bf16.msra.mxu0 0
      %2147 = vmatpush.bf16.msra.mxu0 0
      %2148 = vmatpush.bf16.msra.mxu0 0
      %2149 = vmatpush.bf16.msra.mxu0 0
      %2150 = vmatpush.bf16.msra.mxu0 0
      %2151 = vmatpush.bf16.msra.mxu0 0
      %2152 = vmatpush.bf16.msra.mxu0 %v2143
      %2153 = vmatmul.bf16.gmra.mxu0 %v2095
      %v2154 = vpop.f32.mrf.mxu0
      %v2155 = vadd.f32 0.0, %v2154
      %v2156 = vpop.f32.mrf.mxu0
      %v2157 = vadd.f32 0.0, %v2156
      %2158 = vmatmul.bf16.gmra.mxu0 %v2098
      %v2159 = vpop.f32.mrf.mxu0
      %v2160 = vadd.f32 0.0, %v2159
      %v2161 = vpop.f32.mrf.mxu0
      %v2162 = vadd.f32 0.0, %v2161
      %2163 = vmatmul.bf16.gmra.mxu0 %v2101
      %v2164 = vpop.f32.mrf.mxu0
      %v2165 = vadd.f32 0.0, %v2164
      %v2166 = vpop.f32.mrf.mxu0
      %v2167 = vadd.f32 0.0, %v2166
      %2168 = vmatmul.bf16.gmra.mxu0 %v2104
      %v2169 = vpop.f32.mrf.mxu0
      %v2170 = vadd.f32 0.0, %v2169
      %v2171 = vpop.f32.mrf.mxu0
      %v2172 = vadd.f32 0.0, %v2171
      %2173 = vmatmul.bf16.gmra.mxu0 %v2107
      %v2174 = vpop.f32.mrf.mxu0
      %v2175 = vadd.f32 0.0, %v2174
      %v2176 = vpop.f32.mrf.mxu0
      %v2177 = vadd.f32 0.0, %v2176
      %2178 = vmatmul.bf16.gmra.mxu0 %v2110
      %v2179 = vpop.f32.mrf.mxu0
      %v2180 = vadd.f32 0.0, %v2179
      %v2181 = vpop.f32.mrf.mxu0
      %v2182 = vadd.f32 0.0, %v2181
      %2183 = vmatmul.bf16.gmra.mxu0 %v2113
      %v2184 = vpop.f32.mrf.mxu0
      %v2185 = vadd.f32 0.0, %v2184
      %v2186 = vpop.f32.mrf.mxu0
      %v2187 = vadd.f32 0.0, %v2186
      %2188 = vmatmul.bf16.gmra.mxu0 %v2116
      %v2189 = vpop.f32.mrf.mxu0
      %v2190 = vadd.f32 0.0, %v2189
      %v2191 = vpop.f32.mrf.mxu0
      %v2192 = vadd.f32 0.0, %v2191
      %2193 = vmatmul.bf16.gmra.mxu0 %v2119
      %v2194 = vpop.f32.mrf.mxu0
      %v2195 = vadd.f32 0.0, %v2194
      %v2196 = vpop.f32.mrf.mxu0
      %v2197 = vadd.f32 0.0, %v2196
      %2198 = vmatmul.bf16.gmra.mxu0 %v2122
      %v2199 = vpop.f32.mrf.mxu0
      %v2200 = vadd.f32 0.0, %v2199
      %v2201 = vpop.f32.mrf.mxu0
      %v2202 = vadd.f32 0.0, %v2201
      %2203 = vmatmul.bf16.gmra.mxu0 %v2125
      %v2204 = vpop.f32.mrf.mxu0
      %v2205 = vadd.f32 0.0, %v2204
      %v2206 = vpop.f32.mrf.mxu0
      %v2207 = vadd.f32 0.0, %v2206
      %2208 = vmatmul.bf16.gmra.mxu0 %v2128
      %v2209 = vpop.f32.mrf.mxu0
      %v2210 = vadd.f32 0.0, %v2209
      %v2211 = vpop.f32.mrf.mxu0
      %v2212 = vadd.f32 0.0, %v2211
      %2213 = vmatmul.bf16.gmra.mxu0 %v2131
      %v2214 = vpop.f32.mrf.mxu0
      %v2215 = vadd.f32 0.0, %v2214
      %v2216 = vpop.f32.mrf.mxu0
      %v2217 = vadd.f32 0.0, %v2216
      %2218 = vmatmul.bf16.gmra.mxu0 %v2134
      %v2219 = vpop.f32.mrf.mxu0
      %v2220 = vadd.f32 0.0, %v2219
      %v2221 = vpop.f32.mrf.mxu0
      %v2222 = vadd.f32 0.0, %v2221
      %2223 = vmatmul.bf16.gmra.mxu0 %v2137
      %v2224 = vpop.f32.mrf.mxu0
      %v2225 = vadd.f32 0.0, %v2224
      %v2226 = vpop.f32.mrf.mxu0
      %v2227 = vadd.f32 0.0, %v2226
      %2228 = vmatmul.bf16.gmra.mxu0 %v2140
      %v2229 = vpop.f32.mrf.mxu0
      %v2230 = vadd.f32 0.0, %v2229
      %v2231 = vpop.f32.mrf.mxu0
      %v2232 = vadd.f32 0.0, %v2231
      %2233 = vdwg.mxu0
      %v2234 = vadd.f32 %v1802, %v2155
      %v2235 = vadd.f32 %v1804, %v2157
      %v2236 = vadd.f32 %v1807, %v2160
      %v2237 = vadd.f32 %v1809, %v2162
      %v2238 = vadd.f32 %v1812, %v2165
      %v2239 = vadd.f32 %v1814, %v2167
      %v2240 = vadd.f32 %v1817, %v2170
      %v2241 = vadd.f32 %v1819, %v2172
      %v2242 = vadd.f32 %v1822, %v2175
      %v2243 = vadd.f32 %v1824, %v2177
      %v2244 = vadd.f32 %v1827, %v2180
      %v2245 = vadd.f32 %v1829, %v2182
      %v2246 = vadd.f32 %v1832, %v2185
      %v2247 = vadd.f32 %v1834, %v2187
      %v2248 = vadd.f32 %v1837, %v2190
      %v2249 = vadd.f32 %v1839, %v2192
      %v2250 = vadd.f32 %v1842, %v2195
      %v2251 = vadd.f32 %v1844, %v2197
      %v2252 = vadd.f32 %v1847, %v2200
      %v2253 = vadd.f32 %v1849, %v2202
      %v2254 = vadd.f32 %v1852, %v2205
      %v2255 = vadd.f32 %v1854, %v2207
      %v2256 = vadd.f32 %v1857, %v2210
      %v2257 = vadd.f32 %v1859, %v2212
      %v2258 = vadd.f32 %v1862, %v2215
      %v2259 = vadd.f32 %v1864, %v2217
      %v2260 = vadd.f32 %v1867, %v2220
      %v2261 = vadd.f32 %v1869, %v2222
      %v2262 = vadd.f32 %v1872, %v2225
      %v2263 = vadd.f32 %v1874, %v2227
      %v2264 = vadd.f32 %v1877, %v2230
      %v2265 = vadd.f32 %v1879, %v2232
      %v2266 = vld [vmem:[%s918] sm:$0xf]
      %v2267 = vld [vmem:[%s918 + $0x4] sm:$0xf]
      %v2268 = vld [vmem:[%s918 + $0xc] sm:$0xf]
      %v2269 = vld [vmem:[%s918 + $0x10] sm:$0xf]
      %v2270 = vld [vmem:[%s918 + $0x18] sm:$0xf]
      %v2271 = vld [vmem:[%s918 + $0x1c] sm:$0xf]
      %v2272 = vld [vmem:[%s918 + $0x24] sm:$0xf]
      %v2273 = vld [vmem:[%s918 + $0x28] sm:$0xf]
      %v2274 = vld [vmem:[%s918 + $0x30] sm:$0xf]
      %v2275 = vld [vmem:[%s918 + $0x34] sm:$0xf]
      %v2276 = vld [vmem:[%s918 + $0x3c] sm:$0xf]
      %v2277 = vld [vmem:[%s918 + $0x40] sm:$0xf]
      %v2278 = vld [vmem:[%s918 + $0x48] sm:$0xf]
      %v2279 = vld [vmem:[%s918 + $0x4c] sm:$0xf]
      %v2280 = vld [vmem:[%s918 + $0x54] sm:$0xf]
      %v2281 = vld [vmem:[%s918 + $0x58] sm:$0xf]
      %v2282 = vld [vmem:[%s918 + $0x60] sm:$0xf]
      %v2283 = vld [vmem:[%s918 + $0x64] sm:$0xf]
      %v2284 = vld [vmem:[%s918 + $0x6c] sm:$0xf]
      %v2285 = vld [vmem:[%s918 + $0x70] sm:$0xf]
      %v2286 = vld [vmem:[%s918 + $0x78] sm:$0xf]
      %v2287 = vld [vmem:[%s918 + $0x7c] sm:$0xf]
      %v2288 = vld [vmem:[%s918 + $0x84] sm:$0xf]
      %v2289 = vld [vmem:[%s918 + $0x88] sm:$0xf]
      %v2290 = vld [vmem:[%s918 + $0x90] sm:$0xf]
      %v2291 = vld [vmem:[%s918 + $0x94] sm:$0xf]
      %v2292 = vld [vmem:[%s918 + $0x9c] sm:$0xf]
      %v2293 = vld [vmem:[%s918 + $0xa0] sm:$0xf]
      %v2294 = vld [vmem:[%s918 + $0xa8] sm:$0xf]
      %v2295 = vld [vmem:[%s918 + $0xac] sm:$0xf]
      %v2296 = vld [vmem:[%s918 + $0xb4] sm:$0xf]
      %v2297 = vld [vmem:[%s918 + $0xb8] sm:$0xf]
      %s2298 = scalar_lea.vmem %s3, 6
      %v2299 = vld [vmem:[%s2298] sm:$0x3]
      %v2332 = vunpack.c.l.b16 %v2266
      %v2333 = vunpack.c.l.b16 %v2267
      %v2334 = vunpack.c.l.b16 %v2268
      %v2335 = vunpack.c.l.b16 %v2269
      %v2336 = vunpack.c.l.b16 %v2270
      %v2337 = vunpack.c.l.b16 %v2271
      %v2338 = vunpack.c.l.b16 %v2272
      %v2339 = vunpack.c.l.b16 %v2273
      %v2340 = vunpack.c.l.b16 %v2274
      %v2341 = vunpack.c.l.b16 %v2275
      %v2342 = vunpack.c.l.b16 %v2276
      %v2343 = vunpack.c.l.b16 %v2277
      %v2344 = vunpack.c.l.b16 %v2278
      %v2345 = vunpack.c.l.b16 %v2279
      %v2346 = vunpack.c.l.b16 %v2280
      %v2347 = vunpack.c.l.b16 %v2281
      %v2348 = vunpack.c.l.b16 %v2282
      %v2349 = vunpack.c.l.b16 %v2283
      %v2350 = vunpack.c.l.b16 %v2284
      %v2351 = vunpack.c.l.b16 %v2285
      %v2352 = vunpack.c.l.b16 %v2286
      %v2353 = vunpack.c.l.b16 %v2287
      %v2354 = vunpack.c.l.b16 %v2288
      %v2355 = vunpack.c.l.b16 %v2289
      %v2356 = vunpack.c.l.b16 %v2290
      %v2357 = vunpack.c.l.b16 %v2291
      %v2358 = vunpack.c.l.b16 %v2292
      %v2359 = vunpack.c.l.b16 %v2293
      %v2360 = vunpack.c.l.b16 %v2294
      %v2361 = vunpack.c.l.b16 %v2295
      %v2362 = vunpack.c.l.b16 %v2296
      %v2363 = vunpack.c.l.b16 %v2297
      %v2364 = vpack.c.b16 %v2333, %v2332
      %v2365 = vpack.c.b16 %v2335, %v2334
      %v2366 = vpack.c.b16 %v2337, %v2336
      %v2367 = vpack.c.b16 %v2339, %v2338
      %v2368 = vpack.c.b16 %v2341, %v2340
      %v2369 = vpack.c.b16 %v2343, %v2342
      %v2370 = vpack.c.b16 %v2345, %v2344
      %v2371 = vpack.c.b16 %v2347, %v2346
      %v2372 = vpack.c.b16 %v2349, %v2348
      %v2373 = vpack.c.b16 %v2351, %v2350
      %v2374 = vpack.c.b16 %v2353, %v2352
      %v2375 = vpack.c.b16 %v2355, %v2354
      %v2376 = vpack.c.b16 %v2357, %v2356
      %v2377 = vpack.c.b16 %v2359, %v2358
      %v2378 = vpack.c.b16 %v2361, %v2360
      %v2379 = vpack.c.b16 %v2363, %v2362
      %v2381 = vsel %vm1519, %v2364, 0
      %v2384 = vsel %vm1519, %v2365, 0
      %v2387 = vsel %vm1519, %v2366, 0
      %v2390 = vsel %vm1519, %v2367, 0
      %v2393 = vsel %vm1519, %v2368, 0
      %v2396 = vsel %vm1519, %v2369, 0
      %v2399 = vsel %vm1519, %v2370, 0
      %v2402 = vsel %vm1519, %v2371, 0
      %v2405 = vsel %vm1519, %v2372, 0
      %v2408 = vsel %vm1519, %v2373, 0
      %v2411 = vsel %vm1519, %v2374, 0
      %v2414 = vsel %vm1519, %v2375, 0
      %v2417 = vsel %vm1519, %v2376, 0
      %v2420 = vsel %vm1519, %v2377, 0
      %v2423 = vsel %vm1519, %v2378, 0
      %v2426 = vsel %vm1519, %v2379, 0
      %v2429 = vsel %vm1568, %v2299, 0
      %2431 = vmatpush.bf16.msra.mxu0 0
      %2432 = vmatpush.bf16.msra.mxu0 0
      %2433 = vmatpush.bf16.msra.mxu0 0
      %2434 = vmatpush.bf16.msra.mxu0 0
      %2435 = vmatpush.bf16.msra.mxu0 0
      %2436 = vmatpush.bf16.msra.mxu0 0
      %2437 = vmatpush.bf16.msra.mxu0 0
      %2438 = vmatpush.bf16.msra.mxu0 %v2429
      %2439 = vmatmul.bf16.gmra.mxu0 %v2381
      %v2440 = vpop.f32.mrf.mxu0
      %v2441 = vadd.f32 0.0, %v2440
      %v2442 = vpop.f32.mrf.mxu0
      %v2443 = vadd.f32 0.0, %v2442
      %2444 = vmatmul.bf16.gmra.mxu0 %v2384
      %v2445 = vpop.f32.mrf.mxu0
      %v2446 = vadd.f32 0.0, %v2445
      %v2447 = vpop.f32.mrf.mxu0
      %v2448 = vadd.f32 0.0, %v2447
      %2449 = vmatmul.bf16.gmra.mxu0 %v2387
      %v2450 = vpop.f32.mrf.mxu0
      %v2451 = vadd.f32 0.0, %v2450
      %v2452 = vpop.f32.mrf.mxu0
      %v2453 = vadd.f32 0.0, %v2452
      %2454 = vmatmul.bf16.gmra.mxu0 %v2390
      %v2455 = vpop.f32.mrf.mxu0
      %v2456 = vadd.f32 0.0, %v2455
      %v2457 = vpop.f32.mrf.mxu0
      %v2458 = vadd.f32 0.0, %v2457
      %2459 = vmatmul.bf16.gmra.mxu0 %v2393
      %v2460 = vpop.f32.mrf.mxu0
      %v2461 = vadd.f32 0.0, %v2460
      %v2462 = vpop.f32.mrf.mxu0
      %v2463 = vadd.f32 0.0, %v2462
      %2464 = vmatmul.bf16.gmra.mxu0 %v2396
      %v2465 = vpop.f32.mrf.mxu0
      %v2466 = vadd.f32 0.0, %v2465
      %v2467 = vpop.f32.mrf.mxu0
      %v2468 = vadd.f32 0.0, %v2467
      %2469 = vmatmul.bf16.gmra.mxu0 %v2399
      %v2470 = vpop.f32.mrf.mxu0
      %v2471 = vadd.f32 0.0, %v2470
      %v2472 = vpop.f32.mrf.mxu0
      %v2473 = vadd.f32 0.0, %v2472
      %2474 = vmatmul.bf16.gmra.mxu0 %v2402
      %v2475 = vpop.f32.mrf.mxu0
      %v2476 = vadd.f32 0.0, %v2475
      %v2477 = vpop.f32.mrf.mxu0
      %v2478 = vadd.f32 0.0, %v2477
      %2479 = vmatmul.bf16.gmra.mxu0 %v2405
      %v2480 = vpop.f32.mrf.mxu0
      %v2481 = vadd.f32 0.0, %v2480
      %v2482 = vpop.f32.mrf.mxu0
      %v2483 = vadd.f32 0.0, %v2482
      %2484 = vmatmul.bf16.gmra.mxu0 %v2408
      %v2485 = vpop.f32.mrf.mxu0
      %v2486 = vadd.f32 0.0, %v2485
      %v2487 = vpop.f32.mrf.mxu0
      %v2488 = vadd.f32 0.0, %v2487
      %2489 = vmatmul.bf16.gmra.mxu0 %v2411
      %v2490 = vpop.f32.mrf.mxu0
      %v2491 = vadd.f32 0.0, %v2490
      %v2492 = vpop.f32.mrf.mxu0
      %v2493 = vadd.f32 0.0, %v2492
      %2494 = vmatmul.bf16.gmra.mxu0 %v2414
      %v2495 = vpop.f32.mrf.mxu0
      %v2496 = vadd.f32 0.0, %v2495
      %v2497 = vpop.f32.mrf.mxu0
      %v2498 = vadd.f32 0.0, %v2497
      %2499 = vmatmul.bf16.gmra.mxu0 %v2417
      %v2500 = vpop.f32.mrf.mxu0
      %v2501 = vadd.f32 0.0, %v2500
      %v2502 = vpop.f32.mrf.mxu0
      %v2503 = vadd.f32 0.0, %v2502
      %2504 = vmatmul.bf16.gmra.mxu0 %v2420
      %v2505 = vpop.f32.mrf.mxu0
      %v2506 = vadd.f32 0.0, %v2505
      %v2507 = vpop.f32.mrf.mxu0
      %v2508 = vadd.f32 0.0, %v2507
      %2509 = vmatmul.bf16.gmra.mxu0 %v2423
      %v2510 = vpop.f32.mrf.mxu0
      %v2511 = vadd.f32 0.0, %v2510
      %v2512 = vpop.f32.mrf.mxu0
      %v2513 = vadd.f32 0.0, %v2512
      %2514 = vmatmul.bf16.gmra.mxu0 %v2426
      %v2515 = vpop.f32.mrf.mxu0
      %v2516 = vadd.f32 0.0, %v2515
      %v2517 = vpop.f32.mrf.mxu0
      %v2518 = vadd.f32 0.0, %v2517
      %2519 = vdwg.mxu0
      %v2520 = vadd.f32 %v2234, %v2441
      %v2521 = vadd.f32 %v2235, %v2443
      %v2522 = vadd.f32 %v2236, %v2446
      %v2523 = vadd.f32 %v2237, %v2448
      %v2524 = vadd.f32 %v2238, %v2451
      %v2525 = vadd.f32 %v2239, %v2453
      %v2526 = vadd.f32 %v2240, %v2456
      %v2527 = vadd.f32 %v2241, %v2458
      %v2528 = vadd.f32 %v2242, %v2461
      %v2529 = vadd.f32 %v2243, %v2463
      %v2530 = vadd.f32 %v2244, %v2466
      %v2531 = vadd.f32 %v2245, %v2468
      %v2532 = vadd.f32 %v2246, %v2471
      %v2533 = vadd.f32 %v2247, %v2473
      %v2534 = vadd.f32 %v2248, %v2476
      %v2535 = vadd.f32 %v2249, %v2478
      %v2536 = vadd.f32 %v2250, %v2481
      %v2537 = vadd.f32 %v2251, %v2483
      %v2538 = vadd.f32 %v2252, %v2486
      %v2539 = vadd.f32 %v2253, %v2488
      %v2540 = vadd.f32 %v2254, %v2491
      %v2541 = vadd.f32 %v2255, %v2493
      %v2542 = vadd.f32 %v2256, %v2496
      %v2543 = vadd.f32 %v2257, %v2498
      %v2544 = vadd.f32 %v2258, %v2501
      %v2545 = vadd.f32 %v2259, %v2503
      %v2546 = vadd.f32 %v2260, %v2506
      %v2547 = vadd.f32 %v2261, %v2508
      %v2548 = vadd.f32 %v2262, %v2511
      %v2549 = vadd.f32 %v2263, %v2513
      %v2550 = vadd.f32 %v2264, %v2516
      %v2551 = vadd.f32 %v2265, %v2518
      %v2552 = vld [vmem:[%s918] sm:$0xf]
      %v2553 = vld [vmem:[%s918 + $0x4] sm:$0xf]
      %v2554 = vld [vmem:[%s918 + $0x8] sm:$0x1]
      %v2555 = vld [vmem:[%s918 + $0xc] sm:$0xf]
      %v2556 = vld [vmem:[%s918 + $0x10] sm:$0xf]
      %v2557 = vld [vmem:[%s918 + $0x14] sm:$0x1]
      %v2558 = vld [vmem:[%s918 + $0x18] sm:$0xf]
      %v2559 = vld [vmem:[%s918 + $0x1c] sm:$0xf]
      %v2560 = vld [vmem:[%s918 + $0x20] sm:$0x1]
      %v2561 = vld [vmem:[%s918 + $0x24] sm:$0xf]
      %v2562 = vld [vmem:[%s918 + $0x28] sm:$0xf]
      %v2563 = vld [vmem:[%s918 + $0x2c] sm:$0x1]
      %v2564 = vld [vmem:[%s918 + $0x30] sm:$0xf]
      %v2565 = vld [vmem:[%s918 + $0x34] sm:$0xf]
      %v2566 = vld [vmem:[%s918 + $0x38] sm:$0x1]
      %v2567 = vld [vmem:[%s918 + $0x3c] sm:$0xf]
      %v2568 = vld [vmem:[%s918 + $0x40] sm:$0xf]
      %v2569 = vld [vmem:[%s918 + $0x44] sm:$0x1]
      %v2570 = vld [vmem:[%s918 + $0x48] sm:$0xf]
      %v2571 = vld [vmem:[%s918 + $0x4c] sm:$0xf]
      %v2572 = vld [vmem:[%s918 + $0x50] sm:$0x1]
      %v2573 = vld [vmem:[%s918 + $0x54] sm:$0xf]
      %v2574 = vld [vmem:[%s918 + $0x58] sm:$0xf]
      %v2575 = vld [vmem:[%s918 + $0x5c] sm:$0x1]
      %v2576 = vld [vmem:[%s918 + $0x60] sm:$0xf]
      %v2577 = vld [vmem:[%s918 + $0x64] sm:$0xf]
      %v2578 = vld [vmem:[%s918 + $0x68] sm:$0x1]
      %v2579 = vld [vmem:[%s918 + $0x6c] sm:$0xf]
      %v2580 = vld [vmem:[%s918 + $0x70] sm:$0xf]
      %v2581 = vld [vmem:[%s918 + $0x74] sm:$0x1]
      %v2582 = vld [vmem:[%s918 + $0x78] sm:$0xf]
      %v2583 = vld [vmem:[%s918 + $0x7c] sm:$0xf]
      %v2584 = vld [vmem:[%s918 + $0x80] sm:$0x1]
      %v2585 = vld [vmem:[%s918 + $0x84] sm:$0xf]
      %v2586 = vld [vmem:[%s918 + $0x88] sm:$0xf]
      %v2587 = vld [vmem:[%s918 + $0x8c] sm:$0x1]
      %v2588 = vld [vmem:[%s918 + $0x90] sm:$0xf]
      %v2589 = vld [vmem:[%s918 + $0x94] sm:$0xf]
      %v2590 = vld [vmem:[%s918 + $0x98] sm:$0x1]
      %v2591 = vld [vmem:[%s918 + $0x9c] sm:$0xf]
      %v2592 = vld [vmem:[%s918 + $0xa0] sm:$0xf]
      %v2593 = vld [vmem:[%s918 + $0xa4] sm:$0x1]
      %v2594 = vld [vmem:[%s918 + $0xa8] sm:$0xf]
      %v2595 = vld [vmem:[%s918 + $0xac] sm:$0xf]
      %v2596 = vld [vmem:[%s918 + $0xb0] sm:$0x1]
      %v2597 = vld [vmem:[%s918 + $0xb4] sm:$0xf]
      %v2598 = vld [vmem:[%s918 + $0xb8] sm:$0xf]
      %v2599 = vld [vmem:[%s918 + $0xbc] sm:$0x1]
      %v2601 = vshrl.u32 %v2552, 16
      %v2603 = vrot.slane %v2601, 4
      %v2604 = vshll.u32 %v2552, 16
      %v2606 = vrot.slane %v2604, 5
      %v2607 = vor.u32 %v2603, %v2606
      %v2608 = vrot.slane %v2607, 4
      %v2610 = vshll.u32 %v2553, 16
      %v2612 = vrot.slane %v2610, 5
      %v2613 = vsel %vm1084, %v2608, %v2612
      %v2614 = vshrl.u32 %v2553, 16
      %v2616 = vrot.slane %v2614, 4
      %v2617 = vor.u32 %v2616, %v2612
      %v2618 = vrot.slane %v2617, 4
      %v2620 = vshll.u32 %v2554, 16
      %v2622 = vrot.slane %v2620, 5
      %v2623 = vsel %vm1084, %v2618, %v2622
      %v2625 = vshrl.u32 %v2555, 16
      %v2627 = vrot.slane %v2625, 4
      %v2628 = vshll.u32 %v2555, 16
      %v2630 = vrot.slane %v2628, 5
      %v2631 = vor.u32 %v2627, %v2630
      %v2632 = vrot.slane %v2631, 4
      %v2634 = vshll.u32 %v2556, 16
      %v2636 = vrot.slane %v2634, 5
      %v2637 = vsel %vm1084, %v2632, %v2636
      %v2638 = vshrl.u32 %v2556, 16
      %v2640 = vrot.slane %v2638, 4
      %v2641 = vor.u32 %v2640, %v2636
      %v2642 = vrot.slane %v2641, 4
      %v2644 = vshll.u32 %v2557, 16
      %v2646 = vrot.slane %v2644, 5
      %v2647 = vsel %vm1084, %v2642, %v2646
      %v2649 = vshrl.u32 %v2558, 16
      %v2651 = vrot.slane %v2649, 4
      %v2652 = vshll.u32 %v2558, 16
      %v2654 = vrot.slane %v2652, 5
      %v2655 = vor.u32 %v2651, %v2654
      %v2656 = vrot.slane %v2655, 4
      %v2658 = vshll.u32 %v2559, 16
      %v2660 = vrot.slane %v2658, 5
      %v2661 = vsel %vm1084, %v2656, %v2660
      %v2662 = vshrl.u32 %v2559, 16
      %v2664 = vrot.slane %v2662, 4
      %v2665 = vor.u32 %v2664, %v2660
      %v2666 = vrot.slane %v2665, 4
      %v2668 = vshll.u32 %v2560, 16
      %v2670 = vrot.slane %v2668, 5
      %v2671 = vsel %vm1084, %v2666, %v2670
      %v2673 = vshrl.u32 %v2561, 16
      %v2675 = vrot.slane %v2673, 4
      %v2676 = vshll.u32 %v2561, 16
      %v2678 = vrot.slane %v2676, 5
      %v2679 = vor.u32 %v2675, %v2678
      %v2680 = vrot.slane %v2679, 4
      %v2682 = vshll.u32 %v2562, 16
      %v2684 = vrot.slane %v2682, 5
      %v2685 = vsel %vm1084, %v2680, %v2684
      %v2686 = vshrl.u32 %v2562, 16
      %v2688 = vrot.slane %v2686, 4
      %v2689 = vor.u32 %v2688, %v2684
      %v2690 = vrot.slane %v2689, 4
      %v2692 = vshll.u32 %v2563, 16
      %v2694 = vrot.slane %v2692, 5
      %v2695 = vsel %vm1084, %v2690, %v2694
      %v2697 = vshrl.u32 %v2564, 16
      %v2699 = vrot.slane %v2697, 4
      %v2700 = vshll.u32 %v2564, 16
      %v2702 = vrot.slane %v2700, 5
      %v2703 = vor.u32 %v2699, %v2702
      %v2704 = vrot.slane %v2703, 4
      %v2706 = vshll.u32 %v2565, 16
      %v2708 = vrot.slane %v2706, 5
      %v2709 = vsel %vm1084, %v2704, %v2708
      %v2710 = vshrl.u32 %v2565, 16
      %v2712 = vrot.slane %v2710, 4
      %v2713 = vor.u32 %v2712, %v2708
      %v2714 = vrot.slane %v2713, 4
      %v2716 = vshll.u32 %v2566, 16
      %v2718 = vrot.slane %v2716, 5
      %v2719 = vsel %vm1084, %v2714, %v2718
      %v2721 = vshrl.u32 %v2567, 16
      %v2723 = vrot.slane %v2721, 4
      %v2724 = vshll.u32 %v2567, 16
      %v2726 = vrot.slane %v2724, 5
      %v2727 = vor.u32 %v2723, %v2726
      %v2728 = vrot.slane %v2727, 4
      %v2730 = vshll.u32 %v2568, 16
      %v2732 = vrot.slane %v2730, 5
      %v2733 = vsel %vm1084, %v2728, %v2732
      %v2734 = vshrl.u32 %v2568, 16
      %v2736 = vrot.slane %v2734, 4
      %v2737 = vor.u32 %v2736, %v2732
      %v2738 = vrot.slane %v2737, 4
      %v2740 = vshll.u32 %v2569, 16
      %v2742 = vrot.slane %v2740, 5
      %v2743 = vsel %vm1084, %v2738, %v2742
      %v2745 = vshrl.u32 %v2570, 16
      %v2747 = vrot.slane %v2745, 4
      %v2748 = vshll.u32 %v2570, 16
      %v2750 = vrot.slane %v2748, 5
      %v2751 = vor.u32 %v2747, %v2750
      %v2752 = vrot.slane %v2751, 4
      %v2754 = vshll.u32 %v2571, 16
      %v2756 = vrot.slane %v2754, 5
      %v2757 = vsel %vm1084, %v2752, %v2756
      %v2758 = vshrl.u32 %v2571, 16
      %v2760 = vrot.slane %v2758, 4
      %v2761 = vor.u32 %v2760, %v2756
      %v2762 = vrot.slane %v2761, 4
      %v2764 = vshll.u32 %v2572, 16
      %v2766 = vrot.slane %v2764, 5
      %v2767 = vsel %vm1084, %v2762, %v2766
      %v2769 = vshrl.u32 %v2573, 16
      %v2771 = vrot.slane %v2769, 4
      %v2772 = vshll.u32 %v2573, 16
      %v2774 = vrot.slane %v2772, 5
      %v2775 = vor.u32 %v2771, %v2774
      %v2776 = vrot.slane %v2775, 4
      %v2778 = vshll.u32 %v2574, 16
      %v2780 = vrot.slane %v2778, 5
      %v2781 = vsel %vm1084, %v2776, %v2780
      %v2782 = vshrl.u32 %v2574, 16
      %v2784 = vrot.slane %v2782, 4
      %v2785 = vor.u32 %v2784, %v2780
      %v2786 = vrot.slane %v2785, 4
      %v2788 = vshll.u32 %v2575, 16
      %v2790 = vrot.slane %v2788, 5
      %v2791 = vsel %vm1084, %v2786, %v2790
      %v2793 = vshrl.u32 %v2576, 16
      %v2795 = vrot.slane %v2793, 4
      %v2796 = vshll.u32 %v2576, 16
      %v2798 = vrot.slane %v2796, 5
      %v2799 = vor.u32 %v2795, %v2798
      %v2800 = vrot.slane %v2799, 4
      %v2802 = vshll.u32 %v2577, 16
      %v2804 = vrot.slane %v2802, 5
      %v2805 = vsel %vm1084, %v2800, %v2804
      %v2806 = vshrl.u32 %v2577, 16
      %v2808 = vrot.slane %v2806, 4
      %v2809 = vor.u32 %v2808, %v2804
      %v2810 = vrot.slane %v2809, 4
      %v2812 = vshll.u32 %v2578, 16
      %v2814 = vrot.slane %v2812, 5
      %v2815 = vsel %vm1084, %v2810, %v2814
      %v2817 = vshrl.u32 %v2579, 16
      %v2819 = vrot.slane %v2817, 4
      %v2820 = vshll.u32 %v2579, 16
      %v2822 = vrot.slane %v2820, 5
      %v2823 = vor.u32 %v2819, %v2822
      %v2824 = vrot.slane %v2823, 4
      %v2826 = vshll.u32 %v2580, 16
      %v2828 = vrot.slane %v2826, 5
      %v2829 = vsel %vm1084, %v2824, %v2828
      %v2830 = vshrl.u32 %v2580, 16
      %v2832 = vrot.slane %v2830, 4
      %v2833 = vor.u32 %v2832, %v2828
      %v2834 = vrot.slane %v2833, 4
      %v2836 = vshll.u32 %v2581, 16
      %v2838 = vrot.slane %v2836, 5
      %v2839 = vsel %vm1084, %v2834, %v2838
      %v2841 = vshrl.u32 %v2582, 16
      %v2843 = vrot.slane %v2841, 4
      %v2844 = vshll.u32 %v2582, 16
      %v2846 = vrot.slane %v2844, 5
      %v2847 = vor.u32 %v2843, %v2846
      %v2848 = vrot.slane %v2847, 4
      %v2850 = vshll.u32 %v2583, 16
      %v2852 = vrot.slane %v2850, 5
      %v2853 = vsel %vm1084, %v2848, %v2852
      %v2854 = vshrl.u32 %v2583, 16
      %v2856 = vrot.slane %v2854, 4
      %v2857 = vor.u32 %v2856, %v2852
      %v2858 = vrot.slane %v2857, 4
      %v2860 = vshll.u32 %v2584, 16
      %v2862 = vrot.slane %v2860, 5
      %v2863 = vsel %vm1084, %v2858, %v2862
      %v2865 = vshrl.u32 %v2585, 16
      %v2867 = vrot.slane %v2865, 4
      %v2868 = vshll.u32 %v2585, 16
      %v2870 = vrot.slane %v2868, 5
      %v2871 = vor.u32 %v2867, %v2870
      %v2872 = vrot.slane %v2871, 4
      %v2874 = vshll.u32 %v2586, 16
      %v2876 = vrot.slane %v2874, 5
      %v2877 = vsel %vm1084, %v2872, %v2876
      %v2878 = vshrl.u32 %v2586, 16
      %v2880 = vrot.slane %v2878, 4
      %v2881 = vor.u32 %v2880, %v2876
      %v2882 = vrot.slane %v2881, 4
      %v2884 = vshll.u32 %v2587, 16
      %v2886 = vrot.slane %v2884, 5
      %v2887 = vsel %vm1084, %v2882, %v2886
      %v2889 = vshrl.u32 %v2588, 16
      %v2891 = vrot.slane %v2889, 4
      %v2892 = vshll.u32 %v2588, 16
      %v2894 = vrot.slane %v2892, 5
      %v2895 = vor.u32 %v2891, %v2894
      %v2896 = vrot.slane %v2895, 4
      %v2898 = vshll.u32 %v2589, 16
      %v2900 = vrot.slane %v2898, 5
      %v2901 = vsel %vm1084, %v2896, %v2900
      %v2902 = vshrl.u32 %v2589, 16
      %v2904 = vrot.slane %v2902, 4
      %v2905 = vor.u32 %v2904, %v2900
      %v2906 = vrot.slane %v2905, 4
      %v2908 = vshll.u32 %v2590, 16
      %v2910 = vrot.slane %v2908, 5
      %v2911 = vsel %vm1084, %v2906, %v2910
      %v2913 = vshrl.u32 %v2591, 16
      %v2915 = vrot.slane %v2913, 4
      %v2916 = vshll.u32 %v2591, 16
      %v2918 = vrot.slane %v2916, 5
      %v2919 = vor.u32 %v2915, %v2918
      %v2920 = vrot.slane %v2919, 4
      %v2922 = vshll.u32 %v2592, 16
      %v2924 = vrot.slane %v2922, 5
      %v2925 = vsel %vm1084, %v2920, %v2924
      %v2926 = vshrl.u32 %v2592, 16
      %v2928 = vrot.slane %v2926, 4
      %v2929 = vor.u32 %v2928, %v2924
      %v2930 = vrot.slane %v2929, 4
      %v2932 = vshll.u32 %v2593, 16
      %v2934 = vrot.slane %v2932, 5
      %v2935 = vsel %vm1084, %v2930, %v2934
      %v2937 = vshrl.u32 %v2594, 16
      %v2939 = vrot.slane %v2937, 4
      %v2940 = vshll.u32 %v2594, 16
      %v2942 = vrot.slane %v2940, 5
      %v2943 = vor.u32 %v2939, %v2942
      %v2944 = vrot.slane %v2943, 4
      %v2946 = vshll.u32 %v2595, 16
      %v2948 = vrot.slane %v2946, 5
      %v2949 = vsel %vm1084, %v2944, %v2948
      %v2950 = vshrl.u32 %v2595, 16
      %v2952 = vrot.slane %v2950, 4
      %v2953 = vor.u32 %v2952, %v2948
      %v2954 = vrot.slane %v2953, 4
      %v2956 = vshll.u32 %v2596, 16
      %v2958 = vrot.slane %v2956, 5
      %v2959 = vsel %vm1084, %v2954, %v2958
      %v2961 = vshrl.u32 %v2597, 16
      %v2963 = vrot.slane %v2961, 4
      %v2964 = vshll.u32 %v2597, 16
      %v2966 = vrot.slane %v2964, 5
      %v2967 = vor.u32 %v2963, %v2966
      %v2968 = vrot.slane %v2967, 4
      %v2970 = vshll.u32 %v2598, 16
      %v2972 = vrot.slane %v2970, 5
      %v2973 = vsel %vm1084, %v2968, %v2972
      %v2974 = vshrl.u32 %v2598, 16
      %v2976 = vrot.slane %v2974, 4
      %v2977 = vor.u32 %v2976, %v2972
      %v2978 = vrot.slane %v2977, 4
      %v2980 = vshll.u32 %v2599, 16
      %v2982 = vrot.slane %v2980, 5
      %v2983 = vsel %vm1084, %v2978, %v2982
      %s2984 = scalar_lea.vmem %s3, 8
      %v2985 = vld [vmem:[%s2984] sm:$0x3]
      %v2986 = vunpack.c.l.b16 %v2613
      %v2987 = vunpack.c.l.b16 %v2623
      %v2988 = vunpack.c.l.b16 %v2637
      %v2989 = vunpack.c.l.b16 %v2647
      %v2990 = vunpack.c.l.b16 %v2661
      %v2991 = vunpack.c.l.b16 %v2671
      %v2992 = vunpack.c.l.b16 %v2685
      %v2993 = vunpack.c.l.b16 %v2695
      %v2994 = vunpack.c.l.b16 %v2709
      %v2995 = vunpack.c.l.b16 %v2719
      %v2996 = vunpack.c.l.b16 %v2733
      %v2997 = vunpack.c.l.b16 %v2743
      %v2998 = vunpack.c.l.b16 %v2757
      %v2999 = vunpack.c.l.b16 %v2767
      %v3000 = vunpack.c.l.b16 %v2781
      %v3001 = vunpack.c.l.b16 %v2791
      %v3002 = vunpack.c.l.b16 %v2805
      %v3003 = vunpack.c.l.b16 %v2815
      %v3004 = vunpack.c.l.b16 %v2829
      %v3005 = vunpack.c.l.b16 %v2839
      %v3006 = vunpack.c.l.b16 %v2853
      %v3007 = vunpack.c.l.b16 %v2863
      %v3008 = vunpack.c.l.b16 %v2877
      %v3009 = vunpack.c.l.b16 %v2887
      %v3010 = vunpack.c.l.b16 %v2901
      %v3011 = vunpack.c.l.b16 %v2911
      %v3012 = vunpack.c.l.b16 %v2925
      %v3013 = vunpack.c.l.b16 %v2935
      %v3014 = vunpack.c.l.b16 %v2949
      %v3015 = vunpack.c.l.b16 %v2959
      %v3016 = vunpack.c.l.b16 %v2973
      %v3017 = vunpack.c.l.b16 %v2983
      %v3018 = vpack.c.b16 %v2987, %v2986
      %v3019 = vpack.c.b16 %v2989, %v2988
      %v3020 = vpack.c.b16 %v2991, %v2990
      %v3021 = vpack.c.b16 %v2993, %v2992
      %v3022 = vpack.c.b16 %v2995, %v2994
      %v3023 = vpack.c.b16 %v2997, %v2996
      %v3024 = vpack.c.b16 %v2999, %v2998
      %v3025 = vpack.c.b16 %v3001, %v3000
      %v3026 = vpack.c.b16 %v3003, %v3002
      %v3027 = vpack.c.b16 %v3005, %v3004
      %v3028 = vpack.c.b16 %v3007, %v3006
      %v3029 = vpack.c.b16 %v3009, %v3008
      %v3030 = vpack.c.b16 %v3011, %v3010
      %v3031 = vpack.c.b16 %v3013, %v3012
      %v3032 = vpack.c.b16 %v3015, %v3014
      %v3033 = vpack.c.b16 %v3017, %v3016
      %v3035 = vsel %vm1519, %v3018, 0
      %v3038 = vsel %vm1519, %v3019, 0
      %v3041 = vsel %vm1519, %v3020, 0
      %v3044 = vsel %vm1519, %v3021, 0
      %v3047 = vsel %vm1519, %v3022, 0
      %v3050 = vsel %vm1519, %v3023, 0
      %v3053 = vsel %vm1519, %v3024, 0
      %v3056 = vsel %vm1519, %v3025, 0
      %v3059 = vsel %vm1519, %v3026, 0
      %v3062 = vsel %vm1519, %v3027, 0
      %v3065 = vsel %vm1519, %v3028, 0
      %v3068 = vsel %vm1519, %v3029, 0
      %v3071 = vsel %vm1519, %v3030, 0
      %v3074 = vsel %vm1519, %v3031, 0
      %v3077 = vsel %vm1519, %v3032, 0
      %v3080 = vsel %vm1519, %v3033, 0
      %v3083 = vsel %vm1568, %v2985, 0
      %3085 = vmatpush.bf16.msra.mxu0 0
      %3086 = vmatpush.bf16.msra.mxu0 0
      %3087 = vmatpush.bf16.msra.mxu0 0
      %3088 = vmatpush.bf16.msra.mxu0 0
      %3089 = vmatpush.bf16.msra.mxu0 0
      %3090 = vmatpush.bf16.msra.mxu0 0
      %3091 = vmatpush.bf16.msra.mxu0 0
      %3092 = vmatpush.bf16.msra.mxu0 %v3083
      %3093 = vmatmul.bf16.gmra.mxu0 %v3035
      %v3094 = vpop.f32.mrf.mxu0
      %v3095 = vadd.f32 0.0, %v3094
      %v3096 = vpop.f32.mrf.mxu0
      %v3097 = vadd.f32 0.0, %v3096
      %3098 = vmatmul.bf16.gmra.mxu0 %v3038
      %v3099 = vpop.f32.mrf.mxu0
      %v3100 = vadd.f32 0.0, %v3099
      %v3101 = vpop.f32.mrf.mxu0
      %v3102 = vadd.f32 0.0, %v3101
      %3103 = vmatmul.bf16.gmra.mxu0 %v3041
      %v3104 = vpop.f32.mrf.mxu0
      %v3105 = vadd.f32 0.0, %v3104
      %v3106 = vpop.f32.mrf.mxu0
      %v3107 = vadd.f32 0.0, %v3106
      %3108 = vmatmul.bf16.gmra.mxu0 %v3044
      %v3109 = vpop.f32.mrf.mxu0
      %v3110 = vadd.f32 0.0, %v3109
      %v3111 = vpop.f32.mrf.mxu0
      %v3112 = vadd.f32 0.0, %v3111
      %3113 = vmatmul.bf16.gmra.mxu0 %v3047
      %v3114 = vpop.f32.mrf.mxu0
      %v3115 = vadd.f32 0.0, %v3114
      %v3116 = vpop.f32.mrf.mxu0
      %v3117 = vadd.f32 0.0, %v3116
      %3118 = vmatmul.bf16.gmra.mxu0 %v3050
      %v3119 = vpop.f32.mrf.mxu0
      %v3120 = vadd.f32 0.0, %v3119
      %v3121 = vpop.f32.mrf.mxu0
      %v3122 = vadd.f32 0.0, %v3121
      %3123 = vmatmul.bf16.gmra.mxu0 %v3053
      %v3124 = vpop.f32.mrf.mxu0
      %v3125 = vadd.f32 0.0, %v3124
      %v3126 = vpop.f32.mrf.mxu0
      %v3127 = vadd.f32 0.0, %v3126
      %3128 = vmatmul.bf16.gmra.mxu0 %v3056
      %v3129 = vpop.f32.mrf.mxu0
      %v3130 = vadd.f32 0.0, %v3129
      %v3131 = vpop.f32.mrf.mxu0
      %v3132 = vadd.f32 0.0, %v3131
      %3133 = vmatmul.bf16.gmra.mxu0 %v3059
      %v3134 = vpop.f32.mrf.mxu0
      %v3135 = vadd.f32 0.0, %v3134
      %v3136 = vpop.f32.mrf.mxu0
      %v3137 = vadd.f32 0.0, %v3136
      %3138 = vmatmul.bf16.gmra.mxu0 %v3062
      %v3139 = vpop.f32.mrf.mxu0
      %v3140 = vadd.f32 0.0, %v3139
      %v3141 = vpop.f32.mrf.mxu0
      %v3142 = vadd.f32 0.0, %v3141
      %3143 = vmatmul.bf16.gmra.mxu0 %v3065
      %v3144 = vpop.f32.mrf.mxu0
      %v3145 = vadd.f32 0.0, %v3144
      %v3146 = vpop.f32.mrf.mxu0
      %v3147 = vadd.f32 0.0, %v3146
      %3148 = vmatmul.bf16.gmra.mxu0 %v3068
      %v3149 = vpop.f32.mrf.mxu0
      %v3150 = vadd.f32 0.0, %v3149
      %v3151 = vpop.f32.mrf.mxu0
      %v3152 = vadd.f32 0.0, %v3151
      %3153 = vmatmul.bf16.gmra.mxu0 %v3071
      %v3154 = vpop.f32.mrf.mxu0
      %v3155 = vadd.f32 0.0, %v3154
      %v3156 = vpop.f32.mrf.mxu0
      %v3157 = vadd.f32 0.0, %v3156
      %3158 = vmatmul.bf16.gmra.mxu0 %v3074
      %v3159 = vpop.f32.mrf.mxu0
      %v3160 = vadd.f32 0.0, %v3159
      %v3161 = vpop.f32.mrf.mxu0
      %v3162 = vadd.f32 0.0, %v3161
      %3163 = vmatmul.bf16.gmra.mxu0 %v3077
      %v3164 = vpop.f32.mrf.mxu0
      %v3165 = vadd.f32 0.0, %v3164
      %v3166 = vpop.f32.mrf.mxu0
      %v3167 = vadd.f32 0.0, %v3166
      %3168 = vmatmul.bf16.gmra.mxu0 %v3080
      %v3169 = vpop.f32.mrf.mxu0
      %v3170 = vadd.f32 0.0, %v3169
      %v3171 = vpop.f32.mrf.mxu0
      %v3172 = vadd.f32 0.0, %v3171
      %3173 = vdwg.mxu0
      %v3174 = vadd.f32 %v2520, %v3095
      %v3175 = vadd.f32 %v2521, %v3097
      %v3176 = vadd.f32 %v2522, %v3100
      %v3177 = vadd.f32 %v2523, %v3102
      %v3178 = vadd.f32 %v2524, %v3105
      %v3179 = vadd.f32 %v2525, %v3107
      %v3180 = vadd.f32 %v2526, %v3110
      %v3181 = vadd.f32 %v2527, %v3112
      %v3182 = vadd.f32 %v2528, %v3115
      %v3183 = vadd.f32 %v2529, %v3117
      %v3184 = vadd.f32 %v2530, %v3120
      %v3185 = vadd.f32 %v2531, %v3122
      %v3186 = vadd.f32 %v2532, %v3125
      %v3187 = vadd.f32 %v2533, %v3127
      %v3188 = vadd.f32 %v2534, %v3130
      %v3189 = vadd.f32 %v2535, %v3132
      %v3190 = vadd.f32 %v2536, %v3135
      %v3191 = vadd.f32 %v2537, %v3137
      %v3192 = vadd.f32 %v2538, %v3140
      %v3193 = vadd.f32 %v2539, %v3142
      %v3194 = vadd.f32 %v2540, %v3145
      %v3195 = vadd.f32 %v2541, %v3147
      %v3196 = vadd.f32 %v2542, %v3150
      %v3197 = vadd.f32 %v2543, %v3152
      %v3198 = vadd.f32 %v2544, %v3155
      %v3199 = vadd.f32 %v2545, %v3157
      %v3200 = vadd.f32 %v2546, %v3160
      %v3201 = vadd.f32 %v2547, %v3162
      %v3202 = vadd.f32 %v2548, %v3165
      %v3203 = vadd.f32 %v2549, %v3167
      %v3204 = vadd.f32 %v2550, %v3170
      %v3205 = vadd.f32 %v2551, %v3172
      %v3206 = vld [vmem:[%s918] sm:$0xe]
      %v3207 = vld [vmem:[%s918 + $0xc] sm:$0xe]
      %v3208 = vld [vmem:[%s918 + $0x18] sm:$0xe]
      %v3209 = vld [vmem:[%s918 + $0x24] sm:$0xe]
      %v3210 = vld [vmem:[%s918 + $0x30] sm:$0xe]
      %v3211 = vld [vmem:[%s918 + $0x3c] sm:$0xe]
      %v3212 = vld [vmem:[%s918 + $0x48] sm:$0xe]
      %v3213 = vld [vmem:[%s918 + $0x54] sm:$0xe]
      %v3214 = vld [vmem:[%s918 + $0x60] sm:$0xe]
      %v3215 = vld [vmem:[%s918 + $0x6c] sm:$0xe]
      %v3216 = vld [vmem:[%s918 + $0x78] sm:$0xe]
      %v3217 = vld [vmem:[%s918 + $0x84] sm:$0xe]
      %v3218 = vld [vmem:[%s918 + $0x90] sm:$0xe]
      %v3219 = vld [vmem:[%s918 + $0x9c] sm:$0xe]
      %v3220 = vld [vmem:[%s918 + $0xa8] sm:$0xe]
      %v3221 = vld [vmem:[%s918 + $0xb4] sm:$0xe]
      %v3270 = vrot.slane %v3206, 5
      %v3271 = vrot.slane %v3270, 4
      %v3272 = vrot.slane %v2553, 5
      %v3273 = vsel %vm1931, %v3271, %v3272
      %v3274 = vrot.slane %v3272, 4
      %v3275 = vrot.slane %v2554, 5
      %v3276 = vsel %vm1931, %v3274, %v3275
      %v3277 = vrot.slane %v3207, 5
      %v3278 = vrot.slane %v3277, 4
      %v3279 = vrot.slane %v2556, 5
      %v3280 = vsel %vm1931, %v3278, %v3279
      %v3281 = vrot.slane %v3279, 4
      %v3282 = vrot.slane %v2557, 5
      %v3283 = vsel %vm1931, %v3281, %v3282
      %v3284 = vrot.slane %v3208, 5
      %v3285 = vrot.slane %v3284, 4
      %v3286 = vrot.slane %v2559, 5
      %v3287 = vsel %vm1931, %v3285, %v3286
      %v3288 = vrot.slane %v3286, 4
      %v3289 = vrot.slane %v2560, 5
      %v3290 = vsel %vm1931, %v3288, %v3289
      %v3291 = vrot.slane %v3209, 5
      %v3292 = vrot.slane %v3291, 4
      %v3293 = vrot.slane %v2562, 5
      %v3294 = vsel %vm1931, %v3292, %v3293
      %v3295 = vrot.slane %v3293, 4
      %v3296 = vrot.slane %v2563, 5
      %v3297 = vsel %vm1931, %v3295, %v3296
      %v3298 = vrot.slane %v3210, 5
      %v3299 = vrot.slane %v3298, 4
      %v3300 = vrot.slane %v2565, 5
      %v3301 = vsel %vm1931, %v3299, %v3300
      %v3302 = vrot.slane %v3300, 4
      %v3303 = vrot.slane %v2566, 5
      %v3304 = vsel %vm1931, %v3302, %v3303
      %v3305 = vrot.slane %v3211, 5
      %v3306 = vrot.slane %v3305, 4
      %v3307 = vrot.slane %v2568, 5
      %v3308 = vsel %vm1931, %v3306, %v3307
      %v3309 = vrot.slane %v3307, 4
      %v3310 = vrot.slane %v2569, 5
      %v3311 = vsel %vm1931, %v3309, %v3310
      %v3312 = vrot.slane %v3212, 5
      %v3313 = vrot.slane %v3312, 4
      %v3314 = vrot.slane %v2571, 5
      %v3315 = vsel %vm1931, %v3313, %v3314
      %v3316 = vrot.slane %v3314, 4
      %v3317 = vrot.slane %v2572, 5
      %v3318 = vsel %vm1931, %v3316, %v3317
      %v3319 = vrot.slane %v3213, 5
      %v3320 = vrot.slane %v3319, 4
      %v3321 = vrot.slane %v2574, 5
      %v3322 = vsel %vm1931, %v3320, %v3321
      %v3323 = vrot.slane %v3321, 4
      %v3324 = vrot.slane %v2575, 5
      %v3325 = vsel %vm1931, %v3323, %v3324
      %v3326 = vrot.slane %v3214, 5
      %v3327 = vrot.slane %v3326, 4
      %v3328 = vrot.slane %v2577, 5
      %v3329 = vsel %vm1931, %v3327, %v3328
      %v3330 = vrot.slane %v3328, 4
      %v3331 = vrot.slane %v2578, 5
      %v3332 = vsel %vm1931, %v3330, %v3331
      %v3333 = vrot.slane %v3215, 5
      %v3334 = vrot.slane %v3333, 4
      %v3335 = vrot.slane %v2580, 5
      %v3336 = vsel %vm1931, %v3334, %v3335
      %v3337 = vrot.slane %v3335, 4
      %v3338 = vrot.slane %v2581, 5
      %v3339 = vsel %vm1931, %v3337, %v3338
      %v3340 = vrot.slane %v3216, 5
      %v3341 = vrot.slane %v3340, 4
      %v3342 = vrot.slane %v2583, 5
      %v3343 = vsel %vm1931, %v3341, %v3342
      %v3344 = vrot.slane %v3342, 4
      %v3345 = vrot.slane %v2584, 5
      %v3346 = vsel %vm1931, %v3344, %v3345
      %v3347 = vrot.slane %v3217, 5
      %v3348 = vrot.slane %v3347, 4
      %v3349 = vrot.slane %v2586, 5
      %v3350 = vsel %vm1931, %v3348, %v3349
      %v3351 = vrot.slane %v3349, 4
      %v3352 = vrot.slane %v2587, 5
      %v3353 = vsel %vm1931, %v3351, %v3352
      %v3354 = vrot.slane %v3218, 5
      %v3355 = vrot.slane %v3354, 4
      %v3356 = vrot.slane %v2589, 5
      %v3357 = vsel %vm1931, %v3355, %v3356
      %v3358 = vrot.slane %v3356, 4
      %v3359 = vrot.slane %v2590, 5
      %v3360 = vsel %vm1931, %v3358, %v3359
      %v3361 = vrot.slane %v3219, 5
      %v3362 = vrot.slane %v3361, 4
      %v3363 = vrot.slane %v2592, 5
      %v3364 = vsel %vm1931, %v3362, %v3363
      %v3365 = vrot.slane %v3363, 4
      %v3366 = vrot.slane %v2593, 5
      %v3367 = vsel %vm1931, %v3365, %v3366
      %v3368 = vrot.slane %v3220, 5
      %v3369 = vrot.slane %v3368, 4
      %v3370 = vrot.slane %v2595, 5
      %v3371 = vsel %vm1931, %v3369, %v3370
      %v3372 = vrot.slane %v3370, 4
      %v3373 = vrot.slane %v2596, 5
      %v3374 = vsel %vm1931, %v3372, %v3373
      %v3375 = vrot.slane %v3221, 5
      %v3376 = vrot.slane %v3375, 4
      %v3377 = vrot.slane %v2598, 5
      %v3378 = vsel %vm1931, %v3376, %v3377
      %v3379 = vrot.slane %v3377, 4
      %v3380 = vrot.slane %v2599, 5
      %v3381 = vsel %vm1931, %v3379, %v3380
      %s3382 = scalar_lea.vmem %s3, 10
      %v3383 = vld [vmem:[%s3382] sm:$0x3]
      %v3384 = vunpack.c.l.b16 %v3273
      %v3385 = vunpack.c.l.b16 %v3276
      %v3386 = vunpack.c.l.b16 %v3280
      %v3387 = vunpack.c.l.b16 %v3283
      %v3388 = vunpack.c.l.b16 %v3287
      %v3389 = vunpack.c.l.b16 %v3290
      %v3390 = vunpack.c.l.b16 %v3294
      %v3391 = vunpack.c.l.b16 %v3297
      %v3392 = vunpack.c.l.b16 %v3301
      %v3393 = vunpack.c.l.b16 %v3304
      %v3394 = vunpack.c.l.b16 %v3308
      %v3395 = vunpack.c.l.b16 %v3311
      %v3396 = vunpack.c.l.b16 %v3315
      %v3397 = vunpack.c.l.b16 %v3318
      %v3398 = vunpack.c.l.b16 %v3322
      %v3399 = vunpack.c.l.b16 %v3325
      %v3400 = vunpack.c.l.b16 %v3329
      %v3401 = vunpack.c.l.b16 %v3332
      %v3402 = vunpack.c.l.b16 %v3336
      %v3403 = vunpack.c.l.b16 %v3339
      %v3404 = vunpack.c.l.b16 %v3343
      %v3405 = vunpack.c.l.b16 %v3346
      %v3406 = vunpack.c.l.b16 %v3350
      %v3407 = vunpack.c.l.b16 %v3353
      %v3408 = vunpack.c.l.b16 %v3357
      %v3409 = vunpack.c.l.b16 %v3360
      %v3410 = vunpack.c.l.b16 %v3364
      %v3411 = vunpack.c.l.b16 %v3367
      %v3412 = vunpack.c.l.b16 %v3371
      %v3413 = vunpack.c.l.b16 %v3374
      %v3414 = vunpack.c.l.b16 %v3378
      %v3415 = vunpack.c.l.b16 %v3381
      %v3416 = vpack.c.b16 %v3385, %v3384
      %v3417 = vpack.c.b16 %v3387, %v3386
      %v3418 = vpack.c.b16 %v3389, %v3388
      %v3419 = vpack.c.b16 %v3391, %v3390
      %v3420 = vpack.c.b16 %v3393, %v3392
      %v3421 = vpack.c.b16 %v3395, %v3394
      %v3422 = vpack.c.b16 %v3397, %v3396
      %v3423 = vpack.c.b16 %v3399, %v3398
      %v3424 = vpack.c.b16 %v3401, %v3400
      %v3425 = vpack.c.b16 %v3403, %v3402
      %v3426 = vpack.c.b16 %v3405, %v3404
      %v3427 = vpack.c.b16 %v3407, %v3406
      %v3428 = vpack.c.b16 %v3409, %v3408
      %v3429 = vpack.c.b16 %v3411, %v3410
      %v3430 = vpack.c.b16 %v3413, %v3412
      %v3431 = vpack.c.b16 %v3415, %v3414
      %v3433 = vsel %vm1519, %v3416, 0
      %v3436 = vsel %vm1519, %v3417, 0
      %v3439 = vsel %vm1519, %v3418, 0
      %v3442 = vsel %vm1519, %v3419, 0
      %v3445 = vsel %vm1519, %v3420, 0
      %v3448 = vsel %vm1519, %v3421, 0
      %v3451 = vsel %vm1519, %v3422, 0
      %v3454 = vsel %vm1519, %v3423, 0
      %v3457 = vsel %vm1519, %v3424, 0
      %v3460 = vsel %vm1519, %v3425, 0
      %v3463 = vsel %vm1519, %v3426, 0
      %v3466 = vsel %vm1519, %v3427, 0
      %v3469 = vsel %vm1519, %v3428, 0
      %v3472 = vsel %vm1519, %v3429, 0
      %v3475 = vsel %vm1519, %v3430, 0
      %v3478 = vsel %vm1519, %v3431, 0
      %v3481 = vsel %vm1568, %v3383, 0
      %3483 = vmatpush.bf16.msra.mxu0 0
      %3484 = vmatpush.bf16.msra.mxu0 0
      %3485 = vmatpush.bf16.msra.mxu0 0
      %3486 = vmatpush.bf16.msra.mxu0 0
      %3487 = vmatpush.bf16.msra.mxu0 0
      %3488 = vmatpush.bf16.msra.mxu0 0
      %3489 = vmatpush.bf16.msra.mxu0 0
      %3490 = vmatpush.bf16.msra.mxu0 %v3481
      %3491 = vmatmul.bf16.gmra.mxu0 %v3433
      %v3492 = vpop.f32.mrf.mxu0
      %v3493 = vadd.f32 0.0, %v3492
      %v3494 = vpop.f32.mrf.mxu0
      %v3495 = vadd.f32 0.0, %v3494
      %3496 = vmatmul.bf16.gmra.mxu0 %v3436
      %v3497 = vpop.f32.mrf.mxu0
      %v3498 = vadd.f32 0.0, %v3497
      %v3499 = vpop.f32.mrf.mxu0
      %v3500 = vadd.f32 0.0, %v3499
      %3501 = vmatmul.bf16.gmra.mxu0 %v3439
      %v3502 = vpop.f32.mrf.mxu0
      %v3503 = vadd.f32 0.0, %v3502
      %v3504 = vpop.f32.mrf.mxu0
      %v3505 = vadd.f32 0.0, %v3504
      %3506 = vmatmul.bf16.gmra.mxu0 %v3442
      %v3507 = vpop.f32.mrf.mxu0
      %v3508 = vadd.f32 0.0, %v3507
      %v3509 = vpop.f32.mrf.mxu0
      %v3510 = vadd.f32 0.0, %v3509
      %3511 = vmatmul.bf16.gmra.mxu0 %v3445
      %v3512 = vpop.f32.mrf.mxu0
      %v3513 = vadd.f32 0.0, %v3512
      %v3514 = vpop.f32.mrf.mxu0
      %v3515 = vadd.f32 0.0, %v3514
      %3516 = vmatmul.bf16.gmra.mxu0 %v3448
      %v3517 = vpop.f32.mrf.mxu0
      %v3518 = vadd.f32 0.0, %v3517
      %v3519 = vpop.f32.mrf.mxu0
      %v3520 = vadd.f32 0.0, %v3519
      %3521 = vmatmul.bf16.gmra.mxu0 %v3451
      %v3522 = vpop.f32.mrf.mxu0
      %v3523 = vadd.f32 0.0, %v3522
      %v3524 = vpop.f32.mrf.mxu0
      %v3525 = vadd.f32 0.0, %v3524
      %3526 = vmatmul.bf16.gmra.mxu0 %v3454
      %v3527 = vpop.f32.mrf.mxu0
      %v3528 = vadd.f32 0.0, %v3527
      %v3529 = vpop.f32.mrf.mxu0
      %v3530 = vadd.f32 0.0, %v3529
      %3531 = vmatmul.bf16.gmra.mxu0 %v3457
      %v3532 = vpop.f32.mrf.mxu0
      %v3533 = vadd.f32 0.0, %v3532
      %v3534 = vpop.f32.mrf.mxu0
      %v3535 = vadd.f32 0.0, %v3534
      %3536 = vmatmul.bf16.gmra.mxu0 %v3460
      %v3537 = vpop.f32.mrf.mxu0
      %v3538 = vadd.f32 0.0, %v3537
      %v3539 = vpop.f32.mrf.mxu0
      %v3540 = vadd.f32 0.0, %v3539
      %3541 = vmatmul.bf16.gmra.mxu0 %v3463
      %v3542 = vpop.f32.mrf.mxu0
      %v3543 = vadd.f32 0.0, %v3542
      %v3544 = vpop.f32.mrf.mxu0
      %v3545 = vadd.f32 0.0, %v3544
      %3546 = vmatmul.bf16.gmra.mxu0 %v3466
      %v3547 = vpop.f32.mrf.mxu0
      %v3548 = vadd.f32 0.0, %v3547
      %v3549 = vpop.f32.mrf.mxu0
      %v3550 = vadd.f32 0.0, %v3549
      %3551 = vmatmul.bf16.gmra.mxu0 %v3469
      %v3552 = vpop.f32.mrf.mxu0
      %v3553 = vadd.f32 0.0, %v3552
      %v3554 = vpop.f32.mrf.mxu0
      %v3555 = vadd.f32 0.0, %v3554
      %3556 = vmatmul.bf16.gmra.mxu0 %v3472
      %v3557 = vpop.f32.mrf.mxu0
      %v3558 = vadd.f32 0.0, %v3557
      %v3559 = vpop.f32.mrf.mxu0
      %v3560 = vadd.f32 0.0, %v3559
      %3561 = vmatmul.bf16.gmra.mxu0 %v3475
      %v3562 = vpop.f32.mrf.mxu0
      %v3563 = vadd.f32 0.0, %v3562
      %v3564 = vpop.f32.mrf.mxu0
      %v3565 = vadd.f32 0.0, %v3564
      %3566 = vmatmul.bf16.gmra.mxu0 %v3478
      %v3567 = vpop.f32.mrf.mxu0
      %v3568 = vadd.f32 0.0, %v3567
      %v3569 = vpop.f32.mrf.mxu0
      %v3570 = vadd.f32 0.0, %v3569
      %3571 = vdwg.mxu0
      %v3572 = vadd.f32 %v3174, %v3493
      %v3573 = vadd.f32 %v3175, %v3495
      %v3574 = vadd.f32 %v3176, %v3498
      %v3575 = vadd.f32 %v3177, %v3500
      %v3576 = vadd.f32 %v3178, %v3503
      %v3577 = vadd.f32 %v3179, %v3505
      %v3578 = vadd.f32 %v3180, %v3508
      %v3579 = vadd.f32 %v3181, %v3510
      %v3580 = vadd.f32 %v3182, %v3513
      %v3581 = vadd.f32 %v3183, %v3515
      %v3582 = vadd.f32 %v3184, %v3518
      %v3583 = vadd.f32 %v3185, %v3520
      %v3584 = vadd.f32 %v3186, %v3523
      %v3585 = vadd.f32 %v3187, %v3525
      %v3586 = vadd.f32 %v3188, %v3528
      %v3587 = vadd.f32 %v3189, %v3530
      %v3588 = vadd.f32 %v3190, %v3533
      %v3589 = vadd.f32 %v3191, %v3535
      %v3590 = vadd.f32 %v3192, %v3538
      %v3591 = vadd.f32 %v3193, %v3540
      %v3592 = vadd.f32 %v3194, %v3543
      %v3593 = vadd.f32 %v3195, %v3545
      %v3594 = vadd.f32 %v3196, %v3548
      %v3595 = vadd.f32 %v3197, %v3550
      %v3596 = vadd.f32 %v3198, %v3553
      %v3597 = vadd.f32 %v3199, %v3555
      %v3598 = vadd.f32 %v3200, %v3558
      %v3599 = vadd.f32 %v3201, %v3560
      %v3600 = vadd.f32 %v3202, %v3563
      %v3601 = vadd.f32 %v3203, %v3565
      %v3602 = vadd.f32 %v3204, %v3568
      %v3603 = vadd.f32 %v3205, %v3570
      %s3604 = scalar_lea.vmem [#allocation2], 24
      %v3605 = vld [vmem:[%s3604] sm:$0xf]
      %v3606 = vld [vmem:[%s3604 + $0x4] sm:$0xf]
      %v3607 = vld [vmem:[%s3604 + $0xc] sm:$0xf]
      %v3608 = vld [vmem:[%s3604 + $0x10] sm:$0xf]
      %v3609 = vld [vmem:[%s3604 + $0x18] sm:$0xf]
      %v3610 = vld [vmem:[%s3604 + $0x1c] sm:$0xf]
      %v3611 = vld [vmem:[%s3604 + $0x24] sm:$0xf]
      %v3612 = vld [vmem:[%s3604 + $0x28] sm:$0xf]
      %v3613 = vld [vmem:[%s3604 + $0x30] sm:$0xf]
      %v3614 = vld [vmem:[%s3604 + $0x34] sm:$0xf]
      %v3615 = vld [vmem:[%s3604 + $0x3c] sm:$0xf]
      %v3616 = vld [vmem:[%s3604 + $0x40] sm:$0xf]
      %v3617 = vld [vmem:[%s3604 + $0x48] sm:$0xf]
      %v3618 = vld [vmem:[%s3604 + $0x4c] sm:$0xf]
      %v3619 = vld [vmem:[%s3604 + $0x54] sm:$0xf]
      %v3620 = vld [vmem:[%s3604 + $0x58] sm:$0xf]
      %v3621 = vld [vmem:[%s3604 + $0x60] sm:$0xf]
      %v3622 = vld [vmem:[%s3604 + $0x64] sm:$0xf]
      %v3623 = vld [vmem:[%s3604 + $0x6c] sm:$0xf]
      %v3624 = vld [vmem:[%s3604 + $0x70] sm:$0xf]
      %v3625 = vld [vmem:[%s3604 + $0x78] sm:$0xf]
      %v3626 = vld [vmem:[%s3604 + $0x7c] sm:$0xf]
      %v3627 = vld [vmem:[%s3604 + $0x84] sm:$0xf]
      %v3628 = vld [vmem:[%s3604 + $0x88] sm:$0xf]
      %v3629 = vld [vmem:[%s3604 + $0x90] sm:$0xf]
      %v3630 = vld [vmem:[%s3604 + $0x94] sm:$0xf]
      %v3631 = vld [vmem:[%s3604 + $0x9c] sm:$0xf]
      %v3632 = vld [vmem:[%s3604 + $0xa0] sm:$0xf]
      %v3633 = vld [vmem:[%s3604 + $0xa8] sm:$0xf]
      %v3634 = vld [vmem:[%s3604 + $0xac] sm:$0xf]
      %v3635 = vld [vmem:[%s3604 + $0xb4] sm:$0xf]
      %v3636 = vld [vmem:[%s3604 + $0xb8] sm:$0xf]
      %s3637 = scalar_lea.vmem %s3, 12
      %v3638 = vld [vmem:[%s3637] sm:$0x3]
      %v3671 = vunpack.c.l.b16 %v3605
      %v3672 = vunpack.c.l.b16 %v3606
      %v3673 = vunpack.c.l.b16 %v3607
      %v3674 = vunpack.c.l.b16 %v3608
      %v3675 = vunpack.c.l.b16 %v3609
      %v3676 = vunpack.c.l.b16 %v3610
      %v3677 = vunpack.c.l.b16 %v3611
      %v3678 = vunpack.c.l.b16 %v3612
      %v3679 = vunpack.c.l.b16 %v3613
      %v3680 = vunpack.c.l.b16 %v3614
      %v3681 = vunpack.c.l.b16 %v3615
      %v3682 = vunpack.c.l.b16 %v3616
      %v3683 = vunpack.c.l.b16 %v3617
      %v3684 = vunpack.c.l.b16 %v3618
      %v3685 = vunpack.c.l.b16 %v3619
      %v3686 = vunpack.c.l.b16 %v3620
      %v3687 = vunpack.c.l.b16 %v3621
      %v3688 = vunpack.c.l.b16 %v3622
      %v3689 = vunpack.c.l.b16 %v3623
      %v3690 = vunpack.c.l.b16 %v3624
      %v3691 = vunpack.c.l.b16 %v3625
      %v3692 = vunpack.c.l.b16 %v3626
      %v3693 = vunpack.c.l.b16 %v3627
      %v3694 = vunpack.c.l.b16 %v3628
      %v3695 = vunpack.c.l.b16 %v3629
      %v3696 = vunpack.c.l.b16 %v3630
      %v3697 = vunpack.c.l.b16 %v3631
      %v3698 = vunpack.c.l.b16 %v3632
      %v3699 = vunpack.c.l.b16 %v3633
      %v3700 = vunpack.c.l.b16 %v3634
      %v3701 = vunpack.c.l.b16 %v3635
      %v3702 = vunpack.c.l.b16 %v3636
      %v3703 = vpack.c.b16 %v3672, %v3671
      %v3704 = vpack.c.b16 %v3674, %v3673
      %v3705 = vpack.c.b16 %v3676, %v3675
      %v3706 = vpack.c.b16 %v3678, %v3677
      %v3707 = vpack.c.b16 %v3680, %v3679
      %v3708 = vpack.c.b16 %v3682, %v3681
      %v3709 = vpack.c.b16 %v3684, %v3683
      %v3710 = vpack.c.b16 %v3686, %v3685
      %v3711 = vpack.c.b16 %v3688, %v3687
      %v3712 = vpack.c.b16 %v3690, %v3689
      %v3713 = vpack.c.b16 %v3692, %v3691
      %v3714 = vpack.c.b16 %v3694, %v3693
      %v3715 = vpack.c.b16 %v3696, %v3695
      %v3716 = vpack.c.b16 %v3698, %v3697
      %v3717 = vpack.c.b16 %v3700, %v3699
      %v3718 = vpack.c.b16 %v3702, %v3701
      %v3720 = vsel %vm1519, %v3703, 0
      %v3723 = vsel %vm1519, %v3704, 0
      %v3726 = vsel %vm1519, %v3705, 0
      %v3729 = vsel %vm1519, %v3706, 0
      %v3732 = vsel %vm1519, %v3707, 0
      %v3735 = vsel %vm1519, %v3708, 0
      %v3738 = vsel %vm1519, %v3709, 0
      %v3741 = vsel %vm1519, %v3710, 0
      %v3744 = vsel %vm1519, %v3711, 0
      %v3747 = vsel %vm1519, %v3712, 0
      %v3750 = vsel %vm1519, %v3713, 0
      %v3753 = vsel %vm1519, %v3714, 0
      %v3756 = vsel %vm1519, %v3715, 0
      %v3759 = vsel %vm1519, %v3716, 0
      %v3762 = vsel %vm1519, %v3717, 0
      %v3765 = vsel %vm1519, %v3718, 0
      %v3768 = vsel %vm1568, %v3638, 0
      %3770 = vmatpush.bf16.msra.mxu0 0
      %3771 = vmatpush.bf16.msra.mxu0 0
      %3772 = vmatpush.bf16.msra.mxu0 0
      %3773 = vmatpush.bf16.msra.mxu0 0
      %3774 = vmatpush.bf16.msra.mxu0 0
      %3775 = vmatpush.bf16.msra.mxu0 0
      %3776 = vmatpush.bf16.msra.mxu0 0
      %3777 = vmatpush.bf16.msra.mxu0 %v3768
      %3778 = vmatmul.bf16.gmra.mxu0 %v3720
      %v3779 = vpop.f32.mrf.mxu0
      %v3780 = vadd.f32 0.0, %v3779
      %v3781 = vpop.f32.mrf.mxu0
      %v3782 = vadd.f32 0.0, %v3781
      %3783 = vmatmul.bf16.gmra.mxu0 %v3723
      %v3784 = vpop.f32.mrf.mxu0
      %v3785 = vadd.f32 0.0, %v3784
      %v3786 = vpop.f32.mrf.mxu0
      %v3787 = vadd.f32 0.0, %v3786
      %3788 = vmatmul.bf16.gmra.mxu0 %v3726
      %v3789 = vpop.f32.mrf.mxu0
      %v3790 = vadd.f32 0.0, %v3789
      %v3791 = vpop.f32.mrf.mxu0
      %v3792 = vadd.f32 0.0, %v3791
      %3793 = vmatmul.bf16.gmra.mxu0 %v3729
      %v3794 = vpop.f32.mrf.mxu0
      %v3795 = vadd.f32 0.0, %v3794
      %v3796 = vpop.f32.mrf.mxu0
      %v3797 = vadd.f32 0.0, %v3796
      %3798 = vmatmul.bf16.gmra.mxu0 %v3732
      %v3799 = vpop.f32.mrf.mxu0
      %v3800 = vadd.f32 0.0, %v3799
      %v3801 = vpop.f32.mrf.mxu0
      %v3802 = vadd.f32 0.0, %v3801
      %3803 = vmatmul.bf16.gmra.mxu0 %v3735
      %v3804 = vpop.f32.mrf.mxu0
      %v3805 = vadd.f32 0.0, %v3804
      %v3806 = vpop.f32.mrf.mxu0
      %v3807 = vadd.f32 0.0, %v3806
      %3808 = vmatmul.bf16.gmra.mxu0 %v3738
      %v3809 = vpop.f32.mrf.mxu0
      %v3810 = vadd.f32 0.0, %v3809
      %v3811 = vpop.f32.mrf.mxu0
      %v3812 = vadd.f32 0.0, %v3811
      %3813 = vmatmul.bf16.gmra.mxu0 %v3741
      %v3814 = vpop.f32.mrf.mxu0
      %v3815 = vadd.f32 0.0, %v3814
      %v3816 = vpop.f32.mrf.mxu0
      %v3817 = vadd.f32 0.0, %v3816
      %3818 = vmatmul.bf16.gmra.mxu0 %v3744
      %v3819 = vpop.f32.mrf.mxu0
      %v3820 = vadd.f32 0.0, %v3819
      %v3821 = vpop.f32.mrf.mxu0
      %v3822 = vadd.f32 0.0, %v3821
      %3823 = vmatmul.bf16.gmra.mxu0 %v3747
      %v3824 = vpop.f32.mrf.mxu0
      %v3825 = vadd.f32 0.0, %v3824
      %v3826 = vpop.f32.mrf.mxu0
      %v3827 = vadd.f32 0.0, %v3826
      %3828 = vmatmul.bf16.gmra.mxu0 %v3750
      %v3829 = vpop.f32.mrf.mxu0
      %v3830 = vadd.f32 0.0, %v3829
      %v3831 = vpop.f32.mrf.mxu0
      %v3832 = vadd.f32 0.0, %v3831
      %3833 = vmatmul.bf16.gmra.mxu0 %v3753
      %v3834 = vpop.f32.mrf.mxu0
      %v3835 = vadd.f32 0.0, %v3834
      %v3836 = vpop.f32.mrf.mxu0
      %v3837 = vadd.f32 0.0, %v3836
      %3838 = vmatmul.bf16.gmra.mxu0 %v3756
      %v3839 = vpop.f32.mrf.mxu0
      %v3840 = vadd.f32 0.0, %v3839
      %v3841 = vpop.f32.mrf.mxu0
      %v3842 = vadd.f32 0.0, %v3841
      %3843 = vmatmul.bf16.gmra.mxu0 %v3759
      %v3844 = vpop.f32.mrf.mxu0
      %v3845 = vadd.f32 0.0, %v3844
      %v3846 = vpop.f32.mrf.mxu0
      %v3847 = vadd.f32 0.0, %v3846
      %3848 = vmatmul.bf16.gmra.mxu0 %v3762
      %v3849 = vpop.f32.mrf.mxu0
      %v3850 = vadd.f32 0.0, %v3849
      %v3851 = vpop.f32.mrf.mxu0
      %v3852 = vadd.f32 0.0, %v3851
      %3853 = vmatmul.bf16.gmra.mxu0 %v3765
      %v3854 = vpop.f32.mrf.mxu0
      %v3855 = vadd.f32 0.0, %v3854
      %v3856 = vpop.f32.mrf.mxu0
      %v3857 = vadd.f32 0.0, %v3856
      %3858 = vdwg.mxu0
      %v3859 = vadd.f32 %v3572, %v3780
      %v3860 = vadd.f32 %v3573, %v3782
      %v3861 = vadd.f32 %v3574, %v3785
      %v3862 = vadd.f32 %v3575, %v3787
      %v3863 = vadd.f32 %v3576, %v3790
      %v3864 = vadd.f32 %v3577, %v3792
      %v3865 = vadd.f32 %v3578, %v3795
      %v3866 = vadd.f32 %v3579, %v3797
      %v3867 = vadd.f32 %v3580, %v3800
      %v3868 = vadd.f32 %v3581, %v3802
      %v3869 = vadd.f32 %v3582, %v3805
      %v3870 = vadd.f32 %v3583, %v3807
      %v3871 = vadd.f32 %v3584, %v3810
      %v3872 = vadd.f32 %v3585, %v3812
      %v3873 = vadd.f32 %v3586, %v3815
      %v3874 = vadd.f32 %v3587, %v3817
      %v3875 = vadd.f32 %v3588, %v3820
      %v3876 = vadd.f32 %v3589, %v3822
      %v3877 = vadd.f32 %v3590, %v3825
      %v3878 = vadd.f32 %v3591, %v3827
      %v3879 = vadd.f32 %v3592, %v3830
      %v3880 = vadd.f32 %v3593, %v3832
      %v3881 = vadd.f32 %v3594, %v3835
      %v3882 = vadd.f32 %v3595, %v3837
      %v3883 = vadd.f32 %v3596, %v3840
      %v3884 = vadd.f32 %v3597, %v3842
      %v3885 = vadd.f32 %v3598, %v3845
      %v3886 = vadd.f32 %v3599, %v3847
      %v3887 = vadd.f32 %v3600, %v3850
      %v3888 = vadd.f32 %v3601, %v3852
      %v3889 = vadd.f32 %v3602, %v3855
      %v3890 = vadd.f32 %v3603, %v3857
      %v3891 = vld [vmem:[%s3604] sm:$0xf]
      %v3892 = vld [vmem:[%s3604 + $0x4] sm:$0xf]
      %v3893 = vld [vmem:[%s3604 + $0x8] sm:$0x1]
      %v3894 = vld [vmem:[%s3604 + $0xc] sm:$0xf]
      %v3895 = vld [vmem:[%s3604 + $0x10] sm:$0xf]
      %v3896 = vld [vmem:[%s3604 + $0x14] sm:$0x1]
      %v3897 = vld [vmem:[%s3604 + $0x18] sm:$0xf]
      %v3898 = vld [vmem:[%s3604 + $0x1c] sm:$0xf]
      %v3899 = vld [vmem:[%s3604 + $0x20] sm:$0x1]
      %v3900 = vld [vmem:[%s3604 + $0x24] sm:$0xf]
      %v3901 = vld [vmem:[%s3604 + $0x28] sm:$0xf]
      %v3902 = vld [vmem:[%s3604 + $0x2c] sm:$0x1]
      %v3903 = vld [vmem:[%s3604 + $0x30] sm:$0xf]
      %v3904 = vld [vmem:[%s3604 + $0x34] sm:$0xf]
      %v3905 = vld [vmem:[%s3604 + $0x38] sm:$0x1]
      %v3906 = vld [vmem:[%s3604 + $0x3c] sm:$0xf]
      %v3907 = vld [vmem:[%s3604 + $0x40] sm:$0xf]
      %v3908 = vld [vmem:[%s3604 + $0x44] sm:$0x1]
      %v3909 = vld [vmem:[%s3604 + $0x48] sm:$0xf]
      %v3910 = vld [vmem:[%s3604 + $0x4c] sm:$0xf]
      %v3911 = vld [vmem:[%s3604 + $0x50] sm:$0x1]
      %v3912 = vld [vmem:[%s3604 + $0x54] sm:$0xf]
      %v3913 = vld [vmem:[%s3604 + $0x58] sm:$0xf]
      %v3914 = vld [vmem:[%s3604 + $0x5c] sm:$0x1]
      %v3915 = vld [vmem:[%s3604 + $0x60] sm:$0xf]
      %v3916 = vld [vmem:[%s3604 + $0x64] sm:$0xf]
      %v3917 = vld [vmem:[%s3604 + $0x68] sm:$0x1]
      %v3918 = vld [vmem:[%s3604 + $0x6c] sm:$0xf]
      %v3919 = vld [vmem:[%s3604 + $0x70] sm:$0xf]
      %v3920 = vld [vmem:[%s3604 + $0x74] sm:$0x1]
      %v3921 = vld [vmem:[%s3604 + $0x78] sm:$0xf]
      %v3922 = vld [vmem:[%s3604 + $0x7c] sm:$0xf]
      %v3923 = vld [vmem:[%s3604 + $0x80] sm:$0x1]
      %v3924 = vld [vmem:[%s3604 + $0x84] sm:$0xf]
      %v3925 = vld [vmem:[%s3604 + $0x88] sm:$0xf]
      %v3926 = vld [vmem:[%s3604 + $0x8c] sm:$0x1]
      %v3927 = vld [vmem:[%s3604 + $0x90] sm:$0xf]
      %v3928 = vld [vmem:[%s3604 + $0x94] sm:$0xf]
      %v3929 = vld [vmem:[%s3604 + $0x98] sm:$0x1]
      %v3930 = vld [vmem:[%s3604 + $0x9c] sm:$0xf]
      %v3931 = vld [vmem:[%s3604 + $0xa0] sm:$0xf]
      %v3932 = vld [vmem:[%s3604 + $0xa4] sm:$0x1]
      %v3933 = vld [vmem:[%s3604 + $0xa8] sm:$0xf]
      %v3934 = vld [vmem:[%s3604 + $0xac] sm:$0xf]
      %v3935 = vld [vmem:[%s3604 + $0xb0] sm:$0x1]
      %v3936 = vld [vmem:[%s3604 + $0xb4] sm:$0xf]
      %v3937 = vld [vmem:[%s3604 + $0xb8] sm:$0xf]
      %v3938 = vld [vmem:[%s3604 + $0xbc] sm:$0x1]
      %v3940 = vshrl.u32 %v3891, 16
      %v3942 = vrot.slane %v3940, 4
      %v3943 = vshll.u32 %v3891, 16
      %v3945 = vrot.slane %v3943, 5
      %v3946 = vor.u32 %v3942, %v3945
      %v3947 = vrot.slane %v3946, 4
      %v3949 = vshll.u32 %v3892, 16
      %v3951 = vrot.slane %v3949, 5
      %v3952 = vsel %vm1084, %v3947, %v3951
      %v3953 = vshrl.u32 %v3892, 16
      %v3955 = vrot.slane %v3953, 4
      %v3956 = vor.u32 %v3955, %v3951
      %v3957 = vrot.slane %v3956, 4
      %v3959 = vshll.u32 %v3893, 16
      %v3961 = vrot.slane %v3959, 5
      %v3962 = vsel %vm1084, %v3957, %v3961
      %v3964 = vshrl.u32 %v3894, 16
      %v3966 = vrot.slane %v3964, 4
      %v3967 = vshll.u32 %v3894, 16
      %v3969 = vrot.slane %v3967, 5
      %v3970 = vor.u32 %v3966, %v3969
      %v3971 = vrot.slane %v3970, 4
      %v3973 = vshll.u32 %v3895, 16
      %v3975 = vrot.slane %v3973, 5
      %v3976 = vsel %vm1084, %v3971, %v3975
      %v3977 = vshrl.u32 %v3895, 16
      %v3979 = vrot.slane %v3977, 4
      %v3980 = vor.u32 %v3979, %v3975
      %v3981 = vrot.slane %v3980, 4
      %v3983 = vshll.u32 %v3896, 16
      %v3985 = vrot.slane %v3983, 5
      %v3986 = vsel %vm1084, %v3981, %v3985
      %v3988 = vshrl.u32 %v3897, 16
      %v3990 = vrot.slane %v3988, 4
      %v3991 = vshll.u32 %v3897, 16
      %v3993 = vrot.slane %v3991, 5
      %v3994 = vor.u32 %v3990, %v3993
      %v3995 = vrot.slane %v3994, 4
      %v3997 = vshll.u32 %v3898, 16
      %v3999 = vrot.slane %v3997, 5
      %v4000 = vsel %vm1084, %v3995, %v3999
      %v4001 = vshrl.u32 %v3898, 16
      %v4003 = vrot.slane %v4001, 4
      %v4004 = vor.u32 %v4003, %v3999
      %v4005 = vrot.slane %v4004, 4
      %v4007 = vshll.u32 %v3899, 16
      %v4009 = vrot.slane %v4007, 5
      %v4010 = vsel %vm1084, %v4005, %v4009
      %v4012 = vshrl.u32 %v3900, 16
      %v4014 = vrot.slane %v4012, 4
      %v4015 = vshll.u32 %v3900, 16
      %v4017 = vrot.slane %v4015, 5
      %v4018 = vor.u32 %v4014, %v4017
      %v4019 = vrot.slane %v4018, 4
      %v4021 = vshll.u32 %v3901, 16
      %v4023 = vrot.slane %v4021, 5
      %v4024 = vsel %vm1084, %v4019, %v4023
      %v4025 = vshrl.u32 %v3901, 16
      %v4027 = vrot.slane %v4025, 4
      %v4028 = vor.u32 %v4027, %v4023
      %v4029 = vrot.slane %v4028, 4
      %v4031 = vshll.u32 %v3902, 16
      %v4033 = vrot.slane %v4031, 5
      %v4034 = vsel %vm1084, %v4029, %v4033
      %v4036 = vshrl.u32 %v3903, 16
      %v4038 = vrot.slane %v4036, 4
      %v4039 = vshll.u32 %v3903, 16
      %v4041 = vrot.slane %v4039, 5
      %v4042 = vor.u32 %v4038, %v4041
      %v4043 = vrot.slane %v4042, 4
      %v4045 = vshll.u32 %v3904, 16
      %v4047 = vrot.slane %v4045, 5
      %v4048 = vsel %vm1084, %v4043, %v4047
      %v4049 = vshrl.u32 %v3904, 16
      %v4051 = vrot.slane %v4049, 4
      %v4052 = vor.u32 %v4051, %v4047
      %v4053 = vrot.slane %v4052, 4
      %v4055 = vshll.u32 %v3905, 16
      %v4057 = vrot.slane %v4055, 5
      %v4058 = vsel %vm1084, %v4053, %v4057
      %v4060 = vshrl.u32 %v3906, 16
      %v4062 = vrot.slane %v4060, 4
      %v4063 = vshll.u32 %v3906, 16
      %v4065 = vrot.slane %v4063, 5
      %v4066 = vor.u32 %v4062, %v4065
      %v4067 = vrot.slane %v4066, 4
      %v4069 = vshll.u32 %v3907, 16
      %v4071 = vrot.slane %v4069, 5
      %v4072 = vsel %vm1084, %v4067, %v4071
      %v4073 = vshrl.u32 %v3907, 16
      %v4075 = vrot.slane %v4073, 4
      %v4076 = vor.u32 %v4075, %v4071
      %v4077 = vrot.slane %v4076, 4
      %v4079 = vshll.u32 %v3908, 16
      %v4081 = vrot.slane %v4079, 5
      %v4082 = vsel %vm1084, %v4077, %v4081
      %v4084 = vshrl.u32 %v3909, 16
      %v4086 = vrot.slane %v4084, 4
      %v4087 = vshll.u32 %v3909, 16
      %v4089 = vrot.slane %v4087, 5
      %v4090 = vor.u32 %v4086, %v4089
      %v4091 = vrot.slane %v4090, 4
      %v4093 = vshll.u32 %v3910, 16
      %v4095 = vrot.slane %v4093, 5
      %v4096 = vsel %vm1084, %v4091, %v4095
      %v4097 = vshrl.u32 %v3910, 16
      %v4099 = vrot.slane %v4097, 4
      %v4100 = vor.u32 %v4099, %v4095
      %v4101 = vrot.slane %v4100, 4
      %v4103 = vshll.u32 %v3911, 16
      %v4105 = vrot.slane %v4103, 5
      %v4106 = vsel %vm1084, %v4101, %v4105
      %v4108 = vshrl.u32 %v3912, 16
      %v4110 = vrot.slane %v4108, 4
      %v4111 = vshll.u32 %v3912, 16
      %v4113 = vrot.slane %v4111, 5
      %v4114 = vor.u32 %v4110, %v4113
      %v4115 = vrot.slane %v4114, 4
      %v4117 = vshll.u32 %v3913, 16
      %v4119 = vrot.slane %v4117, 5
      %v4120 = vsel %vm1084, %v4115, %v4119
      %v4121 = vshrl.u32 %v3913, 16
      %v4123 = vrot.slane %v4121, 4
      %v4124 = vor.u32 %v4123, %v4119
      %v4125 = vrot.slane %v4124, 4
      %v4127 = vshll.u32 %v3914, 16
      %v4129 = vrot.slane %v4127, 5
      %v4130 = vsel %vm1084, %v4125, %v4129
      %v4132 = vshrl.u32 %v3915, 16
      %v4134 = vrot.slane %v4132, 4
      %v4135 = vshll.u32 %v3915, 16
      %v4137 = vrot.slane %v4135, 5
      %v4138 = vor.u32 %v4134, %v4137
      %v4139 = vrot.slane %v4138, 4
      %v4141 = vshll.u32 %v3916, 16
      %v4143 = vrot.slane %v4141, 5
      %v4144 = vsel %vm1084, %v4139, %v4143
      %v4145 = vshrl.u32 %v3916, 16
      %v4147 = vrot.slane %v4145, 4
      %v4148 = vor.u32 %v4147, %v4143
      %v4149 = vrot.slane %v4148, 4
      %v4151 = vshll.u32 %v3917, 16
      %v4153 = vrot.slane %v4151, 5
      %v4154 = vsel %vm1084, %v4149, %v4153
      %v4156 = vshrl.u32 %v3918, 16
      %v4158 = vrot.slane %v4156, 4
      %v4159 = vshll.u32 %v3918, 16
      %v4161 = vrot.slane %v4159, 5
      %v4162 = vor.u32 %v4158, %v4161
      %v4163 = vrot.slane %v4162, 4
      %v4165 = vshll.u32 %v3919, 16
      %v4167 = vrot.slane %v4165, 5
      %v4168 = vsel %vm1084, %v4163, %v4167
      %v4169 = vshrl.u32 %v3919, 16
      %v4171 = vrot.slane %v4169, 4
      %v4172 = vor.u32 %v4171, %v4167
      %v4173 = vrot.slane %v4172, 4
      %v4175 = vshll.u32 %v3920, 16
      %v4177 = vrot.slane %v4175, 5
      %v4178 = vsel %vm1084, %v4173, %v4177
      %v4180 = vshrl.u32 %v3921, 16
      %v4182 = vrot.slane %v4180, 4
      %v4183 = vshll.u32 %v3921, 16
      %v4185 = vrot.slane %v4183, 5
      %v4186 = vor.u32 %v4182, %v4185
      %v4187 = vrot.slane %v4186, 4
      %v4189 = vshll.u32 %v3922, 16
      %v4191 = vrot.slane %v4189, 5
      %v4192 = vsel %vm1084, %v4187, %v4191
      %v4193 = vshrl.u32 %v3922, 16
      %v4195 = vrot.slane %v4193, 4
      %v4196 = vor.u32 %v4195, %v4191
      %v4197 = vrot.slane %v4196, 4
      %v4199 = vshll.u32 %v3923, 16
      %v4201 = vrot.slane %v4199, 5
      %v4202 = vsel %vm1084, %v4197, %v4201
      %v4204 = vshrl.u32 %v3924, 16
      %v4206 = vrot.slane %v4204, 4
      %v4207 = vshll.u32 %v3924, 16
      %v4209 = vrot.slane %v4207, 5
      %v4210 = vor.u32 %v4206, %v4209
      %v4211 = vrot.slane %v4210, 4
      %v4213 = vshll.u32 %v3925, 16
      %v4215 = vrot.slane %v4213, 5
      %v4216 = vsel %vm1084, %v4211, %v4215
      %v4217 = vshrl.u32 %v3925, 16
      %v4219 = vrot.slane %v4217, 4
      %v4220 = vor.u32 %v4219, %v4215
      %v4221 = vrot.slane %v4220, 4
      %v4223 = vshll.u32 %v3926, 16
      %v4225 = vrot.slane %v4223, 5
      %v4226 = vsel %vm1084, %v4221, %v4225
      %v4228 = vshrl.u32 %v3927, 16
      %v4230 = vrot.slane %v4228, 4
      %v4231 = vshll.u32 %v3927, 16
      %v4233 = vrot.slane %v4231, 5
      %v4234 = vor.u32 %v4230, %v4233
      %v4235 = vrot.slane %v4234, 4
      %v4237 = vshll.u32 %v3928, 16
      %v4239 = vrot.slane %v4237, 5
      %v4240 = vsel %vm1084, %v4235, %v4239
      %v4241 = vshrl.u32 %v3928, 16
      %v4243 = vrot.slane %v4241, 4
      %v4244 = vor.u32 %v4243, %v4239
      %v4245 = vrot.slane %v4244, 4
      %v4247 = vshll.u32 %v3929, 16
      %v4249 = vrot.slane %v4247, 5
      %v4250 = vsel %vm1084, %v4245, %v4249
      %v4252 = vshrl.u32 %v3930, 16
      %v4254 = vrot.slane %v4252, 4
      %v4255 = vshll.u32 %v3930, 16
      %v4257 = vrot.slane %v4255, 5
      %v4258 = vor.u32 %v4254, %v4257
      %v4259 = vrot.slane %v4258, 4
      %v4261 = vshll.u32 %v3931, 16
      %v4263 = vrot.slane %v4261, 5
      %v4264 = vsel %vm1084, %v4259, %v4263
      %v4265 = vshrl.u32 %v3931, 16
      %v4267 = vrot.slane %v4265, 4
      %v4268 = vor.u32 %v4267, %v4263
      %v4269 = vrot.slane %v4268, 4
      %v4271 = vshll.u32 %v3932, 16
      %v4273 = vrot.slane %v4271, 5
      %v4274 = vsel %vm1084, %v4269, %v4273
      %v4276 = vshrl.u32 %v3933, 16
      %v4278 = vrot.slane %v4276, 4
      %v4279 = vshll.u32 %v3933, 16
      %v4281 = vrot.slane %v4279, 5
      %v4282 = vor.u32 %v4278, %v4281
      %v4283 = vrot.slane %v4282, 4
      %v4285 = vshll.u32 %v3934, 16
      %v4287 = vrot.slane %v4285, 5
      %v4288 = vsel %vm1084, %v4283, %v4287
      %v4289 = vshrl.u32 %v3934, 16
      %v4291 = vrot.slane %v4289, 4
      %v4292 = vor.u32 %v4291, %v4287
      %v4293 = vrot.slane %v4292, 4
      %v4295 = vshll.u32 %v3935, 16
      %v4297 = vrot.slane %v4295, 5
      %v4298 = vsel %vm1084, %v4293, %v4297
      %v4300 = vshrl.u32 %v3936, 16
      %v4302 = vrot.slane %v4300, 4
      %v4303 = vshll.u32 %v3936, 16
      %v4305 = vrot.slane %v4303, 5
      %v4306 = vor.u32 %v4302, %v4305
      %v4307 = vrot.slane %v4306, 4
      %v4309 = vshll.u32 %v3937, 16
      %v4311 = vrot.slane %v4309, 5
      %v4312 = vsel %vm1084, %v4307, %v4311
      %v4313 = vshrl.u32 %v3937, 16
      %v4315 = vrot.slane %v4313, 4
      %v4316 = vor.u32 %v4315, %v4311
      %v4317 = vrot.slane %v4316, 4
      %v4319 = vshll.u32 %v3938, 16
      %v4321 = vrot.slane %v4319, 5
      %v4322 = vsel %vm1084, %v4317, %v4321
      %s4323 = scalar_lea.vmem %s3, 14
      %v4324 = vld [vmem:[%s4323] sm:$0x3]
      %v4325 = vunpack.c.l.b16 %v3952
      %v4326 = vunpack.c.l.b16 %v3962
      %v4327 = vunpack.c.l.b16 %v3976
      %v4328 = vunpack.c.l.b16 %v3986
      %v4329 = vunpack.c.l.b16 %v4000
      %v4330 = vunpack.c.l.b16 %v4010
      %v4331 = vunpack.c.l.b16 %v4024
      %v4332 = vunpack.c.l.b16 %v4034
      %v4333 = vunpack.c.l.b16 %v4048
      %v4334 = vunpack.c.l.b16 %v4058
      %v4335 = vunpack.c.l.b16 %v4072
      %v4336 = vunpack.c.l.b16 %v4082
      %v4337 = vunpack.c.l.b16 %v4096
      %v4338 = vunpack.c.l.b16 %v4106
      %v4339 = vunpack.c.l.b16 %v4120
      %v4340 = vunpack.c.l.b16 %v4130
      %v4341 = vunpack.c.l.b16 %v4144
      %v4342 = vunpack.c.l.b16 %v4154
      %v4343 = vunpack.c.l.b16 %v4168
      %v4344 = vunpack.c.l.b16 %v4178
      %v4345 = vunpack.c.l.b16 %v4192
      %v4346 = vunpack.c.l.b16 %v4202
      %v4347 = vunpack.c.l.b16 %v4216
      %v4348 = vunpack.c.l.b16 %v4226
      %v4349 = vunpack.c.l.b16 %v4240
      %v4350 = vunpack.c.l.b16 %v4250
      %v4351 = vunpack.c.l.b16 %v4264
      %v4352 = vunpack.c.l.b16 %v4274
      %v4353 = vunpack.c.l.b16 %v4288
      %v4354 = vunpack.c.l.b16 %v4298
      %v4355 = vunpack.c.l.b16 %v4312
      %v4356 = vunpack.c.l.b16 %v4322
      %v4357 = vpack.c.b16 %v4326, %v4325
      %v4358 = vpack.c.b16 %v4328, %v4327
      %v4359 = vpack.c.b16 %v4330, %v4329
      %v4360 = vpack.c.b16 %v4332, %v4331
      %v4361 = vpack.c.b16 %v4334, %v4333
      %v4362 = vpack.c.b16 %v4336, %v4335
      %v4363 = vpack.c.b16 %v4338, %v4337
      %v4364 = vpack.c.b16 %v4340, %v4339
      %v4365 = vpack.c.b16 %v4342, %v4341
      %v4366 = vpack.c.b16 %v4344, %v4343
      %v4367 = vpack.c.b16 %v4346, %v4345
      %v4368 = vpack.c.b16 %v4348, %v4347
      %v4369 = vpack.c.b16 %v4350, %v4349
      %v4370 = vpack.c.b16 %v4352, %v4351
      %v4371 = vpack.c.b16 %v4354, %v4353
      %v4372 = vpack.c.b16 %v4356, %v4355
      %v4374 = vsel %vm1519, %v4357, 0
      %v4377 = vsel %vm1519, %v4358, 0
      %v4380 = vsel %vm1519, %v4359, 0
      %v4383 = vsel %vm1519, %v4360, 0
      %v4386 = vsel %vm1519, %v4361, 0
      %v4389 = vsel %vm1519, %v4362, 0
      %v4392 = vsel %vm1519, %v4363, 0
      %v4395 = vsel %vm1519, %v4364, 0
      %v4398 = vsel %vm1519, %v4365, 0
      %v4401 = vsel %vm1519, %v4366, 0
      %v4404 = vsel %vm1519, %v4367, 0
      %v4407 = vsel %vm1519, %v4368, 0
      %v4410 = vsel %vm1519, %v4369, 0
      %v4413 = vsel %vm1519, %v4370, 0
      %v4416 = vsel %vm1519, %v4371, 0
      %v4419 = vsel %vm1519, %v4372, 0
      %v4422 = vsel %vm1568, %v4324, 0
      %4424 = vmatpush.bf16.msra.mxu0 0
      %4425 = vmatpush.bf16.msra.mxu0 0
      %4426 = vmatpush.bf16.msra.mxu0 0
      %4427 = vmatpush.bf16.msra.mxu0 0
      %4428 = vmatpush.bf16.msra.mxu0 0
      %4429 = vmatpush.bf16.msra.mxu0 0
      %4430 = vmatpush.bf16.msra.mxu0 0
      %4431 = vmatpush.bf16.msra.mxu0 %v4422
      %4432 = vmatmul.bf16.gmra.mxu0 %v4374
      %v4433 = vpop.f32.mrf.mxu0
      %v4434 = vadd.f32 0.0, %v4433
      %v4435 = vpop.f32.mrf.mxu0
      %v4436 = vadd.f32 0.0, %v4435
      %4437 = vmatmul.bf16.gmra.mxu0 %v4377
      %v4438 = vpop.f32.mrf.mxu0
      %v4439 = vadd.f32 0.0, %v4438
      %v4440 = vpop.f32.mrf.mxu0
      %v4441 = vadd.f32 0.0, %v4440
      %4442 = vmatmul.bf16.gmra.mxu0 %v4380
      %v4443 = vpop.f32.mrf.mxu0
      %v4444 = vadd.f32 0.0, %v4443
      %v4445 = vpop.f32.mrf.mxu0
      %v4446 = vadd.f32 0.0, %v4445
      %4447 = vmatmul.bf16.gmra.mxu0 %v4383
      %v4448 = vpop.f32.mrf.mxu0
      %v4449 = vadd.f32 0.0, %v4448
      %v4450 = vpop.f32.mrf.mxu0
      %v4451 = vadd.f32 0.0, %v4450
      %4452 = vmatmul.bf16.gmra.mxu0 %v4386
      %v4453 = vpop.f32.mrf.mxu0
      %v4454 = vadd.f32 0.0, %v4453
      %v4455 = vpop.f32.mrf.mxu0
      %v4456 = vadd.f32 0.0, %v4455
      %4457 = vmatmul.bf16.gmra.mxu0 %v4389
      %v4458 = vpop.f32.mrf.mxu0
      %v4459 = vadd.f32 0.0, %v4458
      %v4460 = vpop.f32.mrf.mxu0
      %v4461 = vadd.f32 0.0, %v4460
      %4462 = vmatmul.bf16.gmra.mxu0 %v4392
      %v4463 = vpop.f32.mrf.mxu0
      %v4464 = vadd.f32 0.0, %v4463
      %v4465 = vpop.f32.mrf.mxu0
      %v4466 = vadd.f32 0.0, %v4465
      %4467 = vmatmul.bf16.gmra.mxu0 %v4395
      %v4468 = vpop.f32.mrf.mxu0
      %v4469 = vadd.f32 0.0, %v4468
      %v4470 = vpop.f32.mrf.mxu0
      %v4471 = vadd.f32 0.0, %v4470
      %4472 = vmatmul.bf16.gmra.mxu0 %v4398
      %v4473 = vpop.f32.mrf.mxu0
      %v4474 = vadd.f32 0.0, %v4473
      %v4475 = vpop.f32.mrf.mxu0
      %v4476 = vadd.f32 0.0, %v4475
      %4477 = vmatmul.bf16.gmra.mxu0 %v4401
      %v4478 = vpop.f32.mrf.mxu0
      %v4479 = vadd.f32 0.0, %v4478
      %v4480 = vpop.f32.mrf.mxu0
      %v4481 = vadd.f32 0.0, %v4480
      %4482 = vmatmul.bf16.gmra.mxu0 %v4404
      %v4483 = vpop.f32.mrf.mxu0
      %v4484 = vadd.f32 0.0, %v4483
      %v4485 = vpop.f32.mrf.mxu0
      %v4486 = vadd.f32 0.0, %v4485
      %4487 = vmatmul.bf16.gmra.mxu0 %v4407
      %v4488 = vpop.f32.mrf.mxu0
      %v4489 = vadd.f32 0.0, %v4488
      %v4490 = vpop.f32.mrf.mxu0
      %v4491 = vadd.f32 0.0, %v4490
      %4492 = vmatmul.bf16.gmra.mxu0 %v4410
      %v4493 = vpop.f32.mrf.mxu0
      %v4494 = vadd.f32 0.0, %v4493
      %v4495 = vpop.f32.mrf.mxu0
      %v4496 = vadd.f32 0.0, %v4495
      %4497 = vmatmul.bf16.gmra.mxu0 %v4413
      %v4498 = vpop.f32.mrf.mxu0
      %v4499 = vadd.f32 0.0, %v4498
      %v4500 = vpop.f32.mrf.mxu0
      %v4501 = vadd.f32 0.0, %v4500
      %4502 = vmatmul.bf16.gmra.mxu0 %v4416
      %v4503 = vpop.f32.mrf.mxu0
      %v4504 = vadd.f32 0.0, %v4503
      %v4505 = vpop.f32.mrf.mxu0
      %v4506 = vadd.f32 0.0, %v4505
      %4507 = vmatmul.bf16.gmra.mxu0 %v4419
      %v4508 = vpop.f32.mrf.mxu0
      %v4509 = vadd.f32 0.0, %v4508
      %v4510 = vpop.f32.mrf.mxu0
      %v4511 = vadd.f32 0.0, %v4510
      %4512 = vdwg.mxu0
      %v4513 = vadd.f32 %v3859, %v4434
      %v4514 = vadd.f32 %v3860, %v4436
      %v4515 = vadd.f32 %v3861, %v4439
      %v4516 = vadd.f32 %v3862, %v4441
      %v4517 = vadd.f32 %v3863, %v4444
      %v4518 = vadd.f32 %v3864, %v4446
      %v4519 = vadd.f32 %v3865, %v4449
      %v4520 = vadd.f32 %v3866, %v4451
      %v4521 = vadd.f32 %v3867, %v4454
      %v4522 = vadd.f32 %v3868, %v4456
      %v4523 = vadd.f32 %v3869, %v4459
      %v4524 = vadd.f32 %v3870, %v4461
      %v4525 = vadd.f32 %v3871, %v4464
      %v4526 = vadd.f32 %v3872, %v4466
      %v4527 = vadd.f32 %v3873, %v4469
      %v4528 = vadd.f32 %v3874, %v4471
      %v4529 = vadd.f32 %v3875, %v4474
      %v4530 = vadd.f32 %v3876, %v4476
      %v4531 = vadd.f32 %v3877, %v4479
      %v4532 = vadd.f32 %v3878, %v4481
      %v4533 = vadd.f32 %v3879, %v4484
      %v4534 = vadd.f32 %v3880, %v4486
      %v4535 = vadd.f32 %v3881, %v4489
      %v4536 = vadd.f32 %v3882, %v4491
      %v4537 = vadd.f32 %v3883, %v4494
      %v4538 = vadd.f32 %v3884, %v4496
      %v4539 = vadd.f32 %v3885, %v4499
      %v4540 = vadd.f32 %v3886, %v4501
      %v4541 = vadd.f32 %v3887, %v4504
      %v4542 = vadd.f32 %v3888, %v4506
      %v4543 = vadd.f32 %v3889, %v4509
      %v4544 = vadd.f32 %v3890, %v4511
      %v4545 = vld [vmem:[%s3604] sm:$0xe]
      %v4546 = vld [vmem:[%s3604 + $0xc] sm:$0xe]
      %v4547 = vld [vmem:[%s3604 + $0x18] sm:$0xe]
      %v4548 = vld [vmem:[%s3604 + $0x24] sm:$0xe]
      %v4549 = vld [vmem:[%s3604 + $0x30] sm:$0xe]
      %v4550 = vld [vmem:[%s3604 + $0x3c] sm:$0xe]
      %v4551 = vld [vmem:[%s3604 + $0x48] sm:$0xe]
      %v4552 = vld [vmem:[%s3604 + $0x54] sm:$0xe]
      %v4553 = vld [vmem:[%s3604 + $0x60] sm:$0xe]
      %v4554 = vld [vmem:[%s3604 + $0x6c] sm:$0xe]
      %v4555 = vld [vmem:[%s3604 + $0x78] sm:$0xe]
      %v4556 = vld [vmem:[%s3604 + $0x84] sm:$0xe]
      %v4557 = vld [vmem:[%s3604 + $0x90] sm:$0xe]
      %v4558 = vld [vmem:[%s3604 + $0x9c] sm:$0xe]
      %v4559 = vld [vmem:[%s3604 + $0xa8] sm:$0xe]
      %v4560 = vld [vmem:[%s3604 + $0xb4] sm:$0xe]
      %v4609 = vrot.slane %v4545, 5
      %v4610 = vrot.slane %v4609, 4
      %v4611 = vrot.slane %v3892, 5
      %v4612 = vsel %vm1931, %v4610, %v4611
      %v4613 = vrot.slane %v4611, 4
      %v4614 = vrot.slane %v3893, 5
      %v4615 = vsel %vm1931, %v4613, %v4614
      %v4616 = vrot.slane %v4546, 5
      %v4617 = vrot.slane %v4616, 4
      %v4618 = vrot.slane %v3895, 5
      %v4619 = vsel %vm1931, %v4617, %v4618
      %v4620 = vrot.slane %v4618, 4
      %v4621 = vrot.slane %v3896, 5
      %v4622 = vsel %vm1931, %v4620, %v4621
      %v4623 = vrot.slane %v4547, 5
      %v4624 = vrot.slane %v4623, 4
      %v4625 = vrot.slane %v3898, 5
      %v4626 = vsel %vm1931, %v4624, %v4625
      %v4627 = vrot.slane %v4625, 4
      %v4628 = vrot.slane %v3899, 5
      %v4629 = vsel %vm1931, %v4627, %v4628
      %v4630 = vrot.slane %v4548, 5
      %v4631 = vrot.slane %v4630, 4
      %v4632 = vrot.slane %v3901, 5
      %v4633 = vsel %vm1931, %v4631, %v4632
      %v4634 = vrot.slane %v4632, 4
      %v4635 = vrot.slane %v3902, 5
      %v4636 = vsel %vm1931, %v4634, %v4635
      %v4637 = vrot.slane %v4549, 5
      %v4638 = vrot.slane %v4637, 4
      %v4639 = vrot.slane %v3904, 5
      %v4640 = vsel %vm1931, %v4638, %v4639
      %v4641 = vrot.slane %v4639, 4
      %v4642 = vrot.slane %v3905, 5
      %v4643 = vsel %vm1931, %v4641, %v4642
      %v4644 = vrot.slane %v4550, 5
      %v4645 = vrot.slane %v4644, 4
      %v4646 = vrot.slane %v3907, 5
      %v4647 = vsel %vm1931, %v4645, %v4646
      %v4648 = vrot.slane %v4646, 4
      %v4649 = vrot.slane %v3908, 5
      %v4650 = vsel %vm1931, %v4648, %v4649
      %v4651 = vrot.slane %v4551, 5
      %v4652 = vrot.slane %v4651, 4
      %v4653 = vrot.slane %v3910, 5
      %v4654 = vsel %vm1931, %v4652, %v4653
      %v4655 = vrot.slane %v4653, 4
      %v4656 = vrot.slane %v3911, 5
      %v4657 = vsel %vm1931, %v4655, %v4656
      %v4658 = vrot.slane %v4552, 5
      %v4659 = vrot.slane %v4658, 4
      %v4660 = vrot.slane %v3913, 5
      %v4661 = vsel %vm1931, %v4659, %v4660
      %v4662 = vrot.slane %v4660, 4
      %v4663 = vrot.slane %v3914, 5
      %v4664 = vsel %vm1931, %v4662, %v4663
      %v4665 = vrot.slane %v4553, 5
      %v4666 = vrot.slane %v4665, 4
      %v4667 = vrot.slane %v3916, 5
      %v4668 = vsel %vm1931, %v4666, %v4667
      %v4669 = vrot.slane %v4667, 4
      %v4670 = vrot.slane %v3917, 5
      %v4671 = vsel %vm1931, %v4669, %v4670
      %v4672 = vrot.slane %v4554, 5
      %v4673 = vrot.slane %v4672, 4
      %v4674 = vrot.slane %v3919, 5
      %v4675 = vsel %vm1931, %v4673, %v4674
      %v4676 = vrot.slane %v4674, 4
      %v4677 = vrot.slane %v3920, 5
      %v4678 = vsel %vm1931, %v4676, %v4677
      %v4679 = vrot.slane %v4555, 5
      %v4680 = vrot.slane %v4679, 4
      %v4681 = vrot.slane %v3922, 5
      %v4682 = vsel %vm1931, %v4680, %v4681
      %v4683 = vrot.slane %v4681, 4
      %v4684 = vrot.slane %v3923, 5
      %v4685 = vsel %vm1931, %v4683, %v4684
      %v4686 = vrot.slane %v4556, 5
      %v4687 = vrot.slane %v4686, 4
      %v4688 = vrot.slane %v3925, 5
      %v4689 = vsel %vm1931, %v4687, %v4688
      %v4690 = vrot.slane %v4688, 4
      %v4691 = vrot.slane %v3926, 5
      %v4692 = vsel %vm1931, %v4690, %v4691
      %v4693 = vrot.slane %v4557, 5
      %v4694 = vrot.slane %v4693, 4
      %v4695 = vrot.slane %v3928, 5
      %v4696 = vsel %vm1931, %v4694, %v4695
      %v4697 = vrot.slane %v4695, 4
      %v4698 = vrot.slane %v3929, 5
      %v4699 = vsel %vm1931, %v4697, %v4698
      %v4700 = vrot.slane %v4558, 5
      %v4701 = vrot.slane %v4700, 4
      %v4702 = vrot.slane %v3931, 5
      %v4703 = vsel %vm1931, %v4701, %v4702
      %v4704 = vrot.slane %v4702, 4
      %v4705 = vrot.slane %v3932, 5
      %v4706 = vsel %vm1931, %v4704, %v4705
      %v4707 = vrot.slane %v4559, 5
      %v4708 = vrot.slane %v4707, 4
      %v4709 = vrot.slane %v3934, 5
      %v4710 = vsel %vm1931, %v4708, %v4709
      %v4711 = vrot.slane %v4709, 4
      %v4712 = vrot.slane %v3935, 5
      %v4713 = vsel %vm1931, %v4711, %v4712
      %v4714 = vrot.slane %v4560, 5
      %v4715 = vrot.slane %v4714, 4
      %v4716 = vrot.slane %v3937, 5
      %v4717 = vsel %vm1931, %v4715, %v4716
      %v4718 = vrot.slane %v4716, 4
      %v4719 = vrot.slane %v3938, 5
      %v4720 = vsel %vm1931, %v4718, %v4719
      %s4721 = scalar_lea.vmem %s3, 16
      %v4722 = vld [vmem:[%s4721] sm:$0x3]
      %v4723 = vunpack.c.l.b16 %v4612
      %v4724 = vunpack.c.l.b16 %v4615
      %v4725 = vunpack.c.l.b16 %v4619
      %v4726 = vunpack.c.l.b16 %v4622
      %v4727 = vunpack.c.l.b16 %v4626
      %v4728 = vunpack.c.l.b16 %v4629
      %v4729 = vunpack.c.l.b16 %v4633
      %v4730 = vunpack.c.l.b16 %v4636
      %v4731 = vunpack.c.l.b16 %v4640
      %v4732 = vunpack.c.l.b16 %v4643
      %v4733 = vunpack.c.l.b16 %v4647
      %v4734 = vunpack.c.l.b16 %v4650
      %v4735 = vunpack.c.l.b16 %v4654
      %v4736 = vunpack.c.l.b16 %v4657
      %v4737 = vunpack.c.l.b16 %v4661
      %v4738 = vunpack.c.l.b16 %v4664
      %v4739 = vunpack.c.l.b16 %v4668
      %v4740 = vunpack.c.l.b16 %v4671
      %v4741 = vunpack.c.l.b16 %v4675
      %v4742 = vunpack.c.l.b16 %v4678
      %v4743 = vunpack.c.l.b16 %v4682
      %v4744 = vunpack.c.l.b16 %v4685
      %v4745 = vunpack.c.l.b16 %v4689
      %v4746 = vunpack.c.l.b16 %v4692
      %v4747 = vunpack.c.l.b16 %v4696
      %v4748 = vunpack.c.l.b16 %v4699
      %v4749 = vunpack.c.l.b16 %v4703
      %v4750 = vunpack.c.l.b16 %v4706
      %v4751 = vunpack.c.l.b16 %v4710
      %v4752 = vunpack.c.l.b16 %v4713
      %v4753 = vunpack.c.l.b16 %v4717
      %v4754 = vunpack.c.l.b16 %v4720
      %v4755 = vpack.c.b16 %v4724, %v4723
      %v4756 = vpack.c.b16 %v4726, %v4725
      %v4757 = vpack.c.b16 %v4728, %v4727
      %v4758 = vpack.c.b16 %v4730, %v4729
      %v4759 = vpack.c.b16 %v4732, %v4731
      %v4760 = vpack.c.b16 %v4734, %v4733
      %v4761 = vpack.c.b16 %v4736, %v4735
      %v4762 = vpack.c.b16 %v4738, %v4737
      %v4763 = vpack.c.b16 %v4740, %v4739
      %v4764 = vpack.c.b16 %v4742, %v4741
      %v4765 = vpack.c.b16 %v4744, %v4743
      %v4766 = vpack.c.b16 %v4746, %v4745
      %v4767 = vpack.c.b16 %v4748, %v4747
      %v4768 = vpack.c.b16 %v4750, %v4749
      %v4769 = vpack.c.b16 %v4752, %v4751
      %v4770 = vpack.c.b16 %v4754, %v4753
      %v4772 = vsel %vm1519, %v4755, 0
      %v4775 = vsel %vm1519, %v4756, 0
      %v4778 = vsel %vm1519, %v4757, 0
      %v4781 = vsel %vm1519, %v4758, 0
      %v4784 = vsel %vm1519, %v4759, 0
      %v4787 = vsel %vm1519, %v4760, 0
      %v4790 = vsel %vm1519, %v4761, 0
      %v4793 = vsel %vm1519, %v4762, 0
      %v4796 = vsel %vm1519, %v4763, 0
      %v4799 = vsel %vm1519, %v4764, 0
      %v4802 = vsel %vm1519, %v4765, 0
      %v4805 = vsel %vm1519, %v4766, 0
      %v4808 = vsel %vm1519, %v4767, 0
      %v4811 = vsel %vm1519, %v4768, 0
      %v4814 = vsel %vm1519, %v4769, 0
      %v4817 = vsel %vm1519, %v4770, 0
      %v4820 = vsel %vm1568, %v4722, 0
      %4822 = vmatpush.bf16.msra.mxu0 0
      %4823 = vmatpush.bf16.msra.mxu0 0
      %4824 = vmatpush.bf16.msra.mxu0 0
      %4825 = vmatpush.bf16.msra.mxu0 0
      %4826 = vmatpush.bf16.msra.mxu0 0
      %4827 = vmatpush.bf16.msra.mxu0 0
      %4828 = vmatpush.bf16.msra.mxu0 0
      %4829 = vmatpush.bf16.msra.mxu0 %v4820
      %4830 = vmatmul.bf16.gmra.mxu0 %v4772
      %v4831 = vpop.f32.mrf.mxu0
      %v4832 = vadd.f32 0.0, %v4831
      %v4833 = vpop.f32.mrf.mxu0
      %v4834 = vadd.f32 0.0, %v4833
      %4835 = vmatmul.bf16.gmra.mxu0 %v4775
      %v4836 = vpop.f32.mrf.mxu0
      %v4837 = vadd.f32 0.0, %v4836
      %v4838 = vpop.f32.mrf.mxu0
      %v4839 = vadd.f32 0.0, %v4838
      %4840 = vmatmul.bf16.gmra.mxu0 %v4778
      %v4841 = vpop.f32.mrf.mxu0
      %v4842 = vadd.f32 0.0, %v4841
      %v4843 = vpop.f32.mrf.mxu0
      %v4844 = vadd.f32 0.0, %v4843
      %4845 = vmatmul.bf16.gmra.mxu0 %v4781
      %v4846 = vpop.f32.mrf.mxu0
      %v4847 = vadd.f32 0.0, %v4846
      %v4848 = vpop.f32.mrf.mxu0
      %v4849 = vadd.f32 0.0, %v4848
      %4850 = vmatmul.bf16.gmra.mxu0 %v4784
      %v4851 = vpop.f32.mrf.mxu0
      %v4852 = vadd.f32 0.0, %v4851
      %v4853 = vpop.f32.mrf.mxu0
      %v4854 = vadd.f32 0.0, %v4853
      %4855 = vmatmul.bf16.gmra.mxu0 %v4787
      %v4856 = vpop.f32.mrf.mxu0
      %v4857 = vadd.f32 0.0, %v4856
      %v4858 = vpop.f32.mrf.mxu0
      %v4859 = vadd.f32 0.0, %v4858
      %4860 = vmatmul.bf16.gmra.mxu0 %v4790
      %v4861 = vpop.f32.mrf.mxu0
      %v4862 = vadd.f32 0.0, %v4861
      %v4863 = vpop.f32.mrf.mxu0
      %v4864 = vadd.f32 0.0, %v4863
      %4865 = vmatmul.bf16.gmra.mxu0 %v4793
      %v4866 = vpop.f32.mrf.mxu0
      %v4867 = vadd.f32 0.0, %v4866
      %v4868 = vpop.f32.mrf.mxu0
      %v4869 = vadd.f32 0.0, %v4868
      %4870 = vmatmul.bf16.gmra.mxu0 %v4796
      %v4871 = vpop.f32.mrf.mxu0
      %v4872 = vadd.f32 0.0, %v4871
      %v4873 = vpop.f32.mrf.mxu0
      %v4874 = vadd.f32 0.0, %v4873
      %4875 = vmatmul.bf16.gmra.mxu0 %v4799
      %v4876 = vpop.f32.mrf.mxu0
      %v4877 = vadd.f32 0.0, %v4876
      %v4878 = vpop.f32.mrf.mxu0
      %v4879 = vadd.f32 0.0, %v4878
      %4880 = vmatmul.bf16.gmra.mxu0 %v4802
      %v4881 = vpop.f32.mrf.mxu0
      %v4882 = vadd.f32 0.0, %v4881
      %v4883 = vpop.f32.mrf.mxu0
      %v4884 = vadd.f32 0.0, %v4883
      %4885 = vmatmul.bf16.gmra.mxu0 %v4805
      %v4886 = vpop.f32.mrf.mxu0
      %v4887 = vadd.f32 0.0, %v4886
      %v4888 = vpop.f32.mrf.mxu0
      %v4889 = vadd.f32 0.0, %v4888
      %4890 = vmatmul.bf16.gmra.mxu0 %v4808
      %v4891 = vpop.f32.mrf.mxu0
      %v4892 = vadd.f32 0.0, %v4891
      %v4893 = vpop.f32.mrf.mxu0
      %v4894 = vadd.f32 0.0, %v4893
      %4895 = vmatmul.bf16.gmra.mxu0 %v4811
      %v4896 = vpop.f32.mrf.mxu0
      %v4897 = vadd.f32 0.0, %v4896
      %v4898 = vpop.f32.mrf.mxu0
      %v4899 = vadd.f32 0.0, %v4898
      %4900 = vmatmul.bf16.gmra.mxu0 %v4814
      %v4901 = vpop.f32.mrf.mxu0
      %v4902 = vadd.f32 0.0, %v4901
      %v4903 = vpop.f32.mrf.mxu0
      %v4904 = vadd.f32 0.0, %v4903
      %4905 = vmatmul.bf16.gmra.mxu0 %v4817
      %v4906 = vpop.f32.mrf.mxu0
      %v4907 = vadd.f32 0.0, %v4906
      %v4908 = vpop.f32.mrf.mxu0
      %v4909 = vadd.f32 0.0, %v4908
      %4910 = vdwg.mxu0
      %v4911 = vadd.f32 %v4513, %v4832
      %v4912 = vadd.f32 %v4514, %v4834
      %v4913 = vadd.f32 %v4515, %v4837
      %v4914 = vadd.f32 %v4516, %v4839
      %v4915 = vadd.f32 %v4517, %v4842
      %v4916 = vadd.f32 %v4518, %v4844
      %v4917 = vadd.f32 %v4519, %v4847
      %v4918 = vadd.f32 %v4520, %v4849
      %v4919 = vadd.f32 %v4521, %v4852
      %v4920 = vadd.f32 %v4522, %v4854
      %v4921 = vadd.f32 %v4523, %v4857
      %v4922 = vadd.f32 %v4524, %v4859
      %v4923 = vadd.f32 %v4525, %v4862
      %v4924 = vadd.f32 %v4526, %v4864
      %v4925 = vadd.f32 %v4527, %v4867
      %v4926 = vadd.f32 %v4528, %v4869
      %v4927 = vadd.f32 %v4529, %v4872
      %v4928 = vadd.f32 %v4530, %v4874
      %v4929 = vadd.f32 %v4531, %v4877
      %v4930 = vadd.f32 %v4532, %v4879
      %v4931 = vadd.f32 %v4533, %v4882
      %v4932 = vadd.f32 %v4534, %v4884
      %v4933 = vadd.f32 %v4535, %v4887
      %v4934 = vadd.f32 %v4536, %v4889
      %v4935 = vadd.f32 %v4537, %v4892
      %v4936 = vadd.f32 %v4538, %v4894
      %v4937 = vadd.f32 %v4539, %v4897
      %v4938 = vadd.f32 %v4540, %v4899
      %v4939 = vadd.f32 %v4541, %v4902
      %v4940 = vadd.f32 %v4542, %v4904
      %v4941 = vadd.f32 %v4543, %v4907
      %v4942 = vadd.f32 %v4544, %v4909
      %v4943 = vpack.c.bf16 %v4911, %v4911
      %v4944 = vpack.c.bf16 %v4912, %v4912
      %v4945 = vpack.c.bf16 %v4913, %v4913
      %v4946 = vpack.c.bf16 %v4914, %v4914
      %v4947 = vpack.c.bf16 %v4915, %v4915
      %v4948 = vpack.c.bf16 %v4916, %v4916
      %v4949 = vpack.c.bf16 %v4917, %v4917
      %v4950 = vpack.c.bf16 %v4918, %v4918
      %v4951 = vpack.c.bf16 %v4919, %v4919
      %v4952 = vpack.c.bf16 %v4920, %v4920
      %v4953 = vpack.c.bf16 %v4921, %v4921
      %v4954 = vpack.c.bf16 %v4922, %v4922
      %v4955 = vpack.c.bf16 %v4923, %v4923
      %v4956 = vpack.c.bf16 %v4924, %v4924
      %v4957 = vpack.c.bf16 %v4925, %v4925
      %v4958 = vpack.c.bf16 %v4926, %v4926
      %v4959 = vpack.c.bf16 %v4927, %v4927
      %v4960 = vpack.c.bf16 %v4928, %v4928
      %v4961 = vpack.c.bf16 %v4929, %v4929
      %v4962 = vpack.c.bf16 %v4930, %v4930
      %v4963 = vpack.c.bf16 %v4931, %v4931
      %v4964 = vpack.c.bf16 %v4932, %v4932
      %v4965 = vpack.c.bf16 %v4933, %v4933
      %v4966 = vpack.c.bf16 %v4934, %v4934
      %v4967 = vpack.c.bf16 %v4935, %v4935
      %v4968 = vpack.c.bf16 %v4936, %v4936
      %v4969 = vpack.c.bf16 %v4937, %v4937
      %v4970 = vpack.c.bf16 %v4938, %v4938
      %v4971 = vpack.c.bf16 %v4939, %v4939
      %v4972 = vpack.c.bf16 %v4940, %v4940
      %v4973 = vpack.c.bf16 %v4941, %v4941
      %v4974 = vpack.c.bf16 %v4942, %v4942
      %4975 = vst.msk [vmem:[%s264] sm:$0xf] %vm474, %v4943
      %4976 = vst.msk [vmem:[%s264 + $0x4] sm:$0xf] %vm474, %v4944
      %4977 = vst.msk [vmem:[%s264 + $0x8] sm:$0xf] %vm474, %v4945
      %4978 = vst.msk [vmem:[%s264 + $0xc] sm:$0xf] %vm474, %v4946
      %4979 = vst.msk [vmem:[%s264 + $0x10] sm:$0xf] %vm474, %v4947
      %4980 = vst.msk [vmem:[%s264 + $0x14] sm:$0xf] %vm474, %v4948
      %4981 = vst.msk [vmem:[%s264 + $0x18] sm:$0xf] %vm474, %v4949
      %4982 = vst.msk [vmem:[%s264 + $0x1c] sm:$0xf] %vm474, %v4950
      %4983 = vst.msk [vmem:[%s264 + $0x20] sm:$0xf] %vm474, %v4951
      %4984 = vst.msk [vmem:[%s264 + $0x24] sm:$0xf] %vm474, %v4952
      %4985 = vst.msk [vmem:[%s264 + $0x28] sm:$0xf] %vm474, %v4953
      %4986 = vst.msk [vmem:[%s264 + $0x2c] sm:$0xf] %vm474, %v4954
      %4987 = vst.msk [vmem:[%s264 + $0x30] sm:$0xf] %vm474, %v4955
      %4988 = vst.msk [vmem:[%s264 + $0x34] sm:$0xf] %vm474, %v4956
      %4989 = vst.msk [vmem:[%s264 + $0x38] sm:$0xf] %vm474, %v4957
      %4990 = vst.msk [vmem:[%s264 + $0x3c] sm:$0xf] %vm474, %v4958
      %4991 = vst.msk [vmem:[%s264 + $0x40] sm:$0xf] %vm474, %v4959
      %4992 = vst.msk [vmem:[%s264 + $0x44] sm:$0xf] %vm474, %v4960
      %4993 = vst.msk [vmem:[%s264 + $0x48] sm:$0xf] %vm474, %v4961
      %4994 = vst.msk [vmem:[%s264 + $0x4c] sm:$0xf] %vm474, %v4962
      %4995 = vst.msk [vmem:[%s264 + $0x50] sm:$0xf] %vm474, %v4963
      %4996 = vst.msk [vmem:[%s264 + $0x54] sm:$0xf] %vm474, %v4964
      %4997 = vst.msk [vmem:[%s264 + $0x58] sm:$0xf] %vm474, %v4965
      %4998 = vst.msk [vmem:[%s264 + $0x5c] sm:$0xf] %vm474, %v4966
      %4999 = vst.msk [vmem:[%s264 + $0x60] sm:$0xf] %vm474, %v4967
      %5000 = vst.msk [vmem:[%s264 + $0x64] sm:$0xf] %vm474, %v4968
      %5001 = vst.msk [vmem:[%s264 + $0x68] sm:$0xf] %vm474, %v4969
      %5002 = vst.msk [vmem:[%s264 + $0x6c] sm:$0xf] %vm474, %v4970
      %5003 = vst.msk [vmem:[%s264 + $0x70] sm:$0xf] %vm474, %v4971
      %5004 = vst.msk [vmem:[%s264 + $0x74] sm:$0xf] %vm474, %v4972
      %5005 = vst.msk [vmem:[%s264 + $0x78] sm:$0xf] %vm474, %v4973
      %5006 = vst.msk [vmem:[%s264 + $0x7c] sm:$0xf] %vm474, %v4974
      %v5007 = vsel %vm1519, %v4911, 0.0
      %v5008 = vsel %vm1519, %v4912, 0.0
      %v5009 = vadd.f32 %v5007, %v5008
      %v5010 = vsel %vm1519, %v4913, 0.0
      %v5011 = vadd.f32 %v5009, %v5010
      %v5012 = vsel %vm1519, %v4914, 0.0
      %v5013 = vadd.f32 %v5011, %v5012
      %v5014 = vsel %vm1519, %v4915, 0.0
      %v5015 = vadd.f32 %v5013, %v5014
      %v5016 = vsel %vm1519, %v4916, 0.0
      %v5017 = vadd.f32 %v5015, %v5016
      %v5018 = vsel %vm1519, %v4917, 0.0
      %v5019 = vadd.f32 %v5017, %v5018
      %v5020 = vsel %vm1519, %v4918, 0.0
      %v5021 = vadd.f32 %v5019, %v5020
      %v5022 = vsel %vm1519, %v4919, 0.0
      %v5023 = vadd.f32 %v5021, %v5022
      %v5024 = vsel %vm1519, %v4920, 0.0
      %v5025 = vadd.f32 %v5023, %v5024
      %v5026 = vsel %vm1519, %v4921, 0.0
      %v5027 = vadd.f32 %v5025, %v5026
      %v5028 = vsel %vm1519, %v4922, 0.0
      %v5029 = vadd.f32 %v5027, %v5028
      %v5030 = vsel %vm1519, %v4923, 0.0
      %v5031 = vadd.f32 %v5029, %v5030
      %v5032 = vsel %vm1519, %v4924, 0.0
      %v5033 = vadd.f32 %v5031, %v5032
      %v5034 = vsel %vm1519, %v4925, 0.0
      %v5035 = vadd.f32 %v5033, %v5034
      %v5036 = vsel %vm1519, %v4926, 0.0
      %v5037 = vadd.f32 %v5035, %v5036
      %v5038 = vsel %vm1519, %v4927, 0.0
      %v5039 = vadd.f32 %v5037, %v5038
      %v5040 = vsel %vm1519, %v4928, 0.0
      %v5041 = vadd.f32 %v5039, %v5040
      %v5042 = vsel %vm1519, %v4929, 0.0
      %v5043 = vadd.f32 %v5041, %v5042
      %v5044 = vsel %vm1519, %v4930, 0.0
      %v5045 = vadd.f32 %v5043, %v5044
      %v5046 = vsel %vm1519, %v4931, 0.0
      %v5047 = vadd.f32 %v5045, %v5046
      %v5048 = vsel %vm1519, %v4932, 0.0
      %v5049 = vadd.f32 %v5047, %v5048
      %v5050 = vsel %vm1519, %v4933, 0.0
      %v5051 = vadd.f32 %v5049, %v5050
      %v5052 = vsel %vm1519, %v4934, 0.0
      %v5053 = vadd.f32 %v5051, %v5052
      %v5054 = vsel %vm1519, %v4935, 0.0
      %v5055 = vadd.f32 %v5053, %v5054
      %v5056 = vsel %vm1519, %v4936, 0.0
      %v5057 = vadd.f32 %v5055, %v5056
      %v5058 = vsel %vm1519, %v4937, 0.0
      %v5059 = vadd.f32 %v5057, %v5058
      %v5060 = vsel %vm1519, %v4938, 0.0
      %v5061 = vadd.f32 %v5059, %v5060
      %v5062 = vsel %vm1519, %v4939, 0.0
      %v5063 = vadd.f32 %v5061, %v5062
      %v5064 = vsel %vm1519, %v4940, 0.0
      %v5065 = vadd.f32 %v5063, %v5064
      %v5066 = vsel %vm1519, %v4941, 0.0
      %v5067 = vadd.f32 %v5065, %v5066
      %v5068 = vsel %vm1519, %v4942, 0.0
      %v5069 = vadd.f32 %v5067, %v5068
      %v5070 = vrot.slane %v5069, 4
      %v5071 = vadd.f32 %v5069, %v5070
      %v5072 = vrot.slane %v5071, 2
      %v5073 = vadd.f32 %v5071, %v5072
      %v5074 = vrot.slane %v5073, 1
      %v5075 = vadd.f32 %v5073, %v5074
      %5076 = vst.msk [vmem:[%s268] sm:$0xff] %vm1519, %v5075
      %v5077 = vmul.f32 %v4911, %v4911
      %v5078 = vmul.f32 %v4912, %v4912
      %v5079 = vmul.f32 %v4913, %v4913
      %v5080 = vmul.f32 %v4914, %v4914
      %v5081 = vmul.f32 %v4915, %v4915
      %v5082 = vmul.f32 %v4916, %v4916
      %v5083 = vmul.f32 %v4917, %v4917
      %v5084 = vmul.f32 %v4918, %v4918
      %v5085 = vmul.f32 %v4919, %v4919
      %v5086 = vmul.f32 %v4920, %v4920
      %v5087 = vmul.f32 %v4921, %v4921
      %v5088 = vmul.f32 %v4922, %v4922
      %v5089 = vmul.f32 %v4923, %v4923
      %v5090 = vmul.f32 %v4924, %v4924
      %v5091 = vmul.f32 %v4925, %v4925
      %v5092 = vmul.f32 %v4926, %v4926
      %v5093 = vmul.f32 %v4927, %v4927
      %v5094 = vmul.f32 %v4928, %v4928
      %v5095 = vmul.f32 %v4929, %v4929
      %v5096 = vmul.f32 %v4930, %v4930
      %v5097 = vmul.f32 %v4931, %v4931
      %v5098 = vmul.f32 %v4932, %v4932
      %v5099 = vmul.f32 %v4933, %v4933
      %v5100 = vmul.f32 %v4934, %v4934
      %v5101 = vmul.f32 %v4935, %v4935
      %v5102 = vmul.f32 %v4936, %v4936
      %v5103 = vmul.f32 %v4937, %v4937
      %v5104 = vmul.f32 %v4938, %v4938
      %v5105 = vmul.f32 %v4939, %v4939
      %v5106 = vmul.f32 %v4940, %v4940
      %v5107 = vmul.f32 %v4941, %v4941
      %v5108 = vmul.f32 %v4942, %v4942
      %v5109 = vsel %vm1519, %v5077, 0.0
      %v5110 = vsel %vm1519, %v5078, 0.0
      %v5111 = vadd.f32 %v5109, %v5110
      %v5112 = vsel %vm1519, %v5079, 0.0
      %v5113 = vadd.f32 %v5111, %v5112
      %v5114 = vsel %vm1519, %v5080, 0.0
      %v5115 = vadd.f32 %v5113, %v5114
      %v5116 = vsel %vm1519, %v5081, 0.0
      %v5117 = vadd.f32 %v5115, %v5116
      %v5118 = vsel %vm1519, %v5082, 0.0
      %v5119 = vadd.f32 %v5117, %v5118
      %v5120 = vsel %vm1519, %v5083, 0.0
      %v5121 = vadd.f32 %v5119, %v5120
      %v5122 = vsel %vm1519, %v5084, 0.0
      %v5123 = vadd.f32 %v5121, %v5122
      %v5124 = vsel %vm1519, %v5085, 0.0
      %v5125 = vadd.f32 %v5123, %v5124
      %v5126 = vsel %vm1519, %v5086, 0.0
      %v5127 = vadd.f32 %v5125, %v5126
      %v5128 = vsel %vm1519, %v5087, 0.0
      %v5129 = vadd.f32 %v5127, %v5128
      %v5130 = vsel %vm1519, %v5088, 0.0
      %v5131 = vadd.f32 %v5129, %v5130
      %v5132 = vsel %vm1519, %v5089, 0.0
      %v5133 = vadd.f32 %v5131, %v5132
      %v5134 = vsel %vm1519, %v5090, 0.0
      %v5135 = vadd.f32 %v5133, %v5134
      %v5136 = vsel %vm1519, %v5091, 0.0
      %v5137 = vadd.f32 %v5135, %v5136
      %v5138 = vsel %vm1519, %v5092, 0.0
      %v5139 = vadd.f32 %v5137, %v5138
      %v5140 = vsel %vm1519, %v5093, 0.0
      %v5141 = vadd.f32 %v5139, %v5140
      %v5142 = vsel %vm1519, %v5094, 0.0
      %v5143 = vadd.f32 %v5141, %v5142
      %v5144 = vsel %vm1519, %v5095, 0.0
      %v5145 = vadd.f32 %v5143, %v5144
      %v5146 = vsel %vm1519, %v5096, 0.0
      %v5147 = vadd.f32 %v5145, %v5146
      %v5148 = vsel %vm1519, %v5097, 0.0
      %v5149 = vadd.f32 %v5147, %v5148
      %v5150 = vsel %vm1519, %v5098, 0.0
      %v5151 = vadd.f32 %v5149, %v5150
      %v5152 = vsel %vm1519, %v5099, 0.0
      %v5153 = vadd.f32 %v5151, %v5152
      %v5154 = vsel %vm1519, %v5100, 0.0
      %v5155 = vadd.f32 %v5153, %v5154
      %v5156 = vsel %vm1519, %v5101, 0.0
      %v5157 = vadd.f32 %v5155, %v5156
      %v5158 = vsel %vm1519, %v5102, 0.0
      %v5159 = vadd.f32 %v5157, %v5158
      %v5160 = vsel %vm1519, %v5103, 0.0
      %v5161 = vadd.f32 %v5159, %v5160
      %v5162 = vsel %vm1519, %v5104, 0.0
      %v5163 = vadd.f32 %v5161, %v5162
      %v5164 = vsel %vm1519, %v5105, 0.0
      %v5165 = vadd.f32 %v5163, %v5164
      %v5166 = vsel %vm1519, %v5106, 0.0
      %v5167 = vadd.f32 %v5165, %v5166
      %v5168 = vsel %vm1519, %v5107, 0.0
      %v5169 = vadd.f32 %v5167, %v5168
      %v5170 = vsel %vm1519, %v5108, 0.0
      %v5171 = vadd.f32 %v5169, %v5170
      %v5172 = vrot.slane %v5171, 4
      %v5173 = vadd.f32 %v5171, %v5172
      %v5174 = vrot.slane %v5173, 2
      %v5175 = vadd.f32 %v5173, %v5174
      %v5176 = vrot.slane %v5175, 1
      %v5177 = vadd.f32 %v5175, %v5176
      %5178 = vst.msk [vmem:[%s272] sm:$0xff] %vm1519, %v5177
      %p5179 = scmp.lt.s32.totalorder %s18, 1
      %s5180 = scalar_select %p5179, %s18, 1
      %s5181 = smul.addr %s5180, 32
      %s5182 = smul.addr %s5181, 4
      %s5183 = scalar_lea.vmem %s4, %s5182
      %p5184 = scmp.lt.s32.totalorder %s18, 1
      %s5185 = scalar_select %p5184, %s18, 1
      %s5186 = smul.addr %s5185, 8
      %s5187 = scalar_lea.vmem %s5, %s5186
      %p5188 = scmp.lt.s32.totalorder %s18, 1
      %s5189 = scalar_select %p5188, %s18, 1
      %s5190 = smul.addr %s5189, 8
      %s5191 = scalar_lea.vmem %s6, %s5190
      // Predicated region
      $region37: #{_lambda_.5} parent=35 // pred_check
        %p5192 = pneg %p125
      $region38: #{_lambda_.5} parent=35 // pred_check_branch
        %5194 = sbr.rel (%p5192) target = $region40
      $region39: #{_lambda_.5} parent=35 // pred_region
        _
      $region40: #{_lambda_.5} parent=35 // pred_fallthru
        _
      // Predicated region
      $region41: #{_lambda_.5} parent=35 // pred_check
        %p5195 = pneg %p151
      $region42: #{_lambda_.5} parent=35 // pred_check_branch
        %5197 = sbr.rel (%p5195) target = $region44
      $region43: #{_lambda_.5} parent=35 // pred_region
        _
      $region44: #{_lambda_.5} parent=35 // pred_fallthru
        _
      // Predicated region
      $region45: #{_lambda_.5} parent=35 // pred_check
        %p5198 = pneg %p177
      $region46: #{_lambda_.5} parent=35 // pred_check_branch
        %5200 = sbr.rel (%p5198) target = $region48
      $region47: #{_lambda_.5} parent=35 // pred_region
        _
      $region48: #{_lambda_.5} parent=35 // pred_fallthru
        _
    $region36: #{_lambda_.5} parent=5 // pred_fallthru
      _
    %p5201 = scmp.le.s32.totalorder 2, %s13
    // Predicated region
    $region49: #{_lambda_.5} parent=5 // pred_check
      %p5202 = pneg %p5201
    $region50: #{_lambda_.5} parent=5 // pred_check_branch
      %5204 = sbr.rel (%p5202) target = $region52
    $region51: #{_lambda_.5} parent=5 // pred_region
      %s5205 = ssub.s32 %s13, 2
      // Predicated region
      $region53: #{_lambda_.5} parent=51 // pred_check
        %p5206 = pneg %p131
      $region54: #{_lambda_.5} parent=51 // pred_check_branch
        %5208 = sbr.rel (%p5206) target = $region56
      $region55: #{_lambda_.5} parent=51 // pred_region
        %p5209 = scmp.lt.s32.totalorder %s19, 1
        %s5210 = scalar_select %p5209, %s19, 1
        %s5211 = smul.addr %s5210, 32
        %s5212 = smul.addr %s5211, 4
        %s5213 = scalar_lea.vmem %s4, %s5212
      $region56: #{_lambda_.5} parent=51 // pred_fallthru
        _
      // Predicated region
      $region57: #{_lambda_.5} parent=51 // pred_check
        %p5214 = pneg %p157
      $region58: #{_lambda_.5} parent=51 // pred_check_branch
        %5216 = sbr.rel (%p5214) target = $region60
      $region59: #{_lambda_.5} parent=51 // pred_region
        %p5217 = scmp.lt.s32.totalorder %s19, 1
        %s5218 = scalar_select %p5217, %s19, 1
        %s5219 = smul.addr %s5218, 8
        %s5220 = scalar_lea.vmem %s5, %s5219
      $region60: #{_lambda_.5} parent=51 // pred_fallthru
        _
      // Predicated region
      $region61: #{_lambda_.5} parent=51 // pred_check
        %p5221 = pneg %p183
      $region62: #{_lambda_.5} parent=51 // pred_check_branch
        %5223 = sbr.rel (%p5221) target = $region64
      $region63: #{_lambda_.5} parent=51 // pred_region
        %p5224 = scmp.lt.s32.totalorder %s19, 1
        %s5225 = scalar_select %p5224, %s19, 1
        %s5226 = smul.addr %s5225, 8
        %s5227 = scalar_lea.vmem %s6, %s5226
      $region64: #{_lambda_.5} parent=51 // pred_fallthru
        _
    $region52: #{_lambda_.5} parent=5 // pred_fallthru
      _
  $region6: #{_lambda_.5} parent=0 // loop_footer
    %s17 = sadd.s32 1, %s13
  $region7: #{_lambda_.5} parent=0 // loop_footer_branch
    %12 = sbr.rel target = $region3
  $region8: #{_lambda_.5} parent=0 // loop_exit
    _

</llo_original>
